<compile_context>
chip_gen: v7x
topology: tpu7x:2x2x1
jax: 0.10.0
libtpu: 0.0.40
codegen_flags: <defaults>
</compile_context>

<pallas_src>
import functools

import jax
import jax.numpy as jnp
import numpy as np
from jax.experimental import pallas as pl
from jax.experimental.pallas import tpu as pltpu

LANE = 128
PREF_TILE = 256          # preferred row/K tile (multiple of 128); raise to 512 for big N


def _round_up(x, m):
    return ((x + m - 1) // m) * m


def _pad_dim(d):
    """Pad a logical dim to something tileable: 128 if small, else multiple of 256."""
    return LANE if d <= LANE else _round_up(d, PREF_TILE)


def _pick_tile(dim, pref=PREF_TILE):
    return pref if dim % pref == 0 else LANE


def _pad2(x, rows, cols):
    return jnp.pad(x, ((0, rows - x.shape[0]), (0, cols - x.shape[1])))


def _pad1(x, n):
    return jnp.pad(x, (0, n - x.shape[0]))


_COMPILER_PARAMS_3D = pltpu.CompilerParams(
    dimension_semantics=("parallel", "parallel", "arbitrary"),
    vmem_limit_bytes=32 * 1024 * 1024)


# ---------------------------------------------------------------------------
# Pallas kernels
# ---------------------------------------------------------------------------
def _matmul_kernel(x_ref, w_ref, o_ref, acc_ref):
    @pl.when(pl.program_id(2) == 0)
    def _():
        acc_ref[...] = jnp.zeros_like(acc_ref)

    acc_ref[...] += jnp.dot(x_ref[...], w_ref[...],
                            preferred_element_type=jnp.float32)

    @pl.when(pl.program_id(2) == pl.num_programs(2) - 1)
    def _():
        o_ref[...] = acc_ref[...].astype(o_ref.dtype)


def tiled_matmul(x, w):
    """C = X @ W with a (rows, cols, K) grid and an f32 VMEM accumulator."""
    m, k = x.shape
    k2, n = w.shape
    assert k == k2
    tm, tn, tk = _pick_tile(m), _pick_tile(n), _pick_tile(k)
    grid = (m // tm, n // tn, k // tk)
    return pl.pallas_call(
        _matmul_kernel,
        out_shape=jax.ShapeDtypeStruct((m, n), jnp.float32),
        grid_spec=pltpu.PrefetchScalarGridSpec(
            num_scalar_prefetch=0,
            grid=grid,
            in_specs=[pl.BlockSpec((tm, tk), lambda i, j, kk: (i, kk)),
                      pl.BlockSpec((tk, tn), lambda i, j, kk: (kk, j))],
            out_specs=pl.BlockSpec((tm, tn), lambda i, j, kk: (i, j)),
            scratch_shapes=[pltpu.VMEM((tm, tn), jnp.float32)]),
        compiler_params=_COMPILER_PARAMS_3D,
    )(x, w)


def _dual_adj_kernel(wts_ref, a_sp_ref, a_ft_ref, z_ref, o_ref, acc_ref):
    @pl.when(pl.program_id(2) == 0)
    def _():
        acc_ref[...] = jnp.zeros_like(acc_ref)

    # w_sp*(A_sp@Z) + w_ft*(A_ft@Z) == (w_sp*A_sp + w_ft*A_ft) @ Z
    # blend the adjacency tiles on the VPU -> a single MXU matmul per tile pair.
    a = (wts_ref[0, 0] * a_sp_ref[...].astype(jnp.float32)
         + wts_ref[0, 1] * a_ft_ref[...].astype(jnp.float32))
    acc_ref[...] += jnp.dot(a.astype(z_ref.dtype), z_ref[...],
                            preferred_element_type=jnp.float32)

    @pl.when(pl.program_id(2) == pl.num_programs(2) - 1)
    def _():
        o_ref[...] = acc_ref[...].astype(o_ref.dtype)


def fused_dual_adj(adj_sp, adj_ft, z, w_sp, w_ft):
    """out = w_sp * (A_sp @ Z) + w_ft * (A_ft @ Z), tiled, both graphs streamed once."""
    n = adj_sp.shape[0]
    d = z.shape[1]
    tm, tn, tk = _pick_tile(n), _pick_tile(d), _pick_tile(n)
    grid = (n // tm, d // tn, n // tk)
    wts = jnp.stack([w_sp.reshape(()), w_ft.reshape(())]).reshape(1, 2).astype(jnp.float32)
    return pl.pallas_call(
        _dual_adj_kernel,
        out_shape=jax.ShapeDtypeStruct((n, d), jnp.float32),
        grid_spec=pltpu.PrefetchScalarGridSpec(
            num_scalar_prefetch=0,
            grid=grid,
            in_specs=[pl.BlockSpec(memory_space=pltpu.MemorySpace.SMEM),   # [1,2] scalars
                      pl.BlockSpec((tm, tk), lambda i, j, kk: (i, kk)),
                      pl.BlockSpec((tm, tk), lambda i, j, kk: (i, kk)),
                      pl.BlockSpec((tk, tn), lambda i, j, kk: (kk, j))],
            out_specs=pl.BlockSpec((tm, tn), lambda i, j, kk: (i, j)),
            scratch_shapes=[pltpu.VMEM((tm, tn), jnp.float32)]),
        compiler_params=_COMPILER_PARAMS_3D,
    )(wts, adj_sp, adj_ft, z)


def _attn_heads_kernel(e1_ref, e2_ref, wo_ref, u_ref, wh1_ref, bh1_ref,
                       wh2_ref, bh2_ref,
                       comb_ref, alpha_ref, h1_ref, h2_ref):
    e1 = e1_ref[...]
    e2 = e2_ref[...]
    wo = wo_ref[...]
    u = u_ref[...]                                   # [1, Dp]
    v1 = jnp.tanh(jnp.dot(e1, wo, preferred_element_type=jnp.float32))
    v2 = jnp.tanh(jnp.dot(e2, wo, preferred_element_type=jnp.float32))
    # score = v @ u as VPU multiply + lane reduction (no width-1 MXU matmul)
    s1 = jnp.sum(v1 * u, axis=-1, keepdims=True) + 1e-6
    s2 = jnp.sum(v2 * u, axis=-1, keepdims=True) + 1e-6
    m = jnp.maximum(s1, s2)
    ex1 = jnp.exp(s1 - m)
    ex2 = jnp.exp(s2 - m)
    inv = pl.reciprocal(ex1 + ex2)                   # exact; approx=True also OK here
    a1 = ex1 * inv
    a2 = ex2 * inv
    comb_ref[...] = a1 * e1 + a2 * e2
    # alpha written into a lane-dense padded slab (col 0 = a1, col 1 = a2)
    lane = jax.lax.broadcasted_iota(jnp.int32, alpha_ref.shape, dimension=1)
    alpha_ref[...] = jnp.where(lane == 0, a1, 0.0) + jnp.where(lane == 1, a2, 0.0)
    # fused VAE heads: [mu | log_var] packed per modality -> one wide MXU matmul each
    h1_ref[...] = jnp.dot(e1, wh1_ref[...],
                          preferred_element_type=jnp.float32) + bh1_ref[...]
    h2_ref[...] = jnp.dot(e2, wh2_ref[...],
                          preferred_element_type=jnp.float32) + bh2_ref[...]


def attention_and_heads(e1, e2, wo, u_row, wh1, bh1, wh2, bh2):
    n, dp = e1.shape
    dh = wh1.shape[1]
    tm = _pick_tile(n)
    grid = (n // tm,)
    row_spec = pl.BlockSpec((tm, dp), lambda i: (i, 0))
    head_spec = pl.BlockSpec((tm, dh), lambda i: (i, 0))
    return pl.pallas_call(
        _attn_heads_kernel,
        out_shape=(jax.ShapeDtypeStruct((n, dp), jnp.float32),
                   jax.ShapeDtypeStruct((n, dp), jnp.float32),
                   jax.ShapeDtypeStruct((n, dh), jnp.float32),
                   jax.ShapeDtypeStruct((n, dh), jnp.float32)),
        grid_spec=pltpu.PrefetchScalarGridSpec(
            num_scalar_prefetch=0,
            grid=grid,
            in_specs=[row_spec, row_spec,
                      pl.BlockSpec((dp, dp), lambda i: (0, 0)),
                      pl.BlockSpec((1, dp), lambda i: (0, 0)),
                      pl.BlockSpec((dp, dh), lambda i: (0, 0)),
                      pl.BlockSpec((1, dh), lambda i: (0, 0)),
                      pl.BlockSpec((dp, dh), lambda i: (0, 0)),
                      pl.BlockSpec((1, dh), lambda i: (0, 0))],
            out_specs=(row_spec, row_spec, head_spec, head_spec)),
        compiler_params=pltpu.CompilerParams(
            dimension_semantics=("parallel",),
            vmem_limit_bytes=32 * 1024 * 1024),
    )(e1, e2, wo, u_row, wh1, bh1, wh2, bh2)


# ---------------------------------------------------------------------------
# Parameter construction (deterministic, xavier-uniform-style bounds)
# ---------------------------------------------------------------------------
def _xavier(key, shape):
    fan_in, fan_out = shape[0], shape[1]
    bound = np.sqrt(6.0 / (fan_in + fan_out))
    return jax.random.uniform(key, shape, jnp.float32, -bound, bound)


def init_params(key, din1, dout1, din2, dout2):
    ks = jax.random.split(key, 12)
    return {
        "enc1_w": _xavier(ks[0], (din1, dout1)),
        "enc2_w": _xavier(ks[1], (din2, dout2)),
        "dec1_w": _xavier(ks[2], (dout1, din1)),
        "dec2_w": _xavier(ks[3], (dout2, din2)),
        "w_omega": _xavier(ks[4], (dout1, dout2)),
        "u_omega": _xavier(ks[5], (dout2, 1)),
        "w_spatial_omics1": jnp.full((1,), 0.5, jnp.float32),
        "w_feature_omics1": jnp.full((1,), 0.5, jnp.float32),
        "w_spatial_omics2": jnp.full((1,), 0.5, jnp.float32),
        "w_feature_omics2": jnp.full((1,), 0.5, jnp.float32),
        "mu1_w": _xavier(ks[6], (dout1, dout1)),
        "mu1_b": jax.random.uniform(ks[7], (dout1,), jnp.float32, -0.1, 0.1),
        "lv1_w": _xavier(ks[8], (dout1, dout1)),
        "lv1_b": jax.random.uniform(ks[9], (dout1,), jnp.float32, -0.1, 0.1),
        "mu2_w": _xavier(ks[10], (dout2, dout2)),
        "mu2_b": jnp.zeros((dout2,), jnp.float32),
        "lv2_w": _xavier(ks[11], (dout2, dout2)),
        "lv2_b": jnp.zeros((dout2,), jnp.float32),
    }


# ---------------------------------------------------------------------------
# Encoder_overall forward
# ---------------------------------------------------------------------------
def encoder_overall_forward(params, feat1, feat2,
                            adj_sp1, adj_ft1, adj_sp2, adj_ft2,
                            adj_dtype=jnp.float32):
    n, din1 = feat1.shape
    din2 = feat2.shape[1]
    d1 = params["enc1_w"].shape[1]
    d2 = params["enc2_w"].shape[1]
    assert d1 == d2, "cross-modality attention requires equal latent dims"
    d = d1

    n_p = _pad_dim(n)
    din1_p = _pad_dim(din1)
    din2_p = _pad_dim(din2)
    d_p = _pad_dim(d)
    cd = adj_dtype      # streaming dtype for the big adjacency / feature operands

    # ---- pad & cast the big streamed operands --------------------------------
    f1_p = _pad2(feat1, n_p, din1_p).astype(cd)
    f2_p = _pad2(feat2, n_p, din2_p).astype(cd)
    asp1 = _pad2(adj_sp1, n_p, n_p).astype(cd)
    aft1 = _pad2(adj_ft1, n_p, n_p).astype(cd)
    asp2 = _pad2(adj_sp2, n_p, n_p).astype(cd)
    aft2 = _pad2(adj_ft2, n_p, n_p).astype(cd)

    # ---- pad parameters (plain-JAX glue; all tiny) ----------------------------
    enc1_w = _pad2(params["enc1_w"], din1_p, d_p)
    enc2_w = _pad2(params["enc2_w"], din2_p, d_p)
    dec1_w = _pad2(params["dec1_w"], d_p, din1_p)
    dec2_w = _pad2(params["dec2_w"], d_p, din2_p)
    wo_p = _pad2(params["w_omega"], d_p, d_p)
    u_row = _pad2(params["u_omega"].T, 1, d_p)                       # [1, Dp]
    wh1 = jnp.concatenate([_pad2(params["mu1_w"].T, d_p, d_p),
                           _pad2(params["lv1_w"].T, d_p, d_p)], axis=1)
    bh1 = jnp.concatenate([_pad1(params["mu1_b"], d_p),
                           _pad1(params["lv1_b"], d_p)]).reshape(1, 2 * d_p)
    wh2 = jnp.concatenate([_pad2(params["mu2_w"].T, d_p, d_p),
                           _pad2(params["lv2_w"].T, d_p, d_p)], axis=1)
    bh2 = jnp.concatenate([_pad1(params["mu2_b"], d_p),
                           _pad1(params["lv2_b"], d_p)]).reshape(1, 2 * d_p)
    # combined weights for the re-associated two-layer cross-recon chain
    wc1 = jnp.matmul(dec1_w, enc1_w, precision=jax.lax.Precision.HIGHEST)   # [Dp, Dp]
    wc2 = jnp.matmul(dec2_w, enc2_w, precision=jax.lax.Precision.HIGHEST)

    # ---- modality encoders: XW once, both graphs fused ------------------------
    xw1 = tiled_matmul(f1_p, enc1_w.astype(cd))                      # [Np, Dp] f32
    xw2 = tiled_matmul(f2_p, enc2_w.astype(cd))
    e1_p = fused_dual_adj(asp1, aft1, xw1.astype(cd),
                          params["w_spatial_omics1"], params["w_feature_omics1"])
    e2_p = fused_dual_adj(asp2, aft2, xw2.astype(cd),
                          params["w_spatial_omics2"], params["w_feature_omics2"])

    # ---- attention + all four VAE heads in one kernel -------------------------
    comb_p, alpha_p, heads1, heads2 = attention_and_heads(
        e1_p, e2_p, wo_p, u_row, wh1, bh1, wh2, bh2)

    # ---- decoder / cross-modality reconstruction ------------------------------
    # One pass over adj_spatial_omics1 serves both
    #   recon_omics1     = A1 @ (comb @ W_dec1)
    #   cross hop 1      = A1 @ (e2 @ (W_dec1 @ W_enc1))   (re-associated chain)
    # via wide RHS  [comb | e2] @ blockdiag(W_dec1, W_dec1@W_enc1).
    xcat1 = jnp.concatenate([comb_p, e2_p], axis=1)                  # [Np, 2Dp]
    wblk1 = jnp.concatenate(
        [jnp.concatenate([dec1_w, jnp.zeros((d_p, d_p), jnp.float32)], axis=1),
         jnp.concatenate([jnp.zeros((d_p, din1_p), jnp.float32), wc1], axis=1)],
        axis=0)                                                      # [2Dp, DIN1p+Dp]
    z1 = tiled_matmul(xcat1.astype(cd), wblk1.astype(cd))
    r1 = tiled_matmul(asp1, z1.astype(cd))                           # [Np, DIN1p+Dp]
    recon1_p = r1[:, :din1_p]
    hop1 = r1[:, din1_p:]                                            # [Np, Dp]
    cross_o2_p = tiled_matmul(asp1, hop1.astype(cd))                 # omics2 across recon

    xcat2 = jnp.concatenate([comb_p, e1_p], axis=1)
    wblk2 = jnp.concatenate(
        [jnp.concatenate([dec2_w, jnp.zeros((d_p, d_p), jnp.float32)], axis=1),
         jnp.concatenate([jnp.zeros((d_p, din2_p), jnp.float32), wc2], axis=1)],
        axis=0)
    z2 = tiled_matmul(xcat2.astype(cd), wblk2.astype(cd))
    r2 = tiled_matmul(asp2, z2.astype(cd))
    recon2_p = r2[:, :din2_p]
    hop2 = r2[:, din2_p:]
    cross_o1_p = tiled_matmul(asp2, hop2.astype(cd))                 # omics1 across recon

    # ---- strip padding ---------------------------------------------------------
    return {
        "emb_latent_omics1": e1_p[:n, :d],
        "emb_latent_omics2": e2_p[:n, :d],
        "emb_latent_combined": comb_p[:n, :d],
        "emb_recon_omics1": recon1_p[:n, :din1],
        "emb_recon_omics2": recon2_p[:n, :din2],
        "emb_latent_omics1_across_recon": cross_o1_p[:n, :d],
        "emb_latent_omics2_across_recon": cross_o2_p[:n, :d],
        "mu_omics1": heads1[:n, :d],
        "log_var_omics1": heads1[:n, d_p:d_p + d],
        "mu_omics2": heads2[:n, :d],
        "log_var_omics2": heads2[:n, d_p:d_p + d],
        "alpha": alpha_p[:n, :2],
    }


# ---------------------------------------------------------------------------
# Pure-JAX reference (literal PyTorch op ordering) for correctness checking
# ---------------------------------------------------------------------------
def reference_forward(params, feat1, feat2, adj_sp1, adj_ft1, adj_sp2, adj_ft2):
    mm = functools.partial(jnp.matmul, precision=jax.lax.Precision.HIGHEST)

    def gcn(f, w, a):
        return mm(a, mm(f, w))

    e1 = (params["w_spatial_omics1"] * gcn(feat1, params["enc1_w"], adj_sp1)
          + params["w_feature_omics1"] * gcn(feat1, params["enc1_w"], adj_ft1))
    e2 = (params["w_spatial_omics2"] * gcn(feat2, params["enc2_w"], adj_sp2)
          + params["w_feature_omics2"] * gcn(feat2, params["enc2_w"], adj_ft2))
    emb = jnp.stack([e1, e2], axis=1)                                # [N, 2, D]
    v = jnp.tanh(mm(emb, params["w_omega"]))
    vu = jnp.squeeze(mm(v, params["u_omega"]), -1) + 1e-6            # [N, 2]
    alpha = jax.nn.softmax(vu, axis=1)
    comb = jnp.einsum("nmd,nm->nd", emb, alpha,
                      precision=jax.lax.Precision.HIGHEST)
    return {
        "emb_latent_omics1": e1,
        "emb_latent_omics2": e2,
        "emb_latent_combined": comb,
        "alpha": alpha,
        "mu_omics1": mm(e1, params["mu1_w"].T) + params["mu1_b"],
        "log_var_omics1": mm(e1, params["lv1_w"].T) + params["lv1_b"],
        "mu_omics2": mm(e2, params["mu2_w"].T) + params["mu2_b"],
        "log_var_omics2": mm(e2, params["lv2_w"].T) + params["lv2_b"],
        "emb_recon_omics1": gcn(comb, params["dec1_w"], adj_sp1),
        "emb_recon_omics2": gcn(comb, params["dec2_w"], adj_sp2),
        "emb_latent_omics1_across_recon": gcn(
            gcn(e1, params["dec2_w"], adj_sp2), params["enc2_w"], adj_sp2),
        "emb_latent_omics2_across_recon": gcn(
            gcn(e2, params["dec1_w"], adj_sp1), params["enc1_w"], adj_sp1),
    }


if __name__ == "__main__":
    # spots x genes (small, non-multiple-of-128 shapes to exercise the padding path)
    N, DIN1, DIN2, DOUT = 300, 96, 48, 16

    key = jax.random.PRNGKey(0)
    k_param, k_f1, k_f2, k_a1, k_a2, k_a3, k_a4 = jax.random.split(key, 7)

    params = init_params(k_param, DIN1, DOUT, DIN2, DOUT)

    feat1 = jax.random.normal(k_f1, (N, DIN1), jnp.float32)
    feat2 = jax.random.normal(k_f2, (N, DIN2), jnp.float32)

    def make_adj(k):
        a = jax.random.uniform(k, (N, N), jnp.float32)
        return a / jnp.sum(a, axis=1, keepdims=True)      # row-normalized dense adj

    adj_sp1 = make_adj(k_a1)
    adj_ft1 = make_adj(k_a2)
    adj_sp2 = make_adj(k_a3)
    adj_ft2 = make_adj(k_a4)

    fwd = jax.jit(encoder_overall_forward, static_argnames=("adj_dtype",))

    # full-precision path, checked against the literal reference
    results = fwd(params, feat1, feat2, adj_sp1, adj_ft1, adj_sp2, adj_ft2,
                  adj_dtype=jnp.float32)
    jax.block_until_ready(results)

    ref = reference_forward(params, feat1, feat2, adj_sp1, adj_ft1, adj_sp2, adj_ft2)
    for name, val in ref.items():
        assert results[name].shape == val.shape, name
        np.testing.assert_allclose(np.asarray(results[name]), np.asarray(val),
                                   rtol=1e-3, atol=1e-3, err_msg=name)

    # bf16-streamed adjacency/feature path (halves HBM bytes on v6e/v7x); looser
    # tolerance because the big operands are quantized to bf16 (accumulation stays f32).
    results_bf16 = fwd(params, feat1, feat2, adj_sp1, adj_ft1, adj_sp2, adj_ft2,
                       adj_dtype=jnp.bfloat16)
    jax.block_until_ready(results_bf16)
    np.testing.assert_allclose(np.asarray(results_bf16["emb_latent_omics1"]),
                               np.asarray(ref["emb_latent_omics1"]),
                               rtol=5e-2, atol=5e-2)

    print("KERNEL_OK")
</pallas_src>

<mosaic_0001>
module attributes {stable_mosaic.version = 11 : i64} {
  func.func @_dual_adj_kernel(%arg0: i32, %arg1: i32, %arg2: i32, %arg3: memref<1x2xf32, #tpu.memory_space<smem>>, %arg4: memref<256x256xf32, #tpu.memory_space<vmem>>, %arg5: memref<256x256xf32, #tpu.memory_space<vmem>>, %arg6: memref<256x128xf32, #tpu.memory_space<vmem>>, %arg7: memref<256x128xf32, #tpu.memory_space<vmem>>, %arg8: memref<256x128xf32, #tpu.memory_space<vmem>>) attributes {dimension_semantics = [#tpu.dimension_semantics<parallel>, #tpu.dimension_semantics<parallel>, #tpu.dimension_semantics<arbitrary>], iteration_bounds = array<i64: 2, 1, 2>, scalar_prefetch = 0 : i64, scratch_operands = 1 : i64, tpu.core_type = #tpu.core_type<tc>, window_params = [{transform_indices = @transform_0, window_bounds = array<i64: 1, 2>}, {transform_indices = @transform_1, window_bounds = array<i64: 256, 256>}, {transform_indices = @transform_2, window_bounds = array<i64: 256, 256>}, {transform_indices = @transform_3, window_bounds = array<i64: 256, 128>}, {transform_indices = @transform_4, window_bounds = array<i64: 256, 128>}]} {
    %c0_i32 = arith.constant 0 : i32
    %0 = arith.cmpi eq, %arg2, %c0_i32 : i32
    %1 = arith.extui %0 : i1 to i32
    %c0_i32_0 = arith.constant 0 : i32
    %2 = arith.cmpi ne, %1, %c0_i32_0 : i32
    scf.if %2 {
      %cst_14 = arith.constant 0.000000e+00 : f32
      %20 = vector.broadcast %cst_14 : f32 to vector<256x128xf32>
      %c0_15 = arith.constant 0 : index
      %c0_16 = arith.constant 0 : index
      %21 = vector.load %arg8[%c0_15, %c0_16] : memref<256x128xf32, #tpu.memory_space<vmem>>, vector<256x128xf32>
      tpu.vector_store %arg8[%c0_15, %c0_16], %20 {strides = array<i32>} : memref<256x128xf32, #tpu.memory_space<vmem>>, vector<256x128xf32>,
    } else {
    }
    %c0 = arith.constant 0 : index
    %c0_1 = arith.constant 0 : index
    %3 = memref.load %arg3[%c0, %c0_1] : memref<1x2xf32, #tpu.memory_space<smem>>
    %c0_2 = arith.constant 0 : index
    %c0_3 = arith.constant 0 : index
    %4 = vector.load %arg4[%c0_2, %c0_3] : memref<256x256xf32, #tpu.memory_space<vmem>>, vector<256x256xf32>
    %5 = vector.broadcast %3 : f32 to vector<256x256xf32>
    %6 = arith.mulf %5, %4 : vector<256x256xf32>
    %c0_4 = arith.constant 0 : index
    %c1 = arith.constant 1 : index
    %7 = memref.load %arg3[%c0_4, %c1] : memref<1x2xf32, #tpu.memory_space<smem>>
    %c0_5 = arith.constant 0 : index
    %c0_6 = arith.constant 0 : index
    %8 = vector.load %arg5[%c0_5, %c0_6] : memref<256x256xf32, #tpu.memory_space<vmem>>, vector<256x256xf32>
    %9 = vector.broadcast %7 : f32 to vector<256x256xf32>
    %10 = arith.mulf %9, %8 : vector<256x256xf32>
    %11 = arith.addf %6, %10 : vector<256x256xf32>
    %c0_7 = arith.constant 0 : index
    %c0_8 = arith.constant 0 : index
    %12 = vector.load %arg8[%c0_7, %c0_8] : memref<256x128xf32, #tpu.memory_space<vmem>>, vector<256x128xf32>
    %c0_9 = arith.constant 0 : index
    %c0_10 = arith.constant 0 : index
    %13 = vector.load %arg6[%c0_9, %c0_10] : memref<256x128xf32, #tpu.memory_space<vmem>>, vector<256x128xf32>
    %cst = arith.constant dense<0.000000e+00> : vector<256x128xf32>
    %14 = tpu.matmul %11, %13, %cst {dimension_numbers = #tpu.dot_dimension_numbers<[1], [0], [0], [1], [0, 0, 1, 1], [], []>} : vector<256x256xf32>, vector<256x128xf32>, vector<256x128xf32> -> vector<256x128xf32>
    %15 = arith.addf %12, %14 : vector<256x128xf32>
    %c0_11 = arith.constant 0 : index
    %c0_12 = arith.constant 0 : index
    %16 = vector.load %arg8[%c0_11, %c0_12] : memref<256x128xf32, #tpu.memory_space<vmem>>, vector<256x128xf32>
    tpu.vector_store %arg8[%c0_11, %c0_12], %15 {strides = array<i32>} : memref<256x128xf32, #tpu.memory_space<vmem>>, vector<256x128xf32>,
    %c1_i32 = arith.constant 1 : i32
    %17 = arith.cmpi eq, %arg2, %c1_i32 : i32
    %18 = arith.extui %17 : i1 to i32
    %c0_i32_13 = arith.constant 0 : i32
    %19 = arith.cmpi ne, %18, %c0_i32_13 : i32
    scf.if %19 {
      %c0_14 = arith.constant 0 : index
      %c0_15 = arith.constant 0 : index
      %20 = vector.load %arg8[%c0_14, %c0_15] : memref<256x128xf32, #tpu.memory_space<vmem>>, vector<256x128xf32>
      %c0_16 = arith.constant 0 : index
      %c0_17 = arith.constant 0 : index
      %21 = vector.load %arg7[%c0_16, %c0_17] : memref<256x128xf32, #tpu.memory_space<vmem>>, vector<256x128xf32>
      tpu.vector_store %arg7[%c0_16, %c0_17], %20 {strides = array<i32>} : memref<256x128xf32, #tpu.memory_space<vmem>>, vector<256x128xf32>,
    } else {
    }
    return
  }
  func.func @transform_0(%arg0: i32, %arg1: i32, %arg2: i32) -> (i32, i32) {
    %c0_i32 = arith.constant 0 : i32
    %c0_i32_0 = arith.constant 0 : i32
    %c0_i32_1 = arith.constant 0 : i32
    return %c0_i32, %c0_i32_0 : i32, i32
  }
  func.func @transform_1(%arg0: i32, %arg1: i32, %arg2: i32) -> (i32, i32) {
    %c0_i32 = arith.constant 0 : i32
    return %arg0, %arg2 : i32, i32
  }
  func.func @transform_2(%arg0: i32, %arg1: i32, %arg2: i32) -> (i32, i32) {
    %c0_i32 = arith.constant 0 : i32
    return %arg0, %arg2 : i32, i32
  }
  func.func @transform_3(%arg0: i32, %arg1: i32, %arg2: i32) -> (i32, i32) {
    %c0_i32 = arith.constant 0 : i32
    return %arg2, %arg1 : i32, i32
  }
  func.func @transform_4(%arg0: i32, %arg1: i32, %arg2: i32) -> (i32, i32) {
    %c0_i32 = arith.constant 0 : i32
    return %arg0, %arg1 : i32, i32
  }
}

module attributes {stable_mosaic.version = 11 : i64} {
  func.func @_matmul_kernel(%arg0: i32, %arg1: i32, %arg2: i32, %arg3: memref<256x128xf32, #tpu.memory_space<vmem>>, %arg4: memref<128x128xf32, #tpu.memory_space<vmem>>, %arg5: memref<256x128xf32, #tpu.memory_space<vmem>>, %arg6: memref<256x128xf32, #tpu.memory_space<vmem>>) attributes {dimension_semantics = [#tpu.dimension_semantics<parallel>, #tpu.dimension_semantics<parallel>, #tpu.dimension_semantics<arbitrary>], iteration_bounds = array<i64: 2, 1, 1>, scalar_prefetch = 0 : i64, scratch_operands = 1 : i64, tpu.core_type = #tpu.core_type<tc>, window_params = [{transform_indices = @transform_0, window_bounds = array<i64: 256, 128>}, {transform_indices = @transform_1, window_bounds = array<i64: 128, 128>}, {transform_indices = @transform_2, window_bounds = array<i64: 256, 128>}]} {
    %c0_i32 = arith.constant 0 : i32
    %0 = arith.cmpi eq, %arg2, %c0_i32 : i32
    %1 = arith.extui %0 : i1 to i32
    %c0_i32_0 = arith.constant 0 : i32
    %2 = arith.cmpi ne, %1, %c0_i32_0 : i32
    scf.if %2 {
      %cst_10 = arith.constant 0.000000e+00 : f32
      %12 = vector.broadcast %cst_10 : f32 to vector<256x128xf32>
      %c0_11 = arith.constant 0 : index
      %c0_12 = arith.constant 0 : index
      %13 = vector.load %arg6[%c0_11, %c0_12] : memref<256x128xf32, #tpu.memory_space<vmem>>, vector<256x128xf32>
      tpu.vector_store %arg6[%c0_11, %c0_12], %12 {strides = array<i32>} : memref<256x128xf32, #tpu.memory_space<vmem>>, vector<256x128xf32>,
    } else {
    }
    %c0 = arith.constant 0 : index
    %c0_1 = arith.constant 0 : index
    %3 = vector.load %arg6[%c0, %c0_1] : memref<256x128xf32, #tpu.memory_space<vmem>>, vector<256x128xf32>
    %c0_2 = arith.constant 0 : index
    %c0_3 = arith.constant 0 : index
    %4 = vector.load %arg3[%c0_2, %c0_3] : memref<256x128xf32, #tpu.memory_space<vmem>>, vector<256x128xf32>
    %c0_4 = arith.constant 0 : index
    %c0_5 = arith.constant 0 : index
    %5 = vector.load %arg4[%c0_4, %c0_5] : memref<128x128xf32, #tpu.memory_space<vmem>>, vector<128x128xf32>
    %cst = arith.constant dense<0.000000e+00> : vector<256x128xf32>
    %6 = tpu.matmul %4, %5, %cst {dimension_numbers = #tpu.dot_dimension_numbers<[1], [0], [0], [1], [0, 0, 1, 1], [], []>} : vector<256x128xf32>, vector<128x128xf32>, vector<256x128xf32> -> vector<256x128xf32>
    %7 = arith.addf %3, %6 : vector<256x128xf32>
    %c0_6 = arith.constant 0 : index
    %c0_7 = arith.constant 0 : index
    %8 = vector.load %arg6[%c0_6, %c0_7] : memref<256x128xf32, #tpu.memory_space<vmem>>, vector<256x128xf32>
    tpu.vector_store %arg6[%c0_6, %c0_7], %7 {strides = array<i32>} : memref<256x128xf32, #tpu.memory_space<vmem>>, vector<256x128xf32>,
    %c0_i32_8 = arith.constant 0 : i32
    %9 = arith.cmpi eq, %arg2, %c0_i32_8 : i32
    %10 = arith.extui %9 : i1 to i32
    %c0_i32_9 = arith.constant 0 : i32
    %11 = arith.cmpi ne, %10, %c0_i32_9 : i32
    scf.if %11 {
      %c0_10 = arith.constant 0 : index
      %c0_11 = arith.constant 0 : index
      %12 = vector.load %arg6[%c0_10, %c0_11] : memref<256x128xf32, #tpu.memory_space<vmem>>, vector<256x128xf32>
      %c0_12 = arith.constant 0 : index
      %c0_13 = arith.constant 0 : index
      %13 = vector.load %arg5[%c0_12, %c0_13] : memref<256x128xf32, #tpu.memory_space<vmem>>, vector<256x128xf32>
      tpu.vector_store %arg5[%c0_12, %c0_13], %12 {strides = array<i32>} : memref<256x128xf32, #tpu.memory_space<vmem>>, vector<256x128xf32>,
    } else {
    }
    return
  }
  func.func @transform_0(%arg0: i32, %arg1: i32, %arg2: i32) -> (i32, i32) {
    %c0_i32 = arith.constant 0 : i32
    return %arg0, %arg2 : i32, i32
  }
  func.func @transform_1(%arg0: i32, %arg1: i32, %arg2: i32) -> (i32, i32) {
    %c0_i32 = arith.constant 0 : i32
    return %arg2, %arg1 : i32, i32
  }
  func.func @transform_2(%arg0: i32, %arg1: i32, %arg2: i32) -> (i32, i32) {
    %c0_i32 = arith.constant 0 : i32
    return %arg0, %arg1 : i32, i32
  }
}

module attributes {stable_mosaic.version = 11 : i64} {
  func.func @_attn_heads_kernel(%arg0: i32, %arg1: memref<256x128xf32, #tpu.memory_space<vmem>>, %arg2: memref<256x128xf32, #tpu.memory_space<vmem>>, %arg3: memref<128x128xf32, #tpu.memory_space<vmem>>, %arg4: memref<1x128xf32, #tpu.memory_space<vmem>>, %arg5: memref<128x256xf32, #tpu.memory_space<vmem>>, %arg6: memref<1x256xf32, #tpu.memory_space<vmem>>, %arg7: memref<128x256xf32, #tpu.memory_space<vmem>>, %arg8: memref<1x256xf32, #tpu.memory_space<vmem>>, %arg9: memref<256x128xf32, #tpu.memory_space<vmem>>, %arg10: memref<256x128xf32, #tpu.memory_space<vmem>>, %arg11: memref<256x256xf32, #tpu.memory_space<vmem>>, %arg12: memref<256x256xf32, #tpu.memory_space<vmem>>) attributes {dimension_semantics = [#tpu.dimension_semantics<parallel>], iteration_bounds = array<i64: 2>, scalar_prefetch = 0 : i64, scratch_operands = 0 : i64, tpu.core_type = #tpu.core_type<tc>, window_params = [{transform_indices = @transform_0, window_bounds = array<i64: 256, 128>}, {transform_indices = @transform_1, window_bounds = array<i64: 256, 128>}, {pipeline_mode = #tpu.pipeline_mode<synchronous>, transform_indices = @transform_2, window_bounds = array<i64: 128, 128>}, {pipeline_mode = #tpu.pipeline_mode<synchronous>, transform_indices = @transform_3, window_bounds = array<i64: 1, 128>}, {pipeline_mode = #tpu.pipeline_mode<synchronous>, transform_indices = @transform_4, window_bounds = array<i64: 128, 256>}, {pipeline_mode = #tpu.pipeline_mode<synchronous>, transform_indices = @transform_5, window_bounds = array<i64: 1, 256>}, {pipeline_mode = #tpu.pipeline_mode<synchronous>, transform_indices = @transform_6, window_bounds = array<i64: 128, 256>}, {pipeline_mode = #tpu.pipeline_mode<synchronous>, transform_indices = @transform_7, window_bounds = array<i64: 1, 256>}, {transform_indices = @transform_8, window_bounds = array<i64: 256, 128>}, {transform_indices = @transform_9, window_bounds = array<i64: 256, 128>}, {transform_indices = @transform_10, window_bounds = array<i64: 256, 256>}, {transform_indices = @transform_11, window_bounds = array<i64: 256, 256>}]} {
    %c0 = arith.constant 0 : index
    %c0_0 = arith.constant 0 : index
    %0 = vector.load %arg1[%c0, %c0_0] : memref<256x128xf32, #tpu.memory_space<vmem>>, vector<256x128xf32>
    %c0_1 = arith.constant 0 : index
    %c0_2 = arith.constant 0 : index
    %1 = vector.load %arg2[%c0_1, %c0_2] : memref<256x128xf32, #tpu.memory_space<vmem>>, vector<256x128xf32>
    %c0_3 = arith.constant 0 : index
    %c0_4 = arith.constant 0 : index
    %2 = vector.load %arg3[%c0_3, %c0_4] : memref<128x128xf32, #tpu.memory_space<vmem>>, vector<128x128xf32>
    %c0_5 = arith.constant 0 : index
    %c0_6 = arith.constant 0 : index
    %3 = vector.load %arg4[%c0_5, %c0_6] : memref<1x128xf32, #tpu.memory_space<vmem>>, vector<1x128xf32>
    %cst = arith.constant dense<0.000000e+00> : vector<256x128xf32>
    %4 = tpu.matmul %0, %2, %cst {dimension_numbers = #tpu.dot_dimension_numbers<[1], [0], [0], [1], [0, 0, 1, 1], [], []>} : vector<256x128xf32>, vector<128x128xf32>, vector<256x128xf32> -> vector<256x128xf32>
    %5 = math.tanh %4 : vector<256x128xf32>
    %cst_7 = arith.constant dense<0.000000e+00> : vector<256x128xf32>
    %6 = tpu.matmul %1, %2, %cst_7 {dimension_numbers = #tpu.dot_dimension_numbers<[1], [0], [0], [1], [0, 0, 1, 1], [], []>} : vector<256x128xf32>, vector<128x128xf32>, vector<256x128xf32> -> vector<256x128xf32>
    %7 = math.tanh %6 : vector<256x128xf32>
    %8 = vector.broadcast %3 : vector<1x128xf32> to vector<256x128xf32>
    %9 = arith.mulf %5, %8 : vector<256x128xf32>
    %cst_8 = arith.constant dense<0.000000e+00> : vector<256xf32>
    %10 = vector.multi_reduction <add>, %9, %cst_8 [1] : vector<256x128xf32> to vector<256xf32>
    %11 = vector.shape_cast %10 : vector<256xf32> to vector<256x1xf32>
    %cst_9 = arith.constant 9.99999997E-7 : f32
    %12 = vector.broadcast %cst_9 : f32 to vector<256x1xf32>
    %13 = arith.addf %11, %12 : vector<256x1xf32>
    %14 = vector.broadcast %3 : vector<1x128xf32> to vector<256x128xf32>
    %15 = arith.mulf %7, %14 : vector<256x128xf32>
    %cst_10 = arith.constant dense<0.000000e+00> : vector<256xf32>
    %16 = vector.multi_reduction <add>, %15, %cst_10 [1] : vector<256x128xf32> to vector<256xf32>
    %17 = vector.shape_cast %16 : vector<256xf32> to vector<256x1xf32>
    %cst_11 = arith.constant 9.99999997E-7 : f32
    %18 = vector.broadcast %cst_11 : f32 to vector<256x1xf32>
    %19 = arith.addf %17, %18 : vector<256x1xf32>
    %20 = arith.maximumf %13, %19 : vector<256x1xf32>
    %21 = arith.subf %13, %20 : vector<256x1xf32>
    %22 = math.exp %21 : vector<256x1xf32>
    %23 = arith.subf %19, %20 : vector<256x1xf32>
    %24 = math.exp %23 : vector<256x1xf32>
    %25 = arith.addf %22, %24 : vector<256x1xf32>
    %26 = tpu.reciprocal %25 : vector<256x1xf32> -> vector<256x1xf32>
    %27 = arith.mulf %22, %26 : vector<256x1xf32>
    %28 = arith.mulf %24, %26 : vector<256x1xf32>
    %29 = vector.broadcast %27 : vector<256x1xf32> to vector<256x128xf32>
    %30 = arith.mulf %29, %0 : vector<256x128xf32>
    %31 = vector.broadcast %28 : vector<256x1xf32> to vector<256x128xf32>
    %32 = arith.mulf %31, %1 : vector<256x128xf32>
    %33 = arith.addf %30, %32 : vector<256x128xf32>
    %c0_12 = arith.constant 0 : index
    %c0_13 = arith.constant 0 : index
    %34 = vector.load %arg9[%c0_12, %c0_13] : memref<256x128xf32, #tpu.memory_space<vmem>>, vector<256x128xf32>
    tpu.vector_store %arg9[%c0_12, %c0_13], %33 {strides = array<i32>} : memref<256x128xf32, #tpu.memory_space<vmem>>, vector<256x128xf32>,
    %35 = tpu.iota {dimensions = array<i32: 1>} : vector<256x128xi32>
    %c0_i32 = arith.constant 0 : i32
    %36 = vector.broadcast %c0_i32 : i32 to vector<256x128xi32>
    %37 = arith.cmpi eq, %35, %36 : vector<256x128xi32>
    %cst_14 = arith.constant 0.000000e+00 : f32
    %38 = vector.shape_cast %27 : vector<256x1xf32> to vector<256x1xf32>
    %39 = vector.broadcast %38 : vector<256x1xf32> to vector<256x128xf32>
    %40 = vector.broadcast %cst_14 : f32 to vector<256x128xf32>
    %41 = arith.select %37, %39, %40 : vector<256x128xi1>, vector<256x128xf32>
    %c1_i32 = arith.constant 1 : i32
    %42 = vector.broadcast %c1_i32 : i32 to vector<256x128xi32>
    %43 = arith.cmpi eq, %35, %42 : vector<256x128xi32>
    %cst_15 = arith.constant 0.000000e+00 : f32
    %44 = vector.shape_cast %28 : vector<256x1xf32> to vector<256x1xf32>
    %45 = vector.broadcast %44 : vector<256x1xf32> to vector<256x128xf32>
    %46 = vector.broadcast %cst_15 : f32 to vector<256x128xf32>
    %47 = arith.select %43, %45, %46 : vector<256x128xi1>, vector<256x128xf32>
    %48 = arith.addf %41, %47 : vector<256x128xf32>
    %c0_16 = arith.constant 0 : index
    %c0_17 = arith.constant 0 : index
    %49 = vector.load %arg10[%c0_16, %c0_17] : memref<256x128xf32, #tpu.memory_space<vmem>>, vector<256x128xf32>
    tpu.vector_store %arg10[%c0_16, %c0_17], %48 {strides = array<i32>} : memref<256x128xf32, #tpu.memory_space<vmem>>, vector<256x128xf32>,
    %c0_18 = arith.constant 0 : index
    %c0_19 = arith.constant 0 : index
    %50 = vector.load %arg5[%c0_18, %c0_19] : memref<128x256xf32, #tpu.memory_space<vmem>>, vector<128x256xf32>
    %cst_20 = arith.constant dense<0.000000e+00> : vector<256x256xf32>
    %51 = tpu.matmul %0, %50, %cst_20 {dimension_numbers = #tpu.dot_dimension_numbers<[1], [0], [0], [1], [0, 0, 1, 1], [], []>} : vector<256x128xf32>, vector<128x256xf32>, vector<256x256xf32> -> vector<256x256xf32>
    %c0_21 = arith.constant 0 : index
    %c0_22 = arith.constant 0 : index
    %52 = vector.load %arg6[%c0_21, %c0_22] : memref<1x256xf32, #tpu.memory_space<vmem>>, vector<1x256xf32>
    %53 = vector.broadcast %52 : vector<1x256xf32> to vector<256x256xf32>
    %54 = arith.addf %51, %53 : vector<256x256xf32>
    %c0_23 = arith.constant 0 : index
    %c0_24 = arith.constant 0 : index
    %55 = vector.load %arg11[%c0_23, %c0_24] : memref<256x256xf32, #tpu.memory_space<vmem>>, vector<256x256xf32>
    tpu.vector_store %arg11[%c0_23, %c0_24], %54 {strides = array<i32>} : memref<256x256xf32, #tpu.memory_space<vmem>>, vector<256x256xf32>,
    %c0_25 = arith.constant 0 : index
    %c0_26 = arith.constant 0 : index
    %56 = vector.load %arg7[%c0_25, %c0_26] : memref<128x256xf32, #tpu.memory_space<vmem>>, vector<128x256xf32>
    %cst_27 = arith.constant dense<0.000000e+00> : vector<256x256xf32>
    %57 = tpu.matmul %1, %56, %cst_27 {dimension_numbers = #tpu.dot_dimension_numbers<[1], [0], [0], [1], [0, 0, 1, 1], [], []>} : vector<256x128xf32>, vector<128x256xf32>, vector<256x256xf32> -> vector<256x256xf32>
    %c0_28 = arith.constant 0 : index
    %c0_29 = arith.constant 0 : index
    %58 = vector.load %arg8[%c0_28, %c0_29] : memref<1x256xf32, #tpu.memory_space<vmem>>, vector<1x256xf32>
    %59 = vector.broadcast %58 : vector<1x256xf32> to vector<256x256xf32>
    %60 = arith.addf %57, %59 : vector<256x256xf32>
    %c0_30 = arith.constant 0 : index
    %c0_31 = arith.constant 0 : index
    %61 = vector.load %arg12[%c0_30, %c0_31] : memref<256x256xf32, #tpu.memory_space<vmem>>, vector<256x256xf32>
    tpu.vector_store %arg12[%c0_30, %c0_31], %60 {strides = array<i32>} : memref<256x256xf32, #tpu.memory_space<vmem>>, vector<256x256xf32>,
    return
  }
  func.func @transform_0(%arg0: i32) -> (i32, i32) {
    %c0_i32 = arith.constant 0 : i32
    %c0_i32_0 = arith.constant 0 : i32
    return %arg0, %c0_i32 : i32, i32
  }
  func.func @transform_1(%arg0: i32) -> (i32, i32) {
    %c0_i32 = arith.constant 0 : i32
    %c0_i32_0 = arith.constant 0 : i32
    return %arg0, %c0_i32 : i32, i32
  }
  func.func @transform_2(%arg0: i32) -> (i32, i32) {
    %c0_i32 = arith.constant 0 : i32
    %c0_i32_0 = arith.constant 0 : i32
    %c0_i32_1 = arith.constant 0 : i32
    return %c0_i32, %c0_i32_0 : i32, i32
  }
  func.func @transform_3(%arg0: i32) -> (i32, i32) {
    %c0_i32 = arith.constant 0 : i32
    %c0_i32_0 = arith.constant 0 : i32
    %c0_i32_1 = arith.constant 0 : i32
    return %c0_i32, %c0_i32_0 : i32, i32
  }
  func.func @transform_4(%arg0: i32) -> (i32, i32) {
    %c0_i32 = arith.constant 0 : i32
    %c0_i32_0 = arith.constant 0 : i32
    %c0_i32_1 = arith.constant 0 : i32
    return %c0_i32, %c0_i32_0 : i32, i32
  }
  func.func @transform_5(%arg0: i32) -> (i32, i32) {
    %c0_i32 = arith.constant 0 : i32
    %c0_i32_0 = arith.constant 0 : i32
    %c0_i32_1 = arith.constant 0 : i32
    return %c0_i32, %c0_i32_0 : i32, i32
  }
  func.func @transform_6(%arg0: i32) -> (i32, i32) {
    %c0_i32 = arith.constant 0 : i32
    %c0_i32_0 = arith.constant 0 : i32
    %c0_i32_1 = arith.constant 0 : i32
    return %c0_i32, %c0_i32_0 : i32, i32
  }
  func.func @transform_7(%arg0: i32) -> (i32, i32) {
    %c0_i32 = arith.constant 0 : i32
    %c0_i32_0 = arith.constant 0 : i32
    %c0_i32_1 = arith.constant 0 : i32
    return %c0_i32, %c0_i32_0 : i32, i32
  }
  func.func @transform_8(%arg0: i32) -> (i32, i32) {
    %c0_i32 = arith.constant 0 : i32
    %c0_i32_0 = arith.constant 0 : i32
    return %arg0, %c0_i32 : i32, i32
  }
  func.func @transform_9(%arg0: i32) -> (i32, i32) {
    %c0_i32 = arith.constant 0 : i32
    %c0_i32_0 = arith.constant 0 : i32
    return %arg0, %c0_i32 : i32, i32
  }
  func.func @transform_10(%arg0: i32) -> (i32, i32) {
    %c0_i32 = arith.constant 0 : i32
    %c0_i32_0 = arith.constant 0 : i32
    return %arg0, %c0_i32 : i32, i32
  }
  func.func @transform_11(%arg0: i32) -> (i32, i32) {
    %c0_i32 = arith.constant 0 : i32
    %c0_i32_0 = arith.constant 0 : i32
    return %arg0, %c0_i32 : i32, i32
  }
}

module attributes {stable_mosaic.version = 11 : i64} {
  func.func @_matmul_kernel(%arg0: i32, %arg1: i32, %arg2: i32, %arg3: memref<256x256xf32, #tpu.memory_space<vmem>>, %arg4: memref<256x256xf32, #tpu.memory_space<vmem>>, %arg5: memref<256x256xf32, #tpu.memory_space<vmem>>, %arg6: memref<256x256xf32, #tpu.memory_space<vmem>>) attributes {dimension_semantics = [#tpu.dimension_semantics<parallel>, #tpu.dimension_semantics<parallel>, #tpu.dimension_semantics<arbitrary>], iteration_bounds = array<i64: 2, 1, 1>, scalar_prefetch = 0 : i64, scratch_operands = 1 : i64, tpu.core_type = #tpu.core_type<tc>, window_params = [{transform_indices = @transform_0, window_bounds = array<i64: 256, 256>}, {transform_indices = @transform_1, window_bounds = array<i64: 256, 256>}, {transform_indices = @transform_2, window_bounds = array<i64: 256, 256>}]} {
    %c0_i32 = arith.constant 0 : i32
    %0 = arith.cmpi eq, %arg2, %c0_i32 : i32
    %1 = arith.extui %0 : i1 to i32
    %c0_i32_0 = arith.constant 0 : i32
    %2 = arith.cmpi ne, %1, %c0_i32_0 : i32
    scf.if %2 {
      %cst_10 = arith.constant 0.000000e+00 : f32
      %12 = vector.broadcast %cst_10 : f32 to vector<256x256xf32>
      %c0_11 = arith.constant 0 : index
      %c0_12 = arith.constant 0 : index
      %13 = vector.load %arg6[%c0_11, %c0_12] : memref<256x256xf32, #tpu.memory_space<vmem>>, vector<256x256xf32>
      tpu.vector_store %arg6[%c0_11, %c0_12], %12 {strides = array<i32>} : memref<256x256xf32, #tpu.memory_space<vmem>>, vector<256x256xf32>,
    } else {
    }
    %c0 = arith.constant 0 : index
    %c0_1 = arith.constant 0 : index
    %3 = vector.load %arg6[%c0, %c0_1] : memref<256x256xf32, #tpu.memory_space<vmem>>, vector<256x256xf32>
    %c0_2 = arith.constant 0 : index
    %c0_3 = arith.constant 0 : index
    %4 = vector.load %arg3[%c0_2, %c0_3] : memref<256x256xf32, #tpu.memory_space<vmem>>, vector<256x256xf32>
    %c0_4 = arith.constant 0 : index
    %c0_5 = arith.constant 0 : index
    %5 = vector.load %arg4[%c0_4, %c0_5] : memref<256x256xf32, #tpu.memory_space<vmem>>, vector<256x256xf32>
    %cst = arith.constant dense<0.000000e+00> : vector<256x256xf32>
    %6 = tpu.matmul %4, %5, %cst {dimension_numbers = #tpu.dot_dimension_numbers<[1], [0], [0], [1], [0, 0, 1, 1], [], []>} : vector<256x256xf32>, vector<256x256xf32>, vector<256x256xf32> -> vector<256x256xf32>
    %7 = arith.addf %3, %6 : vector<256x256xf32>
    %c0_6 = arith.constant 0 : index
    %c0_7 = arith.constant 0 : index
    %8 = vector.load %arg6[%c0_6, %c0_7] : memref<256x256xf32, #tpu.memory_space<vmem>>, vector<256x256xf32>
    tpu.vector_store %arg6[%c0_6, %c0_7], %7 {strides = array<i32>} : memref<256x256xf32, #tpu.memory_space<vmem>>, vector<256x256xf32>,
    %c0_i32_8 = arith.constant 0 : i32
    %9 = arith.cmpi eq, %arg2, %c0_i32_8 : i32
    %10 = arith.extui %9 : i1 to i32
    %c0_i32_9 = arith.constant 0 : i32
    %11 = arith.cmpi ne, %10, %c0_i32_9 : i32
    scf.if %11 {
      %c0_10 = arith.constant 0 : index
      %c0_11 = arith.constant 0 : index
      %12 = vector.load %arg6[%c0_10, %c0_11] : memref<256x256xf32, #tpu.memory_space<vmem>>, vector<256x256xf32>
      %c0_12 = arith.constant 0 : index
      %c0_13 = arith.constant 0 : index
      %13 = vector.load %arg5[%c0_12, %c0_13] : memref<256x256xf32, #tpu.memory_space<vmem>>, vector<256x256xf32>
      tpu.vector_store %arg5[%c0_12, %c0_13], %12 {strides = array<i32>} : memref<256x256xf32, #tpu.memory_space<vmem>>, vector<256x256xf32>,
    } else {
    }
    return
  }
  func.func @transform_0(%arg0: i32, %arg1: i32, %arg2: i32) -> (i32, i32) {
    %c0_i32 = arith.constant 0 : i32
    return %arg0, %arg2 : i32, i32
  }
  func.func @transform_1(%arg0: i32, %arg1: i32, %arg2: i32) -> (i32, i32) {
    %c0_i32 = arith.constant 0 : i32
    return %arg2, %arg1 : i32, i32
  }
  func.func @transform_2(%arg0: i32, %arg1: i32, %arg2: i32) -> (i32, i32) {
    %c0_i32 = arith.constant 0 : i32
    return %arg0, %arg1 : i32, i32
  }
}

module attributes {stable_mosaic.version = 11 : i64} {
  func.func @_matmul_kernel(%arg0: i32, %arg1: i32, %arg2: i32, %arg3: memref<256x256xf32, #tpu.memory_space<vmem>>, %arg4: memref<256x256xf32, #tpu.memory_space<vmem>>, %arg5: memref<256x256xf32, #tpu.memory_space<vmem>>, %arg6: memref<256x256xf32, #tpu.memory_space<vmem>>) attributes {dimension_semantics = [#tpu.dimension_semantics<parallel>, #tpu.dimension_semantics<parallel>, #tpu.dimension_semantics<arbitrary>], iteration_bounds = array<i64: 2, 1, 2>, scalar_prefetch = 0 : i64, scratch_operands = 1 : i64, tpu.core_type = #tpu.core_type<tc>, window_params = [{transform_indices = @transform_0, window_bounds = array<i64: 256, 256>}, {transform_indices = @transform_1, window_bounds = array<i64: 256, 256>}, {transform_indices = @transform_2, window_bounds = array<i64: 256, 256>}]} {
    %c0_i32 = arith.constant 0 : i32
    %0 = arith.cmpi eq, %arg2, %c0_i32 : i32
    %1 = arith.extui %0 : i1 to i32
    %c0_i32_0 = arith.constant 0 : i32
    %2 = arith.cmpi ne, %1, %c0_i32_0 : i32
    scf.if %2 {
      %cst_9 = arith.constant 0.000000e+00 : f32
      %12 = vector.broadcast %cst_9 : f32 to vector<256x256xf32>
      %c0_10 = arith.constant 0 : index
      %c0_11 = arith.constant 0 : index
      %13 = vector.load %arg6[%c0_10, %c0_11] : memref<256x256xf32, #tpu.memory_space<vmem>>, vector<256x256xf32>
      tpu.vector_store %arg6[%c0_10, %c0_11], %12 {strides = array<i32>} : memref<256x256xf32, #tpu.memory_space<vmem>>, vector<256x256xf32>,
    } else {
    }
    %c0 = arith.constant 0 : index
    %c0_1 = arith.constant 0 : index
    %3 = vector.load %arg6[%c0, %c0_1] : memref<256x256xf32, #tpu.memory_space<vmem>>, vector<256x256xf32>
    %c0_2 = arith.constant 0 : index
    %c0_3 = arith.constant 0 : index
    %4 = vector.load %arg3[%c0_2, %c0_3] : memref<256x256xf32, #tpu.memory_space<vmem>>, vector<256x256xf32>
    %c0_4 = arith.constant 0 : index
    %c0_5 = arith.constant 0 : index
    %5 = vector.load %arg4[%c0_4, %c0_5] : memref<256x256xf32, #tpu.memory_space<vmem>>, vector<256x256xf32>
    %cst = arith.constant dense<0.000000e+00> : vector<256x256xf32>
    %6 = tpu.matmul %4, %5, %cst {dimension_numbers = #tpu.dot_dimension_numbers<[1], [0], [0], [1], [0, 0, 1, 1], [], []>} : vector<256x256xf32>, vector<256x256xf32>, vector<256x256xf32> -> vector<256x256xf32>
    %7 = arith.addf %3, %6 : vector<256x256xf32>
    %c0_6 = arith.constant 0 : index
    %c0_7 = arith.constant 0 : index
    %8 = vector.load %arg6[%c0_6, %c0_7] : memref<256x256xf32, #tpu.memory_space<vmem>>, vector<256x256xf32>
    tpu.vector_store %arg6[%c0_6, %c0_7], %7 {strides = array<i32>} : memref<256x256xf32, #tpu.memory_space<vmem>>, vector<256x256xf32>,
    %c1_i32 = arith.constant 1 : i32
    %9 = arith.cmpi eq, %arg2, %c1_i32 : i32
    %10 = arith.extui %9 : i1 to i32
    %c0_i32_8 = arith.constant 0 : i32
    %11 = arith.cmpi ne, %10, %c0_i32_8 : i32
    scf.if %11 {
      %c0_9 = arith.constant 0 : index
      %c0_10 = arith.constant 0 : index
      %12 = vector.load %arg6[%c0_9, %c0_10] : memref<256x256xf32, #tpu.memory_space<vmem>>, vector<256x256xf32>
      %c0_11 = arith.constant 0 : index
      %c0_12 = arith.constant 0 : index
      %13 = vector.load %arg5[%c0_11, %c0_12] : memref<256x256xf32, #tpu.memory_space<vmem>>, vector<256x256xf32>
      tpu.vector_store %arg5[%c0_11, %c0_12], %12 {strides = array<i32>} : memref<256x256xf32, #tpu.memory_space<vmem>>, vector<256x256xf32>,
    } else {
    }
    return
  }
  func.func @transform_0(%arg0: i32, %arg1: i32, %arg2: i32) -> (i32, i32) {
    %c0_i32 = arith.constant 0 : i32
    return %arg0, %arg2 : i32, i32
  }
  func.func @transform_1(%arg0: i32, %arg1: i32, %arg2: i32) -> (i32, i32) {
    %c0_i32 = arith.constant 0 : i32
    return %arg2, %arg1 : i32, i32
  }
  func.func @transform_2(%arg0: i32, %arg1: i32, %arg2: i32) -> (i32, i32) {
    %c0_i32 = arith.constant 0 : i32
    return %arg0, %arg1 : i32, i32
  }
}

module attributes {stable_mosaic.version = 11 : i64} {
  func.func @_matmul_kernel(%arg0: i32, %arg1: i32, %arg2: i32, %arg3: memref<256x256xf32, #tpu.memory_space<vmem>>, %arg4: memref<256x128xf32, #tpu.memory_space<vmem>>, %arg5: memref<256x128xf32, #tpu.memory_space<vmem>>, %arg6: memref<256x128xf32, #tpu.memory_space<vmem>>) attributes {dimension_semantics = [#tpu.dimension_semantics<parallel>, #tpu.dimension_semantics<parallel>, #tpu.dimension_semantics<arbitrary>], iteration_bounds = array<i64: 2, 1, 2>, scalar_prefetch = 0 : i64, scratch_operands = 1 : i64, tpu.core_type = #tpu.core_type<tc>, window_params = [{transform_indices = @transform_0, window_bounds = array<i64: 256, 256>}, {transform_indices = @transform_1, window_bounds = array<i64: 256, 128>}, {transform_indices = @transform_2, window_bounds = array<i64: 256, 128>}]} {
    %c0_i32 = arith.constant 0 : i32
    %0 = arith.cmpi eq, %arg2, %c0_i32 : i32
    %1 = arith.extui %0 : i1 to i32
    %c0_i32_0 = arith.constant 0 : i32
    %2 = arith.cmpi ne, %1, %c0_i32_0 : i32
    scf.if %2 {
      %cst_9 = arith.constant 0.000000e+00 : f32
      %12 = vector.broadcast %cst_9 : f32 to vector<256x128xf32>
      %c0_10 = arith.constant 0 : index
      %c0_11 = arith.constant 0 : index
      %13 = vector.load %arg6[%c0_10, %c0_11] : memref<256x128xf32, #tpu.memory_space<vmem>>, vector<256x128xf32>
      tpu.vector_store %arg6[%c0_10, %c0_11], %12 {strides = array<i32>} : memref<256x128xf32, #tpu.memory_space<vmem>>, vector<256x128xf32>,
    } else {
    }
    %c0 = arith.constant 0 : index
    %c0_1 = arith.constant 0 : index
    %3 = vector.load %arg6[%c0, %c0_1] : memref<256x128xf32, #tpu.memory_space<vmem>>, vector<256x128xf32>
    %c0_2 = arith.constant 0 : index
    %c0_3 = arith.constant 0 : index
    %4 = vector.load %arg3[%c0_2, %c0_3] : memref<256x256xf32, #tpu.memory_space<vmem>>, vector<256x256xf32>
    %c0_4 = arith.constant 0 : index
    %c0_5 = arith.constant 0 : index
    %5 = vector.load %arg4[%c0_4, %c0_5] : memref<256x128xf32, #tpu.memory_space<vmem>>, vector<256x128xf32>
    %cst = arith.constant dense<0.000000e+00> : vector<256x128xf32>
    %6 = tpu.matmul %4, %5, %cst {dimension_numbers = #tpu.dot_dimension_numbers<[1], [0], [0], [1], [0, 0, 1, 1], [], []>} : vector<256x256xf32>, vector<256x128xf32>, vector<256x128xf32> -> vector<256x128xf32>
    %7 = arith.addf %3, %6 : vector<256x128xf32>
    %c0_6 = arith.constant 0 : index
    %c0_7 = arith.constant 0 : index
    %8 = vector.load %arg6[%c0_6, %c0_7] : memref<256x128xf32, #tpu.memory_space<vmem>>, vector<256x128xf32>
    tpu.vector_store %arg6[%c0_6, %c0_7], %7 {strides = array<i32>} : memref<256x128xf32, #tpu.memory_space<vmem>>, vector<256x128xf32>,
    %c1_i32 = arith.constant 1 : i32
    %9 = arith.cmpi eq, %arg2, %c1_i32 : i32
    %10 = arith.extui %9 : i1 to i32
    %c0_i32_8 = arith.constant 0 : i32
    %11 = arith.cmpi ne, %10, %c0_i32_8 : i32
    scf.if %11 {
      %c0_9 = arith.constant 0 : index
      %c0_10 = arith.constant 0 : index
      %12 = vector.load %arg6[%c0_9, %c0_10] : memref<256x128xf32, #tpu.memory_space<vmem>>, vector<256x128xf32>
      %c0_11 = arith.constant 0 : index
      %c0_12 = arith.constant 0 : index
      %13 = vector.load %arg5[%c0_11, %c0_12] : memref<256x128xf32, #tpu.memory_space<vmem>>, vector<256x128xf32>
      tpu.vector_store %arg5[%c0_11, %c0_12], %12 {strides = array<i32>} : memref<256x128xf32, #tpu.memory_space<vmem>>, vector<256x128xf32>,
    } else {
    }
    return
  }
  func.func @transform_0(%arg0: i32, %arg1: i32, %arg2: i32) -> (i32, i32) {
    %c0_i32 = arith.constant 0 : i32
    return %arg0, %arg2 : i32, i32
  }
  func.func @transform_1(%arg0: i32, %arg1: i32, %arg2: i32) -> (i32, i32) {
    %c0_i32 = arith.constant 0 : i32
    return %arg2, %arg1 : i32, i32
  }
  func.func @transform_2(%arg0: i32, %arg1: i32, %arg2: i32) -> (i32, i32) {
    %c0_i32 = arith.constant 0 : i32
    return %arg0, %arg1 : i32, i32
  }
}

</mosaic_0001>

<llo_original>
// kernel: encoder_overall_forward.11
$region0: #{encoder_overall_forward.11}
  #allocation0 [shape = 'u32[]', space=smem, size = 0x4, offset = 0x4, fixed_abs, tag = 'smem constant byte address 0x4 - core index']
  #allocation1 [shape = 'u32[144,128]{1,0:T(1,128)}', space=vmem, size = 0x12000, scoped, tag = 'internal scratch']
  #allocation2 [shape = 'f32[256,128]{1,0:T(8,128)}', space=vmem, size = 0x20000, scoped, tag = 'scratch operand']
  %s0 = inlined_call_operand.vmem [shape: f32[512,128], index: 0, kind: input, shape index: {}]
  %s1 = inlined_call_operand.vmem [shape: f32[128,128], index: 1, kind: input, shape index: {}]
  %s2 = inlined_call_operand.vmem [shape: f32[512,128], index: 2, kind: output, shape index: {}]
  %s3 = sld [smem:[#allocation0]]
  $region49: #{encoder_overall_forward.11} parent=0
    _
  %s5 = ssub.s32 1, %s3
  %s6 = scalar_select 0, %s5, %s3
  loop: start=0, step=1, limit=4
  $region2: #{encoder_overall_forward.11} parent=0 // loop_pre_header
    _
  $region3: #{encoder_overall_forward.11} parent=0 // loop_header
    %s8 = sphi 0, %s12
    %p9 = scmp.ge.s32.totalorder %s8, 4
    %s15 = sphi 0, %s34
    %s16 = sphi 0, %s30
    %s17 = sphi 0, %s26
    %s18 = sphi 0, %s15
    %s19 = sphi 0, %s16
    %s20 = sphi 0, %s17
    %s21 = sphi 0, %s18
    %s22 = sphi 0, %s19
    %s23 = sphi 0, %s20
    %s39 = sphi 0, %s41
    %s42 = sphi 0, %s39
    %s43 = sphi 0, %s42
    %s59 = sphi 0, %s43
    %s67 = sphi 0, %s69
    %s70 = sphi 0, %s67
    %s71 = sphi 0, %s70
    %s87 = sphi 0, %s71
    %s95 = sphi 0, %s97
    %s98 = sphi 0, %s95
    %s99 = sphi 0, %s98
    %s115 = sphi 0, %s99
  $region4: #{encoder_overall_forward.11} parent=0 // loop_header_branch
    %11 = sbr.rel (%p9) target = $region8
  $region5: #{encoder_overall_forward.11} parent=0 // loop_body
    %s13 = ssub.s32 %s8, 1
    %s14 = ssub.s32 %s8, 2
    %s24 = sadd.s32 1, %s17
    %p25 = scmp.ge.s32.totalorder %s24, 1
    %s26 = scalar_select %p25, 0, %s24
    %s27 = sadd.s32 1, %s16
    %s28 = scalar_select %p25, %s27, %s16
    %p29 = scmp.ge.s32.totalorder %s28, 1
    %s30 = scalar_select %p29, 0, %s28
    %s31 = sadd.s32 1, %s15
    %s32 = scalar_select %p29, %s31, %s15
    %p33 = scmp.ge.s32.totalorder %s32, 2
    %s34 = scalar_select %p33, 0, %s32
    %s35 = ssub.s32 %s15, %s34
    %s36 = ssub.s32 %s17, %s26
    %s37 = sor.u32 %s35, %s36
    %p38 = scmp.eq.s32.totalorder %s37, 0
    %s40 = sadd.s32 %s39, 1
    %s41 = scalar_select %p38, %s39, %s40
    %p44 = pneg %p38
    %p45 = scmp.eq.s32.totalorder %s8, 1
    %p46 = por %p44, %p45
    %p47 = scmp.ne.s32.totalorder %s39, %s42
    %p48 = scmp.eq.s32.totalorder %s8, 0
    %p49 = por %p47, %p48
    %p50 = scmp.ne.s32.totalorder %s39, %s42
    %p51 = scmp.eq.s32.totalorder %s13, 1
    %p52 = por %p50, %p51
    %p53 = scmp.ne.s32.totalorder %s42, %s43
    %p54 = scmp.eq.s32.totalorder %s13, 0
    %p55 = por %p53, %p54
    %p56 = scmp.ne.s32.totalorder %s42, %s43
    %p57 = scmp.eq.s32.totalorder %s14, 1
    %p58 = por %p56, %p57
    %p60 = scmp.ne.s32.totalorder %s43, %s59
    %p61 = scmp.eq.s32.totalorder %s14, 0
    %p62 = por %p60, %p61
    %s63 = ssub.s32 %s17, %s26
    %s64 = ssub.s32 %s16, %s30
    %s65 = sor.u32 %s63, %s64
    %p66 = scmp.eq.s32.totalorder %s65, 0
    %s68 = sadd.s32 %s67, 1
    %s69 = scalar_select %p66, %s67, %s68
    %p72 = pneg %p66
    %p73 = scmp.eq.s32.totalorder %s8, 1
    %p74 = por %p72, %p73
    %p75 = scmp.ne.s32.totalorder %s67, %s70
    %p76 = scmp.eq.s32.totalorder %s8, 0
    %p77 = por %p75, %p76
    %p78 = scmp.ne.s32.totalorder %s67, %s70
    %p79 = scmp.eq.s32.totalorder %s13, 1
    %p80 = por %p78, %p79
    %p81 = scmp.ne.s32.totalorder %s70, %s71
    %p82 = scmp.eq.s32.totalorder %s13, 0
    %p83 = por %p81, %p82
    %p84 = scmp.ne.s32.totalorder %s70, %s71
    %p85 = scmp.eq.s32.totalorder %s14, 1
    %p86 = por %p84, %p85
    %p88 = scmp.ne.s32.totalorder %s71, %s87
    %p89 = scmp.eq.s32.totalorder %s14, 0
    %p90 = por %p88, %p89
    %s91 = ssub.s32 %s15, %s34
    %s92 = ssub.s32 %s16, %s30
    %s93 = sor.u32 %s91, %s92
    %p94 = scmp.eq.s32.totalorder %s93, 0
    %s96 = sadd.s32 %s95, 1
    %s97 = scalar_select %p94, %s95, %s96
    %p100 = pneg %p94
    %p101 = scmp.eq.s32.totalorder %s8, 1
    %p102 = por %p100, %p101
    %p103 = scmp.ne.s32.totalorder %s95, %s98
    %p104 = scmp.eq.s32.totalorder %s8, 0
    %p105 = por %p103, %p104
    %p106 = scmp.ne.s32.totalorder %s95, %s98
    %p107 = scmp.eq.s32.totalorder %s13, 1
    %p108 = por %p106, %p107
    %p109 = scmp.ne.s32.totalorder %s98, %s99
    %p110 = scmp.eq.s32.totalorder %s13, 0
    %p111 = por %p109, %p110
    %p112 = scmp.ne.s32.totalorder %s98, %s99
    %p113 = scmp.eq.s32.totalorder %s14, 1
    %p114 = por %p112, %p113
    %p116 = scmp.ne.s32.totalorder %s99, %s115
    %p117 = scmp.eq.s32.totalorder %s14, 0
    %p118 = por %p116, %p117
    %p119 = scmp.le.s32.totalorder 1, %s8
    %p120 = scmp.lt.s32.totalorder %s8, 3
    %p121 = pnand %p119, %p120
    %p122 = pneg %p121
    // Predicated region
    $region9: #{encoder_overall_forward.11} parent=5 // pred_check
      _
    $region10: #{encoder_overall_forward.11} parent=5 // pred_check_branch
      %124 = sbr.rel (%p121) target = $region12
    $region11: #{encoder_overall_forward.11} parent=5 // pred_region
      %s125 = ssub.s32 %s8, 1
      // Predicated region
      $region13: #{encoder_overall_forward.11} parent=11 // pred_check
        %p126 = pneg %p83
      $region14: #{encoder_overall_forward.11} parent=11 // pred_check_branch
        %128 = sbr.rel (%p126) target = $region16
      $region15: #{encoder_overall_forward.11} parent=11 // pred_region
        %s129 = smul.u32 16, %s20
        %p130 = scmp.lt.s32.totalorder %s129, 15
        %s131 = scalar_select %p130, %s129, 15
        %p132 = scmp.lt.s32.totalorder %s19, 0
        %s133 = scalar_select %p132, %s19, 0
        %s134 = sadd.s32 %s133, %s131
        %s135 = smul.addr %s134, 8
        %s136 = scalar_lea.vmem %s1, %s135
        %s137 = smul.u32 16, %s20
      $region16: #{encoder_overall_forward.11} parent=11 // pred_fallthru
        _
    $region12: #{encoder_overall_forward.11} parent=5 // pred_fallthru
      _
    %p138 = scmp.lt.s32.totalorder %s8, 2
    // Predicated region
    $region17: #{encoder_overall_forward.11} parent=5 // pred_check
      %p139 = pneg %p138
    $region18: #{encoder_overall_forward.11} parent=5 // pred_check_branch
      %141 = sbr.rel (%p139) target = $region20
    $region19: #{encoder_overall_forward.11} parent=5 // pred_region
      // Predicated region
      $region21: #{encoder_overall_forward.11} parent=19 // pred_check
        %p142 = pneg %p49
      $region22: #{encoder_overall_forward.11} parent=19 // pred_check_branch
        %144 = sbr.rel (%p142) target = $region24
      $region23: #{encoder_overall_forward.11} parent=19 // pred_region
        %s145 = smul.u32 32, %s15
        %p146 = scmp.lt.s32.totalorder %s145, 63
        %s147 = scalar_select %p146, %s145, 63
        %p148 = scmp.lt.s32.totalorder %s17, 0
        %s149 = scalar_select %p148, %s17, 0
        %s150 = sadd.s32 %s149, %s147
        %s151 = smul.addr %s150, 8
        %s152 = scalar_lea.vmem %s0, %s151
        %s153 = smul.u32 32, %s15
      $region24: #{encoder_overall_forward.11} parent=19 // pred_fallthru
        _
    $region20: #{encoder_overall_forward.11} parent=5 // pred_fallthru
      _
    %p154 = scmp.le.s32.totalorder 1, %s8
    %p155 = scmp.lt.s32.totalorder %s8, 3
    %p156 = pnand %p154, %p155
    %p157 = pneg %p156
    // Predicated region
    $region25: #{encoder_overall_forward.11} parent=5 // pred_check
      _
    $region26: #{encoder_overall_forward.11} parent=5 // pred_check_branch
      %159 = sbr.rel (%p156) target = $region28
    $region27: #{encoder_overall_forward.11} parent=5 // pred_region
      %s160 = ssub.s32 %s8, 1
      %s161 = smul.u32 32, %s18
      %p162 = scmp.lt.s32.totalorder %s161, 63
      %s163 = scalar_select %p162, %s161, 63
      %p164 = scmp.lt.s32.totalorder %s20, 0
      %s165 = scalar_select %p164, %s20, 0
      %s166 = sadd.s32 %s165, %s163
      %s167 = smul.addr %s166, 8
      %s168 = scalar_lea.vmem %s0, %s167
      %p169 = pneg %p55
      %p170 = pneg %p52
      %s171 = smul.u32 16, %s20
      %p172 = scmp.lt.s32.totalorder %s171, 15
      %s173 = scalar_select %p172, %s171, 15
      %p174 = scmp.lt.s32.totalorder %s19, 0
      %s175 = scalar_select %p174, %s19, 0
      %s176 = sadd.s32 %s175, %s173
      %s177 = smul.addr %s176, 8
      %s178 = scalar_lea.vmem %s1, %s177
      %p179 = pneg %p83
      %p180 = pneg %p80
      %p181 = pneg %p111
      %p182 = pneg %p108
      %s183 = smul.u32 32, %s18
      %p184 = scmp.lt.s32.totalorder %s183, 63
      %s185 = scalar_select %p184, %s183, 63
      %p186 = scmp.lt.s32.totalorder %s19, 0
      %s187 = scalar_select %p186, %s19, 0
      %s188 = sadd.s32 %s187, %s185
      %s189 = smul.addr %s188, 8
      %s190 = scalar_lea.vmem %s2, %s189
      %s191 = smul.u32 32, %s18
      %p192 = scmp.lt.s32.totalorder %s191, 63
      %s193 = scalar_select %p192, %s191, 63
      %p194 = scmp.lt.s32.totalorder %s20, 0
      %s195 = scalar_select %p194, %s20, 0
      %s196 = sadd.s32 %s195, %s193
      %s197 = smul.addr %s196, 8
      %s198 = scalar_lea.vmem %s0, %s197
      %s199 = smul.u32 32, %s18
      %s200 = smul.u32 16, %s20
      %p201 = scmp.lt.s32.totalorder %s200, 15
      %s202 = scalar_select %p201, %s200, 15
      %p203 = scmp.lt.s32.totalorder %s19, 0
      %s204 = scalar_select %p203, %s19, 0
      %s205 = sadd.s32 %s204, %s202
      %s206 = smul.addr %s205, 8
      %s207 = scalar_lea.vmem %s1, %s206
      %s208 = smul.u32 16, %s20
      %s209 = smul.u32 32, %s18
      %p210 = scmp.lt.s32.totalorder %s209, 63
      %s211 = scalar_select %p210, %s209, 63
      %p212 = scmp.lt.s32.totalorder %s19, 0
      %s213 = scalar_select %p212, %s19, 0
      %s214 = sadd.s32 %s213, %s211
      %s215 = smul.addr %s214, 8
      %s216 = scalar_lea.vmem %s2, %s215
      %s217 = smul.u32 32, %s18
      %p218 = scmp.eq.s32.totalorder %s20, 0
      // Predicated region
      $region29: #{encoder_overall_forward.11} parent=27 // pred_check
        %p219 = pneg %p218
      $region30: #{encoder_overall_forward.11} parent=27 // pred_check_branch
        %221 = sbr.rel (%p219) target = $region32
      $region31: #{encoder_overall_forward.11} parent=27 // pred_region
        %222 = vst [vmem:[#allocation2] sm:$0xff] 0.0
        %223 = vst [vmem:[#allocation2 + $0x8] sm:$0xff] 0.0
        %224 = vst [vmem:[#allocation2 + $0x10] sm:$0xff] 0.0
        %225 = vst [vmem:[#allocation2 + $0x18] sm:$0xff] 0.0
        %226 = vst [vmem:[#allocation2 + $0x20] sm:$0xff] 0.0
        %227 = vst [vmem:[#allocation2 + $0x28] sm:$0xff] 0.0
        %228 = vst [vmem:[#allocation2 + $0x30] sm:$0xff] 0.0
        %229 = vst [vmem:[#allocation2 + $0x38] sm:$0xff] 0.0
        %230 = vst [vmem:[#allocation2 + $0x40] sm:$0xff] 0.0
        %231 = vst [vmem:[#allocation2 + $0x48] sm:$0xff] 0.0
        %232 = vst [vmem:[#allocation2 + $0x50] sm:$0xff] 0.0
        %233 = vst [vmem:[#allocation2 + $0x58] sm:$0xff] 0.0
        %234 = vst [vmem:[#allocation2 + $0x60] sm:$0xff] 0.0
        %235 = vst [vmem:[#allocation2 + $0x68] sm:$0xff] 0.0
        %236 = vst [vmem:[#allocation2 + $0x70] sm:$0xff] 0.0
        %237 = vst [vmem:[#allocation2 + $0x78] sm:$0xff] 0.0
        %238 = vst [vmem:[#allocation2 + $0x80] sm:$0xff] 0.0
        %239 = vst [vmem:[#allocation2 + $0x88] sm:$0xff] 0.0
        %240 = vst [vmem:[#allocation2 + $0x90] sm:$0xff] 0.0
        %241 = vst [vmem:[#allocation2 + $0x98] sm:$0xff] 0.0
        %242 = vst [vmem:[#allocation2 + $0xa0] sm:$0xff] 0.0
        %243 = vst [vmem:[#allocation2 + $0xa8] sm:$0xff] 0.0
        %244 = vst [vmem:[#allocation2 + $0xb0] sm:$0xff] 0.0
        %245 = vst [vmem:[#allocation2 + $0xb8] sm:$0xff] 0.0
        %246 = vst [vmem:[#allocation2 + $0xc0] sm:$0xff] 0.0
        %247 = vst [vmem:[#allocation2 + $0xc8] sm:$0xff] 0.0
        %248 = vst [vmem:[#allocation2 + $0xd0] sm:$0xff] 0.0
        %249 = vst [vmem:[#allocation2 + $0xd8] sm:$0xff] 0.0
        %250 = vst [vmem:[#allocation2 + $0xe0] sm:$0xff] 0.0
        %251 = vst [vmem:[#allocation2 + $0xe8] sm:$0xff] 0.0
        %252 = vst [vmem:[#allocation2 + $0xf0] sm:$0xff] 0.0
        %253 = vst [vmem:[#allocation2 + $0xf8] sm:$0xff] 0.0
      $region32: #{encoder_overall_forward.11} parent=27 // pred_fallthru
        _
      %v254 = vld [vmem:[#allocation2] sm:$0xff]
      %v255 = vld [vmem:[#allocation2 + $0x8] sm:$0xff]
      %v256 = vld [vmem:[#allocation2 + $0x10] sm:$0xff]
      %v257 = vld [vmem:[#allocation2 + $0x18] sm:$0xff]
      %v258 = vld [vmem:[#allocation2 + $0x20] sm:$0xff]
      %v259 = vld [vmem:[#allocation2 + $0x28] sm:$0xff]
      %v260 = vld [vmem:[#allocation2 + $0x30] sm:$0xff]
      %v261 = vld [vmem:[#allocation2 + $0x38] sm:$0xff]
      %v262 = vld [vmem:[#allocation2 + $0x40] sm:$0xff]
      %v263 = vld [vmem:[#allocation2 + $0x48] sm:$0xff]
      %v264 = vld [vmem:[#allocation2 + $0x50] sm:$0xff]
      %v265 = vld [vmem:[#allocation2 + $0x58] sm:$0xff]
      %v266 = vld [vmem:[#allocation2 + $0x60] sm:$0xff]
      %v267 = vld [vmem:[#allocation2 + $0x68] sm:$0xff]
      %v268 = vld [vmem:[#allocation2 + $0x70] sm:$0xff]
      %v269 = vld [vmem:[#allocation2 + $0x78] sm:$0xff]
      %v270 = vld [vmem:[#allocation2 + $0x80] sm:$0xff]
      %v271 = vld [vmem:[#allocation2 + $0x88] sm:$0xff]
      %v272 = vld [vmem:[#allocation2 + $0x90] sm:$0xff]
      %v273 = vld [vmem:[#allocation2 + $0x98] sm:$0xff]
      %v274 = vld [vmem:[#allocation2 + $0xa0] sm:$0xff]
      %v275 = vld [vmem:[#allocation2 + $0xa8] sm:$0xff]
      %v276 = vld [vmem:[#allocation2 + $0xb0] sm:$0xff]
      %v277 = vld [vmem:[#allocation2 + $0xb8] sm:$0xff]
      %v278 = vld [vmem:[#allocation2 + $0xc0] sm:$0xff]
      %v279 = vld [vmem:[#allocation2 + $0xc8] sm:$0xff]
      %v280 = vld [vmem:[#allocation2 + $0xd0] sm:$0xff]
      %v281 = vld [vmem:[#allocation2 + $0xd8] sm:$0xff]
      %v282 = vld [vmem:[#allocation2 + $0xe0] sm:$0xff]
      %v283 = vld [vmem:[#allocation2 + $0xe8] sm:$0xff]
      %v284 = vld [vmem:[#allocation2 + $0xf0] sm:$0xff]
      %v285 = vld [vmem:[#allocation2 + $0xf8] sm:$0xff]
      %v286 = vld [vmem:[%s198] sm:$0xff]
      %v287 = vld [vmem:[%s198 + $0x8] sm:$0xff]
      %v288 = vld [vmem:[%s198 + $0x10] sm:$0xff]
      %v289 = vld [vmem:[%s198 + $0x18] sm:$0xff]
      %v290 = vld [vmem:[%s198 + $0x20] sm:$0xff]
      %v291 = vld [vmem:[%s198 + $0x28] sm:$0xff]
      %v292 = vld [vmem:[%s198 + $0x30] sm:$0xff]
      %v293 = vld [vmem:[%s198 + $0x38] sm:$0xff]
      %v294 = vld [vmem:[%s198 + $0x40] sm:$0xff]
      %v295 = vld [vmem:[%s198 + $0x48] sm:$0xff]
      %v296 = vld [vmem:[%s198 + $0x50] sm:$0xff]
      %v297 = vld [vmem:[%s198 + $0x58] sm:$0xff]
      %v298 = vld [vmem:[%s198 + $0x60] sm:$0xff]
      %v299 = vld [vmem:[%s198 + $0x68] sm:$0xff]
      %v300 = vld [vmem:[%s198 + $0x70] sm:$0xff]
      %v301 = vld [vmem:[%s198 + $0x78] sm:$0xff]
      %v302 = vld [vmem:[%s198 + $0x80] sm:$0xff]
      %v303 = vld [vmem:[%s198 + $0x88] sm:$0xff]
      %v304 = vld [vmem:[%s198 + $0x90] sm:$0xff]
      %v305 = vld [vmem:[%s198 + $0x98] sm:$0xff]
      %v306 = vld [vmem:[%s198 + $0xa0] sm:$0xff]
      %v307 = vld [vmem:[%s198 + $0xa8] sm:$0xff]
      %v308 = vld [vmem:[%s198 + $0xb0] sm:$0xff]
      %v309 = vld [vmem:[%s198 + $0xb8] sm:$0xff]
      %v310 = vld [vmem:[%s198 + $0xc0] sm:$0xff]
      %v311 = vld [vmem:[%s198 + $0xc8] sm:$0xff]
      %v312 = vld [vmem:[%s198 + $0xd0] sm:$0xff]
      %v313 = vld [vmem:[%s198 + $0xd8] sm:$0xff]
      %v314 = vld [vmem:[%s198 + $0xe0] sm:$0xff]
      %v315 = vld [vmem:[%s198 + $0xe8] sm:$0xff]
      %v316 = vld [vmem:[%s198 + $0xf0] sm:$0xff]
      %v317 = vld [vmem:[%s198 + $0xf8] sm:$0xff]
      %v318 = vld [vmem:[%s207] sm:$0xff]
      %v319 = vld [vmem:[%s207 + $0x8] sm:$0xff]
      %v320 = vld [vmem:[%s207 + $0x10] sm:$0xff]
      %v321 = vld [vmem:[%s207 + $0x18] sm:$0xff]
      %v322 = vld [vmem:[%s207 + $0x20] sm:$0xff]
      %v323 = vld [vmem:[%s207 + $0x28] sm:$0xff]
      %v324 = vld [vmem:[%s207 + $0x30] sm:$0xff]
      %v325 = vld [vmem:[%s207 + $0x38] sm:$0xff]
      %v326 = vld [vmem:[%s207 + $0x40] sm:$0xff]
      %v327 = vld [vmem:[%s207 + $0x48] sm:$0xff]
      %v328 = vld [vmem:[%s207 + $0x50] sm:$0xff]
      %v329 = vld [vmem:[%s207 + $0x58] sm:$0xff]
      %v330 = vld [vmem:[%s207 + $0x60] sm:$0xff]
      %v331 = vld [vmem:[%s207 + $0x68] sm:$0xff]
      %v332 = vld [vmem:[%s207 + $0x70] sm:$0xff]
      %v333 = vld [vmem:[%s207 + $0x78] sm:$0xff]
      %334 = vmatprep.subr.mxu0 0.0
      %335 = vmatpush1.msra.mxu0 %v318
      %336 = vmatprep.subr.mxu0 0.0
      %337 = vmatpush1.msra.mxu0 %v319
      %338 = vmatprep.subr.mxu0 0.0
      %339 = vmatpush1.msra.mxu0 %v320
      %340 = vmatprep.subr.mxu0 0.0
      %341 = vmatpush1.msra.mxu0 %v321
      %342 = vmatprep.subr.mxu0 0.0
      %343 = vmatpush1.msra.mxu0 %v322
      %344 = vmatprep.subr.mxu0 0.0
      %345 = vmatpush1.msra.mxu0 %v323
      %346 = vmatprep.subr.mxu0 0.0
      %347 = vmatpush1.msra.mxu0 %v324
      %348 = vmatprep.subr.mxu0 0.0
      %349 = vmatpush1.msra.mxu0 %v325
      %350 = vmatprep.subr.mxu0 0.0
      %351 = vmatpush1.msra.mxu0 %v326
      %352 = vmatprep.subr.mxu0 0.0
      %353 = vmatpush1.msra.mxu0 %v327
      %354 = vmatprep.subr.mxu0 0.0
      %355 = vmatpush1.msra.mxu0 %v328
      %356 = vmatprep.subr.mxu0 0.0
      %357 = vmatpush1.msra.mxu0 %v329
      %358 = vmatprep.subr.mxu0 0.0
      %359 = vmatpush1.msra.mxu0 %v330
      %360 = vmatprep.subr.mxu0 0.0
      %361 = vmatpush1.msra.mxu0 %v331
      %362 = vmatprep.subr.mxu0 0.0
      %363 = vmatpush1.msra.mxu0 %v332
      %364 = vmatprep.subr.mxu0 0.0
      %365 = vmatpush1.msra.mxu0 %v333
      %366 = vmatprep.subr.mxu0 0.0
      %367 = vmatpush1.msra.mxu0 0.0
      %368 = vmatprep.subr.mxu0 0.0
      %369 = vmatpush1.msra.mxu0 0.0
      %370 = vmatprep.subr.mxu0 0.0
      %371 = vmatpush1.msra.mxu0 0.0
      %372 = vmatprep.subr.mxu0 0.0
      %373 = vmatpush1.msra.mxu0 0.0
      %374 = vmatprep.subr.mxu0 0.0
      %375 = vmatpush1.msra.mxu0 0.0
      %376 = vmatprep.subr.mxu0 0.0
      %377 = vmatpush1.msra.mxu0 0.0
      %378 = vmatprep.subr.mxu0 0.0
      %379 = vmatpush1.msra.mxu0 0.0
      %380 = vmatprep.subr.mxu0 0.0
      %381 = vmatpush1.msra.mxu0 0.0
      %382 = vmatprep.subr.mxu0 0.0
      %383 = vmatpush1.msra.mxu0 0.0
      %384 = vmatprep.subr.mxu0 0.0
      %385 = vmatpush1.msra.mxu0 0.0
      %386 = vmatprep.subr.mxu0 0.0
      %387 = vmatpush1.msra.mxu0 0.0
      %388 = vmatprep.subr.mxu0 0.0
      %389 = vmatpush1.msra.mxu0 0.0
      %390 = vmatprep.subr.mxu0 0.0
      %391 = vmatpush1.msra.mxu0 0.0
      %392 = vmatprep.subr.mxu0 0.0
      %393 = vmatpush1.msra.mxu0 0.0
      %394 = vmatprep.subr.mxu0 0.0
      %395 = vmatpush1.msra.mxu0 0.0
      %396 = vmatprep.subr.mxu0 0.0
      %397 = vmatpush1.msra.mxu0 0.0
      %398 = vmatprep.mubr.f32.mxu0 0.0
      %399 = vmatmul.mubr.f32.gmra.mrb[0].mxu0 %v286
      %v400 = vpop.f32.mrb[0].mxu0
      %v401 = vadd.f32 0.0, %v400
      %v402 = vpop.f32.mrb[0].mxu0
      %403 = vmatprep.mubr.f32.mxu0 0.0
      %404 = vmatmul.mubr.f32.gmra.mrb[0].mxu0 %v287
      %v405 = vpop.f32.mrb[0].mxu0
      %v406 = vadd.f32 0.0, %v405
      %v407 = vpop.f32.mrb[0].mxu0
      %408 = vmatprep.mubr.f32.mxu0 0.0
      %409 = vmatmul.mubr.f32.gmra.mrb[0].mxu0 %v288
      %v410 = vpop.f32.mrb[0].mxu0
      %v411 = vadd.f32 0.0, %v410
      %v412 = vpop.f32.mrb[0].mxu0
      %413 = vmatprep.mubr.f32.mxu0 0.0
      %414 = vmatmul.mubr.f32.gmra.mrb[0].mxu0 %v289
      %v415 = vpop.f32.mrb[0].mxu0
      %v416 = vadd.f32 0.0, %v415
      %v417 = vpop.f32.mrb[0].mxu0
      %418 = vmatprep.mubr.f32.mxu0 0.0
      %419 = vmatmul.mubr.f32.gmra.mrb[0].mxu0 %v290
      %v420 = vpop.f32.mrb[0].mxu0
      %v421 = vadd.f32 0.0, %v420
      %v422 = vpop.f32.mrb[0].mxu0
      %423 = vmatprep.mubr.f32.mxu0 0.0
      %424 = vmatmul.mubr.f32.gmra.mrb[0].mxu0 %v291
      %v425 = vpop.f32.mrb[0].mxu0
      %v426 = vadd.f32 0.0, %v425
      %v427 = vpop.f32.mrb[0].mxu0
      %428 = vmatprep.mubr.f32.mxu0 0.0
      %429 = vmatmul.mubr.f32.gmra.mrb[0].mxu0 %v292
      %v430 = vpop.f32.mrb[0].mxu0
      %v431 = vadd.f32 0.0, %v430
      %v432 = vpop.f32.mrb[0].mxu0
      %433 = vmatprep.mubr.f32.mxu0 0.0
      %434 = vmatmul.mubr.f32.gmra.mrb[0].mxu0 %v293
      %v435 = vpop.f32.mrb[0].mxu0
      %v436 = vadd.f32 0.0, %v435
      %v437 = vpop.f32.mrb[0].mxu0
      %438 = vmatprep.mubr.f32.mxu0 0.0
      %439 = vmatmul.mubr.f32.gmra.mrb[0].mxu0 %v294
      %v440 = vpop.f32.mrb[0].mxu0
      %v441 = vadd.f32 0.0, %v440
      %v442 = vpop.f32.mrb[0].mxu0
      %443 = vmatprep.mubr.f32.mxu0 0.0
      %444 = vmatmul.mubr.f32.gmra.mrb[0].mxu0 %v295
      %v445 = vpop.f32.mrb[0].mxu0
      %v446 = vadd.f32 0.0, %v445
      %v447 = vpop.f32.mrb[0].mxu0
      %448 = vmatprep.mubr.f32.mxu0 0.0
      %449 = vmatmul.mubr.f32.gmra.mrb[0].mxu0 %v296
      %v450 = vpop.f32.mrb[0].mxu0
      %v451 = vadd.f32 0.0, %v450
      %v452 = vpop.f32.mrb[0].mxu0
      %453 = vmatprep.mubr.f32.mxu0 0.0
      %454 = vmatmul.mubr.f32.gmra.mrb[0].mxu0 %v297
      %v455 = vpop.f32.mrb[0].mxu0
      %v456 = vadd.f32 0.0, %v455
      %v457 = vpop.f32.mrb[0].mxu0
      %458 = vmatprep.mubr.f32.mxu0 0.0
      %459 = vmatmul.mubr.f32.gmra.mrb[0].mxu0 %v298
      %v460 = vpop.f32.mrb[0].mxu0
      %v461 = vadd.f32 0.0, %v460
      %v462 = vpop.f32.mrb[0].mxu0
      %463 = vmatprep.mubr.f32.mxu0 0.0
      %464 = vmatmul.mubr.f32.gmra.mrb[0].mxu0 %v299
      %v465 = vpop.f32.mrb[0].mxu0
      %v466 = vadd.f32 0.0, %v465
      %v467 = vpop.f32.mrb[0].mxu0
      %468 = vmatprep.mubr.f32.mxu0 0.0
      %469 = vmatmul.mubr.f32.gmra.mrb[0].mxu0 %v300
      %v470 = vpop.f32.mrb[0].mxu0
      %v471 = vadd.f32 0.0, %v470
      %v472 = vpop.f32.mrb[0].mxu0
      %473 = vmatprep.mubr.f32.mxu0 0.0
      %474 = vmatmul.mubr.f32.gmra.mrb[0].mxu0 %v301
      %v475 = vpop.f32.mrb[0].mxu0
      %v476 = vadd.f32 0.0, %v475
      %v477 = vpop.f32.mrb[0].mxu0
      %478 = vmatprep.mubr.f32.mxu0 0.0
      %479 = vmatmul.mubr.f32.gmra.mrb[0].mxu0 %v302
      %v480 = vpop.f32.mrb[0].mxu0
      %v481 = vadd.f32 0.0, %v480
      %v482 = vpop.f32.mrb[0].mxu0
      %483 = vmatprep.mubr.f32.mxu0 0.0
      %484 = vmatmul.mubr.f32.gmra.mrb[0].mxu0 %v303
      %v485 = vpop.f32.mrb[0].mxu0
      %v486 = vadd.f32 0.0, %v485
      %v487 = vpop.f32.mrb[0].mxu0
      %488 = vmatprep.mubr.f32.mxu0 0.0
      %489 = vmatmul.mubr.f32.gmra.mrb[0].mxu0 %v304
      %v490 = vpop.f32.mrb[0].mxu0
      %v491 = vadd.f32 0.0, %v490
      %v492 = vpop.f32.mrb[0].mxu0
      %493 = vmatprep.mubr.f32.mxu0 0.0
      %494 = vmatmul.mubr.f32.gmra.mrb[0].mxu0 %v305
      %v495 = vpop.f32.mrb[0].mxu0
      %v496 = vadd.f32 0.0, %v495
      %v497 = vpop.f32.mrb[0].mxu0
      %498 = vmatprep.mubr.f32.mxu0 0.0
      %499 = vmatmul.mubr.f32.gmra.mrb[0].mxu0 %v306
      %v500 = vpop.f32.mrb[0].mxu0
      %v501 = vadd.f32 0.0, %v500
      %v502 = vpop.f32.mrb[0].mxu0
      %503 = vmatprep.mubr.f32.mxu0 0.0
      %504 = vmatmul.mubr.f32.gmra.mrb[0].mxu0 %v307
      %v505 = vpop.f32.mrb[0].mxu0
      %v506 = vadd.f32 0.0, %v505
      %v507 = vpop.f32.mrb[0].mxu0
      %508 = vmatprep.mubr.f32.mxu0 0.0
      %509 = vmatmul.mubr.f32.gmra.mrb[0].mxu0 %v308
      %v510 = vpop.f32.mrb[0].mxu0
      %v511 = vadd.f32 0.0, %v510
      %v512 = vpop.f32.mrb[0].mxu0
      %513 = vmatprep.mubr.f32.mxu0 0.0
      %514 = vmatmul.mubr.f32.gmra.mrb[0].mxu0 %v309
      %v515 = vpop.f32.mrb[0].mxu0
      %v516 = vadd.f32 0.0, %v515
      %v517 = vpop.f32.mrb[0].mxu0
      %518 = vmatprep.mubr.f32.mxu0 0.0
      %519 = vmatmul.mubr.f32.gmra.mrb[0].mxu0 %v310
      %v520 = vpop.f32.mrb[0].mxu0
      %v521 = vadd.f32 0.0, %v520
      %v522 = vpop.f32.mrb[0].mxu0
      %523 = vmatprep.mubr.f32.mxu0 0.0
      %524 = vmatmul.mubr.f32.gmra.mrb[0].mxu0 %v311
      %v525 = vpop.f32.mrb[0].mxu0
      %v526 = vadd.f32 0.0, %v525
      %v527 = vpop.f32.mrb[0].mxu0
      %528 = vmatprep.mubr.f32.mxu0 0.0
      %529 = vmatmul.mubr.f32.gmra.mrb[0].mxu0 %v312
      %v530 = vpop.f32.mrb[0].mxu0
      %v531 = vadd.f32 0.0, %v530
      %v532 = vpop.f32.mrb[0].mxu0
      %533 = vmatprep.mubr.f32.mxu0 0.0
      %534 = vmatmul.mubr.f32.gmra.mrb[0].mxu0 %v313
      %v535 = vpop.f32.mrb[0].mxu0
      %v536 = vadd.f32 0.0, %v535
      %v537 = vpop.f32.mrb[0].mxu0
      %538 = vmatprep.mubr.f32.mxu0 0.0
      %539 = vmatmul.mubr.f32.gmra.mrb[0].mxu0 %v314
      %v540 = vpop.f32.mrb[0].mxu0
      %v541 = vadd.f32 0.0, %v540
      %v542 = vpop.f32.mrb[0].mxu0
      %543 = vmatprep.mubr.f32.mxu0 0.0
      %544 = vmatmul.mubr.f32.gmra.mrb[0].mxu0 %v315
      %v545 = vpop.f32.mrb[0].mxu0
      %v546 = vadd.f32 0.0, %v545
      %v547 = vpop.f32.mrb[0].mxu0
      %548 = vmatprep.mubr.f32.mxu0 0.0
      %549 = vmatmul.mubr.f32.gmra.mrb[0].mxu0 %v316
      %v550 = vpop.f32.mrb[0].mxu0
      %v551 = vadd.f32 0.0, %v550
      %v552 = vpop.f32.mrb[0].mxu0
      %553 = vmatprep.mubr.f32.mxu0 0.0
      %554 = vmatmul.mubr.f32.gmra.mrb[0].mxu0 %v317
      %v555 = vpop.f32.mrb[0].mxu0
      %v556 = vadd.f32 0.0, %v555
      %v557 = vpop.f32.mrb[0].mxu0
      %558 = vdwg.mxu0
      %v559 = vadd.f32 %v254, %v401
      %v560 = vadd.f32 %v255, %v406
      %v561 = vadd.f32 %v256, %v411
      %v562 = vadd.f32 %v257, %v416
      %v563 = vadd.f32 %v258, %v421
      %v564 = vadd.f32 %v259, %v426
      %v565 = vadd.f32 %v260, %v431
      %v566 = vadd.f32 %v261, %v436
      %v567 = vadd.f32 %v262, %v441
      %v568 = vadd.f32 %v263, %v446
      %v569 = vadd.f32 %v264, %v451
      %v570 = vadd.f32 %v265, %v456
      %v571 = vadd.f32 %v266, %v461
      %v572 = vadd.f32 %v267, %v466
      %v573 = vadd.f32 %v268, %v471
      %v574 = vadd.f32 %v269, %v476
      %v575 = vadd.f32 %v270, %v481
      %v576 = vadd.f32 %v271, %v486
      %v577 = vadd.f32 %v272, %v491
      %v578 = vadd.f32 %v273, %v496
      %v579 = vadd.f32 %v274, %v501
      %v580 = vadd.f32 %v275, %v506
      %v581 = vadd.f32 %v276, %v511
      %v582 = vadd.f32 %v277, %v516
      %v583 = vadd.f32 %v278, %v521
      %v584 = vadd.f32 %v279, %v526
      %v585 = vadd.f32 %v280, %v531
      %v586 = vadd.f32 %v281, %v536
      %v587 = vadd.f32 %v282, %v541
      %v588 = vadd.f32 %v283, %v546
      %v589 = vadd.f32 %v284, %v551
      %v590 = vadd.f32 %v285, %v556
      %591 = vst [vmem:[#allocation2] sm:$0xff] %v559
      %592 = vst [vmem:[#allocation2 + $0x8] sm:$0xff] %v560
      %593 = vst [vmem:[#allocation2 + $0x10] sm:$0xff] %v561
      %594 = vst [vmem:[#allocation2 + $0x18] sm:$0xff] %v562
      %595 = vst [vmem:[#allocation2 + $0x20] sm:$0xff] %v563
      %596 = vst [vmem:[#allocation2 + $0x28] sm:$0xff] %v564
      %597 = vst [vmem:[#allocation2 + $0x30] sm:$0xff] %v565
      %598 = vst [vmem:[#allocation2 + $0x38] sm:$0xff] %v566
      %599 = vst [vmem:[#allocation2 + $0x40] sm:$0xff] %v567
      %600 = vst [vmem:[#allocation2 + $0x48] sm:$0xff] %v568
      %601 = vst [vmem:[#allocation2 + $0x50] sm:$0xff] %v569
      %602 = vst [vmem:[#allocation2 + $0x58] sm:$0xff] %v570
      %603 = vst [vmem:[#allocation2 + $0x60] sm:$0xff] %v571
      %604 = vst [vmem:[#allocation2 + $0x68] sm:$0xff] %v572
      %605 = vst [vmem:[#allocation2 + $0x70] sm:$0xff] %v573
      %606 = vst [vmem:[#allocation2 + $0x78] sm:$0xff] %v574
      %607 = vst [vmem:[#allocation2 + $0x80] sm:$0xff] %v575
      %608 = vst [vmem:[#allocation2 + $0x88] sm:$0xff] %v576
      %609 = vst [vmem:[#allocation2 + $0x90] sm:$0xff] %v577
      %610 = vst [vmem:[#allocation2 + $0x98] sm:$0xff] %v578
      %611 = vst [vmem:[#allocation2 + $0xa0] sm:$0xff] %v579
      %612 = vst [vmem:[#allocation2 + $0xa8] sm:$0xff] %v580
      %613 = vst [vmem:[#allocation2 + $0xb0] sm:$0xff] %v581
      %614 = vst [vmem:[#allocation2 + $0xb8] sm:$0xff] %v582
      %615 = vst [vmem:[#allocation2 + $0xc0] sm:$0xff] %v583
      %616 = vst [vmem:[#allocation2 + $0xc8] sm:$0xff] %v584
      %617 = vst [vmem:[#allocation2 + $0xd0] sm:$0xff] %v585
      %618 = vst [vmem:[#allocation2 + $0xd8] sm:$0xff] %v586
      %619 = vst [vmem:[#allocation2 + $0xe0] sm:$0xff] %v587
      %620 = vst [vmem:[#allocation2 + $0xe8] sm:$0xff] %v588
      %621 = vst [vmem:[#allocation2 + $0xf0] sm:$0xff] %v589
      %622 = vst [vmem:[#allocation2 + $0xf8] sm:$0xff] %v590
      // Predicated region
      $region33: #{encoder_overall_forward.11} parent=27 // pred_check
        %p623 = pneg %p218
      $region34: #{encoder_overall_forward.11} parent=27 // pred_check_branch
        %625 = sbr.rel (%p623) target = $region36
      $region35: #{encoder_overall_forward.11} parent=27 // pred_region
        %v626 = vld [vmem:[#allocation2] sm:$0xff]
        %v627 = vld [vmem:[#allocation2 + $0x8] sm:$0xff]
        %v628 = vld [vmem:[#allocation2 + $0x10] sm:$0xff]
        %v629 = vld [vmem:[#allocation2 + $0x18] sm:$0xff]
        %v630 = vld [vmem:[#allocation2 + $0x20] sm:$0xff]
        %v631 = vld [vmem:[#allocation2 + $0x28] sm:$0xff]
        %v632 = vld [vmem:[#allocation2 + $0x30] sm:$0xff]
        %v633 = vld [vmem:[#allocation2 + $0x38] sm:$0xff]
        %v634 = vld [vmem:[#allocation2 + $0x40] sm:$0xff]
        %v635 = vld [vmem:[#allocation2 + $0x48] sm:$0xff]
        %v636 = vld [vmem:[#allocation2 + $0x50] sm:$0xff]
        %v637 = vld [vmem:[#allocation2 + $0x58] sm:$0xff]
        %v638 = vld [vmem:[#allocation2 + $0x60] sm:$0xff]
        %v639 = vld [vmem:[#allocation2 + $0x68] sm:$0xff]
        %v640 = vld [vmem:[#allocation2 + $0x70] sm:$0xff]
        %v641 = vld [vmem:[#allocation2 + $0x78] sm:$0xff]
        %v642 = vld [vmem:[#allocation2 + $0x80] sm:$0xff]
        %v643 = vld [vmem:[#allocation2 + $0x88] sm:$0xff]
        %v644 = vld [vmem:[#allocation2 + $0x90] sm:$0xff]
        %v645 = vld [vmem:[#allocation2 + $0x98] sm:$0xff]
        %v646 = vld [vmem:[#allocation2 + $0xa0] sm:$0xff]
        %v647 = vld [vmem:[#allocation2 + $0xa8] sm:$0xff]
        %v648 = vld [vmem:[#allocation2 + $0xb0] sm:$0xff]
        %v649 = vld [vmem:[#allocation2 + $0xb8] sm:$0xff]
        %v650 = vld [vmem:[#allocation2 + $0xc0] sm:$0xff]
        %v651 = vld [vmem:[#allocation2 + $0xc8] sm:$0xff]
        %v652 = vld [vmem:[#allocation2 + $0xd0] sm:$0xff]
        %v653 = vld [vmem:[#allocation2 + $0xd8] sm:$0xff]
        %v654 = vld [vmem:[#allocation2 + $0xe0] sm:$0xff]
        %v655 = vld [vmem:[#allocation2 + $0xe8] sm:$0xff]
        %v656 = vld [vmem:[#allocation2 + $0xf0] sm:$0xff]
        %v657 = vld [vmem:[#allocation2 + $0xf8] sm:$0xff]
        %658 = vst [vmem:[%s216] sm:$0xff] %v626
        %659 = vst [vmem:[%s216 + $0x8] sm:$0xff] %v627
        %660 = vst [vmem:[%s216 + $0x10] sm:$0xff] %v628
        %661 = vst [vmem:[%s216 + $0x18] sm:$0xff] %v629
        %662 = vst [vmem:[%s216 + $0x20] sm:$0xff] %v630
        %663 = vst [vmem:[%s216 + $0x28] sm:$0xff] %v631
        %664 = vst [vmem:[%s216 + $0x30] sm:$0xff] %v632
        %665 = vst [vmem:[%s216 + $0x38] sm:$0xff] %v633
        %666 = vst [vmem:[%s216 + $0x40] sm:$0xff] %v634
        %667 = vst [vmem:[%s216 + $0x48] sm:$0xff] %v635
        %668 = vst [vmem:[%s216 + $0x50] sm:$0xff] %v636
        %669 = vst [vmem:[%s216 + $0x58] sm:$0xff] %v637
        %670 = vst [vmem:[%s216 + $0x60] sm:$0xff] %v638
        %671 = vst [vmem:[%s216 + $0x68] sm:$0xff] %v639
        %672 = vst [vmem:[%s216 + $0x70] sm:$0xff] %v640
        %673 = vst [vmem:[%s216 + $0x78] sm:$0xff] %v641
        %674 = vst [vmem:[%s216 + $0x80] sm:$0xff] %v642
        %675 = vst [vmem:[%s216 + $0x88] sm:$0xff] %v643
        %676 = vst [vmem:[%s216 + $0x90] sm:$0xff] %v644
        %677 = vst [vmem:[%s216 + $0x98] sm:$0xff] %v645
        %678 = vst [vmem:[%s216 + $0xa0] sm:$0xff] %v646
        %679 = vst [vmem:[%s216 + $0xa8] sm:$0xff] %v647
        %680 = vst [vmem:[%s216 + $0xb0] sm:$0xff] %v648
        %681 = vst [vmem:[%s216 + $0xb8] sm:$0xff] %v649
        %682 = vst [vmem:[%s216 + $0xc0] sm:$0xff] %v650
        %683 = vst [vmem:[%s216 + $0xc8] sm:$0xff] %v651
        %684 = vst [vmem:[%s216 + $0xd0] sm:$0xff] %v652
        %685 = vst [vmem:[%s216 + $0xd8] sm:$0xff] %v653
        %686 = vst [vmem:[%s216 + $0xe0] sm:$0xff] %v654
        %687 = vst [vmem:[%s216 + $0xe8] sm:$0xff] %v655
        %688 = vst [vmem:[%s216 + $0xf0] sm:$0xff] %v656
        %689 = vst [vmem:[%s216 + $0xf8] sm:$0xff] %v657
      $region36: #{encoder_overall_forward.11} parent=27 // pred_fallthru
        _
      %s690 = smul.u32 32, %s18
      %p691 = scmp.lt.s32.totalorder %s690, 63
      %s692 = scalar_select %p691, %s690, 63
      %p693 = scmp.lt.s32.totalorder %s19, 0
      %s694 = scalar_select %p693, %s19, 0
      %s695 = sadd.s32 %s694, %s692
      %s696 = smul.addr %s695, 8
      %s697 = scalar_lea.vmem %s2, %s696
      // Predicated region
      $region37: #{encoder_overall_forward.11} parent=27 // pred_check
        %p698 = pneg %p108
      $region38: #{encoder_overall_forward.11} parent=27 // pred_check_branch
        %700 = sbr.rel (%p698) target = $region40
      $region39: #{encoder_overall_forward.11} parent=27 // pred_region
        %s701 = smul.u32 32, %s18
      $region40: #{encoder_overall_forward.11} parent=27 // pred_fallthru
        _
    $region28: #{encoder_overall_forward.11} parent=5 // pred_fallthru
      _
    %p702 = scmp.le.s32.totalorder 2, %s8
    // Predicated region
    $region41: #{encoder_overall_forward.11} parent=5 // pred_check
      %p703 = pneg %p702
    $region42: #{encoder_overall_forward.11} parent=5 // pred_check_branch
      %705 = sbr.rel (%p703) target = $region44
    $region43: #{encoder_overall_forward.11} parent=5 // pred_region
      %s706 = ssub.s32 %s8, 2
      // Predicated region
      $region45: #{encoder_overall_forward.11} parent=43 // pred_check
        %p707 = pneg %p114
      $region46: #{encoder_overall_forward.11} parent=43 // pred_check_branch
        %709 = sbr.rel (%p707) target = $region48
      $region47: #{encoder_overall_forward.11} parent=43 // pred_region
        %s710 = smul.u32 32, %s21
        %p711 = scmp.lt.s32.totalorder %s710, 63
        %s712 = scalar_select %p711, %s710, 63
        %p713 = scmp.lt.s32.totalorder %s22, 0
        %s714 = scalar_select %p713, %s22, 0
        %s715 = sadd.s32 %s714, %s712
        %s716 = smul.addr %s715, 8
        %s717 = scalar_lea.vmem %s2, %s716
      $region48: #{encoder_overall_forward.11} parent=43 // pred_fallthru
        _
    $region44: #{encoder_overall_forward.11} parent=5 // pred_fallthru
      _
  $region6: #{encoder_overall_forward.11} parent=0 // loop_footer
    %s12 = sadd.s32 1, %s8
  $region7: #{encoder_overall_forward.11} parent=0 // loop_footer_branch
    %7 = sbr.rel target = $region3
  $region8: #{encoder_overall_forward.11} parent=0 // loop_exit
    _

// kernel: encoder_overall_forward.13
$region0: #{encoder_overall_forward.13}
  #allocation0 [shape = 'u32[]', space=smem, size = 0x4, offset = 0x4, fixed_abs, tag = 'smem constant byte address 0x4 - core index']
  #allocation1 [shape = 'u32[144,128]{1,0:T(1,128)}', space=vmem, size = 0x12000, scoped, tag = 'internal scratch']
  #allocation2 [shape = 'f32[256,128]{1,0:T(8,128)}', space=vmem, size = 0x20000, scoped, tag = 'scratch operand']
  %s0 = inlined_call_operand.vmem [shape: f32[1,2], index: 0, kind: input, shape index: {}]
  %s1 = inlined_call_operand.vmem [shape: f32[512,512], index: 1, kind: input, shape index: {}]
  %s2 = inlined_call_operand.vmem [shape: f32[512,512], index: 2, kind: input, shape index: {}]
  %s3 = inlined_call_operand.vmem [shape: f32[512,128], index: 3, kind: input, shape index: {}]
  %s4 = inlined_call_operand.vmem [shape: f32[512,128], index: 4, kind: output, shape index: {}]
  %s5 = sld [smem:[#allocation0]]
  $region107: #{encoder_overall_forward.13} parent=0
    _
  %s7 = ssub.s32 1, %s5
  %s8 = scalar_select 0, %s7, %s5
  $region1: #{encoder_overall_forward.13} parent=0
    #allocation3 [shape = 'u8[512]{0}', space=smem, size = 0x200, scoped, tag = 'input window, operand 0, single buffered']
    #allocation4 [shape = 's32[2]{0}', space=sflag, size = 0x8, scoped, tag = 'scoped memory for encoder_overall_forward.13']
    #allocation5 [shape = 'u8[524288]{0}', space=vmem, size = 0x80000, scoped, tag = 'input window, operand 1']
    #allocation6 [shape = 'u8[524288]{0}', space=vmem, size = 0x80000, scoped, tag = 'input window, operand 2']
    %9 = vsyncpa [#allocation4], 0
    loop: start=0, step=1, limit=6
    $region2: #{encoder_overall_forward.13} parent=1 // loop_pre_header
      _
    $region3: #{encoder_overall_forward.13} parent=1 // loop_header
      %s11 = sphi 0, %s15
      %p12 = scmp.ge.s32.totalorder %s11, 6
      %s18 = sphi 0, %s37
      %s19 = sphi 0, %s33
      %s20 = sphi 0, %s29
      %s21 = sphi 0, %s18
      %s22 = sphi 0, %s19
      %s23 = sphi 0, %s20
      %s24 = sphi 0, %s21
      %s25 = sphi 0, %s22
      %s26 = sphi 0, %s23
      %s38 = sphi 0, %s38
      %s40 = sphi 0, %s38
      %s41 = sphi 0, %s40
      %s55 = sphi 0, %s41
      %s63 = sphi 0, %s65
      %s66 = sphi 0, %s63
      %s67 = sphi 0, %s66
      %s83 = sphi 0, %s67
      %s91 = sphi 0, %s93
      %s94 = sphi 0, %s91
      %s95 = sphi 0, %s94
      %s111 = sphi 0, %s95
      %s119 = sphi 0, %s121
      %s122 = sphi 0, %s119
      %s123 = sphi 0, %s122
      %s139 = sphi 0, %s123
      %s147 = sphi 0, %s149
      %s150 = sphi 0, %s147
      %s151 = sphi 0, %s150
      %s167 = sphi 0, %s151
    $region4: #{encoder_overall_forward.13} parent=1 // loop_header_branch
      %14 = sbr.rel (%p12) target = $region8
    $region5: #{encoder_overall_forward.13} parent=1 // loop_body
      %s16 = ssub.s32 %s11, 1
      %s17 = ssub.s32 %s11, 2
      %s27 = sadd.s32 1, %s20
      %p28 = scmp.ge.s32.totalorder %s27, 2
      %s29 = scalar_select %p28, 0, %s27
      %s30 = sadd.s32 1, %s19
      %s31 = scalar_select %p28, %s30, %s19
      %p32 = scmp.ge.s32.totalorder %s31, 1
      %s33 = scalar_select %p32, 0, %s31
      %s34 = sadd.s32 1, %s18
      %s35 = scalar_select %p32, %s34, %s18
      %p36 = scmp.ge.s32.totalorder %s35, 2
      %s37 = scalar_select %p36, 0, %s35
      %s39 = sadd.s32 %s38, 1
      %p42 = scmp.eq.s32.totalorder %s11, 3
      %p43 = scmp.ne.s32.totalorder %s38, %s40
      %p44 = scmp.eq.s32.totalorder %s11, 0
      %p45 = por %p43, %p44
      %p46 = scmp.ne.s32.totalorder %s38, %s40
      %p47 = scmp.eq.s32.totalorder %s16, 3
      %p48 = por %p46, %p47
      %p49 = scmp.ne.s32.totalorder %s40, %s41
      %p50 = scmp.eq.s32.totalorder %s16, 0
      %p51 = por %p49, %p50
      %p52 = scmp.ne.s32.totalorder %s40, %s41
      %p53 = scmp.eq.s32.totalorder %s17, 3
      %p54 = por %p52, %p53
      %p56 = scmp.ne.s32.totalorder %s41, %s55
      %p57 = scmp.eq.s32.totalorder %s17, 0
      %p58 = por %p56, %p57
      %s59 = ssub.s32 %s18, %s37
      %s60 = ssub.s32 %s20, %s29
      %s61 = sor.u32 %s59, %s60
      %p62 = scmp.eq.s32.totalorder %s61, 0
      %s64 = sadd.s32 %s63, 1
      %s65 = scalar_select %p62, %s63, %s64
      %p68 = pneg %p62
      %p69 = scmp.eq.s32.totalorder %s11, 3
      %p70 = por %p68, %p69
      %p71 = scmp.ne.s32.totalorder %s63, %s66
      %p72 = scmp.eq.s32.totalorder %s11, 0
      %p73 = por %p71, %p72
      %p74 = scmp.ne.s32.totalorder %s63, %s66
      %p75 = scmp.eq.s32.totalorder %s16, 3
      %p76 = por %p74, %p75
      %p77 = scmp.ne.s32.totalorder %s66, %s67
      %p78 = scmp.eq.s32.totalorder %s16, 0
      %p79 = por %p77, %p78
      %p80 = scmp.ne.s32.totalorder %s66, %s67
      %p81 = scmp.eq.s32.totalorder %s17, 3
      %p82 = por %p80, %p81
      %p84 = scmp.ne.s32.totalorder %s67, %s83
      %p85 = scmp.eq.s32.totalorder %s17, 0
      %p86 = por %p84, %p85
      %s87 = ssub.s32 %s18, %s37
      %s88 = ssub.s32 %s20, %s29
      %s89 = sor.u32 %s87, %s88
      %p90 = scmp.eq.s32.totalorder %s89, 0
      %s92 = sadd.s32 %s91, 1
      %s93 = scalar_select %p90, %s91, %s92
      %p96 = pneg %p90
      %p97 = scmp.eq.s32.totalorder %s11, 3
      %p98 = por %p96, %p97
      %p99 = scmp.ne.s32.totalorder %s91, %s94
      %p100 = scmp.eq.s32.totalorder %s11, 0
      %p101 = por %p99, %p100
      %p102 = scmp.ne.s32.totalorder %s91, %s94
      %p103 = scmp.eq.s32.totalorder %s16, 3
      %p104 = por %p102, %p103
      %p105 = scmp.ne.s32.totalorder %s94, %s95
      %p106 = scmp.eq.s32.totalorder %s16, 0
      %p107 = por %p105, %p106
      %p108 = scmp.ne.s32.totalorder %s94, %s95
      %p109 = scmp.eq.s32.totalorder %s17, 3
      %p110 = por %p108, %p109
      %p112 = scmp.ne.s32.totalorder %s95, %s111
      %p113 = scmp.eq.s32.totalorder %s17, 0
      %p114 = por %p112, %p113
      %s115 = ssub.s32 %s20, %s29
      %s116 = ssub.s32 %s19, %s33
      %s117 = sor.u32 %s115, %s116
      %p118 = scmp.eq.s32.totalorder %s117, 0
      %s120 = sadd.s32 %s119, 1
      %s121 = scalar_select %p118, %s119, %s120
      %p124 = pneg %p118
      %p125 = scmp.eq.s32.totalorder %s11, 3
      %p126 = por %p124, %p125
      %p127 = scmp.ne.s32.totalorder %s119, %s122
      %p128 = scmp.eq.s32.totalorder %s11, 0
      %p129 = por %p127, %p128
      %p130 = scmp.ne.s32.totalorder %s119, %s122
      %p131 = scmp.eq.s32.totalorder %s16, 3
      %p132 = por %p130, %p131
      %p133 = scmp.ne.s32.totalorder %s122, %s123
      %p134 = scmp.eq.s32.totalorder %s16, 0
      %p135 = por %p133, %p134
      %p136 = scmp.ne.s32.totalorder %s122, %s123
      %p137 = scmp.eq.s32.totalorder %s17, 3
      %p138 = por %p136, %p137
      %p140 = scmp.ne.s32.totalorder %s123, %s139
      %p141 = scmp.eq.s32.totalorder %s17, 0
      %p142 = por %p140, %p141
      %s143 = ssub.s32 %s18, %s37
      %s144 = ssub.s32 %s19, %s33
      %s145 = sor.u32 %s143, %s144
      %p146 = scmp.eq.s32.totalorder %s145, 0
      %s148 = sadd.s32 %s147, 1
      %s149 = scalar_select %p146, %s147, %s148
      %p152 = pneg %p146
      %p153 = scmp.eq.s32.totalorder %s11, 3
      %p154 = por %p152, %p153
      %p155 = scmp.ne.s32.totalorder %s147, %s150
      %p156 = scmp.eq.s32.totalorder %s11, 0
      %p157 = por %p155, %p156
      %p158 = scmp.ne.s32.totalorder %s147, %s150
      %p159 = scmp.eq.s32.totalorder %s16, 3
      %p160 = por %p158, %p159
      %p161 = scmp.ne.s32.totalorder %s150, %s151
      %p162 = scmp.eq.s32.totalorder %s16, 0
      %p163 = por %p161, %p162
      %p164 = scmp.ne.s32.totalorder %s150, %s151
      %p165 = scmp.eq.s32.totalorder %s17, 3
      %p166 = por %p164, %p165
      %p168 = scmp.ne.s32.totalorder %s151, %s167
      %p169 = scmp.eq.s32.totalorder %s17, 0
      %p170 = por %p168, %p169
      %p171 = scmp.le.s32.totalorder 1, %s11
      %p172 = scmp.lt.s32.totalorder %s11, 5
      %p173 = pnand %p171, %p172
      %p174 = pneg %p173
      // Predicated region
      $region9: #{encoder_overall_forward.13} parent=5 // pred_check
        _
      $region10: #{encoder_overall_forward.13} parent=5 // pred_check_branch
        %176 = sbr.rel (%p173) target = $region12
      $region11: #{encoder_overall_forward.13} parent=5 // pred_region
        %s177 = ssub.s32 %s11, 1
        // Predicated region
        $region13: #{encoder_overall_forward.13} parent=11 // pred_check
          %p178 = pneg %p51
        $region14: #{encoder_overall_forward.13} parent=11 // pred_check_branch
          %180 = sbr.rel (%p178) target = $region16
        $region15: #{encoder_overall_forward.13} parent=11 // pred_region
          %s182 = ssub.s32 16, 16
          %183 = vsyncadd [#allocation4], %s182
          %s185 = sshll.u32 %s0, 4
          %s186 = int_to_ptr.vmem [resolvable:$true] %s185
          %188 = dma.vmem_to_smem %s186, 16, [#allocation3], [#allocation4]
        $region16: #{encoder_overall_forward.13} parent=11 // pred_fallthru
          _
      $region12: #{encoder_overall_forward.13} parent=5 // pred_fallthru
        _
      %p189 = scmp.lt.s32.totalorder %s11, 4
      // Predicated region
      $region17: #{encoder_overall_forward.13} parent=5 // pred_check
        %p190 = pneg %p189
      $region18: #{encoder_overall_forward.13} parent=5 // pred_check_branch
        %192 = sbr.rel (%p190) target = $region20
      $region19: #{encoder_overall_forward.13} parent=5 // pred_region
        // Predicated region
        $region21: #{encoder_overall_forward.13} parent=19 // pred_check
          %p193 = pneg %p73
        $region22: #{encoder_overall_forward.13} parent=19 // pred_check_branch
          %195 = sbr.rel (%p193) target = $region24
        $region23: #{encoder_overall_forward.13} parent=19 // pred_region
          %s196 = sand.u32 %s63, 1
          %s197 = sand.u32 %s63, 1
          %s198 = smul.addr %s197, 512
          %s199 = scalar_lea.vmem [#allocation5], %s198
          %s200 = smul.u32 32, %s18
          %s201 = smul.u32 2, %s20
          %s202 = smul.addr %s200, 4
          %s203 = sadd.s32 %s201, %s202
          %s204 = smul.addr %s203, 8
          %s205 = scalar_lea.vmem %s1, %s204
          // Predicated region
          $region25: #{encoder_overall_forward.13} parent=23 // pred_check
            _
          $region26: #{encoder_overall_forward.13} parent=23 // pred_check_branch
            %207 = sbr.rel (0) target = $region28
          $region27: #{encoder_overall_forward.13} parent=23 // pred_region
            // Predicated region
            $region29: #{encoder_overall_forward.13} parent=27 // pred_check
              _
            $region30: #{encoder_overall_forward.13} parent=27 // pred_check_branch
              %209 = sbr.rel (0) target = $region32
            $region31: #{encoder_overall_forward.13} parent=27 // pred_region
              loop: start=0, step=1, limit=1
              $region33: #{encoder_overall_forward.13} parent=31 // loop_pre_header
                _
              $region34: #{encoder_overall_forward.13} parent=31 // loop_header
                %s211 = sphi 0, %s215
                %p212 = scmp.ge.s32.totalorder %s211, 1
                %s216 = sphi %s205, %s205
                %s217 = sphi %s199, %s199
              $region35: #{encoder_overall_forward.13} parent=31 // loop_header_branch
                %214 = sbr.rel (%p212) target = $region39
              $region36: #{encoder_overall_forward.13} parent=31 // loop_body
                %v218 = vld [vmem:[%s216] sm:$0xff]
                %219 = vst [vmem:[%s217] sm:$0xff] %v218
                %v220 = vld [vmem:[%s216 + $0x8] sm:$0xff]
                %221 = vst [vmem:[%s217 + $0x8] sm:$0xff] %v220
                %v222 = vld [vmem:[%s216 + $0x20] sm:$0xff]
                %223 = vst [vmem:[%s217 + $0x10] sm:$0xff] %v222
                %v224 = vld [vmem:[%s216 + $0x28] sm:$0xff]
                %225 = vst [vmem:[%s217 + $0x18] sm:$0xff] %v224
                %v226 = vld [vmem:[%s216 + $0x40] sm:$0xff]
                %227 = vst [vmem:[%s217 + $0x20] sm:$0xff] %v226
                %v228 = vld [vmem:[%s216 + $0x48] sm:$0xff]
                %229 = vst [vmem:[%s217 + $0x28] sm:$0xff] %v228
                %v230 = vld [vmem:[%s216 + $0x60] sm:$0xff]
                %231 = vst [vmem:[%s217 + $0x30] sm:$0xff] %v230
                %v232 = vld [vmem:[%s216 + $0x68] sm:$0xff]
                %233 = vst [vmem:[%s217 + $0x38] sm:$0xff] %v232
                %v234 = vld [vmem:[%s216 + $0x80] sm:$0xff]
                %235 = vst [vmem:[%s217 + $0x40] sm:$0xff] %v234
                %v236 = vld [vmem:[%s216 + $0x88] sm:$0xff]
                %237 = vst [vmem:[%s217 + $0x48] sm:$0xff] %v236
                %v238 = vld [vmem:[%s216 + $0xa0] sm:$0xff]
                %239 = vst [vmem:[%s217 + $0x50] sm:$0xff] %v238
                %v240 = vld [vmem:[%s216 + $0xa8] sm:$0xff]
                %241 = vst [vmem:[%s217 + $0x58] sm:$0xff] %v240
                %v242 = vld [vmem:[%s216 + $0xc0] sm:$0xff]
                %243 = vst [vmem:[%s217 + $0x60] sm:$0xff] %v242
                %v244 = vld [vmem:[%s216 + $0xc8] sm:$0xff]
                %245 = vst [vmem:[%s217 + $0x68] sm:$0xff] %v244
                %v246 = vld [vmem:[%s216 + $0xe0] sm:$0xff]
                %247 = vst [vmem:[%s217 + $0x70] sm:$0xff] %v246
                %v248 = vld [vmem:[%s216 + $0xe8] sm:$0xff]
                %249 = vst [vmem:[%s217 + $0x78] sm:$0xff] %v248
                %v250 = vld [vmem:[%s216 + $0x100] sm:$0xff]
                %251 = vst [vmem:[%s217 + $0x80] sm:$0xff] %v250
                %v252 = vld [vmem:[%s216 + $0x108] sm:$0xff]
                %253 = vst [vmem:[%s217 + $0x88] sm:$0xff] %v252
                %v254 = vld [vmem:[%s216 + $0x120] sm:$0xff]
                %255 = vst [vmem:[%s217 + $0x90] sm:$0xff] %v254
                %v256 = vld [vmem:[%s216 + $0x128] sm:$0xff]
                %257 = vst [vmem:[%s217 + $0x98] sm:$0xff] %v256
                %v258 = vld [vmem:[%s216 + $0x140] sm:$0xff]
                %259 = vst [vmem:[%s217 + $0xa0] sm:$0xff] %v258
                %v260 = vld [vmem:[%s216 + $0x148] sm:$0xff]
                %261 = vst [vmem:[%s217 + $0xa8] sm:$0xff] %v260
                %v262 = vld [vmem:[%s216 + $0x160] sm:$0xff]
                %263 = vst [vmem:[%s217 + $0xb0] sm:$0xff] %v262
                %v264 = vld [vmem:[%s216 + $0x168] sm:$0xff]
                %265 = vst [vmem:[%s217 + $0xb8] sm:$0xff] %v264
                %v266 = vld [vmem:[%s216 + $0x180] sm:$0xff]
                %267 = vst [vmem:[%s217 + $0xc0] sm:$0xff] %v266
                %v268 = vld [vmem:[%s216 + $0x188] sm:$0xff]
                %269 = vst [vmem:[%s217 + $0xc8] sm:$0xff] %v268
                %v270 = vld [vmem:[%s216 + $0x1a0] sm:$0xff]
                %271 = vst [vmem:[%s217 + $0xd0] sm:$0xff] %v270
                %v272 = vld [vmem:[%s216 + $0x1a8] sm:$0xff]
                %273 = vst [vmem:[%s217 + $0xd8] sm:$0xff] %v272
                %v274 = vld [vmem:[%s216 + $0x1c0] sm:$0xff]
                %275 = vst [vmem:[%s217 + $0xe0] sm:$0xff] %v274
                %v276 = vld [vmem:[%s216 + $0x1c8] sm:$0xff]
                %277 = vst [vmem:[%s217 + $0xe8] sm:$0xff] %v276
                %v278 = vld [vmem:[%s216 + $0x1e0] sm:$0xff]
                %279 = vst [vmem:[%s217 + $0xf0] sm:$0xff] %v278
                %v280 = vld [vmem:[%s216 + $0x1e8] sm:$0xff]
                %281 = vst [vmem:[%s217 + $0xf8] sm:$0xff] %v280
                %v282 = vld [vmem:[%s216 + $0x200] sm:$0xff]
                %283 = vst [vmem:[%s217 + $0x100] sm:$0xff] %v282
                %v284 = vld [vmem:[%s216 + $0x208] sm:$0xff]
                %285 = vst [vmem:[%s217 + $0x108] sm:$0xff] %v284
                %v286 = vld [vmem:[%s216 + $0x220] sm:$0xff]
                %287 = vst [vmem:[%s217 + $0x110] sm:$0xff] %v286
                %v288 = vld [vmem:[%s216 + $0x228] sm:$0xff]
                %289 = vst [vmem:[%s217 + $0x118] sm:$0xff] %v288
                %v290 = vld [vmem:[%s216 + $0x240] sm:$0xff]
                %291 = vst [vmem:[%s217 + $0x120] sm:$0xff] %v290
                %v292 = vld [vmem:[%s216 + $0x248] sm:$0xff]
                %293 = vst [vmem:[%s217 + $0x128] sm:$0xff] %v292
                %v294 = vld [vmem:[%s216 + $0x260] sm:$0xff]
                %295 = vst [vmem:[%s217 + $0x130] sm:$0xff] %v294
                %v296 = vld [vmem:[%s216 + $0x268] sm:$0xff]
                %297 = vst [vmem:[%s217 + $0x138] sm:$0xff] %v296
                %v298 = vld [vmem:[%s216 + $0x280] sm:$0xff]
                %299 = vst [vmem:[%s217 + $0x140] sm:$0xff] %v298
                %v300 = vld [vmem:[%s216 + $0x288] sm:$0xff]
                %301 = vst [vmem:[%s217 + $0x148] sm:$0xff] %v300
                %v302 = vld [vmem:[%s216 + $0x2a0] sm:$0xff]
                %303 = vst [vmem:[%s217 + $0x150] sm:$0xff] %v302
                %v304 = vld [vmem:[%s216 + $0x2a8] sm:$0xff]
                %305 = vst [vmem:[%s217 + $0x158] sm:$0xff] %v304
                %v306 = vld [vmem:[%s216 + $0x2c0] sm:$0xff]
                %307 = vst [vmem:[%s217 + $0x160] sm:$0xff] %v306
                %v308 = vld [vmem:[%s216 + $0x2c8] sm:$0xff]
                %309 = vst [vmem:[%s217 + $0x168] sm:$0xff] %v308
                %v310 = vld [vmem:[%s216 + $0x2e0] sm:$0xff]
                %311 = vst [vmem:[%s217 + $0x170] sm:$0xff] %v310
                %v312 = vld [vmem:[%s216 + $0x2e8] sm:$0xff]
                %313 = vst [vmem:[%s217 + $0x178] sm:$0xff] %v312
                %v314 = vld [vmem:[%s216 + $0x300] sm:$0xff]
                %315 = vst [vmem:[%s217 + $0x180] sm:$0xff] %v314
                %v316 = vld [vmem:[%s216 + $0x308] sm:$0xff]
                %317 = vst [vmem:[%s217 + $0x188] sm:$0xff] %v316
                %v318 = vld [vmem:[%s216 + $0x320] sm:$0xff]
                %319 = vst [vmem:[%s217 + $0x190] sm:$0xff] %v318
                %v320 = vld [vmem:[%s216 + $0x328] sm:$0xff]
                %321 = vst [vmem:[%s217 + $0x198] sm:$0xff] %v320
                %v322 = vld [vmem:[%s216 + $0x340] sm:$0xff]
                %323 = vst [vmem:[%s217 + $0x1a0] sm:$0xff] %v322
                %v324 = vld [vmem:[%s216 + $0x348] sm:$0xff]
                %325 = vst [vmem:[%s217 + $0x1a8] sm:$0xff] %v324
                %v326 = vld [vmem:[%s216 + $0x360] sm:$0xff]
                %327 = vst [vmem:[%s217 + $0x1b0] sm:$0xff] %v326
                %v328 = vld [vmem:[%s216 + $0x368] sm:$0xff]
                %329 = vst [vmem:[%s217 + $0x1b8] sm:$0xff] %v328
                %v330 = vld [vmem:[%s216 + $0x380] sm:$0xff]
                %331 = vst [vmem:[%s217 + $0x1c0] sm:$0xff] %v330
                %v332 = vld [vmem:[%s216 + $0x388] sm:$0xff]
                %333 = vst [vmem:[%s217 + $0x1c8] sm:$0xff] %v332
                %v334 = vld [vmem:[%s216 + $0x3a0] sm:$0xff]
                %335 = vst [vmem:[%s217 + $0x1d0] sm:$0xff] %v334
                %v336 = vld [vmem:[%s216 + $0x3a8] sm:$0xff]
                %337 = vst [vmem:[%s217 + $0x1d8] sm:$0xff] %v336
                %v338 = vld [vmem:[%s216 + $0x3c0] sm:$0xff]
                %339 = vst [vmem:[%s217 + $0x1e0] sm:$0xff] %v338
                %v340 = vld [vmem:[%s216 + $0x3c8] sm:$0xff]
                %341 = vst [vmem:[%s217 + $0x1e8] sm:$0xff] %v340
                %v342 = vld [vmem:[%s216 + $0x3e0] sm:$0xff]
                %343 = vst [vmem:[%s217 + $0x1f0] sm:$0xff] %v342
                %v344 = vld [vmem:[%s216 + $0x3e8] sm:$0xff]
                %345 = vst [vmem:[%s217 + $0x1f8] sm:$0xff] %v344
              $region37: #{encoder_overall_forward.13} parent=31 // loop_footer
                %s215 = sadd.s32 1, %s211
              $region38: #{encoder_overall_forward.13} parent=31 // loop_footer_branch
                %210 = sbr.rel target = $region34
              $region39: #{encoder_overall_forward.13} parent=31 // loop_exit
                _
            $region32: #{encoder_overall_forward.13} parent=27 // pred_fallthru
              _
            // Predicated region
            $region40: #{encoder_overall_forward.13} parent=27 // pred_check
              _
            $region41: #{encoder_overall_forward.13} parent=27 // pred_check_branch
              %347 = sbr.rel target = $region43
            $region42: #{encoder_overall_forward.13} parent=27 // pred_region
              _
            $region43: #{encoder_overall_forward.13} parent=27 // pred_fallthru
              _
          $region28: #{encoder_overall_forward.13} parent=23 // pred_fallthru
            _
          %348 = vnop
        $region24: #{encoder_overall_forward.13} parent=19 // pred_fallthru
          _
        // Predicated region
        $region44: #{encoder_overall_forward.13} parent=19 // pred_check
          %p349 = pneg %p101
        $region45: #{encoder_overall_forward.13} parent=19 // pred_check_branch
          %351 = sbr.rel (%p349) target = $region47
        $region46: #{encoder_overall_forward.13} parent=19 // pred_region
          %s352 = sand.u32 %s91, 1
          %s353 = sand.u32 %s91, 1
          %s354 = smul.addr %s353, 512
          %s355 = scalar_lea.vmem [#allocation6], %s354
          %s356 = smul.u32 32, %s18
          %s357 = smul.u32 2, %s20
          %s358 = smul.addr %s356, 4
          %s359 = sadd.s32 %s357, %s358
          %s360 = smul.addr %s359, 8
          %s361 = scalar_lea.vmem %s2, %s360
          // Predicated region
          $region48: #{encoder_overall_forward.13} parent=46 // pred_check
            _
          $region49: #{encoder_overall_forward.13} parent=46 // pred_check_branch
            %363 = sbr.rel (0) target = $region51
          $region50: #{encoder_overall_forward.13} parent=46 // pred_region
            // Predicated region
            $region52: #{encoder_overall_forward.13} parent=50 // pred_check
              _
            $region53: #{encoder_overall_forward.13} parent=50 // pred_check_branch
              %365 = sbr.rel (0) target = $region55
            $region54: #{encoder_overall_forward.13} parent=50 // pred_region
              loop: start=0, step=1, limit=1
              $region56: #{encoder_overall_forward.13} parent=54 // loop_pre_header
                _
              $region57: #{encoder_overall_forward.13} parent=54 // loop_header
                %s367 = sphi 0, %s371
                %p368 = scmp.ge.s32.totalorder %s367, 1
                %s372 = sphi %s361, %s361
                %s373 = sphi %s355, %s355
              $region58: #{encoder_overall_forward.13} parent=54 // loop_header_branch
                %370 = sbr.rel (%p368) target = $region62
              $region59: #{encoder_overall_forward.13} parent=54 // loop_body
                %v374 = vld [vmem:[%s372] sm:$0xff]
                %375 = vst [vmem:[%s373] sm:$0xff] %v374
                %v376 = vld [vmem:[%s372 + $0x8] sm:$0xff]
                %377 = vst [vmem:[%s373 + $0x8] sm:$0xff] %v376
                %v378 = vld [vmem:[%s372 + $0x20] sm:$0xff]
                %379 = vst [vmem:[%s373 + $0x10] sm:$0xff] %v378
                %v380 = vld [vmem:[%s372 + $0x28] sm:$0xff]
                %381 = vst [vmem:[%s373 + $0x18] sm:$0xff] %v380
                %v382 = vld [vmem:[%s372 + $0x40] sm:$0xff]
                %383 = vst [vmem:[%s373 + $0x20] sm:$0xff] %v382
                %v384 = vld [vmem:[%s372 + $0x48] sm:$0xff]
                %385 = vst [vmem:[%s373 + $0x28] sm:$0xff] %v384
                %v386 = vld [vmem:[%s372 + $0x60] sm:$0xff]
                %387 = vst [vmem:[%s373 + $0x30] sm:$0xff] %v386
                %v388 = vld [vmem:[%s372 + $0x68] sm:$0xff]
                %389 = vst [vmem:[%s373 + $0x38] sm:$0xff] %v388
                %v390 = vld [vmem:[%s372 + $0x80] sm:$0xff]
                %391 = vst [vmem:[%s373 + $0x40] sm:$0xff] %v390
                %v392 = vld [vmem:[%s372 + $0x88] sm:$0xff]
                %393 = vst [vmem:[%s373 + $0x48] sm:$0xff] %v392
                %v394 = vld [vmem:[%s372 + $0xa0] sm:$0xff]
                %395 = vst [vmem:[%s373 + $0x50] sm:$0xff] %v394
                %v396 = vld [vmem:[%s372 + $0xa8] sm:$0xff]
                %397 = vst [vmem:[%s373 + $0x58] sm:$0xff] %v396
                %v398 = vld [vmem:[%s372 + $0xc0] sm:$0xff]
                %399 = vst [vmem:[%s373 + $0x60] sm:$0xff] %v398
                %v400 = vld [vmem:[%s372 + $0xc8] sm:$0xff]
                %401 = vst [vmem:[%s373 + $0x68] sm:$0xff] %v400
                %v402 = vld [vmem:[%s372 + $0xe0] sm:$0xff]
                %403 = vst [vmem:[%s373 + $0x70] sm:$0xff] %v402
                %v404 = vld [vmem:[%s372 + $0xe8] sm:$0xff]
                %405 = vst [vmem:[%s373 + $0x78] sm:$0xff] %v404
                %v406 = vld [vmem:[%s372 + $0x100] sm:$0xff]
                %407 = vst [vmem:[%s373 + $0x80] sm:$0xff] %v406
                %v408 = vld [vmem:[%s372 + $0x108] sm:$0xff]
                %409 = vst [vmem:[%s373 + $0x88] sm:$0xff] %v408
                %v410 = vld [vmem:[%s372 + $0x120] sm:$0xff]
                %411 = vst [vmem:[%s373 + $0x90] sm:$0xff] %v410
                %v412 = vld [vmem:[%s372 + $0x128] sm:$0xff]
                %413 = vst [vmem:[%s373 + $0x98] sm:$0xff] %v412
                %v414 = vld [vmem:[%s372 + $0x140] sm:$0xff]
                %415 = vst [vmem:[%s373 + $0xa0] sm:$0xff] %v414
                %v416 = vld [vmem:[%s372 + $0x148] sm:$0xff]
                %417 = vst [vmem:[%s373 + $0xa8] sm:$0xff] %v416
                %v418 = vld [vmem:[%s372 + $0x160] sm:$0xff]
                %419 = vst [vmem:[%s373 + $0xb0] sm:$0xff] %v418
                %v420 = vld [vmem:[%s372 + $0x168] sm:$0xff]
                %421 = vst [vmem:[%s373 + $0xb8] sm:$0xff] %v420
                %v422 = vld [vmem:[%s372 + $0x180] sm:$0xff]
                %423 = vst [vmem:[%s373 + $0xc0] sm:$0xff] %v422
                %v424 = vld [vmem:[%s372 + $0x188] sm:$0xff]
                %425 = vst [vmem:[%s373 + $0xc8] sm:$0xff] %v424
                %v426 = vld [vmem:[%s372 + $0x1a0] sm:$0xff]
                %427 = vst [vmem:[%s373 + $0xd0] sm:$0xff] %v426
                %v428 = vld [vmem:[%s372 + $0x1a8] sm:$0xff]
                %429 = vst [vmem:[%s373 + $0xd8] sm:$0xff] %v428
                %v430 = vld [vmem:[%s372 + $0x1c0] sm:$0xff]
                %431 = vst [vmem:[%s373 + $0xe0] sm:$0xff] %v430
                %v432 = vld [vmem:[%s372 + $0x1c8] sm:$0xff]
                %433 = vst [vmem:[%s373 + $0xe8] sm:$0xff] %v432
                %v434 = vld [vmem:[%s372 + $0x1e0] sm:$0xff]
                %435 = vst [vmem:[%s373 + $0xf0] sm:$0xff] %v434
                %v436 = vld [vmem:[%s372 + $0x1e8] sm:$0xff]
                %437 = vst [vmem:[%s373 + $0xf8] sm:$0xff] %v436
                %v438 = vld [vmem:[%s372 + $0x200] sm:$0xff]
                %439 = vst [vmem:[%s373 + $0x100] sm:$0xff] %v438
                %v440 = vld [vmem:[%s372 + $0x208] sm:$0xff]
                %441 = vst [vmem:[%s373 + $0x108] sm:$0xff] %v440
                %v442 = vld [vmem:[%s372 + $0x220] sm:$0xff]
                %443 = vst [vmem:[%s373 + $0x110] sm:$0xff] %v442
                %v444 = vld [vmem:[%s372 + $0x228] sm:$0xff]
                %445 = vst [vmem:[%s373 + $0x118] sm:$0xff] %v444
                %v446 = vld [vmem:[%s372 + $0x240] sm:$0xff]
                %447 = vst [vmem:[%s373 + $0x120] sm:$0xff] %v446
                %v448 = vld [vmem:[%s372 + $0x248] sm:$0xff]
                %449 = vst [vmem:[%s373 + $0x128] sm:$0xff] %v448
                %v450 = vld [vmem:[%s372 + $0x260] sm:$0xff]
                %451 = vst [vmem:[%s373 + $0x130] sm:$0xff] %v450
                %v452 = vld [vmem:[%s372 + $0x268] sm:$0xff]
                %453 = vst [vmem:[%s373 + $0x138] sm:$0xff] %v452
                %v454 = vld [vmem:[%s372 + $0x280] sm:$0xff]
                %455 = vst [vmem:[%s373 + $0x140] sm:$0xff] %v454
                %v456 = vld [vmem:[%s372 + $0x288] sm:$0xff]
                %457 = vst [vmem:[%s373 + $0x148] sm:$0xff] %v456
                %v458 = vld [vmem:[%s372 + $0x2a0] sm:$0xff]
                %459 = vst [vmem:[%s373 + $0x150] sm:$0xff] %v458
                %v460 = vld [vmem:[%s372 + $0x2a8] sm:$0xff]
                %461 = vst [vmem:[%s373 + $0x158] sm:$0xff] %v460
                %v462 = vld [vmem:[%s372 + $0x2c0] sm:$0xff]
                %463 = vst [vmem:[%s373 + $0x160] sm:$0xff] %v462
                %v464 = vld [vmem:[%s372 + $0x2c8] sm:$0xff]
                %465 = vst [vmem:[%s373 + $0x168] sm:$0xff] %v464
                %v466 = vld [vmem:[%s372 + $0x2e0] sm:$0xff]
                %467 = vst [vmem:[%s373 + $0x170] sm:$0xff] %v466
                %v468 = vld [vmem:[%s372 + $0x2e8] sm:$0xff]
                %469 = vst [vmem:[%s373 + $0x178] sm:$0xff] %v468
                %v470 = vld [vmem:[%s372 + $0x300] sm:$0xff]
                %471 = vst [vmem:[%s373 + $0x180] sm:$0xff] %v470
                %v472 = vld [vmem:[%s372 + $0x308] sm:$0xff]
                %473 = vst [vmem:[%s373 + $0x188] sm:$0xff] %v472
                %v474 = vld [vmem:[%s372 + $0x320] sm:$0xff]
                %475 = vst [vmem:[%s373 + $0x190] sm:$0xff] %v474
                %v476 = vld [vmem:[%s372 + $0x328] sm:$0xff]
                %477 = vst [vmem:[%s373 + $0x198] sm:$0xff] %v476
                %v478 = vld [vmem:[%s372 + $0x340] sm:$0xff]
                %479 = vst [vmem:[%s373 + $0x1a0] sm:$0xff] %v478
                %v480 = vld [vmem:[%s372 + $0x348] sm:$0xff]
                %481 = vst [vmem:[%s373 + $0x1a8] sm:$0xff] %v480
                %v482 = vld [vmem:[%s372 + $0x360] sm:$0xff]
                %483 = vst [vmem:[%s373 + $0x1b0] sm:$0xff] %v482
                %v484 = vld [vmem:[%s372 + $0x368] sm:$0xff]
                %485 = vst [vmem:[%s373 + $0x1b8] sm:$0xff] %v484
                %v486 = vld [vmem:[%s372 + $0x380] sm:$0xff]
                %487 = vst [vmem:[%s373 + $0x1c0] sm:$0xff] %v486
                %v488 = vld [vmem:[%s372 + $0x388] sm:$0xff]
                %489 = vst [vmem:[%s373 + $0x1c8] sm:$0xff] %v488
                %v490 = vld [vmem:[%s372 + $0x3a0] sm:$0xff]
                %491 = vst [vmem:[%s373 + $0x1d0] sm:$0xff] %v490
                %v492 = vld [vmem:[%s372 + $0x3a8] sm:$0xff]
                %493 = vst [vmem:[%s373 + $0x1d8] sm:$0xff] %v492
                %v494 = vld [vmem:[%s372 + $0x3c0] sm:$0xff]
                %495 = vst [vmem:[%s373 + $0x1e0] sm:$0xff] %v494
                %v496 = vld [vmem:[%s372 + $0x3c8] sm:$0xff]
                %497 = vst [vmem:[%s373 + $0x1e8] sm:$0xff] %v496
                %v498 = vld [vmem:[%s372 + $0x3e0] sm:$0xff]
                %499 = vst [vmem:[%s373 + $0x1f0] sm:$0xff] %v498
                %v500 = vld [vmem:[%s372 + $0x3e8] sm:$0xff]
                %501 = vst [vmem:[%s373 + $0x1f8] sm:$0xff] %v500
              $region60: #{encoder_overall_forward.13} parent=54 // loop_footer
                %s371 = sadd.s32 1, %s367
              $region61: #{encoder_overall_forward.13} parent=54 // loop_footer_branch
                %366 = sbr.rel target = $region57
              $region62: #{encoder_overall_forward.13} parent=54 // loop_exit
                _
            $region55: #{encoder_overall_forward.13} parent=50 // pred_fallthru
              _
            // Predicated region
            $region63: #{encoder_overall_forward.13} parent=50 // pred_check
              _
            $region64: #{encoder_overall_forward.13} parent=50 // pred_check_branch
              %503 = sbr.rel target = $region66
            $region65: #{encoder_overall_forward.13} parent=50 // pred_region
              _
            $region66: #{encoder_overall_forward.13} parent=50 // pred_fallthru
              _
          $region51: #{encoder_overall_forward.13} parent=46 // pred_fallthru
            _
          %504 = vnop
        $region47: #{encoder_overall_forward.13} parent=19 // pred_fallthru
          _
        // Predicated region
        $region67: #{encoder_overall_forward.13} parent=19 // pred_check
          %p505 = pneg %p129
        $region68: #{encoder_overall_forward.13} parent=19 // pred_check_branch
          %507 = sbr.rel (%p505) target = $region70
        $region69: #{encoder_overall_forward.13} parent=19 // pred_region
          %s508 = smul.u32 32, %s20
          %p509 = scmp.lt.s32.totalorder %s508, 63
          %s510 = scalar_select %p509, %s508, 63
          %p511 = scmp.lt.s32.totalorder %s19, 0
          %s512 = scalar_select %p511, %s19, 0
          %s513 = sadd.s32 %s512, %s510
          %s514 = smul.addr %s513, 8
          %s515 = scalar_lea.vmem %s3, %s514
          %s516 = smul.u32 32, %s20
        $region70: #{encoder_overall_forward.13} parent=19 // pred_fallthru
          _
      $region20: #{encoder_overall_forward.13} parent=5 // pred_fallthru
        _
      %p517 = scmp.le.s32.totalorder 1, %s11
      %p518 = scmp.lt.s32.totalorder %s11, 5
      %p519 = pnand %p517, %p518
      %p520 = pneg %p519
      // Predicated region
      $region71: #{encoder_overall_forward.13} parent=5 // pred_check
        _
      $region72: #{encoder_overall_forward.13} parent=5 // pred_check_branch
        %522 = sbr.rel (%p519) target = $region74
      $region73: #{encoder_overall_forward.13} parent=5 // pred_region
        %s523 = ssub.s32 %s11, 1
        // Predicated region
        $region75: #{encoder_overall_forward.13} parent=73 // pred_check
          %p524 = pneg %p51
        $region76: #{encoder_overall_forward.13} parent=73 // pred_check_branch
          %526 = sbr.rel (%p524) target = $region78
        $region77: #{encoder_overall_forward.13} parent=73 // pred_region
          %527 = dma.done [#allocation4], 16
        $region78: #{encoder_overall_forward.13} parent=73 // pred_fallthru
          _
        %s528 = sand.u32 %s66, 1
        %s529 = sand.u32 %s66, 1
        %s530 = smul.addr %s529, 512
        %s531 = scalar_lea.vmem [#allocation5], %s530
        // Predicated region
        $region79: #{encoder_overall_forward.13} parent=73 // pred_check
          %p532 = pneg %p79
        $region80: #{encoder_overall_forward.13} parent=73 // pred_check_branch
          %534 = sbr.rel (%p532) target = $region82
        $region81: #{encoder_overall_forward.13} parent=73 // pred_region
          _
        $region82: #{encoder_overall_forward.13} parent=73 // pred_fallthru
          _
        %s535 = sand.u32 %s94, 1
        %s536 = sand.u32 %s94, 1
        %s537 = smul.addr %s536, 512
        %s538 = scalar_lea.vmem [#allocation6], %s537
        // Predicated region
        $region83: #{encoder_overall_forward.13} parent=73 // pred_check
          %p539 = pneg %p107
        $region84: #{encoder_overall_forward.13} parent=73 // pred_check_branch
          %541 = sbr.rel (%p539) target = $region86
        $region85: #{encoder_overall_forward.13} parent=73 // pred_region
          _
        $region86: #{encoder_overall_forward.13} parent=73 // pred_fallthru
          _
        %542 = sfence
        %p543 = pneg %p51
        %p544 = pneg %p48
        %s545 = sand.u32 %s66, 1
        %s546 = sand.u32 %s66, 1
        %s547 = smul.addr %s546, 512
        %s548 = scalar_lea.vmem [#allocation5], %s547
        %p549 = pneg %p79
        %p550 = pneg %p76
        %s551 = sand.u32 %s94, 1
        %s552 = sand.u32 %s94, 1
        %s553 = smul.addr %s552, 512
        %s554 = scalar_lea.vmem [#allocation6], %s553
        %p555 = pneg %p107
        %p556 = pneg %p104
        %s557 = smul.u32 32, %s23
        %p558 = scmp.lt.s32.totalorder %s557, 63
        %s559 = scalar_select %p558, %s557, 63
        %p560 = scmp.lt.s32.totalorder %s22, 0
        %s561 = scalar_select %p560, %s22, 0
        %s562 = sadd.s32 %s561, %s559
        %s563 = smul.addr %s562, 8
        %s564 = scalar_lea.vmem %s3, %s563
        %p565 = pneg %p135
        %p566 = pneg %p132
        %p567 = pneg %p163
        %p568 = pneg %p160
        %s569 = smul.u32 32, %s21
        %p570 = scmp.lt.s32.totalorder %s569, 63
        %s571 = scalar_select %p570, %s569, 63
        %p572 = scmp.lt.s32.totalorder %s22, 0
        %s573 = scalar_select %p572, %s22, 0
        %s574 = sadd.s32 %s573, %s571
        %s575 = smul.addr %s574, 8
        %s576 = scalar_lea.vmem %s4, %s575
        %s577 = smul.u32 32, %s21
        %s578 = smul.u32 2, %s23
        %s579 = smul.u32 32, %s21
        %s580 = smul.u32 2, %s23
        %s581 = smul.u32 32, %s23
        %p582 = scmp.lt.s32.totalorder %s581, 63
        %s583 = scalar_select %p582, %s581, 63
        %p584 = scmp.lt.s32.totalorder %s22, 0
        %s585 = scalar_select %p584, %s22, 0
        %s586 = sadd.s32 %s585, %s583
        %s587 = smul.addr %s586, 8
        %s588 = scalar_lea.vmem %s3, %s587
        %s589 = smul.u32 32, %s23
        %s590 = smul.u32 32, %s21
        %p591 = scmp.lt.s32.totalorder %s590, 63
        %s592 = scalar_select %p591, %s590, 63
        %p593 = scmp.lt.s32.totalorder %s22, 0
        %s594 = scalar_select %p593, %s22, 0
        %s595 = sadd.s32 %s594, %s592
        %s596 = smul.addr %s595, 8
        %s597 = scalar_lea.vmem %s4, %s596
        %s598 = smul.u32 32, %s21
        %p599 = scmp.eq.s32.totalorder %s23, 0
        // Predicated region
        $region87: #{encoder_overall_forward.13} parent=73 // pred_check
          %p600 = pneg %p599
        $region88: #{encoder_overall_forward.13} parent=73 // pred_check_branch
          %602 = sbr.rel (%p600) target = $region90
        $region89: #{encoder_overall_forward.13} parent=73 // pred_region
          %603 = vst [vmem:[#allocation2] sm:$0xff] 0.0
          %604 = vst [vmem:[#allocation2 + $0x8] sm:$0xff] 0.0
          %605 = vst [vmem:[#allocation2 + $0x10] sm:$0xff] 0.0
          %606 = vst [vmem:[#allocation2 + $0x18] sm:$0xff] 0.0
          %607 = vst [vmem:[#allocation2 + $0x20] sm:$0xff] 0.0
          %608 = vst [vmem:[#allocation2 + $0x28] sm:$0xff] 0.0
          %609 = vst [vmem:[#allocation2 + $0x30] sm:$0xff] 0.0
          %610 = vst [vmem:[#allocation2 + $0x38] sm:$0xff] 0.0
          %611 = vst [vmem:[#allocation2 + $0x40] sm:$0xff] 0.0
          %612 = vst [vmem:[#allocation2 + $0x48] sm:$0xff] 0.0
          %613 = vst [vmem:[#allocation2 + $0x50] sm:$0xff] 0.0
          %614 = vst [vmem:[#allocation2 + $0x58] sm:$0xff] 0.0
          %615 = vst [vmem:[#allocation2 + $0x60] sm:$0xff] 0.0
          %616 = vst [vmem:[#allocation2 + $0x68] sm:$0xff] 0.0
          %617 = vst [vmem:[#allocation2 + $0x70] sm:$0xff] 0.0
          %618 = vst [vmem:[#allocation2 + $0x78] sm:$0xff] 0.0
          %619 = vst [vmem:[#allocation2 + $0x80] sm:$0xff] 0.0
          %620 = vst [vmem:[#allocation2 + $0x88] sm:$0xff] 0.0
          %621 = vst [vmem:[#allocation2 + $0x90] sm:$0xff] 0.0
          %622 = vst [vmem:[#allocation2 + $0x98] sm:$0xff] 0.0
          %623 = vst [vmem:[#allocation2 + $0xa0] sm:$0xff] 0.0
          %624 = vst [vmem:[#allocation2 + $0xa8] sm:$0xff] 0.0
          %625 = vst [vmem:[#allocation2 + $0xb0] sm:$0xff] 0.0
          %626 = vst [vmem:[#allocation2 + $0xb8] sm:$0xff] 0.0
          %627 = vst [vmem:[#allocation2 + $0xc0] sm:$0xff] 0.0
          %628 = vst [vmem:[#allocation2 + $0xc8] sm:$0xff] 0.0
          %629 = vst [vmem:[#allocation2 + $0xd0] sm:$0xff] 0.0
          %630 = vst [vmem:[#allocation2 + $0xd8] sm:$0xff] 0.0
          %631 = vst [vmem:[#allocation2 + $0xe0] sm:$0xff] 0.0
          %632 = vst [vmem:[#allocation2 + $0xe8] sm:$0xff] 0.0
          %633 = vst [vmem:[#allocation2 + $0xf0] sm:$0xff] 0.0
          %634 = vst [vmem:[#allocation2 + $0xf8] sm:$0xff] 0.0
        $region90: #{encoder_overall_forward.13} parent=73 // pred_fallthru
          _
        %s635 = sld [smem:[#allocation3]]
        %v636 = vld [vmem:[%s531] sm:$0xff]
        %v637 = vld [vmem:[%s531 + $0x8] sm:$0xff]
        %v638 = vld [vmem:[%s531 + $0x10] sm:$0xff]
        %v639 = vld [vmem:[%s531 + $0x18] sm:$0xff]
        %v640 = vld [vmem:[%s531 + $0x20] sm:$0xff]
        %v641 = vld [vmem:[%s531 + $0x28] sm:$0xff]
        %v642 = vld [vmem:[%s531 + $0x30] sm:$0xff]
        %v643 = vld [vmem:[%s531 + $0x38] sm:$0xff]
        %v644 = vld [vmem:[%s531 + $0x40] sm:$0xff]
        %v645 = vld [vmem:[%s531 + $0x48] sm:$0xff]
        %v646 = vld [vmem:[%s531 + $0x50] sm:$0xff]
        %v647 = vld [vmem:[%s531 + $0x58] sm:$0xff]
        %v648 = vld [vmem:[%s531 + $0x60] sm:$0xff]
        %v649 = vld [vmem:[%s531 + $0x68] sm:$0xff]
        %v650 = vld [vmem:[%s531 + $0x70] sm:$0xff]
        %v651 = vld [vmem:[%s531 + $0x78] sm:$0xff]
        %v652 = vld [vmem:[%s531 + $0x80] sm:$0xff]
        %v653 = vld [vmem:[%s531 + $0x88] sm:$0xff]
        %v654 = vld [vmem:[%s531 + $0x90] sm:$0xff]
        %v655 = vld [vmem:[%s531 + $0x98] sm:$0xff]
        %v656 = vld [vmem:[%s531 + $0xa0] sm:$0xff]
        %v657 = vld [vmem:[%s531 + $0xa8] sm:$0xff]
        %v658 = vld [vmem:[%s531 + $0xb0] sm:$0xff]
        %v659 = vld [vmem:[%s531 + $0xb8] sm:$0xff]
        %v660 = vld [vmem:[%s531 + $0xc0] sm:$0xff]
        %v661 = vld [vmem:[%s531 + $0xc8] sm:$0xff]
        %v662 = vld [vmem:[%s531 + $0xd0] sm:$0xff]
        %v663 = vld [vmem:[%s531 + $0xd8] sm:$0xff]
        %v664 = vld [vmem:[%s531 + $0xe0] sm:$0xff]
        %v665 = vld [vmem:[%s531 + $0xe8] sm:$0xff]
        %v666 = vld [vmem:[%s531 + $0xf0] sm:$0xff]
        %v667 = vld [vmem:[%s531 + $0xf8] sm:$0xff]
        %v668 = vld [vmem:[%s531 + $0x100] sm:$0xff]
        %v669 = vld [vmem:[%s531 + $0x108] sm:$0xff]
        %v670 = vld [vmem:[%s531 + $0x110] sm:$0xff]
        %v671 = vld [vmem:[%s531 + $0x118] sm:$0xff]
        %v672 = vld [vmem:[%s531 + $0x120] sm:$0xff]
        %v673 = vld [vmem:[%s531 + $0x128] sm:$0xff]
        %v674 = vld [vmem:[%s531 + $0x130] sm:$0xff]
        %v675 = vld [vmem:[%s531 + $0x138] sm:$0xff]
        %v676 = vld [vmem:[%s531 + $0x140] sm:$0xff]
        %v677 = vld [vmem:[%s531 + $0x148] sm:$0xff]
        %v678 = vld [vmem:[%s531 + $0x150] sm:$0xff]
        %v679 = vld [vmem:[%s531 + $0x158] sm:$0xff]
        %v680 = vld [vmem:[%s531 + $0x160] sm:$0xff]
        %v681 = vld [vmem:[%s531 + $0x168] sm:$0xff]
        %v682 = vld [vmem:[%s531 + $0x170] sm:$0xff]
        %v683 = vld [vmem:[%s531 + $0x178] sm:$0xff]
        %v684 = vld [vmem:[%s531 + $0x180] sm:$0xff]
        %v685 = vld [vmem:[%s531 + $0x188] sm:$0xff]
        %v686 = vld [vmem:[%s531 + $0x190] sm:$0xff]
        %v687 = vld [vmem:[%s531 + $0x198] sm:$0xff]
        %v688 = vld [vmem:[%s531 + $0x1a0] sm:$0xff]
        %v689 = vld [vmem:[%s531 + $0x1a8] sm:$0xff]
        %v690 = vld [vmem:[%s531 + $0x1b0] sm:$0xff]
        %v691 = vld [vmem:[%s531 + $0x1b8] sm:$0xff]
        %v692 = vld [vmem:[%s531 + $0x1c0] sm:$0xff]
        %v693 = vld [vmem:[%s531 + $0x1c8] sm:$0xff]
        %v694 = vld [vmem:[%s531 + $0x1d0] sm:$0xff]
        %v695 = vld [vmem:[%s531 + $0x1d8] sm:$0xff]
        %v696 = vld [vmem:[%s531 + $0x1e0] sm:$0xff]
        %v697 = vld [vmem:[%s531 + $0x1e8] sm:$0xff]
        %v698 = vld [vmem:[%s531 + $0x1f0] sm:$0xff]
        %v699 = vld [vmem:[%s531 + $0x1f8] sm:$0xff]
        %v700 = vstv %s635
        %v701 = vmul.f32 %v700, %v636
        %v702 = vmul.f32 %v700, %v637
        %v703 = vmul.f32 %v700, %v638
        %v704 = vmul.f32 %v700, %v639
        %v705 = vmul.f32 %v700, %v640
        %v706 = vmul.f32 %v700, %v641
        %v707 = vmul.f32 %v700, %v642
        %v708 = vmul.f32 %v700, %v643
        %v709 = vmul.f32 %v700, %v644
        %v710 = vmul.f32 %v700, %v645
        %v711 = vmul.f32 %v700, %v646
        %v712 = vmul.f32 %v700, %v647
        %v713 = vmul.f32 %v700, %v648
        %v714 = vmul.f32 %v700, %v649
        %v715 = vmul.f32 %v700, %v650
        %v716 = vmul.f32 %v700, %v651
        %v717 = vmul.f32 %v700, %v652
        %v718 = vmul.f32 %v700, %v653
        %v719 = vmul.f32 %v700, %v654
        %v720 = vmul.f32 %v700, %v655
        %v721 = vmul.f32 %v700, %v656
        %v722 = vmul.f32 %v700, %v657
        %v723 = vmul.f32 %v700, %v658
        %v724 = vmul.f32 %v700, %v659
        %v725 = vmul.f32 %v700, %v660
        %v726 = vmul.f32 %v700, %v661
        %v727 = vmul.f32 %v700, %v662
        %v728 = vmul.f32 %v700, %v663
        %v729 = vmul.f32 %v700, %v664
        %v730 = vmul.f32 %v700, %v665
        %v731 = vmul.f32 %v700, %v666
        %v732 = vmul.f32 %v700, %v667
        %v733 = vmul.f32 %v700, %v668
        %v734 = vmul.f32 %v700, %v669
        %v735 = vmul.f32 %v700, %v670
        %v736 = vmul.f32 %v700, %v671
        %v737 = vmul.f32 %v700, %v672
        %v738 = vmul.f32 %v700, %v673
        %v739 = vmul.f32 %v700, %v674
        %v740 = vmul.f32 %v700, %v675
        %v741 = vmul.f32 %v700, %v676
        %v742 = vmul.f32 %v700, %v677
        %v743 = vmul.f32 %v700, %v678
        %v744 = vmul.f32 %v700, %v679
        %v745 = vmul.f32 %v700, %v680
        %v746 = vmul.f32 %v700, %v681
        %v747 = vmul.f32 %v700, %v682
        %v748 = vmul.f32 %v700, %v683
        %v749 = vmul.f32 %v700, %v684
        %v750 = vmul.f32 %v700, %v685
        %v751 = vmul.f32 %v700, %v686
        %v752 = vmul.f32 %v700, %v687
        %v753 = vmul.f32 %v700, %v688
        %v754 = vmul.f32 %v700, %v689
        %v755 = vmul.f32 %v700, %v690
        %v756 = vmul.f32 %v700, %v691
        %v757 = vmul.f32 %v700, %v692
        %v758 = vmul.f32 %v700, %v693
        %v759 = vmul.f32 %v700, %v694
        %v760 = vmul.f32 %v700, %v695
        %v761 = vmul.f32 %v700, %v696
        %v762 = vmul.f32 %v700, %v697
        %v763 = vmul.f32 %v700, %v698
        %v764 = vmul.f32 %v700, %v699
        %s765 = sld [smem:[#allocation3 + $0x1]]
        %v766 = vld [vmem:[%s538] sm:$0xff]
        %v767 = vld [vmem:[%s538 + $0x8] sm:$0xff]
        %v768 = vld [vmem:[%s538 + $0x10] sm:$0xff]
        %v769 = vld [vmem:[%s538 + $0x18] sm:$0xff]
        %v770 = vld [vmem:[%s538 + $0x20] sm:$0xff]
        %v771 = vld [vmem:[%s538 + $0x28] sm:$0xff]
        %v772 = vld [vmem:[%s538 + $0x30] sm:$0xff]
        %v773 = vld [vmem:[%s538 + $0x38] sm:$0xff]
        %v774 = vld [vmem:[%s538 + $0x40] sm:$0xff]
        %v775 = vld [vmem:[%s538 + $0x48] sm:$0xff]
        %v776 = vld [vmem:[%s538 + $0x50] sm:$0xff]
        %v777 = vld [vmem:[%s538 + $0x58] sm:$0xff]
        %v778 = vld [vmem:[%s538 + $0x60] sm:$0xff]
        %v779 = vld [vmem:[%s538 + $0x68] sm:$0xff]
        %v780 = vld [vmem:[%s538 + $0x70] sm:$0xff]
        %v781 = vld [vmem:[%s538 + $0x78] sm:$0xff]
        %v782 = vld [vmem:[%s538 + $0x80] sm:$0xff]
        %v783 = vld [vmem:[%s538 + $0x88] sm:$0xff]
        %v784 = vld [vmem:[%s538 + $0x90] sm:$0xff]
        %v785 = vld [vmem:[%s538 + $0x98] sm:$0xff]
        %v786 = vld [vmem:[%s538 + $0xa0] sm:$0xff]
        %v787 = vld [vmem:[%s538 + $0xa8] sm:$0xff]
        %v788 = vld [vmem:[%s538 + $0xb0] sm:$0xff]
        %v789 = vld [vmem:[%s538 + $0xb8] sm:$0xff]
        %v790 = vld [vmem:[%s538 + $0xc0] sm:$0xff]
        %v791 = vld [vmem:[%s538 + $0xc8] sm:$0xff]
        %v792 = vld [vmem:[%s538 + $0xd0] sm:$0xff]
        %v793 = vld [vmem:[%s538 + $0xd8] sm:$0xff]
        %v794 = vld [vmem:[%s538 + $0xe0] sm:$0xff]
        %v795 = vld [vmem:[%s538 + $0xe8] sm:$0xff]
        %v796 = vld [vmem:[%s538 + $0xf0] sm:$0xff]
        %v797 = vld [vmem:[%s538 + $0xf8] sm:$0xff]
        %v798 = vld [vmem:[%s538 + $0x100] sm:$0xff]
        %v799 = vld [vmem:[%s538 + $0x108] sm:$0xff]
        %v800 = vld [vmem:[%s538 + $0x110] sm:$0xff]
        %v801 = vld [vmem:[%s538 + $0x118] sm:$0xff]
        %v802 = vld [vmem:[%s538 + $0x120] sm:$0xff]
        %v803 = vld [vmem:[%s538 + $0x128] sm:$0xff]
        %v804 = vld [vmem:[%s538 + $0x130] sm:$0xff]
        %v805 = vld [vmem:[%s538 + $0x138] sm:$0xff]
        %v806 = vld [vmem:[%s538 + $0x140] sm:$0xff]
        %v807 = vld [vmem:[%s538 + $0x148] sm:$0xff]
        %v808 = vld [vmem:[%s538 + $0x150] sm:$0xff]
        %v809 = vld [vmem:[%s538 + $0x158] sm:$0xff]
        %v810 = vld [vmem:[%s538 + $0x160] sm:$0xff]
        %v811 = vld [vmem:[%s538 + $0x168] sm:$0xff]
        %v812 = vld [vmem:[%s538 + $0x170] sm:$0xff]
        %v813 = vld [vmem:[%s538 + $0x178] sm:$0xff]
        %v814 = vld [vmem:[%s538 + $0x180] sm:$0xff]
        %v815 = vld [vmem:[%s538 + $0x188] sm:$0xff]
        %v816 = vld [vmem:[%s538 + $0x190] sm:$0xff]
        %v817 = vld [vmem:[%s538 + $0x198] sm:$0xff]
        %v818 = vld [vmem:[%s538 + $0x1a0] sm:$0xff]
        %v819 = vld [vmem:[%s538 + $0x1a8] sm:$0xff]
        %v820 = vld [vmem:[%s538 + $0x1b0] sm:$0xff]
        %v821 = vld [vmem:[%s538 + $0x1b8] sm:$0xff]
        %v822 = vld [vmem:[%s538 + $0x1c0] sm:$0xff]
        %v823 = vld [vmem:[%s538 + $0x1c8] sm:$0xff]
        %v824 = vld [vmem:[%s538 + $0x1d0] sm:$0xff]
        %v825 = vld [vmem:[%s538 + $0x1d8] sm:$0xff]
        %v826 = vld [vmem:[%s538 + $0x1e0] sm:$0xff]
        %v827 = vld [vmem:[%s538 + $0x1e8] sm:$0xff]
        %v828 = vld [vmem:[%s538 + $0x1f0] sm:$0xff]
        %v829 = vld [vmem:[%s538 + $0x1f8] sm:$0xff]
        %v830 = vstv %s765
        %v831 = vmul.f32 %v830, %v766
        %v832 = vmul.f32 %v830, %v767
        %v833 = vmul.f32 %v830, %v768
        %v834 = vmul.f32 %v830, %v769
        %v835 = vmul.f32 %v830, %v770
        %v836 = vmul.f32 %v830, %v771
        %v837 = vmul.f32 %v830, %v772
        %v838 = vmul.f32 %v830, %v773
        %v839 = vmul.f32 %v830, %v774
        %v840 = vmul.f32 %v830, %v775
        %v841 = vmul.f32 %v830, %v776
        %v842 = vmul.f32 %v830, %v777
        %v843 = vmul.f32 %v830, %v778
        %v844 = vmul.f32 %v830, %v779
        %v845 = vmul.f32 %v830, %v780
        %v846 = vmul.f32 %v830, %v781
        %v847 = vmul.f32 %v830, %v782
        %v848 = vmul.f32 %v830, %v783
        %v849 = vmul.f32 %v830, %v784
        %v850 = vmul.f32 %v830, %v785
        %v851 = vmul.f32 %v830, %v786
        %v852 = vmul.f32 %v830, %v787
        %v853 = vmul.f32 %v830, %v788
        %v854 = vmul.f32 %v830, %v789
        %v855 = vmul.f32 %v830, %v790
        %v856 = vmul.f32 %v830, %v791
        %v857 = vmul.f32 %v830, %v792
        %v858 = vmul.f32 %v830, %v793
        %v859 = vmul.f32 %v830, %v794
        %v860 = vmul.f32 %v830, %v795
        %v861 = vmul.f32 %v830, %v796
        %v862 = vmul.f32 %v830, %v797
        %v863 = vmul.f32 %v830, %v798
        %v864 = vmul.f32 %v830, %v799
        %v865 = vmul.f32 %v830, %v800
        %v866 = vmul.f32 %v830, %v801
        %v867 = vmul.f32 %v830, %v802
        %v868 = vmul.f32 %v830, %v803
        %v869 = vmul.f32 %v830, %v804
        %v870 = vmul.f32 %v830, %v805
        %v871 = vmul.f32 %v830, %v806
        %v872 = vmul.f32 %v830, %v807
        %v873 = vmul.f32 %v830, %v808
        %v874 = vmul.f32 %v830, %v809
        %v875 = vmul.f32 %v830, %v810
        %v876 = vmul.f32 %v830, %v811
        %v877 = vmul.f32 %v830, %v812
        %v878 = vmul.f32 %v830, %v813
        %v879 = vmul.f32 %v830, %v814
        %v880 = vmul.f32 %v830, %v815
        %v881 = vmul.f32 %v830, %v816
        %v882 = vmul.f32 %v830, %v817
        %v883 = vmul.f32 %v830, %v818
        %v884 = vmul.f32 %v830, %v819
        %v885 = vmul.f32 %v830, %v820
        %v886 = vmul.f32 %v830, %v821
        %v887 = vmul.f32 %v830, %v822
        %v888 = vmul.f32 %v830, %v823
        %v889 = vmul.f32 %v830, %v824
        %v890 = vmul.f32 %v830, %v825
        %v891 = vmul.f32 %v830, %v826
        %v892 = vmul.f32 %v830, %v827
        %v893 = vmul.f32 %v830, %v828
        %v894 = vmul.f32 %v830, %v829
        %v895 = vadd.f32 %v701, %v831
        %v896 = vadd.f32 %v702, %v832
        %v897 = vadd.f32 %v703, %v833
        %v898 = vadd.f32 %v704, %v834
        %v899 = vadd.f32 %v705, %v835
        %v900 = vadd.f32 %v706, %v836
        %v901 = vadd.f32 %v707, %v837
        %v902 = vadd.f32 %v708, %v838
        %v903 = vadd.f32 %v709, %v839
        %v904 = vadd.f32 %v710, %v840
        %v905 = vadd.f32 %v711, %v841
        %v906 = vadd.f32 %v712, %v842
        %v907 = vadd.f32 %v713, %v843
        %v908 = vadd.f32 %v714, %v844
        %v909 = vadd.f32 %v715, %v845
        %v910 = vadd.f32 %v716, %v846
        %v911 = vadd.f32 %v717, %v847
        %v912 = vadd.f32 %v718, %v848
        %v913 = vadd.f32 %v719, %v849
        %v914 = vadd.f32 %v720, %v850
        %v915 = vadd.f32 %v721, %v851
        %v916 = vadd.f32 %v722, %v852
        %v917 = vadd.f32 %v723, %v853
        %v918 = vadd.f32 %v724, %v854
        %v919 = vadd.f32 %v725, %v855
        %v920 = vadd.f32 %v726, %v856
        %v921 = vadd.f32 %v727, %v857
        %v922 = vadd.f32 %v728, %v858
        %v923 = vadd.f32 %v729, %v859
        %v924 = vadd.f32 %v730, %v860
        %v925 = vadd.f32 %v731, %v861
        %v926 = vadd.f32 %v732, %v862
        %v927 = vadd.f32 %v733, %v863
        %v928 = vadd.f32 %v734, %v864
        %v929 = vadd.f32 %v735, %v865
        %v930 = vadd.f32 %v736, %v866
        %v931 = vadd.f32 %v737, %v867
        %v932 = vadd.f32 %v738, %v868
        %v933 = vadd.f32 %v739, %v869
        %v934 = vadd.f32 %v740, %v870
        %v935 = vadd.f32 %v741, %v871
        %v936 = vadd.f32 %v742, %v872
        %v937 = vadd.f32 %v743, %v873
        %v938 = vadd.f32 %v744, %v874
        %v939 = vadd.f32 %v745, %v875
        %v940 = vadd.f32 %v746, %v876
        %v941 = vadd.f32 %v747, %v877
        %v942 = vadd.f32 %v748, %v878
        %v943 = vadd.f32 %v749, %v879
        %v944 = vadd.f32 %v750, %v880
        %v945 = vadd.f32 %v751, %v881
        %v946 = vadd.f32 %v752, %v882
        %v947 = vadd.f32 %v753, %v883
        %v948 = vadd.f32 %v754, %v884
        %v949 = vadd.f32 %v755, %v885
        %v950 = vadd.f32 %v756, %v886
        %v951 = vadd.f32 %v757, %v887
        %v952 = vadd.f32 %v758, %v888
        %v953 = vadd.f32 %v759, %v889
        %v954 = vadd.f32 %v760, %v890
        %v955 = vadd.f32 %v761, %v891
        %v956 = vadd.f32 %v762, %v892
        %v957 = vadd.f32 %v763, %v893
        %v958 = vadd.f32 %v764, %v894
        %v959 = vld [vmem:[#allocation2] sm:$0xff]
        %v960 = vld [vmem:[#allocation2 + $0x8] sm:$0xff]
        %v961 = vld [vmem:[#allocation2 + $0x10] sm:$0xff]
        %v962 = vld [vmem:[#allocation2 + $0x18] sm:$0xff]
        %v963 = vld [vmem:[#allocation2 + $0x20] sm:$0xff]
        %v964 = vld [vmem:[#allocation2 + $0x28] sm:$0xff]
        %v965 = vld [vmem:[#allocation2 + $0x30] sm:$0xff]
        %v966 = vld [vmem:[#allocation2 + $0x38] sm:$0xff]
        %v967 = vld [vmem:[#allocation2 + $0x40] sm:$0xff]
        %v968 = vld [vmem:[#allocation2 + $0x48] sm:$0xff]
        %v969 = vld [vmem:[#allocation2 + $0x50] sm:$0xff]
        %v970 = vld [vmem:[#allocation2 + $0x58] sm:$0xff]
        %v971 = vld [vmem:[#allocation2 + $0x60] sm:$0xff]
        %v972 = vld [vmem:[#allocation2 + $0x68] sm:$0xff]
        %v973 = vld [vmem:[#allocation2 + $0x70] sm:$0xff]
        %v974 = vld [vmem:[#allocation2 + $0x78] sm:$0xff]
        %v975 = vld [vmem:[#allocation2 + $0x80] sm:$0xff]
        %v976 = vld [vmem:[#allocation2 + $0x88] sm:$0xff]
        %v977 = vld [vmem:[#allocation2 + $0x90] sm:$0xff]
        %v978 = vld [vmem:[#allocation2 + $0x98] sm:$0xff]
        %v979 = vld [vmem:[#allocation2 + $0xa0] sm:$0xff]
        %v980 = vld [vmem:[#allocation2 + $0xa8] sm:$0xff]
        %v981 = vld [vmem:[#allocation2 + $0xb0] sm:$0xff]
        %v982 = vld [vmem:[#allocation2 + $0xb8] sm:$0xff]
        %v983 = vld [vmem:[#allocation2 + $0xc0] sm:$0xff]
        %v984 = vld [vmem:[#allocation2 + $0xc8] sm:$0xff]
        %v985 = vld [vmem:[#allocation2 + $0xd0] sm:$0xff]
        %v986 = vld [vmem:[#allocation2 + $0xd8] sm:$0xff]
        %v987 = vld [vmem:[#allocation2 + $0xe0] sm:$0xff]
        %v988 = vld [vmem:[#allocation2 + $0xe8] sm:$0xff]
        %v989 = vld [vmem:[#allocation2 + $0xf0] sm:$0xff]
        %v990 = vld [vmem:[#allocation2 + $0xf8] sm:$0xff]
        %v991 = vld [vmem:[%s588] sm:$0xff]
        %v992 = vld [vmem:[%s588 + $0x8] sm:$0xff]
        %v993 = vld [vmem:[%s588 + $0x10] sm:$0xff]
        %v994 = vld [vmem:[%s588 + $0x18] sm:$0xff]
        %v995 = vld [vmem:[%s588 + $0x20] sm:$0xff]
        %v996 = vld [vmem:[%s588 + $0x28] sm:$0xff]
        %v997 = vld [vmem:[%s588 + $0x30] sm:$0xff]
        %v998 = vld [vmem:[%s588 + $0x38] sm:$0xff]
        %v999 = vld [vmem:[%s588 + $0x40] sm:$0xff]
        %v1000 = vld [vmem:[%s588 + $0x48] sm:$0xff]
        %v1001 = vld [vmem:[%s588 + $0x50] sm:$0xff]
        %v1002 = vld [vmem:[%s588 + $0x58] sm:$0xff]
        %v1003 = vld [vmem:[%s588 + $0x60] sm:$0xff]
        %v1004 = vld [vmem:[%s588 + $0x68] sm:$0xff]
        %v1005 = vld [vmem:[%s588 + $0x70] sm:$0xff]
        %v1006 = vld [vmem:[%s588 + $0x78] sm:$0xff]
        %v1007 = vld [vmem:[%s588 + $0x80] sm:$0xff]
        %v1008 = vld [vmem:[%s588 + $0x88] sm:$0xff]
        %v1009 = vld [vmem:[%s588 + $0x90] sm:$0xff]
        %v1010 = vld [vmem:[%s588 + $0x98] sm:$0xff]
        %v1011 = vld [vmem:[%s588 + $0xa0] sm:$0xff]
        %v1012 = vld [vmem:[%s588 + $0xa8] sm:$0xff]
        %v1013 = vld [vmem:[%s588 + $0xb0] sm:$0xff]
        %v1014 = vld [vmem:[%s588 + $0xb8] sm:$0xff]
        %v1015 = vld [vmem:[%s588 + $0xc0] sm:$0xff]
        %v1016 = vld [vmem:[%s588 + $0xc8] sm:$0xff]
        %v1017 = vld [vmem:[%s588 + $0xd0] sm:$0xff]
        %v1018 = vld [vmem:[%s588 + $0xd8] sm:$0xff]
        %v1019 = vld [vmem:[%s588 + $0xe0] sm:$0xff]
        %v1020 = vld [vmem:[%s588 + $0xe8] sm:$0xff]
        %v1021 = vld [vmem:[%s588 + $0xf0] sm:$0xff]
        %v1022 = vld [vmem:[%s588 + $0xf8] sm:$0xff]
        %1023 = vmatprep.subr.mxu0 0.0
        %1024 = vmatpush1.msra.mxu0 %v991
        %1025 = vmatprep.subr.mxu0 0.0
        %1026 = vmatpush1.msra.mxu0 %v992
        %1027 = vmatprep.subr.mxu0 0.0
        %1028 = vmatpush1.msra.mxu0 %v993
        %1029 = vmatprep.subr.mxu0 0.0
        %1030 = vmatpush1.msra.mxu0 %v994
        %1031 = vmatprep.subr.mxu0 0.0
        %1032 = vmatpush1.msra.mxu0 %v995
        %1033 = vmatprep.subr.mxu0 0.0
        %1034 = vmatpush1.msra.mxu0 %v996
        %1035 = vmatprep.subr.mxu0 0.0
        %1036 = vmatpush1.msra.mxu0 %v997
        %1037 = vmatprep.subr.mxu0 0.0
        %1038 = vmatpush1.msra.mxu0 %v998
        %1039 = vmatprep.subr.mxu0 0.0
        %1040 = vmatpush1.msra.mxu0 %v999
        %1041 = vmatprep.subr.mxu0 0.0
        %1042 = vmatpush1.msra.mxu0 %v1000
        %1043 = vmatprep.subr.mxu0 0.0
        %1044 = vmatpush1.msra.mxu0 %v1001
        %1045 = vmatprep.subr.mxu0 0.0
        %1046 = vmatpush1.msra.mxu0 %v1002
        %1047 = vmatprep.subr.mxu0 0.0
        %1048 = vmatpush1.msra.mxu0 %v1003
        %1049 = vmatprep.subr.mxu0 0.0
        %1050 = vmatpush1.msra.mxu0 %v1004
        %1051 = vmatprep.subr.mxu0 0.0
        %1052 = vmatpush1.msra.mxu0 %v1005
        %1053 = vmatprep.subr.mxu0 0.0
        %1054 = vmatpush1.msra.mxu0 %v1006
        %1055 = vmatprep.subr.mxu0 0.0
        %1056 = vmatpush1.msra.mxu0 %v1007
        %1057 = vmatprep.subr.mxu0 0.0
        %1058 = vmatpush1.msra.mxu0 %v1008
        %1059 = vmatprep.subr.mxu0 0.0
        %1060 = vmatpush1.msra.mxu0 %v1009
        %1061 = vmatprep.subr.mxu0 0.0
        %1062 = vmatpush1.msra.mxu0 %v1010
        %1063 = vmatprep.subr.mxu0 0.0
        %1064 = vmatpush1.msra.mxu0 %v1011
        %1065 = vmatprep.subr.mxu0 0.0
        %1066 = vmatpush1.msra.mxu0 %v1012
        %1067 = vmatprep.subr.mxu0 0.0
        %1068 = vmatpush1.msra.mxu0 %v1013
        %1069 = vmatprep.subr.mxu0 0.0
        %1070 = vmatpush1.msra.mxu0 %v1014
        %1071 = vmatprep.subr.mxu0 0.0
        %1072 = vmatpush1.msra.mxu0 %v1015
        %1073 = vmatprep.subr.mxu0 0.0
        %1074 = vmatpush1.msra.mxu0 %v1016
        %1075 = vmatprep.subr.mxu0 0.0
        %1076 = vmatpush1.msra.mxu0 %v1017
        %1077 = vmatprep.subr.mxu0 0.0
        %1078 = vmatpush1.msra.mxu0 %v1018
        %1079 = vmatprep.subr.mxu0 0.0
        %1080 = vmatpush1.msra.mxu0 %v1019
        %1081 = vmatprep.subr.mxu0 0.0
        %1082 = vmatpush1.msra.mxu0 %v1020
        %1083 = vmatprep.subr.mxu0 0.0
        %1084 = vmatpush1.msra.mxu0 %v1021
        %1085 = vmatprep.subr.mxu0 0.0
        %1086 = vmatpush1.msra.mxu0 %v1022
        %1087 = vmatprep.mubr.f32.mxu0 %v896
        %1088 = vmatmul.mubr.f32.gmra.mrb[0].mxu0 %v895
        %v1089 = vpop.f32.mrb[0].mxu0
        %v1090 = vadd.f32 0.0, %v1089
        %v1091 = vpop.f32.mrb[0].mxu0
        %1092 = vmatprep.mubr.f32.mxu0 %v898
        %1093 = vmatmul.mubr.f32.gmra.mrb[0].mxu0 %v897
        %v1094 = vpop.f32.mrb[0].mxu0
        %v1095 = vadd.f32 0.0, %v1094
        %v1096 = vpop.f32.mrb[0].mxu0
        %1097 = vmatprep.mubr.f32.mxu0 %v900
        %1098 = vmatmul.mubr.f32.gmra.mrb[0].mxu0 %v899
        %v1099 = vpop.f32.mrb[0].mxu0
        %v1100 = vadd.f32 0.0, %v1099
        %v1101 = vpop.f32.mrb[0].mxu0
        %1102 = vmatprep.mubr.f32.mxu0 %v902
        %1103 = vmatmul.mubr.f32.gmra.mrb[0].mxu0 %v901
        %v1104 = vpop.f32.mrb[0].mxu0
        %v1105 = vadd.f32 0.0, %v1104
        %v1106 = vpop.f32.mrb[0].mxu0
        %1107 = vmatprep.mubr.f32.mxu0 %v904
        %1108 = vmatmul.mubr.f32.gmra.mrb[0].mxu0 %v903
        %v1109 = vpop.f32.mrb[0].mxu0
        %v1110 = vadd.f32 0.0, %v1109
        %v1111 = vpop.f32.mrb[0].mxu0
        %1112 = vmatprep.mubr.f32.mxu0 %v906
        %1113 = vmatmul.mubr.f32.gmra.mrb[0].mxu0 %v905
        %v1114 = vpop.f32.mrb[0].mxu0
        %v1115 = vadd.f32 0.0, %v1114
        %v1116 = vpop.f32.mrb[0].mxu0
        %1117 = vmatprep.mubr.f32.mxu0 %v908
        %1118 = vmatmul.mubr.f32.gmra.mrb[0].mxu0 %v907
        %v1119 = vpop.f32.mrb[0].mxu0
        %v1120 = vadd.f32 0.0, %v1119
        %v1121 = vpop.f32.mrb[0].mxu0
        %1122 = vmatprep.mubr.f32.mxu0 %v910
        %1123 = vmatmul.mubr.f32.gmra.mrb[0].mxu0 %v909
        %v1124 = vpop.f32.mrb[0].mxu0
        %v1125 = vadd.f32 0.0, %v1124
        %v1126 = vpop.f32.mrb[0].mxu0
        %1127 = vmatprep.mubr.f32.mxu0 %v912
        %1128 = vmatmul.mubr.f32.gmra.mrb[0].mxu0 %v911
        %v1129 = vpop.f32.mrb[0].mxu0
        %v1130 = vadd.f32 0.0, %v1129
        %v1131 = vpop.f32.mrb[0].mxu0
        %1132 = vmatprep.mubr.f32.mxu0 %v914
        %1133 = vmatmul.mubr.f32.gmra.mrb[0].mxu0 %v913
        %v1134 = vpop.f32.mrb[0].mxu0
        %v1135 = vadd.f32 0.0, %v1134
        %v1136 = vpop.f32.mrb[0].mxu0
        %1137 = vmatprep.mubr.f32.mxu0 %v916
        %1138 = vmatmul.mubr.f32.gmra.mrb[0].mxu0 %v915
        %v1139 = vpop.f32.mrb[0].mxu0
        %v1140 = vadd.f32 0.0, %v1139
        %v1141 = vpop.f32.mrb[0].mxu0
        %1142 = vmatprep.mubr.f32.mxu0 %v918
        %1143 = vmatmul.mubr.f32.gmra.mrb[0].mxu0 %v917
        %v1144 = vpop.f32.mrb[0].mxu0
        %v1145 = vadd.f32 0.0, %v1144
        %v1146 = vpop.f32.mrb[0].mxu0
        %1147 = vmatprep.mubr.f32.mxu0 %v920
        %1148 = vmatmul.mubr.f32.gmra.mrb[0].mxu0 %v919
        %v1149 = vpop.f32.mrb[0].mxu0
        %v1150 = vadd.f32 0.0, %v1149
        %v1151 = vpop.f32.mrb[0].mxu0
        %1152 = vmatprep.mubr.f32.mxu0 %v922
        %1153 = vmatmul.mubr.f32.gmra.mrb[0].mxu0 %v921
        %v1154 = vpop.f32.mrb[0].mxu0
        %v1155 = vadd.f32 0.0, %v1154
        %v1156 = vpop.f32.mrb[0].mxu0
        %1157 = vmatprep.mubr.f32.mxu0 %v924
        %1158 = vmatmul.mubr.f32.gmra.mrb[0].mxu0 %v923
        %v1159 = vpop.f32.mrb[0].mxu0
        %v1160 = vadd.f32 0.0, %v1159
        %v1161 = vpop.f32.mrb[0].mxu0
        %1162 = vmatprep.mubr.f32.mxu0 %v926
        %1163 = vmatmul.mubr.f32.gmra.mrb[0].mxu0 %v925
        %v1164 = vpop.f32.mrb[0].mxu0
        %v1165 = vadd.f32 0.0, %v1164
        %v1166 = vpop.f32.mrb[0].mxu0
        %1167 = vmatprep.mubr.f32.mxu0 %v928
        %1168 = vmatmul.mubr.f32.gmra.mrb[0].mxu0 %v927
        %v1169 = vpop.f32.mrb[0].mxu0
        %v1170 = vadd.f32 0.0, %v1169
        %v1171 = vpop.f32.mrb[0].mxu0
        %1172 = vmatprep.mubr.f32.mxu0 %v930
        %1173 = vmatmul.mubr.f32.gmra.mrb[0].mxu0 %v929
        %v1174 = vpop.f32.mrb[0].mxu0
        %v1175 = vadd.f32 0.0, %v1174
        %v1176 = vpop.f32.mrb[0].mxu0
        %1177 = vmatprep.mubr.f32.mxu0 %v932
        %1178 = vmatmul.mubr.f32.gmra.mrb[0].mxu0 %v931
        %v1179 = vpop.f32.mrb[0].mxu0
        %v1180 = vadd.f32 0.0, %v1179
        %v1181 = vpop.f32.mrb[0].mxu0
        %1182 = vmatprep.mubr.f32.mxu0 %v934
        %1183 = vmatmul.mubr.f32.gmra.mrb[0].mxu0 %v933
        %v1184 = vpop.f32.mrb[0].mxu0
        %v1185 = vadd.f32 0.0, %v1184
        %v1186 = vpop.f32.mrb[0].mxu0
        %1187 = vmatprep.mubr.f32.mxu0 %v936
        %1188 = vmatmul.mubr.f32.gmra.mrb[0].mxu0 %v935
        %v1189 = vpop.f32.mrb[0].mxu0
        %v1190 = vadd.f32 0.0, %v1189
        %v1191 = vpop.f32.mrb[0].mxu0
        %1192 = vmatprep.mubr.f32.mxu0 %v938
        %1193 = vmatmul.mubr.f32.gmra.mrb[0].mxu0 %v937
        %v1194 = vpop.f32.mrb[0].mxu0
        %v1195 = vadd.f32 0.0, %v1194
        %v1196 = vpop.f32.mrb[0].mxu0
        %1197 = vmatprep.mubr.f32.mxu0 %v940
        %1198 = vmatmul.mubr.f32.gmra.mrb[0].mxu0 %v939
        %v1199 = vpop.f32.mrb[0].mxu0
        %v1200 = vadd.f32 0.0, %v1199
        %v1201 = vpop.f32.mrb[0].mxu0
        %1202 = vmatprep.mubr.f32.mxu0 %v942
        %1203 = vmatmul.mubr.f32.gmra.mrb[0].mxu0 %v941
        %v1204 = vpop.f32.mrb[0].mxu0
        %v1205 = vadd.f32 0.0, %v1204
        %v1206 = vpop.f32.mrb[0].mxu0
        %1207 = vmatprep.mubr.f32.mxu0 %v944
        %1208 = vmatmul.mubr.f32.gmra.mrb[0].mxu0 %v943
        %v1209 = vpop.f32.mrb[0].mxu0
        %v1210 = vadd.f32 0.0, %v1209
        %v1211 = vpop.f32.mrb[0].mxu0
        %1212 = vmatprep.mubr.f32.mxu0 %v946
        %1213 = vmatmul.mubr.f32.gmra.mrb[0].mxu0 %v945
        %v1214 = vpop.f32.mrb[0].mxu0
        %v1215 = vadd.f32 0.0, %v1214
        %v1216 = vpop.f32.mrb[0].mxu0
        %1217 = vmatprep.mubr.f32.mxu0 %v948
        %1218 = vmatmul.mubr.f32.gmra.mrb[0].mxu0 %v947
        %v1219 = vpop.f32.mrb[0].mxu0
        %v1220 = vadd.f32 0.0, %v1219
        %v1221 = vpop.f32.mrb[0].mxu0
        %1222 = vmatprep.mubr.f32.mxu0 %v950
        %1223 = vmatmul.mubr.f32.gmra.mrb[0].mxu0 %v949
        %v1224 = vpop.f32.mrb[0].mxu0
        %v1225 = vadd.f32 0.0, %v1224
        %v1226 = vpop.f32.mrb[0].mxu0
        %1227 = vmatprep.mubr.f32.mxu0 %v952
        %1228 = vmatmul.mubr.f32.gmra.mrb[0].mxu0 %v951
        %v1229 = vpop.f32.mrb[0].mxu0
        %v1230 = vadd.f32 0.0, %v1229
        %v1231 = vpop.f32.mrb[0].mxu0
        %1232 = vmatprep.mubr.f32.mxu0 %v954
        %1233 = vmatmul.mubr.f32.gmra.mrb[0].mxu0 %v953
        %v1234 = vpop.f32.mrb[0].mxu0
        %v1235 = vadd.f32 0.0, %v1234
        %v1236 = vpop.f32.mrb[0].mxu0
        %1237 = vmatprep.mubr.f32.mxu0 %v956
        %1238 = vmatmul.mubr.f32.gmra.mrb[0].mxu0 %v955
        %v1239 = vpop.f32.mrb[0].mxu0
        %v1240 = vadd.f32 0.0, %v1239
        %v1241 = vpop.f32.mrb[0].mxu0
        %1242 = vmatprep.mubr.f32.mxu0 %v958
        %1243 = vmatmul.mubr.f32.gmra.mrb[0].mxu0 %v957
        %v1244 = vpop.f32.mrb[0].mxu0
        %v1245 = vadd.f32 0.0, %v1244
        %v1246 = vpop.f32.mrb[0].mxu0
        %1247 = vdwg.mxu0
        %v1248 = vadd.f32 %v959, %v1090
        %v1249 = vadd.f32 %v960, %v1095
        %v1250 = vadd.f32 %v961, %v1100
        %v1251 = vadd.f32 %v962, %v1105
        %v1252 = vadd.f32 %v963, %v1110
        %v1253 = vadd.f32 %v964, %v1115
        %v1254 = vadd.f32 %v965, %v1120
        %v1255 = vadd.f32 %v966, %v1125
        %v1256 = vadd.f32 %v967, %v1130
        %v1257 = vadd.f32 %v968, %v1135
        %v1258 = vadd.f32 %v969, %v1140
        %v1259 = vadd.f32 %v970, %v1145
        %v1260 = vadd.f32 %v971, %v1150
        %v1261 = vadd.f32 %v972, %v1155
        %v1262 = vadd.f32 %v973, %v1160
        %v1263 = vadd.f32 %v974, %v1165
        %v1264 = vadd.f32 %v975, %v1170
        %v1265 = vadd.f32 %v976, %v1175
        %v1266 = vadd.f32 %v977, %v1180
        %v1267 = vadd.f32 %v978, %v1185
        %v1268 = vadd.f32 %v979, %v1190
        %v1269 = vadd.f32 %v980, %v1195
        %v1270 = vadd.f32 %v981, %v1200
        %v1271 = vadd.f32 %v982, %v1205
        %v1272 = vadd.f32 %v983, %v1210
        %v1273 = vadd.f32 %v984, %v1215
        %v1274 = vadd.f32 %v985, %v1220
        %v1275 = vadd.f32 %v986, %v1225
        %v1276 = vadd.f32 %v987, %v1230
        %v1277 = vadd.f32 %v988, %v1235
        %v1278 = vadd.f32 %v989, %v1240
        %v1279 = vadd.f32 %v990, %v1245
        %1280 = vst [vmem:[#allocation2] sm:$0xff] %v1248
        %1281 = vst [vmem:[#allocation2 + $0x8] sm:$0xff] %v1249
        %1282 = vst [vmem:[#allocation2 + $0x10] sm:$0xff] %v1250
        %1283 = vst [vmem:[#allocation2 + $0x18] sm:$0xff] %v1251
        %1284 = vst [vmem:[#allocation2 + $0x20] sm:$0xff] %v1252
        %1285 = vst [vmem:[#allocation2 + $0x28] sm:$0xff] %v1253
        %1286 = vst [vmem:[#allocation2 + $0x30] sm:$0xff] %v1254
        %1287 = vst [vmem:[#allocation2 + $0x38] sm:$0xff] %v1255
        %1288 = vst [vmem:[#allocation2 + $0x40] sm:$0xff] %v1256
        %1289 = vst [vmem:[#allocation2 + $0x48] sm:$0xff] %v1257
        %1290 = vst [vmem:[#allocation2 + $0x50] sm:$0xff] %v1258
        %1291 = vst [vmem:[#allocation2 + $0x58] sm:$0xff] %v1259
        %1292 = vst [vmem:[#allocation2 + $0x60] sm:$0xff] %v1260
        %1293 = vst [vmem:[#allocation2 + $0x68] sm:$0xff] %v1261
        %1294 = vst [vmem:[#allocation2 + $0x70] sm:$0xff] %v1262
        %1295 = vst [vmem:[#allocation2 + $0x78] sm:$0xff] %v1263
        %1296 = vst [vmem:[#allocation2 + $0x80] sm:$0xff] %v1264
        %1297 = vst [vmem:[#allocation2 + $0x88] sm:$0xff] %v1265
        %1298 = vst [vmem:[#allocation2 + $0x90] sm:$0xff] %v1266
        %1299 = vst [vmem:[#allocation2 + $0x98] sm:$0xff] %v1267
        %1300 = vst [vmem:[#allocation2 + $0xa0] sm:$0xff] %v1268
        %1301 = vst [vmem:[#allocation2 + $0xa8] sm:$0xff] %v1269
        %1302 = vst [vmem:[#allocation2 + $0xb0] sm:$0xff] %v1270
        %1303 = vst [vmem:[#allocation2 + $0xb8] sm:$0xff] %v1271
        %1304 = vst [vmem:[#allocation2 + $0xc0] sm:$0xff] %v1272
        %1305 = vst [vmem:[#allocation2 + $0xc8] sm:$0xff] %v1273
        %1306 = vst [vmem:[#allocation2 + $0xd0] sm:$0xff] %v1274
        %1307 = vst [vmem:[#allocation2 + $0xd8] sm:$0xff] %v1275
        %1308 = vst [vmem:[#allocation2 + $0xe0] sm:$0xff] %v1276
        %1309 = vst [vmem:[#allocation2 + $0xe8] sm:$0xff] %v1277
        %1310 = vst [vmem:[#allocation2 + $0xf0] sm:$0xff] %v1278
        %1311 = vst [vmem:[#allocation2 + $0xf8] sm:$0xff] %v1279
        %p1312 = scmp.eq.s32.totalorder %s23, 1
        // Predicated region
        $region91: #{encoder_overall_forward.13} parent=73 // pred_check
          %p1313 = pneg %p1312
        $region92: #{encoder_overall_forward.13} parent=73 // pred_check_branch
          %1315 = sbr.rel (%p1313) target = $region94
        $region93: #{encoder_overall_forward.13} parent=73 // pred_region
          %v1316 = vld [vmem:[#allocation2] sm:$0xff]
          %v1317 = vld [vmem:[#allocation2 + $0x8] sm:$0xff]
          %v1318 = vld [vmem:[#allocation2 + $0x10] sm:$0xff]
          %v1319 = vld [vmem:[#allocation2 + $0x18] sm:$0xff]
          %v1320 = vld [vmem:[#allocation2 + $0x20] sm:$0xff]
          %v1321 = vld [vmem:[#allocation2 + $0x28] sm:$0xff]
          %v1322 = vld [vmem:[#allocation2 + $0x30] sm:$0xff]
          %v1323 = vld [vmem:[#allocation2 + $0x38] sm:$0xff]
          %v1324 = vld [vmem:[#allocation2 + $0x40] sm:$0xff]
          %v1325 = vld [vmem:[#allocation2 + $0x48] sm:$0xff]
          %v1326 = vld [vmem:[#allocation2 + $0x50] sm:$0xff]
          %v1327 = vld [vmem:[#allocation2 + $0x58] sm:$0xff]
          %v1328 = vld [vmem:[#allocation2 + $0x60] sm:$0xff]
          %v1329 = vld [vmem:[#allocation2 + $0x68] sm:$0xff]
          %v1330 = vld [vmem:[#allocation2 + $0x70] sm:$0xff]
          %v1331 = vld [vmem:[#allocation2 + $0x78] sm:$0xff]
          %v1332 = vld [vmem:[#allocation2 + $0x80] sm:$0xff]
          %v1333 = vld [vmem:[#allocation2 + $0x88] sm:$0xff]
          %v1334 = vld [vmem:[#allocation2 + $0x90] sm:$0xff]
          %v1335 = vld [vmem:[#allocation2 + $0x98] sm:$0xff]
          %v1336 = vld [vmem:[#allocation2 + $0xa0] sm:$0xff]
          %v1337 = vld [vmem:[#allocation2 + $0xa8] sm:$0xff]
          %v1338 = vld [vmem:[#allocation2 + $0xb0] sm:$0xff]
          %v1339 = vld [vmem:[#allocation2 + $0xb8] sm:$0xff]
          %v1340 = vld [vmem:[#allocation2 + $0xc0] sm:$0xff]
          %v1341 = vld [vmem:[#allocation2 + $0xc8] sm:$0xff]
          %v1342 = vld [vmem:[#allocation2 + $0xd0] sm:$0xff]
          %v1343 = vld [vmem:[#allocation2 + $0xd8] sm:$0xff]
          %v1344 = vld [vmem:[#allocation2 + $0xe0] sm:$0xff]
          %v1345 = vld [vmem:[#allocation2 + $0xe8] sm:$0xff]
          %v1346 = vld [vmem:[#allocation2 + $0xf0] sm:$0xff]
          %v1347 = vld [vmem:[#allocation2 + $0xf8] sm:$0xff]
          %1348 = vst [vmem:[%s597] sm:$0xff] %v1316
          %1349 = vst [vmem:[%s597 + $0x8] sm:$0xff] %v1317
          %1350 = vst [vmem:[%s597 + $0x10] sm:$0xff] %v1318
          %1351 = vst [vmem:[%s597 + $0x18] sm:$0xff] %v1319
          %1352 = vst [vmem:[%s597 + $0x20] sm:$0xff] %v1320
          %1353 = vst [vmem:[%s597 + $0x28] sm:$0xff] %v1321
          %1354 = vst [vmem:[%s597 + $0x30] sm:$0xff] %v1322
          %1355 = vst [vmem:[%s597 + $0x38] sm:$0xff] %v1323
          %1356 = vst [vmem:[%s597 + $0x40] sm:$0xff] %v1324
          %1357 = vst [vmem:[%s597 + $0x48] sm:$0xff] %v1325
          %1358 = vst [vmem:[%s597 + $0x50] sm:$0xff] %v1326
          %1359 = vst [vmem:[%s597 + $0x58] sm:$0xff] %v1327
          %1360 = vst [vmem:[%s597 + $0x60] sm:$0xff] %v1328
          %1361 = vst [vmem:[%s597 + $0x68] sm:$0xff] %v1329
          %1362 = vst [vmem:[%s597 + $0x70] sm:$0xff] %v1330
          %1363 = vst [vmem:[%s597 + $0x78] sm:$0xff] %v1331
          %1364 = vst [vmem:[%s597 + $0x80] sm:$0xff] %v1332
          %1365 = vst [vmem:[%s597 + $0x88] sm:$0xff] %v1333
          %1366 = vst [vmem:[%s597 + $0x90] sm:$0xff] %v1334
          %1367 = vst [vmem:[%s597 + $0x98] sm:$0xff] %v1335
          %1368 = vst [vmem:[%s597 + $0xa0] sm:$0xff] %v1336
          %1369 = vst [vmem:[%s597 + $0xa8] sm:$0xff] %v1337
          %1370 = vst [vmem:[%s597 + $0xb0] sm:$0xff] %v1338
          %1371 = vst [vmem:[%s597 + $0xb8] sm:$0xff] %v1339
          %1372 = vst [vmem:[%s597 + $0xc0] sm:$0xff] %v1340
          %1373 = vst [vmem:[%s597 + $0xc8] sm:$0xff] %v1341
          %1374 = vst [vmem:[%s597 + $0xd0] sm:$0xff] %v1342
          %1375 = vst [vmem:[%s597 + $0xd8] sm:$0xff] %v1343
          %1376 = vst [vmem:[%s597 + $0xe0] sm:$0xff] %v1344
          %1377 = vst [vmem:[%s597 + $0xe8] sm:$0xff] %v1345
          %1378 = vst [vmem:[%s597 + $0xf0] sm:$0xff] %v1346
          %1379 = vst [vmem:[%s597 + $0xf8] sm:$0xff] %v1347
        $region94: #{encoder_overall_forward.13} parent=73 // pred_fallthru
          _
        %s1380 = smul.u32 32, %s21
        %p1381 = scmp.lt.s32.totalorder %s1380, 63
        %s1382 = scalar_select %p1381, %s1380, 63
        %p1383 = scmp.lt.s32.totalorder %s22, 0
        %s1384 = scalar_select %p1383, %s22, 0
        %s1385 = sadd.s32 %s1384, %s1382
        %s1386 = smul.addr %s1385, 8
        %s1387 = scalar_lea.vmem %s4, %s1386
        // Predicated region
        $region95: #{encoder_overall_forward.13} parent=73 // pred_check
          %p1388 = pneg %p160
        $region96: #{encoder_overall_forward.13} parent=73 // pred_check_branch
          %1390 = sbr.rel (%p1388) target = $region98
        $region97: #{encoder_overall_forward.13} parent=73 // pred_region
          %s1391 = smul.u32 32, %s21
        $region98: #{encoder_overall_forward.13} parent=73 // pred_fallthru
          _
      $region74: #{encoder_overall_forward.13} parent=5 // pred_fallthru
        _
      %p1392 = scmp.le.s32.totalorder 2, %s11
      // Predicated region
      $region99: #{encoder_overall_forward.13} parent=5 // pred_check
        %p1393 = pneg %p1392
      $region100: #{encoder_overall_forward.13} parent=5 // pred_check_branch
        %1395 = sbr.rel (%p1393) target = $region102
      $region101: #{encoder_overall_forward.13} parent=5 // pred_region
        %s1396 = ssub.s32 %s11, 2
        // Predicated region
        $region103: #{encoder_overall_forward.13} parent=101 // pred_check
          %p1397 = pneg %p166
        $region104: #{encoder_overall_forward.13} parent=101 // pred_check_branch
          %1399 = sbr.rel (%p1397) target = $region106
        $region105: #{encoder_overall_forward.13} parent=101 // pred_region
          %s1400 = smul.u32 32, %s24
          %p1401 = scmp.lt.s32.totalorder %s1400, 63
          %s1402 = scalar_select %p1401, %s1400, 63
          %p1403 = scmp.lt.s32.totalorder %s25, 0
          %s1404 = scalar_select %p1403, %s25, 0
          %s1405 = sadd.s32 %s1404, %s1402
          %s1406 = smul.addr %s1405, 8
          %s1407 = scalar_lea.vmem %s4, %s1406
        $region106: #{encoder_overall_forward.13} parent=101 // pred_fallthru
          _
      $region102: #{encoder_overall_forward.13} parent=5 // pred_fallthru
        _
    $region6: #{encoder_overall_forward.13} parent=1 // loop_footer
      %s15 = sadd.s32 1, %s11
    $region7: #{encoder_overall_forward.13} parent=1 // loop_footer_branch
      %10 = sbr.rel target = $region3
    $region8: #{encoder_overall_forward.13} parent=1 // loop_exit
      _
    %1408 = vsyncpa [#allocation4], 1
    %s1409 = scalar_lea.sflag [#allocation4], 1
    %1410 = vsyncpa %s1409, 1

// kernel: encoder_overall_forward.15
$region0: #{encoder_overall_forward.15}
  #allocation0 [shape = 'u32[]', space=smem, size = 0x4, offset = 0x4, fixed_abs, tag = 'smem constant byte address 0x4 - core index']
  #allocation1 [shape = 'u32[144,128]{1,0:T(1,128)}', space=vmem, size = 0x12000, scoped, tag = 'internal scratch']
  %s0 = inlined_call_operand.vmem [shape: f32[512,128], index: 0, kind: input, shape index: {}]
  %s1 = inlined_call_operand.vmem [shape: f32[512,128], index: 1, kind: input, shape index: {}]
  %s2 = inlined_call_operand.vmem [shape: f32[128,128], index: 2, kind: input, shape index: {}]
  %s3 = inlined_call_operand.vmem [shape: f32[1,128], index: 3, kind: input, shape index: {}]
  %s4 = inlined_call_operand.vmem [shape: f32[128,256], index: 4, kind: input, shape index: {}]
  %s5 = inlined_call_operand.vmem [shape: f32[1,256], index: 5, kind: input, shape index: {}]
  %s6 = inlined_call_operand.vmem [shape: f32[128,256], index: 6, kind: input, shape index: {}]
  %s7 = inlined_call_operand.vmem [shape: f32[1,256], index: 7, kind: input, shape index: {}]
  %s8 = inlined_call_operand.vmem [shape: f32[512,128], index: 8, kind: output, shape index: {0}]
  %s9 = inlined_call_operand.vmem [shape: f32[512,128], index: 9, kind: output, shape index: {1}]
  %s10 = inlined_call_operand.vmem [shape: f32[512,256], index: 10, kind: output, shape index: {2}]
  %s11 = inlined_call_operand.vmem [shape: f32[512,256], index: 11, kind: output, shape index: {3}]
  %12 = xla_tuple %s8, %s9, %s10, %s11
  %s13 = sld [smem:[#allocation0]]
  $region89: #{encoder_overall_forward.15} parent=0
    _
  %s15 = ssub.s32 1, %s13
  %s16 = scalar_select 0, %s15, %s13
  loop: start=0, step=1, limit=4
  $region2: #{encoder_overall_forward.15} parent=0 // loop_pre_header
    _
  $region3: #{encoder_overall_forward.15} parent=0 // loop_header
    %s18 = sphi 0, %s22
    %p19 = scmp.ge.s32.totalorder %s18, 4
    %s28 = sphi 0, %s30
    %s31 = sphi 0, %s28
    %s32 = sphi 0, %s31
    %s48 = sphi 0, %s32
    %s54 = sphi 0, %s56
    %s57 = sphi 0, %s54
    %s58 = sphi 0, %s57
    %s74 = sphi 0, %s58
    %s78 = sphi 0, %s78
    %s80 = sphi 0, %s78
    %s81 = sphi 0, %s80
    %s95 = sphi 0, %s81
    %s99 = sphi 0, %s99
    %s101 = sphi 0, %s99
    %s102 = sphi 0, %s101
    %s116 = sphi 0, %s102
    %s120 = sphi 0, %s120
    %s122 = sphi 0, %s120
    %s123 = sphi 0, %s122
    %s137 = sphi 0, %s123
    %s141 = sphi 0, %s141
    %s143 = sphi 0, %s141
    %s144 = sphi 0, %s143
    %s158 = sphi 0, %s144
    %s162 = sphi 0, %s162
    %s164 = sphi 0, %s162
    %s165 = sphi 0, %s164
    %s179 = sphi 0, %s165
    %s183 = sphi 0, %s183
    %s185 = sphi 0, %s183
    %s186 = sphi 0, %s185
    %s200 = sphi 0, %s186
    %s206 = sphi 0, %s208
    %s209 = sphi 0, %s206
    %s210 = sphi 0, %s209
    %s226 = sphi 0, %s210
    %s232 = sphi 0, %s234
    %s235 = sphi 0, %s232
    %s236 = sphi 0, %s235
    %s252 = sphi 0, %s236
    %s258 = sphi 0, %s260
    %s261 = sphi 0, %s258
    %s262 = sphi 0, %s261
    %s278 = sphi 0, %s262
    %s284 = sphi 0, %s286
    %s287 = sphi 0, %s284
    %s288 = sphi 0, %s287
    %s304 = sphi 0, %s288
  $region4: #{encoder_overall_forward.15} parent=0 // loop_header_branch
    %21 = sbr.rel (%p19) target = $region8
  $region5: #{encoder_overall_forward.15} parent=0 // loop_body
    %s23 = ssub.s32 %s18, 1
    %s24 = ssub.s32 %s18, 2
    %s25 = sadd.s32 %s18, 1
    %s26 = ssub.s32 %s18, %s25
    %p27 = scmp.eq.s32.totalorder %s26, 0
    %s29 = sadd.s32 %s28, 1
    %s30 = scalar_select %p27, %s28, %s29
    %p33 = pneg %p27
    %p34 = scmp.eq.s32.totalorder %s18, 1
    %p35 = por %p33, %p34
    %p36 = scmp.ne.s32.totalorder %s28, %s31
    %p37 = scmp.eq.s32.totalorder %s18, 0
    %p38 = por %p36, %p37
    %p39 = scmp.ne.s32.totalorder %s28, %s31
    %p40 = scmp.eq.s32.totalorder %s23, 1
    %p41 = por %p39, %p40
    %p42 = scmp.ne.s32.totalorder %s31, %s32
    %p43 = scmp.eq.s32.totalorder %s23, 0
    %p44 = por %p42, %p43
    %p45 = scmp.ne.s32.totalorder %s31, %s32
    %p46 = scmp.eq.s32.totalorder %s24, 1
    %p47 = por %p45, %p46
    %p49 = scmp.ne.s32.totalorder %s32, %s48
    %p50 = scmp.eq.s32.totalorder %s24, 0
    %p51 = por %p49, %p50
    %s52 = ssub.s32 %s18, %s25
    %p53 = scmp.eq.s32.totalorder %s52, 0
    %s55 = sadd.s32 %s54, 1
    %s56 = scalar_select %p53, %s54, %s55
    %p59 = pneg %p53
    %p60 = scmp.eq.s32.totalorder %s18, 1
    %p61 = por %p59, %p60
    %p62 = scmp.ne.s32.totalorder %s54, %s57
    %p63 = scmp.eq.s32.totalorder %s18, 0
    %p64 = por %p62, %p63
    %p65 = scmp.ne.s32.totalorder %s54, %s57
    %p66 = scmp.eq.s32.totalorder %s23, 1
    %p67 = por %p65, %p66
    %p68 = scmp.ne.s32.totalorder %s57, %s58
    %p69 = scmp.eq.s32.totalorder %s23, 0
    %p70 = por %p68, %p69
    %p71 = scmp.ne.s32.totalorder %s57, %s58
    %p72 = scmp.eq.s32.totalorder %s24, 1
    %p73 = por %p71, %p72
    %p75 = scmp.ne.s32.totalorder %s58, %s74
    %p76 = scmp.eq.s32.totalorder %s24, 0
    %p77 = por %p75, %p76
    %s79 = sadd.s32 %s78, 1
    %p82 = scmp.eq.s32.totalorder %s18, 1
    %p83 = scmp.ne.s32.totalorder %s78, %s80
    %p84 = scmp.eq.s32.totalorder %s18, 0
    %p85 = por %p83, %p84
    %p86 = scmp.ne.s32.totalorder %s78, %s80
    %p87 = scmp.eq.s32.totalorder %s23, 1
    %p88 = por %p86, %p87
    %p89 = scmp.ne.s32.totalorder %s80, %s81
    %p90 = scmp.eq.s32.totalorder %s23, 0
    %p91 = por %p89, %p90
    %p92 = scmp.ne.s32.totalorder %s80, %s81
    %p93 = scmp.eq.s32.totalorder %s24, 1
    %p94 = por %p92, %p93
    %p96 = scmp.ne.s32.totalorder %s81, %s95
    %p97 = scmp.eq.s32.totalorder %s24, 0
    %p98 = por %p96, %p97
    %s100 = sadd.s32 %s99, 1
    %p103 = scmp.eq.s32.totalorder %s18, 1
    %p104 = scmp.ne.s32.totalorder %s99, %s101
    %p105 = scmp.eq.s32.totalorder %s18, 0
    %p106 = por %p104, %p105
    %p107 = scmp.ne.s32.totalorder %s99, %s101
    %p108 = scmp.eq.s32.totalorder %s23, 1
    %p109 = por %p107, %p108
    %p110 = scmp.ne.s32.totalorder %s101, %s102
    %p111 = scmp.eq.s32.totalorder %s23, 0
    %p112 = por %p110, %p111
    %p113 = scmp.ne.s32.totalorder %s101, %s102
    %p114 = scmp.eq.s32.totalorder %s24, 1
    %p115 = por %p113, %p114
    %p117 = scmp.ne.s32.totalorder %s102, %s116
    %p118 = scmp.eq.s32.totalorder %s24, 0
    %p119 = por %p117, %p118
    %s121 = sadd.s32 %s120, 1
    %p124 = scmp.eq.s32.totalorder %s18, 1
    %p125 = scmp.ne.s32.totalorder %s120, %s122
    %p126 = scmp.eq.s32.totalorder %s18, 0
    %p127 = por %p125, %p126
    %p128 = scmp.ne.s32.totalorder %s120, %s122
    %p129 = scmp.eq.s32.totalorder %s23, 1
    %p130 = por %p128, %p129
    %p131 = scmp.ne.s32.totalorder %s122, %s123
    %p132 = scmp.eq.s32.totalorder %s23, 0
    %p133 = por %p131, %p132
    %p134 = scmp.ne.s32.totalorder %s122, %s123
    %p135 = scmp.eq.s32.totalorder %s24, 1
    %p136 = por %p134, %p135
    %p138 = scmp.ne.s32.totalorder %s123, %s137
    %p139 = scmp.eq.s32.totalorder %s24, 0
    %p140 = por %p138, %p139
    %s142 = sadd.s32 %s141, 1
    %p145 = scmp.eq.s32.totalorder %s18, 1
    %p146 = scmp.ne.s32.totalorder %s141, %s143
    %p147 = scmp.eq.s32.totalorder %s18, 0
    %p148 = por %p146, %p147
    %p149 = scmp.ne.s32.totalorder %s141, %s143
    %p150 = scmp.eq.s32.totalorder %s23, 1
    %p151 = por %p149, %p150
    %p152 = scmp.ne.s32.totalorder %s143, %s144
    %p153 = scmp.eq.s32.totalorder %s23, 0
    %p154 = por %p152, %p153
    %p155 = scmp.ne.s32.totalorder %s143, %s144
    %p156 = scmp.eq.s32.totalorder %s24, 1
    %p157 = por %p155, %p156
    %p159 = scmp.ne.s32.totalorder %s144, %s158
    %p160 = scmp.eq.s32.totalorder %s24, 0
    %p161 = por %p159, %p160
    %s163 = sadd.s32 %s162, 1
    %p166 = scmp.eq.s32.totalorder %s18, 1
    %p167 = scmp.ne.s32.totalorder %s162, %s164
    %p168 = scmp.eq.s32.totalorder %s18, 0
    %p169 = por %p167, %p168
    %p170 = scmp.ne.s32.totalorder %s162, %s164
    %p171 = scmp.eq.s32.totalorder %s23, 1
    %p172 = por %p170, %p171
    %p173 = scmp.ne.s32.totalorder %s164, %s165
    %p174 = scmp.eq.s32.totalorder %s23, 0
    %p175 = por %p173, %p174
    %p176 = scmp.ne.s32.totalorder %s164, %s165
    %p177 = scmp.eq.s32.totalorder %s24, 1
    %p178 = por %p176, %p177
    %p180 = scmp.ne.s32.totalorder %s165, %s179
    %p181 = scmp.eq.s32.totalorder %s24, 0
    %p182 = por %p180, %p181
    %s184 = sadd.s32 %s183, 1
    %p187 = scmp.eq.s32.totalorder %s18, 1
    %p188 = scmp.ne.s32.totalorder %s183, %s185
    %p189 = scmp.eq.s32.totalorder %s18, 0
    %p190 = por %p188, %p189
    %p191 = scmp.ne.s32.totalorder %s183, %s185
    %p192 = scmp.eq.s32.totalorder %s23, 1
    %p193 = por %p191, %p192
    %p194 = scmp.ne.s32.totalorder %s185, %s186
    %p195 = scmp.eq.s32.totalorder %s23, 0
    %p196 = por %p194, %p195
    %p197 = scmp.ne.s32.totalorder %s185, %s186
    %p198 = scmp.eq.s32.totalorder %s24, 1
    %p199 = por %p197, %p198
    %p201 = scmp.ne.s32.totalorder %s186, %s200
    %p202 = scmp.eq.s32.totalorder %s24, 0
    %p203 = por %p201, %p202
    %s204 = ssub.s32 %s18, %s25
    %p205 = scmp.eq.s32.totalorder %s204, 0
    %s207 = sadd.s32 %s206, 1
    %s208 = scalar_select %p205, %s206, %s207
    %p211 = pneg %p205
    %p212 = scmp.eq.s32.totalorder %s18, 1
    %p213 = por %p211, %p212
    %p214 = scmp.ne.s32.totalorder %s206, %s209
    %p215 = scmp.eq.s32.totalorder %s18, 0
    %p216 = por %p214, %p215
    %p217 = scmp.ne.s32.totalorder %s206, %s209
    %p218 = scmp.eq.s32.totalorder %s23, 1
    %p219 = por %p217, %p218
    %p220 = scmp.ne.s32.totalorder %s209, %s210
    %p221 = scmp.eq.s32.totalorder %s23, 0
    %p222 = por %p220, %p221
    %p223 = scmp.ne.s32.totalorder %s209, %s210
    %p224 = scmp.eq.s32.totalorder %s24, 1
    %p225 = por %p223, %p224
    %p227 = scmp.ne.s32.totalorder %s210, %s226
    %p228 = scmp.eq.s32.totalorder %s24, 0
    %p229 = por %p227, %p228
    %s230 = ssub.s32 %s18, %s25
    %p231 = scmp.eq.s32.totalorder %s230, 0
    %s233 = sadd.s32 %s232, 1
    %s234 = scalar_select %p231, %s232, %s233
    %p237 = pneg %p231
    %p238 = scmp.eq.s32.totalorder %s18, 1
    %p239 = por %p237, %p238
    %p240 = scmp.ne.s32.totalorder %s232, %s235
    %p241 = scmp.eq.s32.totalorder %s18, 0
    %p242 = por %p240, %p241
    %p243 = scmp.ne.s32.totalorder %s232, %s235
    %p244 = scmp.eq.s32.totalorder %s23, 1
    %p245 = por %p243, %p244
    %p246 = scmp.ne.s32.totalorder %s235, %s236
    %p247 = scmp.eq.s32.totalorder %s23, 0
    %p248 = por %p246, %p247
    %p249 = scmp.ne.s32.totalorder %s235, %s236
    %p250 = scmp.eq.s32.totalorder %s24, 1
    %p251 = por %p249, %p250
    %p253 = scmp.ne.s32.totalorder %s236, %s252
    %p254 = scmp.eq.s32.totalorder %s24, 0
    %p255 = por %p253, %p254
    %s256 = ssub.s32 %s18, %s25
    %p257 = scmp.eq.s32.totalorder %s256, 0
    %s259 = sadd.s32 %s258, 1
    %s260 = scalar_select %p257, %s258, %s259
    %p263 = pneg %p257
    %p264 = scmp.eq.s32.totalorder %s18, 1
    %p265 = por %p263, %p264
    %p266 = scmp.ne.s32.totalorder %s258, %s261
    %p267 = scmp.eq.s32.totalorder %s18, 0
    %p268 = por %p266, %p267
    %p269 = scmp.ne.s32.totalorder %s258, %s261
    %p270 = scmp.eq.s32.totalorder %s23, 1
    %p271 = por %p269, %p270
    %p272 = scmp.ne.s32.totalorder %s261, %s262
    %p273 = scmp.eq.s32.totalorder %s23, 0
    %p274 = por %p272, %p273
    %p275 = scmp.ne.s32.totalorder %s261, %s262
    %p276 = scmp.eq.s32.totalorder %s24, 1
    %p277 = por %p275, %p276
    %p279 = scmp.ne.s32.totalorder %s262, %s278
    %p280 = scmp.eq.s32.totalorder %s24, 0
    %p281 = por %p279, %p280
    %s282 = ssub.s32 %s18, %s25
    %p283 = scmp.eq.s32.totalorder %s282, 0
    %s285 = sadd.s32 %s284, 1
    %s286 = scalar_select %p283, %s284, %s285
    %p289 = pneg %p283
    %p290 = scmp.eq.s32.totalorder %s18, 1
    %p291 = por %p289, %p290
    %p292 = scmp.ne.s32.totalorder %s284, %s287
    %p293 = scmp.eq.s32.totalorder %s18, 0
    %p294 = por %p292, %p293
    %p295 = scmp.ne.s32.totalorder %s284, %s287
    %p296 = scmp.eq.s32.totalorder %s23, 1
    %p297 = por %p295, %p296
    %p298 = scmp.ne.s32.totalorder %s287, %s288
    %p299 = scmp.eq.s32.totalorder %s23, 0
    %p300 = por %p298, %p299
    %p301 = scmp.ne.s32.totalorder %s287, %s288
    %p302 = scmp.eq.s32.totalorder %s24, 1
    %p303 = por %p301, %p302
    %p305 = scmp.ne.s32.totalorder %s288, %s304
    %p306 = scmp.eq.s32.totalorder %s24, 0
    %p307 = por %p305, %p306
    %p308 = scmp.le.s32.totalorder 1, %s18
    %p309 = scmp.lt.s32.totalorder %s18, 3
    %p310 = pnand %p308, %p309
    %p311 = pneg %p310
    // Predicated region
    $region9: #{encoder_overall_forward.15} parent=5 // pred_check
      _
    $region10: #{encoder_overall_forward.15} parent=5 // pred_check_branch
      %313 = sbr.rel (%p310) target = $region12
    $region11: #{encoder_overall_forward.15} parent=5 // pred_region
      %s314 = ssub.s32 %s18, 1
      // Predicated region
      $region13: #{encoder_overall_forward.15} parent=11 // pred_check
        %p315 = pneg %p91
      $region14: #{encoder_overall_forward.15} parent=11 // pred_check_branch
        %317 = sbr.rel (%p315) target = $region16
      $region15: #{encoder_overall_forward.15} parent=11 // pred_region
        _
      $region16: #{encoder_overall_forward.15} parent=11 // pred_fallthru
        _
      // Predicated region
      $region17: #{encoder_overall_forward.15} parent=11 // pred_check
        %p318 = pneg %p112
      $region18: #{encoder_overall_forward.15} parent=11 // pred_check_branch
        %320 = sbr.rel (%p318) target = $region20
      $region19: #{encoder_overall_forward.15} parent=11 // pred_region
        _
      $region20: #{encoder_overall_forward.15} parent=11 // pred_fallthru
        _
      // Predicated region
      $region21: #{encoder_overall_forward.15} parent=11 // pred_check
        %p321 = pneg %p133
      $region22: #{encoder_overall_forward.15} parent=11 // pred_check_branch
        %323 = sbr.rel (%p321) target = $region24
      $region23: #{encoder_overall_forward.15} parent=11 // pred_region
        _
      $region24: #{encoder_overall_forward.15} parent=11 // pred_fallthru
        _
      // Predicated region
      $region25: #{encoder_overall_forward.15} parent=11 // pred_check
        %p324 = pneg %p154
      $region26: #{encoder_overall_forward.15} parent=11 // pred_check_branch
        %326 = sbr.rel (%p324) target = $region28
      $region27: #{encoder_overall_forward.15} parent=11 // pred_region
        _
      $region28: #{encoder_overall_forward.15} parent=11 // pred_fallthru
        _
      // Predicated region
      $region29: #{encoder_overall_forward.15} parent=11 // pred_check
        %p327 = pneg %p175
      $region30: #{encoder_overall_forward.15} parent=11 // pred_check_branch
        %329 = sbr.rel (%p327) target = $region32
      $region31: #{encoder_overall_forward.15} parent=11 // pred_region
        _
      $region32: #{encoder_overall_forward.15} parent=11 // pred_fallthru
        _
      // Predicated region
      $region33: #{encoder_overall_forward.15} parent=11 // pred_check
        %p330 = pneg %p196
      $region34: #{encoder_overall_forward.15} parent=11 // pred_check_branch
        %332 = sbr.rel (%p330) target = $region36
      $region35: #{encoder_overall_forward.15} parent=11 // pred_region
        _
      $region36: #{encoder_overall_forward.15} parent=11 // pred_fallthru
        _
    $region12: #{encoder_overall_forward.15} parent=5 // pred_fallthru
      _
    %p333 = scmp.lt.s32.totalorder %s18, 2
    // Predicated region
    $region37: #{encoder_overall_forward.15} parent=5 // pred_check
      %p334 = pneg %p333
    $region38: #{encoder_overall_forward.15} parent=5 // pred_check_branch
      %336 = sbr.rel (%p334) target = $region40
    $region39: #{encoder_overall_forward.15} parent=5 // pred_region
      // Predicated region
      $region41: #{encoder_overall_forward.15} parent=39 // pred_check
        %p337 = pneg %p38
      $region42: #{encoder_overall_forward.15} parent=39 // pred_check_branch
        %339 = sbr.rel (%p337) target = $region44
      $region43: #{encoder_overall_forward.15} parent=39 // pred_region
        %s340 = smul.u32 32, %s18
        %p341 = scmp.lt.s32.totalorder %s340, 63
        %s342 = scalar_select %p341, %s340, 63
        %s343 = smul.addr %s342, 8
        %s344 = scalar_lea.vmem %s0, %s343
        %s345 = smul.u32 32, %s18
      $region44: #{encoder_overall_forward.15} parent=39 // pred_fallthru
        _
      // Predicated region
      $region45: #{encoder_overall_forward.15} parent=39 // pred_check
        %p346 = pneg %p64
      $region46: #{encoder_overall_forward.15} parent=39 // pred_check_branch
        %348 = sbr.rel (%p346) target = $region48
      $region47: #{encoder_overall_forward.15} parent=39 // pred_region
        %s349 = smul.u32 32, %s18
        %p350 = scmp.lt.s32.totalorder %s349, 63
        %s351 = scalar_select %p350, %s349, 63
        %s352 = smul.addr %s351, 8
        %s353 = scalar_lea.vmem %s1, %s352
        %s354 = smul.u32 32, %s18
      $region48: #{encoder_overall_forward.15} parent=39 // pred_fallthru
        _
    $region40: #{encoder_overall_forward.15} parent=5 // pred_fallthru
      _
    %p355 = scmp.le.s32.totalorder 1, %s18
    %p356 = scmp.lt.s32.totalorder %s18, 3
    %p357 = pnand %p355, %p356
    %p358 = pneg %p357
    // Predicated region
    $region49: #{encoder_overall_forward.15} parent=5 // pred_check
      _
    $region50: #{encoder_overall_forward.15} parent=5 // pred_check_branch
      %360 = sbr.rel (%p357) target = $region52
    $region51: #{encoder_overall_forward.15} parent=5 // pred_region
      %s361 = ssub.s32 %s18, 1
      %s362 = smul.u32 32, %s23
      %p363 = scmp.lt.s32.totalorder %s362, 63
      %s364 = scalar_select %p363, %s362, 63
      %s365 = smul.addr %s364, 8
      %s366 = scalar_lea.vmem %s0, %s365
      %p367 = pneg %p44
      %p368 = pneg %p41
      %s369 = smul.u32 32, %s23
      %p370 = scmp.lt.s32.totalorder %s369, 63
      %s371 = scalar_select %p370, %s369, 63
      %s372 = smul.addr %s371, 8
      %s373 = scalar_lea.vmem %s1, %s372
      %p374 = pneg %p70
      %p375 = pneg %p67
      %p376 = pneg %p91
      %p377 = pneg %p88
      %p378 = pneg %p112
      %p379 = pneg %p109
      %p380 = pneg %p133
      %p381 = pneg %p130
      %p382 = pneg %p154
      %p383 = pneg %p151
      %p384 = pneg %p175
      %p385 = pneg %p172
      %p386 = pneg %p196
      %p387 = pneg %p193
      %p388 = pneg %p222
      %p389 = pneg %p219
      %s390 = smul.u32 32, %s23
      %p391 = scmp.lt.s32.totalorder %s390, 63
      %s392 = scalar_select %p391, %s390, 63
      %s393 = smul.addr %s392, 8
      %s394 = scalar_lea.vmem %s8, %s393
      %p395 = pneg %p248
      %p396 = pneg %p245
      %s397 = smul.u32 32, %s23
      %p398 = scmp.lt.s32.totalorder %s397, 63
      %s399 = scalar_select %p398, %s397, 63
      %s400 = smul.addr %s399, 8
      %s401 = scalar_lea.vmem %s9, %s400
      %p402 = pneg %p274
      %p403 = pneg %p271
      %s404 = smul.u32 32, %s23
      %p405 = scmp.lt.s32.totalorder %s404, 63
      %s406 = scalar_select %p405, %s404, 63
      %s407 = smul.addr %s406, 2
      %s408 = smul.addr %s407, 8
      %s409 = scalar_lea.vmem %s10, %s408
      %p410 = pneg %p300
      %p411 = pneg %p297
      %s412 = smul.u32 32, %s23
      %p413 = scmp.lt.s32.totalorder %s412, 63
      %s414 = scalar_select %p413, %s412, 63
      %s415 = smul.addr %s414, 2
      %s416 = smul.addr %s415, 8
      %s417 = scalar_lea.vmem %s11, %s416
      %s418 = smul.u32 32, %s23
      %p419 = scmp.lt.s32.totalorder %s418, 63
      %s420 = scalar_select %p419, %s418, 63
      %s421 = smul.addr %s420, 8
      %s422 = scalar_lea.vmem %s0, %s421
      %s423 = smul.u32 32, %s23
      %s424 = smul.u32 32, %s23
      %p425 = scmp.lt.s32.totalorder %s424, 63
      %s426 = scalar_select %p425, %s424, 63
      %s427 = smul.addr %s426, 8
      %s428 = scalar_lea.vmem %s1, %s427
      %s429 = smul.u32 32, %s23
      %s430 = smul.u32 32, %s23
      %p431 = scmp.lt.s32.totalorder %s430, 63
      %s432 = scalar_select %p431, %s430, 63
      %s433 = smul.addr %s432, 8
      %s434 = scalar_lea.vmem %s8, %s433
      %s435 = smul.u32 32, %s23
      %s436 = smul.u32 32, %s23
      %p437 = scmp.lt.s32.totalorder %s436, 63
      %s438 = scalar_select %p437, %s436, 63
      %s439 = smul.addr %s438, 8
      %s440 = scalar_lea.vmem %s9, %s439
      %s441 = smul.u32 32, %s23
      %s442 = smul.u32 32, %s23
      %p443 = scmp.lt.s32.totalorder %s442, 63
      %s444 = scalar_select %p443, %s442, 63
      %s445 = smul.addr %s444, 2
      %s446 = smul.addr %s445, 8
      %s447 = scalar_lea.vmem %s10, %s446
      %s448 = smul.u32 32, %s23
      %s449 = smul.u32 32, %s23
      %p450 = scmp.lt.s32.totalorder %s449, 63
      %s451 = scalar_select %p450, %s449, 63
      %s452 = smul.addr %s451, 2
      %s453 = smul.addr %s452, 8
      %s454 = scalar_lea.vmem %s11, %s453
      %s455 = smul.u32 32, %s23
      %v456 = vld [vmem:[%s422] sm:$0xff]
      %v457 = vld [vmem:[%s422 + $0x8] sm:$0xff]
      %v458 = vld [vmem:[%s422 + $0x10] sm:$0xff]
      %v459 = vld [vmem:[%s422 + $0x18] sm:$0xff]
      %v460 = vld [vmem:[%s422 + $0x20] sm:$0xff]
      %v461 = vld [vmem:[%s422 + $0x28] sm:$0xff]
      %v462 = vld [vmem:[%s422 + $0x30] sm:$0xff]
      %v463 = vld [vmem:[%s422 + $0x38] sm:$0xff]
      %v464 = vld [vmem:[%s422 + $0x40] sm:$0xff]
      %v465 = vld [vmem:[%s422 + $0x48] sm:$0xff]
      %v466 = vld [vmem:[%s422 + $0x50] sm:$0xff]
      %v467 = vld [vmem:[%s422 + $0x58] sm:$0xff]
      %v468 = vld [vmem:[%s422 + $0x60] sm:$0xff]
      %v469 = vld [vmem:[%s422 + $0x68] sm:$0xff]
      %v470 = vld [vmem:[%s422 + $0x70] sm:$0xff]
      %v471 = vld [vmem:[%s422 + $0x78] sm:$0xff]
      %v472 = vld [vmem:[%s422 + $0x80] sm:$0xff]
      %v473 = vld [vmem:[%s422 + $0x88] sm:$0xff]
      %v474 = vld [vmem:[%s422 + $0x90] sm:$0xff]
      %v475 = vld [vmem:[%s422 + $0x98] sm:$0xff]
      %v476 = vld [vmem:[%s422 + $0xa0] sm:$0xff]
      %v477 = vld [vmem:[%s422 + $0xa8] sm:$0xff]
      %v478 = vld [vmem:[%s422 + $0xb0] sm:$0xff]
      %v479 = vld [vmem:[%s422 + $0xb8] sm:$0xff]
      %v480 = vld [vmem:[%s422 + $0xc0] sm:$0xff]
      %v481 = vld [vmem:[%s422 + $0xc8] sm:$0xff]
      %v482 = vld [vmem:[%s422 + $0xd0] sm:$0xff]
      %v483 = vld [vmem:[%s422 + $0xd8] sm:$0xff]
      %v484 = vld [vmem:[%s422 + $0xe0] sm:$0xff]
      %v485 = vld [vmem:[%s422 + $0xe8] sm:$0xff]
      %v486 = vld [vmem:[%s422 + $0xf0] sm:$0xff]
      %v487 = vld [vmem:[%s422 + $0xf8] sm:$0xff]
      %v488 = vld [vmem:[%s428] sm:$0xff]
      %v489 = vld [vmem:[%s428 + $0x8] sm:$0xff]
      %v490 = vld [vmem:[%s428 + $0x10] sm:$0xff]
      %v491 = vld [vmem:[%s428 + $0x18] sm:$0xff]
      %v492 = vld [vmem:[%s428 + $0x20] sm:$0xff]
      %v493 = vld [vmem:[%s428 + $0x28] sm:$0xff]
      %v494 = vld [vmem:[%s428 + $0x30] sm:$0xff]
      %v495 = vld [vmem:[%s428 + $0x38] sm:$0xff]
      %v496 = vld [vmem:[%s428 + $0x40] sm:$0xff]
      %v497 = vld [vmem:[%s428 + $0x48] sm:$0xff]
      %v498 = vld [vmem:[%s428 + $0x50] sm:$0xff]
      %v499 = vld [vmem:[%s428 + $0x58] sm:$0xff]
      %v500 = vld [vmem:[%s428 + $0x60] sm:$0xff]
      %v501 = vld [vmem:[%s428 + $0x68] sm:$0xff]
      %v502 = vld [vmem:[%s428 + $0x70] sm:$0xff]
      %v503 = vld [vmem:[%s428 + $0x78] sm:$0xff]
      %v504 = vld [vmem:[%s428 + $0x80] sm:$0xff]
      %v505 = vld [vmem:[%s428 + $0x88] sm:$0xff]
      %v506 = vld [vmem:[%s428 + $0x90] sm:$0xff]
      %v507 = vld [vmem:[%s428 + $0x98] sm:$0xff]
      %v508 = vld [vmem:[%s428 + $0xa0] sm:$0xff]
      %v509 = vld [vmem:[%s428 + $0xa8] sm:$0xff]
      %v510 = vld [vmem:[%s428 + $0xb0] sm:$0xff]
      %v511 = vld [vmem:[%s428 + $0xb8] sm:$0xff]
      %v512 = vld [vmem:[%s428 + $0xc0] sm:$0xff]
      %v513 = vld [vmem:[%s428 + $0xc8] sm:$0xff]
      %v514 = vld [vmem:[%s428 + $0xd0] sm:$0xff]
      %v515 = vld [vmem:[%s428 + $0xd8] sm:$0xff]
      %v516 = vld [vmem:[%s428 + $0xe0] sm:$0xff]
      %v517 = vld [vmem:[%s428 + $0xe8] sm:$0xff]
      %v518 = vld [vmem:[%s428 + $0xf0] sm:$0xff]
      %v519 = vld [vmem:[%s428 + $0xf8] sm:$0xff]
      %v520 = vld [vmem:[%s2] sm:$0xff]
      %v521 = vld [vmem:[%s2 + $0x8] sm:$0xff]
      %v522 = vld [vmem:[%s2 + $0x10] sm:$0xff]
      %v523 = vld [vmem:[%s2 + $0x18] sm:$0xff]
      %v524 = vld [vmem:[%s2 + $0x20] sm:$0xff]
      %v525 = vld [vmem:[%s2 + $0x28] sm:$0xff]
      %v526 = vld [vmem:[%s2 + $0x30] sm:$0xff]
      %v527 = vld [vmem:[%s2 + $0x38] sm:$0xff]
      %v528 = vld [vmem:[%s2 + $0x40] sm:$0xff]
      %v529 = vld [vmem:[%s2 + $0x48] sm:$0xff]
      %v530 = vld [vmem:[%s2 + $0x50] sm:$0xff]
      %v531 = vld [vmem:[%s2 + $0x58] sm:$0xff]
      %v532 = vld [vmem:[%s2 + $0x60] sm:$0xff]
      %v533 = vld [vmem:[%s2 + $0x68] sm:$0xff]
      %v534 = vld [vmem:[%s2 + $0x70] sm:$0xff]
      %v535 = vld [vmem:[%s2 + $0x78] sm:$0xff]
      %v536 = vld [vmem:[%s3] sm:$0x1]
      %537 = vmatprep.subr.mxu0 0.0
      %538 = vmatpush1.msra.mxu0 %v520
      %539 = vmatprep.subr.mxu0 0.0
      %540 = vmatpush1.msra.mxu0 %v521
      %541 = vmatprep.subr.mxu0 0.0
      %542 = vmatpush1.msra.mxu0 %v522
      %543 = vmatprep.subr.mxu0 0.0
      %544 = vmatpush1.msra.mxu0 %v523
      %545 = vmatprep.subr.mxu0 0.0
      %546 = vmatpush1.msra.mxu0 %v524
      %547 = vmatprep.subr.mxu0 0.0
      %548 = vmatpush1.msra.mxu0 %v525
      %549 = vmatprep.subr.mxu0 0.0
      %550 = vmatpush1.msra.mxu0 %v526
      %551 = vmatprep.subr.mxu0 0.0
      %552 = vmatpush1.msra.mxu0 %v527
      %553 = vmatprep.subr.mxu0 0.0
      %554 = vmatpush1.msra.mxu0 %v528
      %555 = vmatprep.subr.mxu0 0.0
      %556 = vmatpush1.msra.mxu0 %v529
      %557 = vmatprep.subr.mxu0 0.0
      %558 = vmatpush1.msra.mxu0 %v530
      %559 = vmatprep.subr.mxu0 0.0
      %560 = vmatpush1.msra.mxu0 %v531
      %561 = vmatprep.subr.mxu0 0.0
      %562 = vmatpush1.msra.mxu0 %v532
      %563 = vmatprep.subr.mxu0 0.0
      %564 = vmatpush1.msra.mxu0 %v533
      %565 = vmatprep.subr.mxu0 0.0
      %566 = vmatpush1.msra.mxu0 %v534
      %567 = vmatprep.subr.mxu0 0.0
      %568 = vmatpush1.msra.mxu0 %v535
      %569 = vmatprep.subr.mxu0 0.0
      %570 = vmatpush1.msra.mxu0 0.0
      %571 = vmatprep.subr.mxu0 0.0
      %572 = vmatpush1.msra.mxu0 0.0
      %573 = vmatprep.subr.mxu0 0.0
      %574 = vmatpush1.msra.mxu0 0.0
      %575 = vmatprep.subr.mxu0 0.0
      %576 = vmatpush1.msra.mxu0 0.0
      %577 = vmatprep.subr.mxu0 0.0
      %578 = vmatpush1.msra.mxu0 0.0
      %579 = vmatprep.subr.mxu0 0.0
      %580 = vmatpush1.msra.mxu0 0.0
      %581 = vmatprep.subr.mxu0 0.0
      %582 = vmatpush1.msra.mxu0 0.0
      %583 = vmatprep.subr.mxu0 0.0
      %584 = vmatpush1.msra.mxu0 0.0
      %585 = vmatprep.subr.mxu0 0.0
      %586 = vmatpush1.msra.mxu0 0.0
      %587 = vmatprep.subr.mxu0 0.0
      %588 = vmatpush1.msra.mxu0 0.0
      %589 = vmatprep.subr.mxu0 0.0
      %590 = vmatpush1.msra.mxu0 0.0
      %591 = vmatprep.subr.mxu0 0.0
      %592 = vmatpush1.msra.mxu0 0.0
      %593 = vmatprep.subr.mxu0 0.0
      %594 = vmatpush1.msra.mxu0 0.0
      %595 = vmatprep.subr.mxu0 0.0
      %596 = vmatpush1.msra.mxu0 0.0
      %597 = vmatprep.subr.mxu0 0.0
      %598 = vmatpush1.msra.mxu0 0.0
      %599 = vmatprep.subr.mxu0 0.0
      %600 = vmatpush1.msra.mxu0 0.0
      %601 = vmatprep.mubr.f32.mxu0 0.0
      %602 = vmatmul.mubr.f32.gmra.mrb[0].mxu0 %v456
      %v603 = vpop.f32.mrb[0].mxu0
      %v604 = vadd.f32 0.0, %v603
      %v605 = vpop.f32.mrb[0].mxu0
      %606 = vmatprep.mubr.f32.mxu0 0.0
      %607 = vmatmul.mubr.f32.gmra.mrb[0].mxu0 %v457
      %v608 = vpop.f32.mrb[0].mxu0
      %v609 = vadd.f32 0.0, %v608
      %v610 = vpop.f32.mrb[0].mxu0
      %611 = vmatprep.mubr.f32.mxu0 0.0
      %612 = vmatmul.mubr.f32.gmra.mrb[0].mxu0 %v458
      %v613 = vpop.f32.mrb[0].mxu0
      %v614 = vadd.f32 0.0, %v613
      %v615 = vpop.f32.mrb[0].mxu0
      %616 = vmatprep.mubr.f32.mxu0 0.0
      %617 = vmatmul.mubr.f32.gmra.mrb[0].mxu0 %v459
      %v618 = vpop.f32.mrb[0].mxu0
      %v619 = vadd.f32 0.0, %v618
      %v620 = vpop.f32.mrb[0].mxu0
      %621 = vmatprep.mubr.f32.mxu0 0.0
      %622 = vmatmul.mubr.f32.gmra.mrb[0].mxu0 %v460
      %v623 = vpop.f32.mrb[0].mxu0
      %v624 = vadd.f32 0.0, %v623
      %v625 = vpop.f32.mrb[0].mxu0
      %626 = vmatprep.mubr.f32.mxu0 0.0
      %627 = vmatmul.mubr.f32.gmra.mrb[0].mxu0 %v461
      %v628 = vpop.f32.mrb[0].mxu0
      %v629 = vadd.f32 0.0, %v628
      %v630 = vpop.f32.mrb[0].mxu0
      %631 = vmatprep.mubr.f32.mxu0 0.0
      %632 = vmatmul.mubr.f32.gmra.mrb[0].mxu0 %v462
      %v633 = vpop.f32.mrb[0].mxu0
      %v634 = vadd.f32 0.0, %v633
      %v635 = vpop.f32.mrb[0].mxu0
      %636 = vmatprep.mubr.f32.mxu0 0.0
      %637 = vmatmul.mubr.f32.gmra.mrb[0].mxu0 %v463
      %v638 = vpop.f32.mrb[0].mxu0
      %v639 = vadd.f32 0.0, %v638
      %v640 = vpop.f32.mrb[0].mxu0
      %641 = vmatprep.mubr.f32.mxu0 0.0
      %642 = vmatmul.mubr.f32.gmra.mrb[0].mxu0 %v464
      %v643 = vpop.f32.mrb[0].mxu0
      %v644 = vadd.f32 0.0, %v643
      %v645 = vpop.f32.mrb[0].mxu0
      %646 = vmatprep.mubr.f32.mxu0 0.0
      %647 = vmatmul.mubr.f32.gmra.mrb[0].mxu0 %v465
      %v648 = vpop.f32.mrb[0].mxu0
      %v649 = vadd.f32 0.0, %v648
      %v650 = vpop.f32.mrb[0].mxu0
      %651 = vmatprep.mubr.f32.mxu0 0.0
      %652 = vmatmul.mubr.f32.gmra.mrb[0].mxu0 %v466
      %v653 = vpop.f32.mrb[0].mxu0
      %v654 = vadd.f32 0.0, %v653
      %v655 = vpop.f32.mrb[0].mxu0
      %656 = vmatprep.mubr.f32.mxu0 0.0
      %657 = vmatmul.mubr.f32.gmra.mrb[0].mxu0 %v467
      %v658 = vpop.f32.mrb[0].mxu0
      %v659 = vadd.f32 0.0, %v658
      %v660 = vpop.f32.mrb[0].mxu0
      %661 = vmatprep.mubr.f32.mxu0 0.0
      %662 = vmatmul.mubr.f32.gmra.mrb[0].mxu0 %v468
      %v663 = vpop.f32.mrb[0].mxu0
      %v664 = vadd.f32 0.0, %v663
      %v665 = vpop.f32.mrb[0].mxu0
      %666 = vmatprep.mubr.f32.mxu0 0.0
      %667 = vmatmul.mubr.f32.gmra.mrb[0].mxu0 %v469
      %v668 = vpop.f32.mrb[0].mxu0
      %v669 = vadd.f32 0.0, %v668
      %v670 = vpop.f32.mrb[0].mxu0
      %671 = vmatprep.mubr.f32.mxu0 0.0
      %672 = vmatmul.mubr.f32.gmra.mrb[0].mxu0 %v470
      %v673 = vpop.f32.mrb[0].mxu0
      %v674 = vadd.f32 0.0, %v673
      %v675 = vpop.f32.mrb[0].mxu0
      %676 = vmatprep.mubr.f32.mxu0 0.0
      %677 = vmatmul.mubr.f32.gmra.mrb[0].mxu0 %v471
      %v678 = vpop.f32.mrb[0].mxu0
      %v679 = vadd.f32 0.0, %v678
      %v680 = vpop.f32.mrb[0].mxu0
      %681 = vmatprep.mubr.f32.mxu0 0.0
      %682 = vmatmul.mubr.f32.gmra.mrb[0].mxu0 %v472
      %v683 = vpop.f32.mrb[0].mxu0
      %v684 = vadd.f32 0.0, %v683
      %v685 = vpop.f32.mrb[0].mxu0
      %686 = vmatprep.mubr.f32.mxu0 0.0
      %687 = vmatmul.mubr.f32.gmra.mrb[0].mxu0 %v473
      %v688 = vpop.f32.mrb[0].mxu0
      %v689 = vadd.f32 0.0, %v688
      %v690 = vpop.f32.mrb[0].mxu0
      %691 = vmatprep.mubr.f32.mxu0 0.0
      %692 = vmatmul.mubr.f32.gmra.mrb[0].mxu0 %v474
      %v693 = vpop.f32.mrb[0].mxu0
      %v694 = vadd.f32 0.0, %v693
      %v695 = vpop.f32.mrb[0].mxu0
      %696 = vmatprep.mubr.f32.mxu0 0.0
      %697 = vmatmul.mubr.f32.gmra.mrb[0].mxu0 %v475
      %v698 = vpop.f32.mrb[0].mxu0
      %v699 = vadd.f32 0.0, %v698
      %v700 = vpop.f32.mrb[0].mxu0
      %701 = vmatprep.mubr.f32.mxu0 0.0
      %702 = vmatmul.mubr.f32.gmra.mrb[0].mxu0 %v476
      %v703 = vpop.f32.mrb[0].mxu0
      %v704 = vadd.f32 0.0, %v703
      %v705 = vpop.f32.mrb[0].mxu0
      %706 = vmatprep.mubr.f32.mxu0 0.0
      %707 = vmatmul.mubr.f32.gmra.mrb[0].mxu0 %v477
      %v708 = vpop.f32.mrb[0].mxu0
      %v709 = vadd.f32 0.0, %v708
      %v710 = vpop.f32.mrb[0].mxu0
      %711 = vmatprep.mubr.f32.mxu0 0.0
      %712 = vmatmul.mubr.f32.gmra.mrb[0].mxu0 %v478
      %v713 = vpop.f32.mrb[0].mxu0
      %v714 = vadd.f32 0.0, %v713
      %v715 = vpop.f32.mrb[0].mxu0
      %716 = vmatprep.mubr.f32.mxu0 0.0
      %717 = vmatmul.mubr.f32.gmra.mrb[0].mxu0 %v479
      %v718 = vpop.f32.mrb[0].mxu0
      %v719 = vadd.f32 0.0, %v718
      %v720 = vpop.f32.mrb[0].mxu0
      %721 = vmatprep.mubr.f32.mxu0 0.0
      %722 = vmatmul.mubr.f32.gmra.mrb[0].mxu0 %v480
      %v723 = vpop.f32.mrb[0].mxu0
      %v724 = vadd.f32 0.0, %v723
      %v725 = vpop.f32.mrb[0].mxu0
      %726 = vmatprep.mubr.f32.mxu0 0.0
      %727 = vmatmul.mubr.f32.gmra.mrb[0].mxu0 %v481
      %v728 = vpop.f32.mrb[0].mxu0
      %v729 = vadd.f32 0.0, %v728
      %v730 = vpop.f32.mrb[0].mxu0
      %731 = vmatprep.mubr.f32.mxu0 0.0
      %732 = vmatmul.mubr.f32.gmra.mrb[0].mxu0 %v482
      %v733 = vpop.f32.mrb[0].mxu0
      %v734 = vadd.f32 0.0, %v733
      %v735 = vpop.f32.mrb[0].mxu0
      %736 = vmatprep.mubr.f32.mxu0 0.0
      %737 = vmatmul.mubr.f32.gmra.mrb[0].mxu0 %v483
      %v738 = vpop.f32.mrb[0].mxu0
      %v739 = vadd.f32 0.0, %v738
      %v740 = vpop.f32.mrb[0].mxu0
      %741 = vmatprep.mubr.f32.mxu0 0.0
      %742 = vmatmul.mubr.f32.gmra.mrb[0].mxu0 %v484
      %v743 = vpop.f32.mrb[0].mxu0
      %v744 = vadd.f32 0.0, %v743
      %v745 = vpop.f32.mrb[0].mxu0
      %746 = vmatprep.mubr.f32.mxu0 0.0
      %747 = vmatmul.mubr.f32.gmra.mrb[0].mxu0 %v485
      %v748 = vpop.f32.mrb[0].mxu0
      %v749 = vadd.f32 0.0, %v748
      %v750 = vpop.f32.mrb[0].mxu0
      %751 = vmatprep.mubr.f32.mxu0 0.0
      %752 = vmatmul.mubr.f32.gmra.mrb[0].mxu0 %v486
      %v753 = vpop.f32.mrb[0].mxu0
      %v754 = vadd.f32 0.0, %v753
      %v755 = vpop.f32.mrb[0].mxu0
      %756 = vmatprep.mubr.f32.mxu0 0.0
      %757 = vmatmul.mubr.f32.gmra.mrb[0].mxu0 %v487
      %v758 = vpop.f32.mrb[0].mxu0
      %v759 = vadd.f32 0.0, %v758
      %v760 = vpop.f32.mrb[0].mxu0
      %761 = vdwg.mxu0
      %v762 = vtanh.pop %v604
      %v763 = vtanh.pop %v609
      %v764 = vtanh.pop %v614
      %v765 = vtanh.pop %v619
      %v766 = vtanh.pop %v624
      %v767 = vtanh.pop %v629
      %v768 = vtanh.pop %v634
      %v769 = vtanh.pop %v639
      %v770 = vtanh.pop %v644
      %v771 = vtanh.pop %v649
      %v772 = vtanh.pop %v654
      %v773 = vtanh.pop %v659
      %v774 = vtanh.pop %v664
      %v775 = vtanh.pop %v669
      %v776 = vtanh.pop %v674
      %v777 = vtanh.pop %v679
      %v778 = vtanh.pop %v684
      %v779 = vtanh.pop %v689
      %v780 = vtanh.pop %v694
      %v781 = vtanh.pop %v699
      %v782 = vtanh.pop %v704
      %v783 = vtanh.pop %v709
      %v784 = vtanh.pop %v714
      %v785 = vtanh.pop %v719
      %v786 = vtanh.pop %v724
      %v787 = vtanh.pop %v729
      %v788 = vtanh.pop %v734
      %v789 = vtanh.pop %v739
      %v790 = vtanh.pop %v744
      %v791 = vtanh.pop %v749
      %v792 = vtanh.pop %v754
      %v793 = vtanh.pop %v759
      %794 = vmatprep.subr.mxu0 0.0
      %795 = vmatpush1.msra.mxu0 %v520
      %796 = vmatprep.subr.mxu0 0.0
      %797 = vmatpush1.msra.mxu0 %v521
      %798 = vmatprep.subr.mxu0 0.0
      %799 = vmatpush1.msra.mxu0 %v522
      %800 = vmatprep.subr.mxu0 0.0
      %801 = vmatpush1.msra.mxu0 %v523
      %802 = vmatprep.subr.mxu0 0.0
      %803 = vmatpush1.msra.mxu0 %v524
      %804 = vmatprep.subr.mxu0 0.0
      %805 = vmatpush1.msra.mxu0 %v525
      %806 = vmatprep.subr.mxu0 0.0
      %807 = vmatpush1.msra.mxu0 %v526
      %808 = vmatprep.subr.mxu0 0.0
      %809 = vmatpush1.msra.mxu0 %v527
      %810 = vmatprep.subr.mxu0 0.0
      %811 = vmatpush1.msra.mxu0 %v528
      %812 = vmatprep.subr.mxu0 0.0
      %813 = vmatpush1.msra.mxu0 %v529
      %814 = vmatprep.subr.mxu0 0.0
      %815 = vmatpush1.msra.mxu0 %v530
      %816 = vmatprep.subr.mxu0 0.0
      %817 = vmatpush1.msra.mxu0 %v531
      %818 = vmatprep.subr.mxu0 0.0
      %819 = vmatpush1.msra.mxu0 %v532
      %820 = vmatprep.subr.mxu0 0.0
      %821 = vmatpush1.msra.mxu0 %v533
      %822 = vmatprep.subr.mxu0 0.0
      %823 = vmatpush1.msra.mxu0 %v534
      %824 = vmatprep.subr.mxu0 0.0
      %825 = vmatpush1.msra.mxu0 %v535
      %826 = vmatprep.subr.mxu0 0.0
      %827 = vmatpush1.msra.mxu0 0.0
      %828 = vmatprep.subr.mxu0 0.0
      %829 = vmatpush1.msra.mxu0 0.0
      %830 = vmatprep.subr.mxu0 0.0
      %831 = vmatpush1.msra.mxu0 0.0
      %832 = vmatprep.subr.mxu0 0.0
      %833 = vmatpush1.msra.mxu0 0.0
      %834 = vmatprep.subr.mxu0 0.0
      %835 = vmatpush1.msra.mxu0 0.0
      %836 = vmatprep.subr.mxu0 0.0
      %837 = vmatpush1.msra.mxu0 0.0
      %838 = vmatprep.subr.mxu0 0.0
      %839 = vmatpush1.msra.mxu0 0.0
      %840 = vmatprep.subr.mxu0 0.0
      %841 = vmatpush1.msra.mxu0 0.0
      %842 = vmatprep.subr.mxu0 0.0
      %843 = vmatpush1.msra.mxu0 0.0
      %844 = vmatprep.subr.mxu0 0.0
      %845 = vmatpush1.msra.mxu0 0.0
      %846 = vmatprep.subr.mxu0 0.0
      %847 = vmatpush1.msra.mxu0 0.0
      %848 = vmatprep.subr.mxu0 0.0
      %849 = vmatpush1.msra.mxu0 0.0
      %850 = vmatprep.subr.mxu0 0.0
      %851 = vmatpush1.msra.mxu0 0.0
      %852 = vmatprep.subr.mxu0 0.0
      %853 = vmatpush1.msra.mxu0 0.0
      %854 = vmatprep.subr.mxu0 0.0
      %855 = vmatpush1.msra.mxu0 0.0
      %856 = vmatprep.subr.mxu0 0.0
      %857 = vmatpush1.msra.mxu0 0.0
      %858 = vmatprep.mubr.f32.mxu0 0.0
      %859 = vmatmul.mubr.f32.gmra.mrb[0].mxu0 %v488
      %v860 = vpop.f32.mrb[0].mxu0
      %v861 = vadd.f32 0.0, %v860
      %v862 = vpop.f32.mrb[0].mxu0
      %863 = vmatprep.mubr.f32.mxu0 0.0
      %864 = vmatmul.mubr.f32.gmra.mrb[0].mxu0 %v489
      %v865 = vpop.f32.mrb[0].mxu0
      %v866 = vadd.f32 0.0, %v865
      %v867 = vpop.f32.mrb[0].mxu0
      %868 = vmatprep.mubr.f32.mxu0 0.0
      %869 = vmatmul.mubr.f32.gmra.mrb[0].mxu0 %v490
      %v870 = vpop.f32.mrb[0].mxu0
      %v871 = vadd.f32 0.0, %v870
      %v872 = vpop.f32.mrb[0].mxu0
      %873 = vmatprep.mubr.f32.mxu0 0.0
      %874 = vmatmul.mubr.f32.gmra.mrb[0].mxu0 %v491
      %v875 = vpop.f32.mrb[0].mxu0
      %v876 = vadd.f32 0.0, %v875
      %v877 = vpop.f32.mrb[0].mxu0
      %878 = vmatprep.mubr.f32.mxu0 0.0
      %879 = vmatmul.mubr.f32.gmra.mrb[0].mxu0 %v492
      %v880 = vpop.f32.mrb[0].mxu0
      %v881 = vadd.f32 0.0, %v880
      %v882 = vpop.f32.mrb[0].mxu0
      %883 = vmatprep.mubr.f32.mxu0 0.0
      %884 = vmatmul.mubr.f32.gmra.mrb[0].mxu0 %v493
      %v885 = vpop.f32.mrb[0].mxu0
      %v886 = vadd.f32 0.0, %v885
      %v887 = vpop.f32.mrb[0].mxu0
      %888 = vmatprep.mubr.f32.mxu0 0.0
      %889 = vmatmul.mubr.f32.gmra.mrb[0].mxu0 %v494
      %v890 = vpop.f32.mrb[0].mxu0
      %v891 = vadd.f32 0.0, %v890
      %v892 = vpop.f32.mrb[0].mxu0
      %893 = vmatprep.mubr.f32.mxu0 0.0
      %894 = vmatmul.mubr.f32.gmra.mrb[0].mxu0 %v495
      %v895 = vpop.f32.mrb[0].mxu0
      %v896 = vadd.f32 0.0, %v895
      %v897 = vpop.f32.mrb[0].mxu0
      %898 = vmatprep.mubr.f32.mxu0 0.0
      %899 = vmatmul.mubr.f32.gmra.mrb[0].mxu0 %v496
      %v900 = vpop.f32.mrb[0].mxu0
      %v901 = vadd.f32 0.0, %v900
      %v902 = vpop.f32.mrb[0].mxu0
      %903 = vmatprep.mubr.f32.mxu0 0.0
      %904 = vmatmul.mubr.f32.gmra.mrb[0].mxu0 %v497
      %v905 = vpop.f32.mrb[0].mxu0
      %v906 = vadd.f32 0.0, %v905
      %v907 = vpop.f32.mrb[0].mxu0
      %908 = vmatprep.mubr.f32.mxu0 0.0
      %909 = vmatmul.mubr.f32.gmra.mrb[0].mxu0 %v498
      %v910 = vpop.f32.mrb[0].mxu0
      %v911 = vadd.f32 0.0, %v910
      %v912 = vpop.f32.mrb[0].mxu0
      %913 = vmatprep.mubr.f32.mxu0 0.0
      %914 = vmatmul.mubr.f32.gmra.mrb[0].mxu0 %v499
      %v915 = vpop.f32.mrb[0].mxu0
      %v916 = vadd.f32 0.0, %v915
      %v917 = vpop.f32.mrb[0].mxu0
      %918 = vmatprep.mubr.f32.mxu0 0.0
      %919 = vmatmul.mubr.f32.gmra.mrb[0].mxu0 %v500
      %v920 = vpop.f32.mrb[0].mxu0
      %v921 = vadd.f32 0.0, %v920
      %v922 = vpop.f32.mrb[0].mxu0
      %923 = vmatprep.mubr.f32.mxu0 0.0
      %924 = vmatmul.mubr.f32.gmra.mrb[0].mxu0 %v501
      %v925 = vpop.f32.mrb[0].mxu0
      %v926 = vadd.f32 0.0, %v925
      %v927 = vpop.f32.mrb[0].mxu0
      %928 = vmatprep.mubr.f32.mxu0 0.0
      %929 = vmatmul.mubr.f32.gmra.mrb[0].mxu0 %v502
      %v930 = vpop.f32.mrb[0].mxu0
      %v931 = vadd.f32 0.0, %v930
      %v932 = vpop.f32.mrb[0].mxu0
      %933 = vmatprep.mubr.f32.mxu0 0.0
      %934 = vmatmul.mubr.f32.gmra.mrb[0].mxu0 %v503
      %v935 = vpop.f32.mrb[0].mxu0
      %v936 = vadd.f32 0.0, %v935
      %v937 = vpop.f32.mrb[0].mxu0
      %938 = vmatprep.mubr.f32.mxu0 0.0
      %939 = vmatmul.mubr.f32.gmra.mrb[0].mxu0 %v504
      %v940 = vpop.f32.mrb[0].mxu0
      %v941 = vadd.f32 0.0, %v940
      %v942 = vpop.f32.mrb[0].mxu0
      %943 = vmatprep.mubr.f32.mxu0 0.0
      %944 = vmatmul.mubr.f32.gmra.mrb[0].mxu0 %v505
      %v945 = vpop.f32.mrb[0].mxu0
      %v946 = vadd.f32 0.0, %v945
      %v947 = vpop.f32.mrb[0].mxu0
      %948 = vmatprep.mubr.f32.mxu0 0.0
      %949 = vmatmul.mubr.f32.gmra.mrb[0].mxu0 %v506
      %v950 = vpop.f32.mrb[0].mxu0
      %v951 = vadd.f32 0.0, %v950
      %v952 = vpop.f32.mrb[0].mxu0
      %953 = vmatprep.mubr.f32.mxu0 0.0
      %954 = vmatmul.mubr.f32.gmra.mrb[0].mxu0 %v507
      %v955 = vpop.f32.mrb[0].mxu0
      %v956 = vadd.f32 0.0, %v955
      %v957 = vpop.f32.mrb[0].mxu0
      %958 = vmatprep.mubr.f32.mxu0 0.0
      %959 = vmatmul.mubr.f32.gmra.mrb[0].mxu0 %v508
      %v960 = vpop.f32.mrb[0].mxu0
      %v961 = vadd.f32 0.0, %v960
      %v962 = vpop.f32.mrb[0].mxu0
      %963 = vmatprep.mubr.f32.mxu0 0.0
      %964 = vmatmul.mubr.f32.gmra.mrb[0].mxu0 %v509
      %v965 = vpop.f32.mrb[0].mxu0
      %v966 = vadd.f32 0.0, %v965
      %v967 = vpop.f32.mrb[0].mxu0
      %968 = vmatprep.mubr.f32.mxu0 0.0
      %969 = vmatmul.mubr.f32.gmra.mrb[0].mxu0 %v510
      %v970 = vpop.f32.mrb[0].mxu0
      %v971 = vadd.f32 0.0, %v970
      %v972 = vpop.f32.mrb[0].mxu0
      %973 = vmatprep.mubr.f32.mxu0 0.0
      %974 = vmatmul.mubr.f32.gmra.mrb[0].mxu0 %v511
      %v975 = vpop.f32.mrb[0].mxu0
      %v976 = vadd.f32 0.0, %v975
      %v977 = vpop.f32.mrb[0].mxu0
      %978 = vmatprep.mubr.f32.mxu0 0.0
      %979 = vmatmul.mubr.f32.gmra.mrb[0].mxu0 %v512
      %v980 = vpop.f32.mrb[0].mxu0
      %v981 = vadd.f32 0.0, %v980
      %v982 = vpop.f32.mrb[0].mxu0
      %983 = vmatprep.mubr.f32.mxu0 0.0
      %984 = vmatmul.mubr.f32.gmra.mrb[0].mxu0 %v513
      %v985 = vpop.f32.mrb[0].mxu0
      %v986 = vadd.f32 0.0, %v985
      %v987 = vpop.f32.mrb[0].mxu0
      %988 = vmatprep.mubr.f32.mxu0 0.0
      %989 = vmatmul.mubr.f32.gmra.mrb[0].mxu0 %v514
      %v990 = vpop.f32.mrb[0].mxu0
      %v991 = vadd.f32 0.0, %v990
      %v992 = vpop.f32.mrb[0].mxu0
      %993 = vmatprep.mubr.f32.mxu0 0.0
      %994 = vmatmul.mubr.f32.gmra.mrb[0].mxu0 %v515
      %v995 = vpop.f32.mrb[0].mxu0
      %v996 = vadd.f32 0.0, %v995
      %v997 = vpop.f32.mrb[0].mxu0
      %998 = vmatprep.mubr.f32.mxu0 0.0
      %999 = vmatmul.mubr.f32.gmra.mrb[0].mxu0 %v516
      %v1000 = vpop.f32.mrb[0].mxu0
      %v1001 = vadd.f32 0.0, %v1000
      %v1002 = vpop.f32.mrb[0].mxu0
      %1003 = vmatprep.mubr.f32.mxu0 0.0
      %1004 = vmatmul.mubr.f32.gmra.mrb[0].mxu0 %v517
      %v1005 = vpop.f32.mrb[0].mxu0
      %v1006 = vadd.f32 0.0, %v1005
      %v1007 = vpop.f32.mrb[0].mxu0
      %1008 = vmatprep.mubr.f32.mxu0 0.0
      %1009 = vmatmul.mubr.f32.gmra.mrb[0].mxu0 %v518
      %v1010 = vpop.f32.mrb[0].mxu0
      %v1011 = vadd.f32 0.0, %v1010
      %v1012 = vpop.f32.mrb[0].mxu0
      %1013 = vmatprep.mubr.f32.mxu0 0.0
      %1014 = vmatmul.mubr.f32.gmra.mrb[0].mxu0 %v519
      %v1015 = vpop.f32.mrb[0].mxu0
      %v1016 = vadd.f32 0.0, %v1015
      %v1017 = vpop.f32.mrb[0].mxu0
      %1018 = vdwg.mxu0
      %v1019 = vtanh.pop %v861
      %v1020 = vtanh.pop %v866
      %v1021 = vtanh.pop %v871
      %v1022 = vtanh.pop %v876
      %v1023 = vtanh.pop %v881
      %v1024 = vtanh.pop %v886
      %v1025 = vtanh.pop %v891
      %v1026 = vtanh.pop %v896
      %v1027 = vtanh.pop %v901
      %v1028 = vtanh.pop %v906
      %v1029 = vtanh.pop %v911
      %v1030 = vtanh.pop %v916
      %v1031 = vtanh.pop %v921
      %v1032 = vtanh.pop %v926
      %v1033 = vtanh.pop %v931
      %v1034 = vtanh.pop %v936
      %v1035 = vtanh.pop %v941
      %v1036 = vtanh.pop %v946
      %v1037 = vtanh.pop %v951
      %v1038 = vtanh.pop %v956
      %v1039 = vtanh.pop %v961
      %v1040 = vtanh.pop %v966
      %v1041 = vtanh.pop %v971
      %v1042 = vtanh.pop %v976
      %v1043 = vtanh.pop %v981
      %v1044 = vtanh.pop %v986
      %v1045 = vtanh.pop %v991
      %v1046 = vtanh.pop %v996
      %v1047 = vtanh.pop %v1001
      %v1048 = vtanh.pop %v1006
      %v1049 = vtanh.pop %v1011
      %v1050 = vtanh.pop %v1016
      %v1052 = vlaneseq
      %v1053 = vshrl.u32 %v1052, 7
      %v1054 = vsub.s32 0, %v1053
      %v1055 = vrot.slane %v536, %v1054
      %v1057 = vmul.f32 %v762, %v1055
      %v1058 = vmul.f32 %v763, %v1055
      %v1059 = vmul.f32 %v764, %v1055
      %v1060 = vmul.f32 %v765, %v1055
      %v1061 = vmul.f32 %v766, %v1055
      %v1062 = vmul.f32 %v767, %v1055
      %v1063 = vmul.f32 %v768, %v1055
      %v1064 = vmul.f32 %v769, %v1055
      %v1065 = vmul.f32 %v770, %v1055
      %v1066 = vmul.f32 %v771, %v1055
      %v1067 = vmul.f32 %v772, %v1055
      %v1068 = vmul.f32 %v773, %v1055
      %v1069 = vmul.f32 %v774, %v1055
      %v1070 = vmul.f32 %v775, %v1055
      %v1071 = vmul.f32 %v776, %v1055
      %v1072 = vmul.f32 %v777, %v1055
      %v1073 = vmul.f32 %v778, %v1055
      %v1074 = vmul.f32 %v779, %v1055
      %v1075 = vmul.f32 %v780, %v1055
      %v1076 = vmul.f32 %v781, %v1055
      %v1077 = vmul.f32 %v782, %v1055
      %v1078 = vmul.f32 %v783, %v1055
      %v1079 = vmul.f32 %v784, %v1055
      %v1080 = vmul.f32 %v785, %v1055
      %v1081 = vmul.f32 %v786, %v1055
      %v1082 = vmul.f32 %v787, %v1055
      %v1083 = vmul.f32 %v788, %v1055
      %v1084 = vmul.f32 %v789, %v1055
      %v1085 = vmul.f32 %v790, %v1055
      %v1086 = vmul.f32 %v791, %v1055
      %v1087 = vmul.f32 %v792, %v1055
      %v1088 = vmul.f32 %v793, %v1055
      %1089 = vadd.xlane.f32.xlu0 %v1057
      %v1090 = vpop.xlane.xlu0 %1089
      %1091 = vadd.xlane.f32.xlu0 %v1058
      %v1092 = vpop.xlane.xlu0 %1091
      %1093 = vadd.xlane.f32.xlu0 %v1059
      %v1094 = vpop.xlane.xlu0 %1093
      %1095 = vadd.xlane.f32.xlu0 %v1060
      %v1096 = vpop.xlane.xlu0 %1095
      %1097 = vadd.xlane.f32.xlu0 %v1061
      %v1098 = vpop.xlane.xlu0 %1097
      %1099 = vadd.xlane.f32.xlu0 %v1062
      %v1100 = vpop.xlane.xlu0 %1099
      %1101 = vadd.xlane.f32.xlu0 %v1063
      %v1102 = vpop.xlane.xlu0 %1101
      %1103 = vadd.xlane.f32.xlu0 %v1064
      %v1104 = vpop.xlane.xlu0 %1103
      %1105 = vadd.xlane.f32.xlu0 %v1065
      %v1106 = vpop.xlane.xlu0 %1105
      %1107 = vadd.xlane.f32.xlu0 %v1066
      %v1108 = vpop.xlane.xlu0 %1107
      %1109 = vadd.xlane.f32.xlu0 %v1067
      %v1110 = vpop.xlane.xlu0 %1109
      %1111 = vadd.xlane.f32.xlu0 %v1068
      %v1112 = vpop.xlane.xlu0 %1111
      %1113 = vadd.xlane.f32.xlu0 %v1069
      %v1114 = vpop.xlane.xlu0 %1113
      %1115 = vadd.xlane.f32.xlu0 %v1070
      %v1116 = vpop.xlane.xlu0 %1115
      %1117 = vadd.xlane.f32.xlu0 %v1071
      %v1118 = vpop.xlane.xlu0 %1117
      %1119 = vadd.xlane.f32.xlu0 %v1072
      %v1120 = vpop.xlane.xlu0 %1119
      %1121 = vadd.xlane.f32.xlu0 %v1073
      %v1122 = vpop.xlane.xlu0 %1121
      %1123 = vadd.xlane.f32.xlu0 %v1074
      %v1124 = vpop.xlane.xlu0 %1123
      %1125 = vadd.xlane.f32.xlu0 %v1075
      %v1126 = vpop.xlane.xlu0 %1125
      %1127 = vadd.xlane.f32.xlu0 %v1076
      %v1128 = vpop.xlane.xlu0 %1127
      %1129 = vadd.xlane.f32.xlu0 %v1077
      %v1130 = vpop.xlane.xlu0 %1129
      %1131 = vadd.xlane.f32.xlu0 %v1078
      %v1132 = vpop.xlane.xlu0 %1131
      %1133 = vadd.xlane.f32.xlu0 %v1079
      %v1134 = vpop.xlane.xlu0 %1133
      %1135 = vadd.xlane.f32.xlu0 %v1080
      %v1136 = vpop.xlane.xlu0 %1135
      %1137 = vadd.xlane.f32.xlu0 %v1081
      %v1138 = vpop.xlane.xlu0 %1137
      %1139 = vadd.xlane.f32.xlu0 %v1082
      %v1140 = vpop.xlane.xlu0 %1139
      %1141 = vadd.xlane.f32.xlu0 %v1083
      %v1142 = vpop.xlane.xlu0 %1141
      %1143 = vadd.xlane.f32.xlu0 %v1084
      %v1144 = vpop.xlane.xlu0 %1143
      %1145 = vadd.xlane.f32.xlu0 %v1085
      %v1146 = vpop.xlane.xlu0 %1145
      %1147 = vadd.xlane.f32.xlu0 %v1086
      %v1148 = vpop.xlane.xlu0 %1147
      %1149 = vadd.xlane.f32.xlu0 %v1087
      %v1150 = vpop.xlane.xlu0 %1149
      %1151 = vadd.xlane.f32.xlu0 %v1088
      %v1152 = vpop.xlane.xlu0 %1151
      %v1153 = vadd.f32 %v1090, 1e-06
      %v1154 = vadd.f32 %v1092, 1e-06
      %v1155 = vadd.f32 %v1094, 1e-06
      %v1156 = vadd.f32 %v1096, 1e-06
      %v1157 = vadd.f32 %v1098, 1e-06
      %v1158 = vadd.f32 %v1100, 1e-06
      %v1159 = vadd.f32 %v1102, 1e-06
      %v1160 = vadd.f32 %v1104, 1e-06
      %v1161 = vadd.f32 %v1106, 1e-06
      %v1162 = vadd.f32 %v1108, 1e-06
      %v1163 = vadd.f32 %v1110, 1e-06
      %v1164 = vadd.f32 %v1112, 1e-06
      %v1165 = vadd.f32 %v1114, 1e-06
      %v1166 = vadd.f32 %v1116, 1e-06
      %v1167 = vadd.f32 %v1118, 1e-06
      %v1168 = vadd.f32 %v1120, 1e-06
      %v1169 = vadd.f32 %v1122, 1e-06
      %v1170 = vadd.f32 %v1124, 1e-06
      %v1171 = vadd.f32 %v1126, 1e-06
      %v1172 = vadd.f32 %v1128, 1e-06
      %v1173 = vadd.f32 %v1130, 1e-06
      %v1174 = vadd.f32 %v1132, 1e-06
      %v1175 = vadd.f32 %v1134, 1e-06
      %v1176 = vadd.f32 %v1136, 1e-06
      %v1177 = vadd.f32 %v1138, 1e-06
      %v1178 = vadd.f32 %v1140, 1e-06
      %v1179 = vadd.f32 %v1142, 1e-06
      %v1180 = vadd.f32 %v1144, 1e-06
      %v1181 = vadd.f32 %v1146, 1e-06
      %v1182 = vadd.f32 %v1148, 1e-06
      %v1183 = vadd.f32 %v1150, 1e-06
      %v1184 = vadd.f32 %v1152, 1e-06
      %v1185 = vmul.f32 %v1019, %v1055
      %v1186 = vmul.f32 %v1020, %v1055
      %v1187 = vmul.f32 %v1021, %v1055
      %v1188 = vmul.f32 %v1022, %v1055
      %v1189 = vmul.f32 %v1023, %v1055
      %v1190 = vmul.f32 %v1024, %v1055
      %v1191 = vmul.f32 %v1025, %v1055
      %v1192 = vmul.f32 %v1026, %v1055
      %v1193 = vmul.f32 %v1027, %v1055
      %v1194 = vmul.f32 %v1028, %v1055
      %v1195 = vmul.f32 %v1029, %v1055
      %v1196 = vmul.f32 %v1030, %v1055
      %v1197 = vmul.f32 %v1031, %v1055
      %v1198 = vmul.f32 %v1032, %v1055
      %v1199 = vmul.f32 %v1033, %v1055
      %v1200 = vmul.f32 %v1034, %v1055
      %v1201 = vmul.f32 %v1035, %v1055
      %v1202 = vmul.f32 %v1036, %v1055
      %v1203 = vmul.f32 %v1037, %v1055
      %v1204 = vmul.f32 %v1038, %v1055
      %v1205 = vmul.f32 %v1039, %v1055
      %v1206 = vmul.f32 %v1040, %v1055
      %v1207 = vmul.f32 %v1041, %v1055
      %v1208 = vmul.f32 %v1042, %v1055
      %v1209 = vmul.f32 %v1043, %v1055
      %v1210 = vmul.f32 %v1044, %v1055
      %v1211 = vmul.f32 %v1045, %v1055
      %v1212 = vmul.f32 %v1046, %v1055
      %v1213 = vmul.f32 %v1047, %v1055
      %v1214 = vmul.f32 %v1048, %v1055
      %v1215 = vmul.f32 %v1049, %v1055
      %v1216 = vmul.f32 %v1050, %v1055
      %1217 = vadd.xlane.f32.xlu0 %v1185
      %v1218 = vpop.xlane.xlu0 %1217
      %1219 = vadd.xlane.f32.xlu0 %v1186
      %v1220 = vpop.xlane.xlu0 %1219
      %1221 = vadd.xlane.f32.xlu0 %v1187
      %v1222 = vpop.xlane.xlu0 %1221
      %1223 = vadd.xlane.f32.xlu0 %v1188
      %v1224 = vpop.xlane.xlu0 %1223
      %1225 = vadd.xlane.f32.xlu0 %v1189
      %v1226 = vpop.xlane.xlu0 %1225
      %1227 = vadd.xlane.f32.xlu0 %v1190
      %v1228 = vpop.xlane.xlu0 %1227
      %1229 = vadd.xlane.f32.xlu0 %v1191
      %v1230 = vpop.xlane.xlu0 %1229
      %1231 = vadd.xlane.f32.xlu0 %v1192
      %v1232 = vpop.xlane.xlu0 %1231
      %1233 = vadd.xlane.f32.xlu0 %v1193
      %v1234 = vpop.xlane.xlu0 %1233
      %1235 = vadd.xlane.f32.xlu0 %v1194
      %v1236 = vpop.xlane.xlu0 %1235
      %1237 = vadd.xlane.f32.xlu0 %v1195
      %v1238 = vpop.xlane.xlu0 %1237
      %1239 = vadd.xlane.f32.xlu0 %v1196
      %v1240 = vpop.xlane.xlu0 %1239
      %1241 = vadd.xlane.f32.xlu0 %v1197
      %v1242 = vpop.xlane.xlu0 %1241
      %1243 = vadd.xlane.f32.xlu0 %v1198
      %v1244 = vpop.xlane.xlu0 %1243
      %1245 = vadd.xlane.f32.xlu0 %v1199
      %v1246 = vpop.xlane.xlu0 %1245
      %1247 = vadd.xlane.f32.xlu0 %v1200
      %v1248 = vpop.xlane.xlu0 %1247
      %1249 = vadd.xlane.f32.xlu0 %v1201
      %v1250 = vpop.xlane.xlu0 %1249
      %1251 = vadd.xlane.f32.xlu0 %v1202
      %v1252 = vpop.xlane.xlu0 %1251
      %1253 = vadd.xlane.f32.xlu0 %v1203
      %v1254 = vpop.xlane.xlu0 %1253
      %1255 = vadd.xlane.f32.xlu0 %v1204
      %v1256 = vpop.xlane.xlu0 %1255
      %1257 = vadd.xlane.f32.xlu0 %v1205
      %v1258 = vpop.xlane.xlu0 %1257
      %1259 = vadd.xlane.f32.xlu0 %v1206
      %v1260 = vpop.xlane.xlu0 %1259
      %1261 = vadd.xlane.f32.xlu0 %v1207
      %v1262 = vpop.xlane.xlu0 %1261
      %1263 = vadd.xlane.f32.xlu0 %v1208
      %v1264 = vpop.xlane.xlu0 %1263
      %1265 = vadd.xlane.f32.xlu0 %v1209
      %v1266 = vpop.xlane.xlu0 %1265
      %1267 = vadd.xlane.f32.xlu0 %v1210
      %v1268 = vpop.xlane.xlu0 %1267
      %1269 = vadd.xlane.f32.xlu0 %v1211
      %v1270 = vpop.xlane.xlu0 %1269
      %1271 = vadd.xlane.f32.xlu0 %v1212
      %v1272 = vpop.xlane.xlu0 %1271
      %1273 = vadd.xlane.f32.xlu0 %v1213
      %v1274 = vpop.xlane.xlu0 %1273
      %1275 = vadd.xlane.f32.xlu0 %v1214
      %v1276 = vpop.xlane.xlu0 %1275
      %1277 = vadd.xlane.f32.xlu0 %v1215
      %v1278 = vpop.xlane.xlu0 %1277
      %1279 = vadd.xlane.f32.xlu0 %v1216
      %v1280 = vpop.xlane.xlu0 %1279
      %v1281 = vadd.f32 %v1218, 1e-06
      %v1282 = vadd.f32 %v1220, 1e-06
      %v1283 = vadd.f32 %v1222, 1e-06
      %v1284 = vadd.f32 %v1224, 1e-06
      %v1285 = vadd.f32 %v1226, 1e-06
      %v1286 = vadd.f32 %v1228, 1e-06
      %v1287 = vadd.f32 %v1230, 1e-06
      %v1288 = vadd.f32 %v1232, 1e-06
      %v1289 = vadd.f32 %v1234, 1e-06
      %v1290 = vadd.f32 %v1236, 1e-06
      %v1291 = vadd.f32 %v1238, 1e-06
      %v1292 = vadd.f32 %v1240, 1e-06
      %v1293 = vadd.f32 %v1242, 1e-06
      %v1294 = vadd.f32 %v1244, 1e-06
      %v1295 = vadd.f32 %v1246, 1e-06
      %v1296 = vadd.f32 %v1248, 1e-06
      %v1297 = vadd.f32 %v1250, 1e-06
      %v1298 = vadd.f32 %v1252, 1e-06
      %v1299 = vadd.f32 %v1254, 1e-06
      %v1300 = vadd.f32 %v1256, 1e-06
      %v1301 = vadd.f32 %v1258, 1e-06
      %v1302 = vadd.f32 %v1260, 1e-06
      %v1303 = vadd.f32 %v1262, 1e-06
      %v1304 = vadd.f32 %v1264, 1e-06
      %v1305 = vadd.f32 %v1266, 1e-06
      %v1306 = vadd.f32 %v1268, 1e-06
      %v1307 = vadd.f32 %v1270, 1e-06
      %v1308 = vadd.f32 %v1272, 1e-06
      %v1309 = vadd.f32 %v1274, 1e-06
      %v1310 = vadd.f32 %v1276, 1e-06
      %v1311 = vadd.f32 %v1278, 1e-06
      %v1312 = vadd.f32 %v1280, 1e-06
      %v1313 = vmax.f32 %v1153, %v1281
      %v1314 = vmax.f32 %v1154, %v1282
      %v1315 = vmax.f32 %v1155, %v1283
      %v1316 = vmax.f32 %v1156, %v1284
      %v1317 = vmax.f32 %v1157, %v1285
      %v1318 = vmax.f32 %v1158, %v1286
      %v1319 = vmax.f32 %v1159, %v1287
      %v1320 = vmax.f32 %v1160, %v1288
      %v1321 = vmax.f32 %v1161, %v1289
      %v1322 = vmax.f32 %v1162, %v1290
      %v1323 = vmax.f32 %v1163, %v1291
      %v1324 = vmax.f32 %v1164, %v1292
      %v1325 = vmax.f32 %v1165, %v1293
      %v1326 = vmax.f32 %v1166, %v1294
      %v1327 = vmax.f32 %v1167, %v1295
      %v1328 = vmax.f32 %v1168, %v1296
      %v1329 = vmax.f32 %v1169, %v1297
      %v1330 = vmax.f32 %v1170, %v1298
      %v1331 = vmax.f32 %v1171, %v1299
      %v1332 = vmax.f32 %v1172, %v1300
      %v1333 = vmax.f32 %v1173, %v1301
      %v1334 = vmax.f32 %v1174, %v1302
      %v1335 = vmax.f32 %v1175, %v1303
      %v1336 = vmax.f32 %v1176, %v1304
      %v1337 = vmax.f32 %v1177, %v1305
      %v1338 = vmax.f32 %v1178, %v1306
      %v1339 = vmax.f32 %v1179, %v1307
      %v1340 = vmax.f32 %v1180, %v1308
      %v1341 = vmax.f32 %v1181, %v1309
      %v1342 = vmax.f32 %v1182, %v1310
      %v1343 = vmax.f32 %v1183, %v1311
      %v1344 = vmax.f32 %v1184, %v1312
      %v1345 = vsub.f32 %v1153, %v1313
      %v1346 = vsub.f32 %v1154, %v1314
      %v1347 = vsub.f32 %v1155, %v1315
      %v1348 = vsub.f32 %v1156, %v1316
      %v1349 = vsub.f32 %v1157, %v1317
      %v1350 = vsub.f32 %v1158, %v1318
      %v1351 = vsub.f32 %v1159, %v1319
      %v1352 = vsub.f32 %v1160, %v1320
      %v1353 = vsub.f32 %v1161, %v1321
      %v1354 = vsub.f32 %v1162, %v1322
      %v1355 = vsub.f32 %v1163, %v1323
      %v1356 = vsub.f32 %v1164, %v1324
      %v1357 = vsub.f32 %v1165, %v1325
      %v1358 = vsub.f32 %v1166, %v1326
      %v1359 = vsub.f32 %v1167, %v1327
      %v1360 = vsub.f32 %v1168, %v1328
      %v1361 = vsub.f32 %v1169, %v1329
      %v1362 = vsub.f32 %v1170, %v1330
      %v1363 = vsub.f32 %v1171, %v1331
      %v1364 = vsub.f32 %v1172, %v1332
      %v1365 = vsub.f32 %v1173, %v1333
      %v1366 = vsub.f32 %v1174, %v1334
      %v1367 = vsub.f32 %v1175, %v1335
      %v1368 = vsub.f32 %v1176, %v1336
      %v1369 = vsub.f32 %v1177, %v1337
      %v1370 = vsub.f32 %v1178, %v1338
      %v1371 = vsub.f32 %v1179, %v1339
      %v1372 = vsub.f32 %v1180, %v1340
      %v1373 = vsub.f32 %v1181, %v1341
      %v1374 = vsub.f32 %v1182, %v1342
      %v1375 = vsub.f32 %v1183, %v1343
      %v1376 = vsub.f32 %v1184, %v1344
      %v1377 = vmul.f32 %v1345, 1.442695
      %v1378 = vpow.pop %v1377
      %v1379 = vmul.f32 %v1346, 1.442695
      %v1380 = vpow.pop %v1379
      %v1381 = vmul.f32 %v1347, 1.442695
      %v1382 = vpow.pop %v1381
      %v1383 = vmul.f32 %v1348, 1.442695
      %v1384 = vpow.pop %v1383
      %v1385 = vmul.f32 %v1349, 1.442695
      %v1386 = vpow.pop %v1385
      %v1387 = vmul.f32 %v1350, 1.442695
      %v1388 = vpow.pop %v1387
      %v1389 = vmul.f32 %v1351, 1.442695
      %v1390 = vpow.pop %v1389
      %v1391 = vmul.f32 %v1352, 1.442695
      %v1392 = vpow.pop %v1391
      %v1393 = vmul.f32 %v1353, 1.442695
      %v1394 = vpow.pop %v1393
      %v1395 = vmul.f32 %v1354, 1.442695
      %v1396 = vpow.pop %v1395
      %v1397 = vmul.f32 %v1355, 1.442695
      %v1398 = vpow.pop %v1397
      %v1399 = vmul.f32 %v1356, 1.442695
      %v1400 = vpow.pop %v1399
      %v1401 = vmul.f32 %v1357, 1.442695
      %v1402 = vpow.pop %v1401
      %v1403 = vmul.f32 %v1358, 1.442695
      %v1404 = vpow.pop %v1403
      %v1405 = vmul.f32 %v1359, 1.442695
      %v1406 = vpow.pop %v1405
      %v1407 = vmul.f32 %v1360, 1.442695
      %v1408 = vpow.pop %v1407
      %v1409 = vmul.f32 %v1361, 1.442695
      %v1410 = vpow.pop %v1409
      %v1411 = vmul.f32 %v1362, 1.442695
      %v1412 = vpow.pop %v1411
      %v1413 = vmul.f32 %v1363, 1.442695
      %v1414 = vpow.pop %v1413
      %v1415 = vmul.f32 %v1364, 1.442695
      %v1416 = vpow.pop %v1415
      %v1417 = vmul.f32 %v1365, 1.442695
      %v1418 = vpow.pop %v1417
      %v1419 = vmul.f32 %v1366, 1.442695
      %v1420 = vpow.pop %v1419
      %v1421 = vmul.f32 %v1367, 1.442695
      %v1422 = vpow.pop %v1421
      %v1423 = vmul.f32 %v1368, 1.442695
      %v1424 = vpow.pop %v1423
      %v1425 = vmul.f32 %v1369, 1.442695
      %v1426 = vpow.pop %v1425
      %v1427 = vmul.f32 %v1370, 1.442695
      %v1428 = vpow.pop %v1427
      %v1429 = vmul.f32 %v1371, 1.442695
      %v1430 = vpow.pop %v1429
      %v1431 = vmul.f32 %v1372, 1.442695
      %v1432 = vpow.pop %v1431
      %v1433 = vmul.f32 %v1373, 1.442695
      %v1434 = vpow.pop %v1433
      %v1435 = vmul.f32 %v1374, 1.442695
      %v1436 = vpow.pop %v1435
      %v1437 = vmul.f32 %v1375, 1.442695
      %v1438 = vpow.pop %v1437
      %v1439 = vmul.f32 %v1376, 1.442695
      %v1440 = vpow.pop %v1439
      %v1441 = vsub.f32 %v1281, %v1313
      %v1442 = vsub.f32 %v1282, %v1314
      %v1443 = vsub.f32 %v1283, %v1315
      %v1444 = vsub.f32 %v1284, %v1316
      %v1445 = vsub.f32 %v1285, %v1317
      %v1446 = vsub.f32 %v1286, %v1318
      %v1447 = vsub.f32 %v1287, %v1319
      %v1448 = vsub.f32 %v1288, %v1320
      %v1449 = vsub.f32 %v1289, %v1321
      %v1450 = vsub.f32 %v1290, %v1322
      %v1451 = vsub.f32 %v1291, %v1323
      %v1452 = vsub.f32 %v1292, %v1324
      %v1453 = vsub.f32 %v1293, %v1325
      %v1454 = vsub.f32 %v1294, %v1326
      %v1455 = vsub.f32 %v1295, %v1327
      %v1456 = vsub.f32 %v1296, %v1328
      %v1457 = vsub.f32 %v1297, %v1329
      %v1458 = vsub.f32 %v1298, %v1330
      %v1459 = vsub.f32 %v1299, %v1331
      %v1460 = vsub.f32 %v1300, %v1332
      %v1461 = vsub.f32 %v1301, %v1333
      %v1462 = vsub.f32 %v1302, %v1334
      %v1463 = vsub.f32 %v1303, %v1335
      %v1464 = vsub.f32 %v1304, %v1336
      %v1465 = vsub.f32 %v1305, %v1337
      %v1466 = vsub.f32 %v1306, %v1338
      %v1467 = vsub.f32 %v1307, %v1339
      %v1468 = vsub.f32 %v1308, %v1340
      %v1469 = vsub.f32 %v1309, %v1341
      %v1470 = vsub.f32 %v1310, %v1342
      %v1471 = vsub.f32 %v1311, %v1343
      %v1472 = vsub.f32 %v1312, %v1344
      %v1473 = vmul.f32 %v1441, 1.442695
      %v1474 = vpow.pop %v1473
      %v1475 = vmul.f32 %v1442, 1.442695
      %v1476 = vpow.pop %v1475
      %v1477 = vmul.f32 %v1443, 1.442695
      %v1478 = vpow.pop %v1477
      %v1479 = vmul.f32 %v1444, 1.442695
      %v1480 = vpow.pop %v1479
      %v1481 = vmul.f32 %v1445, 1.442695
      %v1482 = vpow.pop %v1481
      %v1483 = vmul.f32 %v1446, 1.442695
      %v1484 = vpow.pop %v1483
      %v1485 = vmul.f32 %v1447, 1.442695
      %v1486 = vpow.pop %v1485
      %v1487 = vmul.f32 %v1448, 1.442695
      %v1488 = vpow.pop %v1487
      %v1489 = vmul.f32 %v1449, 1.442695
      %v1490 = vpow.pop %v1489
      %v1491 = vmul.f32 %v1450, 1.442695
      %v1492 = vpow.pop %v1491
      %v1493 = vmul.f32 %v1451, 1.442695
      %v1494 = vpow.pop %v1493
      %v1495 = vmul.f32 %v1452, 1.442695
      %v1496 = vpow.pop %v1495
      %v1497 = vmul.f32 %v1453, 1.442695
      %v1498 = vpow.pop %v1497
      %v1499 = vmul.f32 %v1454, 1.442695
      %v1500 = vpow.pop %v1499
      %v1501 = vmul.f32 %v1455, 1.442695
      %v1502 = vpow.pop %v1501
      %v1503 = vmul.f32 %v1456, 1.442695
      %v1504 = vpow.pop %v1503
      %v1505 = vmul.f32 %v1457, 1.442695
      %v1506 = vpow.pop %v1505
      %v1507 = vmul.f32 %v1458, 1.442695
      %v1508 = vpow.pop %v1507
      %v1509 = vmul.f32 %v1459, 1.442695
      %v1510 = vpow.pop %v1509
      %v1511 = vmul.f32 %v1460, 1.442695
      %v1512 = vpow.pop %v1511
      %v1513 = vmul.f32 %v1461, 1.442695
      %v1514 = vpow.pop %v1513
      %v1515 = vmul.f32 %v1462, 1.442695
      %v1516 = vpow.pop %v1515
      %v1517 = vmul.f32 %v1463, 1.442695
      %v1518 = vpow.pop %v1517
      %v1519 = vmul.f32 %v1464, 1.442695
      %v1520 = vpow.pop %v1519
      %v1521 = vmul.f32 %v1465, 1.442695
      %v1522 = vpow.pop %v1521
      %v1523 = vmul.f32 %v1466, 1.442695
      %v1524 = vpow.pop %v1523
      %v1525 = vmul.f32 %v1467, 1.442695
      %v1526 = vpow.pop %v1525
      %v1527 = vmul.f32 %v1468, 1.442695
      %v1528 = vpow.pop %v1527
      %v1529 = vmul.f32 %v1469, 1.442695
      %v1530 = vpow.pop %v1529
      %v1531 = vmul.f32 %v1470, 1.442695
      %v1532 = vpow.pop %v1531
      %v1533 = vmul.f32 %v1471, 1.442695
      %v1534 = vpow.pop %v1533
      %v1535 = vmul.f32 %v1472, 1.442695
      %v1536 = vpow.pop %v1535
      %v1537 = vadd.f32 %v1378, %v1474
      %v1538 = vadd.f32 %v1380, %v1476
      %v1539 = vadd.f32 %v1382, %v1478
      %v1540 = vadd.f32 %v1384, %v1480
      %v1541 = vadd.f32 %v1386, %v1482
      %v1542 = vadd.f32 %v1388, %v1484
      %v1543 = vadd.f32 %v1390, %v1486
      %v1544 = vadd.f32 %v1392, %v1488
      %v1545 = vadd.f32 %v1394, %v1490
      %v1546 = vadd.f32 %v1396, %v1492
      %v1547 = vadd.f32 %v1398, %v1494
      %v1548 = vadd.f32 %v1400, %v1496
      %v1549 = vadd.f32 %v1402, %v1498
      %v1550 = vadd.f32 %v1404, %v1500
      %v1551 = vadd.f32 %v1406, %v1502
      %v1552 = vadd.f32 %v1408, %v1504
      %v1553 = vadd.f32 %v1410, %v1506
      %v1554 = vadd.f32 %v1412, %v1508
      %v1555 = vadd.f32 %v1414, %v1510
      %v1556 = vadd.f32 %v1416, %v1512
      %v1557 = vadd.f32 %v1418, %v1514
      %v1558 = vadd.f32 %v1420, %v1516
      %v1559 = vadd.f32 %v1422, %v1518
      %v1560 = vadd.f32 %v1424, %v1520
      %v1561 = vadd.f32 %v1426, %v1522
      %v1562 = vadd.f32 %v1428, %v1524
      %v1563 = vadd.f32 %v1430, %v1526
      %v1564 = vadd.f32 %v1432, %v1528
      %v1565 = vadd.f32 %v1434, %v1530
      %v1566 = vadd.f32 %v1436, %v1532
      %v1567 = vadd.f32 %v1438, %v1534
      %v1568 = vadd.f32 %v1440, %v1536
      %v1569 = vrcp.pop %v1537
      %v1570 = vrcp.pop %v1538
      %v1571 = vrcp.pop %v1539
      %v1572 = vrcp.pop %v1540
      %v1573 = vrcp.pop %v1541
      %v1574 = vrcp.pop %v1542
      %v1575 = vrcp.pop %v1543
      %v1576 = vrcp.pop %v1544
      %v1577 = vrcp.pop %v1545
      %v1578 = vrcp.pop %v1546
      %v1579 = vrcp.pop %v1547
      %v1580 = vrcp.pop %v1548
      %v1581 = vrcp.pop %v1549
      %v1582 = vrcp.pop %v1550
      %v1583 = vrcp.pop %v1551
      %v1584 = vrcp.pop %v1552
      %v1585 = vrcp.pop %v1553
      %v1586 = vrcp.pop %v1554
      %v1587 = vrcp.pop %v1555
      %v1588 = vrcp.pop %v1556
      %v1589 = vrcp.pop %v1557
      %v1590 = vrcp.pop %v1558
      %v1591 = vrcp.pop %v1559
      %v1592 = vrcp.pop %v1560
      %v1593 = vrcp.pop %v1561
      %v1594 = vrcp.pop %v1562
      %v1595 = vrcp.pop %v1563
      %v1596 = vrcp.pop %v1564
      %v1597 = vrcp.pop %v1565
      %v1598 = vrcp.pop %v1566
      %v1599 = vrcp.pop %v1567
      %v1600 = vrcp.pop %v1568
      %v1601 = vmul.f32 %v1378, %v1569
      %v1602 = vmul.f32 %v1380, %v1570
      %v1603 = vmul.f32 %v1382, %v1571
      %v1604 = vmul.f32 %v1384, %v1572
      %v1605 = vmul.f32 %v1386, %v1573
      %v1606 = vmul.f32 %v1388, %v1574
      %v1607 = vmul.f32 %v1390, %v1575
      %v1608 = vmul.f32 %v1392, %v1576
      %v1609 = vmul.f32 %v1394, %v1577
      %v1610 = vmul.f32 %v1396, %v1578
      %v1611 = vmul.f32 %v1398, %v1579
      %v1612 = vmul.f32 %v1400, %v1580
      %v1613 = vmul.f32 %v1402, %v1581
      %v1614 = vmul.f32 %v1404, %v1582
      %v1615 = vmul.f32 %v1406, %v1583
      %v1616 = vmul.f32 %v1408, %v1584
      %v1617 = vmul.f32 %v1410, %v1585
      %v1618 = vmul.f32 %v1412, %v1586
      %v1619 = vmul.f32 %v1414, %v1587
      %v1620 = vmul.f32 %v1416, %v1588
      %v1621 = vmul.f32 %v1418, %v1589
      %v1622 = vmul.f32 %v1420, %v1590
      %v1623 = vmul.f32 %v1422, %v1591
      %v1624 = vmul.f32 %v1424, %v1592
      %v1625 = vmul.f32 %v1426, %v1593
      %v1626 = vmul.f32 %v1428, %v1594
      %v1627 = vmul.f32 %v1430, %v1595
      %v1628 = vmul.f32 %v1432, %v1596
      %v1629 = vmul.f32 %v1434, %v1597
      %v1630 = vmul.f32 %v1436, %v1598
      %v1631 = vmul.f32 %v1438, %v1599
      %v1632 = vmul.f32 %v1440, %v1600
      %v1633 = vmul.f32 %v1474, %v1569
      %v1634 = vmul.f32 %v1476, %v1570
      %v1635 = vmul.f32 %v1478, %v1571
      %v1636 = vmul.f32 %v1480, %v1572
      %v1637 = vmul.f32 %v1482, %v1573
      %v1638 = vmul.f32 %v1484, %v1574
      %v1639 = vmul.f32 %v1486, %v1575
      %v1640 = vmul.f32 %v1488, %v1576
      %v1641 = vmul.f32 %v1490, %v1577
      %v1642 = vmul.f32 %v1492, %v1578
      %v1643 = vmul.f32 %v1494, %v1579
      %v1644 = vmul.f32 %v1496, %v1580
      %v1645 = vmul.f32 %v1498, %v1581
      %v1646 = vmul.f32 %v1500, %v1582
      %v1647 = vmul.f32 %v1502, %v1583
      %v1648 = vmul.f32 %v1504, %v1584
      %v1649 = vmul.f32 %v1506, %v1585
      %v1650 = vmul.f32 %v1508, %v1586
      %v1651 = vmul.f32 %v1510, %v1587
      %v1652 = vmul.f32 %v1512, %v1588
      %v1653 = vmul.f32 %v1514, %v1589
      %v1654 = vmul.f32 %v1516, %v1590
      %v1655 = vmul.f32 %v1518, %v1591
      %v1656 = vmul.f32 %v1520, %v1592
      %v1657 = vmul.f32 %v1522, %v1593
      %v1658 = vmul.f32 %v1524, %v1594
      %v1659 = vmul.f32 %v1526, %v1595
      %v1660 = vmul.f32 %v1528, %v1596
      %v1661 = vmul.f32 %v1530, %v1597
      %v1662 = vmul.f32 %v1532, %v1598
      %v1663 = vmul.f32 %v1534, %v1599
      %v1664 = vmul.f32 %v1536, %v1600
      %v1665 = vmul.f32 %v1601, %v456
      %v1666 = vmul.f32 %v1602, %v457
      %v1667 = vmul.f32 %v1603, %v458
      %v1668 = vmul.f32 %v1604, %v459
      %v1669 = vmul.f32 %v1605, %v460
      %v1670 = vmul.f32 %v1606, %v461
      %v1671 = vmul.f32 %v1607, %v462
      %v1672 = vmul.f32 %v1608, %v463
      %v1673 = vmul.f32 %v1609, %v464
      %v1674 = vmul.f32 %v1610, %v465
      %v1675 = vmul.f32 %v1611, %v466
      %v1676 = vmul.f32 %v1612, %v467
      %v1677 = vmul.f32 %v1613, %v468
      %v1678 = vmul.f32 %v1614, %v469
      %v1679 = vmul.f32 %v1615, %v470
      %v1680 = vmul.f32 %v1616, %v471
      %v1681 = vmul.f32 %v1617, %v472
      %v1682 = vmul.f32 %v1618, %v473
      %v1683 = vmul.f32 %v1619, %v474
      %v1684 = vmul.f32 %v1620, %v475
      %v1685 = vmul.f32 %v1621, %v476
      %v1686 = vmul.f32 %v1622, %v477
      %v1687 = vmul.f32 %v1623, %v478
      %v1688 = vmul.f32 %v1624, %v479
      %v1689 = vmul.f32 %v1625, %v480
      %v1690 = vmul.f32 %v1626, %v481
      %v1691 = vmul.f32 %v1627, %v482
      %v1692 = vmul.f32 %v1628, %v483
      %v1693 = vmul.f32 %v1629, %v484
      %v1694 = vmul.f32 %v1630, %v485
      %v1695 = vmul.f32 %v1631, %v486
      %v1696 = vmul.f32 %v1632, %v487
      %v1697 = vmul.f32 %v1633, %v488
      %v1698 = vmul.f32 %v1634, %v489
      %v1699 = vmul.f32 %v1635, %v490
      %v1700 = vmul.f32 %v1636, %v491
      %v1701 = vmul.f32 %v1637, %v492
      %v1702 = vmul.f32 %v1638, %v493
      %v1703 = vmul.f32 %v1639, %v494
      %v1704 = vmul.f32 %v1640, %v495
      %v1705 = vmul.f32 %v1641, %v496
      %v1706 = vmul.f32 %v1642, %v497
      %v1707 = vmul.f32 %v1643, %v498
      %v1708 = vmul.f32 %v1644, %v499
      %v1709 = vmul.f32 %v1645, %v500
      %v1710 = vmul.f32 %v1646, %v501
      %v1711 = vmul.f32 %v1647, %v502
      %v1712 = vmul.f32 %v1648, %v503
      %v1713 = vmul.f32 %v1649, %v504
      %v1714 = vmul.f32 %v1650, %v505
      %v1715 = vmul.f32 %v1651, %v506
      %v1716 = vmul.f32 %v1652, %v507
      %v1717 = vmul.f32 %v1653, %v508
      %v1718 = vmul.f32 %v1654, %v509
      %v1719 = vmul.f32 %v1655, %v510
      %v1720 = vmul.f32 %v1656, %v511
      %v1721 = vmul.f32 %v1657, %v512
      %v1722 = vmul.f32 %v1658, %v513
      %v1723 = vmul.f32 %v1659, %v514
      %v1724 = vmul.f32 %v1660, %v515
      %v1725 = vmul.f32 %v1661, %v516
      %v1726 = vmul.f32 %v1662, %v517
      %v1727 = vmul.f32 %v1663, %v518
      %v1728 = vmul.f32 %v1664, %v519
      %v1729 = vadd.f32 %v1665, %v1697
      %v1730 = vadd.f32 %v1666, %v1698
      %v1731 = vadd.f32 %v1667, %v1699
      %v1732 = vadd.f32 %v1668, %v1700
      %v1733 = vadd.f32 %v1669, %v1701
      %v1734 = vadd.f32 %v1670, %v1702
      %v1735 = vadd.f32 %v1671, %v1703
      %v1736 = vadd.f32 %v1672, %v1704
      %v1737 = vadd.f32 %v1673, %v1705
      %v1738 = vadd.f32 %v1674, %v1706
      %v1739 = vadd.f32 %v1675, %v1707
      %v1740 = vadd.f32 %v1676, %v1708
      %v1741 = vadd.f32 %v1677, %v1709
      %v1742 = vadd.f32 %v1678, %v1710
      %v1743 = vadd.f32 %v1679, %v1711
      %v1744 = vadd.f32 %v1680, %v1712
      %v1745 = vadd.f32 %v1681, %v1713
      %v1746 = vadd.f32 %v1682, %v1714
      %v1747 = vadd.f32 %v1683, %v1715
      %v1748 = vadd.f32 %v1684, %v1716
      %v1749 = vadd.f32 %v1685, %v1717
      %v1750 = vadd.f32 %v1686, %v1718
      %v1751 = vadd.f32 %v1687, %v1719
      %v1752 = vadd.f32 %v1688, %v1720
      %v1753 = vadd.f32 %v1689, %v1721
      %v1754 = vadd.f32 %v1690, %v1722
      %v1755 = vadd.f32 %v1691, %v1723
      %v1756 = vadd.f32 %v1692, %v1724
      %v1757 = vadd.f32 %v1693, %v1725
      %v1758 = vadd.f32 %v1694, %v1726
      %v1759 = vadd.f32 %v1695, %v1727
      %v1760 = vadd.f32 %v1696, %v1728
      %1761 = vst [vmem:[%s434] sm:$0xff] %v1729
      %1762 = vst [vmem:[%s434 + $0x8] sm:$0xff] %v1730
      %1763 = vst [vmem:[%s434 + $0x10] sm:$0xff] %v1731
      %1764 = vst [vmem:[%s434 + $0x18] sm:$0xff] %v1732
      %1765 = vst [vmem:[%s434 + $0x20] sm:$0xff] %v1733
      %1766 = vst [vmem:[%s434 + $0x28] sm:$0xff] %v1734
      %1767 = vst [vmem:[%s434 + $0x30] sm:$0xff] %v1735
      %1768 = vst [vmem:[%s434 + $0x38] sm:$0xff] %v1736
      %1769 = vst [vmem:[%s434 + $0x40] sm:$0xff] %v1737
      %1770 = vst [vmem:[%s434 + $0x48] sm:$0xff] %v1738
      %1771 = vst [vmem:[%s434 + $0x50] sm:$0xff] %v1739
      %1772 = vst [vmem:[%s434 + $0x58] sm:$0xff] %v1740
      %1773 = vst [vmem:[%s434 + $0x60] sm:$0xff] %v1741
      %1774 = vst [vmem:[%s434 + $0x68] sm:$0xff] %v1742
      %1775 = vst [vmem:[%s434 + $0x70] sm:$0xff] %v1743
      %1776 = vst [vmem:[%s434 + $0x78] sm:$0xff] %v1744
      %1777 = vst [vmem:[%s434 + $0x80] sm:$0xff] %v1745
      %1778 = vst [vmem:[%s434 + $0x88] sm:$0xff] %v1746
      %1779 = vst [vmem:[%s434 + $0x90] sm:$0xff] %v1747
      %1780 = vst [vmem:[%s434 + $0x98] sm:$0xff] %v1748
      %1781 = vst [vmem:[%s434 + $0xa0] sm:$0xff] %v1749
      %1782 = vst [vmem:[%s434 + $0xa8] sm:$0xff] %v1750
      %1783 = vst [vmem:[%s434 + $0xb0] sm:$0xff] %v1751
      %1784 = vst [vmem:[%s434 + $0xb8] sm:$0xff] %v1752
      %1785 = vst [vmem:[%s434 + $0xc0] sm:$0xff] %v1753
      %1786 = vst [vmem:[%s434 + $0xc8] sm:$0xff] %v1754
      %1787 = vst [vmem:[%s434 + $0xd0] sm:$0xff] %v1755
      %1788 = vst [vmem:[%s434 + $0xd8] sm:$0xff] %v1756
      %1789 = vst [vmem:[%s434 + $0xe0] sm:$0xff] %v1757
      %1790 = vst [vmem:[%s434 + $0xe8] sm:$0xff] %v1758
      %1791 = vst [vmem:[%s434 + $0xf0] sm:$0xff] %v1759
      %1792 = vst [vmem:[%s434 + $0xf8] sm:$0xff] %v1760
      %v1793 = vlaneseq
      %v1794 = vand.u32 %v1793, 127
      %vm1795 = vcmp.eq.s32.totalorder %v1794, 0
      %v1796 = vsel %vm1795, %v1601, 0.0
      %v1797 = vsel %vm1795, %v1602, 0.0
      %v1798 = vsel %vm1795, %v1603, 0.0
      %v1799 = vsel %vm1795, %v1604, 0.0
      %v1800 = vsel %vm1795, %v1605, 0.0
      %v1801 = vsel %vm1795, %v1606, 0.0
      %v1802 = vsel %vm1795, %v1607, 0.0
      %v1803 = vsel %vm1795, %v1608, 0.0
      %v1804 = vsel %vm1795, %v1609, 0.0
      %v1805 = vsel %vm1795, %v1610, 0.0
      %v1806 = vsel %vm1795, %v1611, 0.0
      %v1807 = vsel %vm1795, %v1612, 0.0
      %v1808 = vsel %vm1795, %v1613, 0.0
      %v1809 = vsel %vm1795, %v1614, 0.0
      %v1810 = vsel %vm1795, %v1615, 0.0
      %v1811 = vsel %vm1795, %v1616, 0.0
      %v1812 = vsel %vm1795, %v1617, 0.0
      %v1813 = vsel %vm1795, %v1618, 0.0
      %v1814 = vsel %vm1795, %v1619, 0.0
      %v1815 = vsel %vm1795, %v1620, 0.0
      %v1816 = vsel %vm1795, %v1621, 0.0
      %v1817 = vsel %vm1795, %v1622, 0.0
      %v1818 = vsel %vm1795, %v1623, 0.0
      %v1819 = vsel %vm1795, %v1624, 0.0
      %v1820 = vsel %vm1795, %v1625, 0.0
      %v1821 = vsel %vm1795, %v1626, 0.0
      %v1822 = vsel %vm1795, %v1627, 0.0
      %v1823 = vsel %vm1795, %v1628, 0.0
      %v1824 = vsel %vm1795, %v1629, 0.0
      %v1825 = vsel %vm1795, %v1630, 0.0
      %v1826 = vsel %vm1795, %v1631, 0.0
      %v1827 = vsel %vm1795, %v1632, 0.0
      %vm1828 = vcmp.eq.s32.totalorder %v1794, 1
      %v1829 = vsel %vm1828, %v1633, 0.0
      %v1830 = vsel %vm1828, %v1634, 0.0
      %v1831 = vsel %vm1828, %v1635, 0.0
      %v1832 = vsel %vm1828, %v1636, 0.0
      %v1833 = vsel %vm1828, %v1637, 0.0
      %v1834 = vsel %vm1828, %v1638, 0.0
      %v1835 = vsel %vm1828, %v1639, 0.0
      %v1836 = vsel %vm1828, %v1640, 0.0
      %v1837 = vsel %vm1828, %v1641, 0.0
      %v1838 = vsel %vm1828, %v1642, 0.0
      %v1839 = vsel %vm1828, %v1643, 0.0
      %v1840 = vsel %vm1828, %v1644, 0.0
      %v1841 = vsel %vm1828, %v1645, 0.0
      %v1842 = vsel %vm1828, %v1646, 0.0
      %v1843 = vsel %vm1828, %v1647, 0.0
      %v1844 = vsel %vm1828, %v1648, 0.0
      %v1845 = vsel %vm1828, %v1649, 0.0
      %v1846 = vsel %vm1828, %v1650, 0.0
      %v1847 = vsel %vm1828, %v1651, 0.0
      %v1848 = vsel %vm1828, %v1652, 0.0
      %v1849 = vsel %vm1828, %v1653, 0.0
      %v1850 = vsel %vm1828, %v1654, 0.0
      %v1851 = vsel %vm1828, %v1655, 0.0
      %v1852 = vsel %vm1828, %v1656, 0.0
      %v1853 = vsel %vm1828, %v1657, 0.0
      %v1854 = vsel %vm1828, %v1658, 0.0
      %v1855 = vsel %vm1828, %v1659, 0.0
      %v1856 = vsel %vm1828, %v1660, 0.0
      %v1857 = vsel %vm1828, %v1661, 0.0
      %v1858 = vsel %vm1828, %v1662, 0.0
      %v1859 = vsel %vm1828, %v1663, 0.0
      %v1860 = vsel %vm1828, %v1664, 0.0
      %v1861 = vadd.f32 %v1796, %v1829
      %v1862 = vadd.f32 %v1797, %v1830
      %v1863 = vadd.f32 %v1798, %v1831
      %v1864 = vadd.f32 %v1799, %v1832
      %v1865 = vadd.f32 %v1800, %v1833
      %v1866 = vadd.f32 %v1801, %v1834
      %v1867 = vadd.f32 %v1802, %v1835
      %v1868 = vadd.f32 %v1803, %v1836
      %v1869 = vadd.f32 %v1804, %v1837
      %v1870 = vadd.f32 %v1805, %v1838
      %v1871 = vadd.f32 %v1806, %v1839
      %v1872 = vadd.f32 %v1807, %v1840
      %v1873 = vadd.f32 %v1808, %v1841
      %v1874 = vadd.f32 %v1809, %v1842
      %v1875 = vadd.f32 %v1810, %v1843
      %v1876 = vadd.f32 %v1811, %v1844
      %v1877 = vadd.f32 %v1812, %v1845
      %v1878 = vadd.f32 %v1813, %v1846
      %v1879 = vadd.f32 %v1814, %v1847
      %v1880 = vadd.f32 %v1815, %v1848
      %v1881 = vadd.f32 %v1816, %v1849
      %v1882 = vadd.f32 %v1817, %v1850
      %v1883 = vadd.f32 %v1818, %v1851
      %v1884 = vadd.f32 %v1819, %v1852
      %v1885 = vadd.f32 %v1820, %v1853
      %v1886 = vadd.f32 %v1821, %v1854
      %v1887 = vadd.f32 %v1822, %v1855
      %v1888 = vadd.f32 %v1823, %v1856
      %v1889 = vadd.f32 %v1824, %v1857
      %v1890 = vadd.f32 %v1825, %v1858
      %v1891 = vadd.f32 %v1826, %v1859
      %v1892 = vadd.f32 %v1827, %v1860
      %1893 = vst [vmem:[%s440] sm:$0xff] %v1861
      %1894 = vst [vmem:[%s440 + $0x8] sm:$0xff] %v1862
      %1895 = vst [vmem:[%s440 + $0x10] sm:$0xff] %v1863
      %1896 = vst [vmem:[%s440 + $0x18] sm:$0xff] %v1864
      %1897 = vst [vmem:[%s440 + $0x20] sm:$0xff] %v1865
      %1898 = vst [vmem:[%s440 + $0x28] sm:$0xff] %v1866
      %1899 = vst [vmem:[%s440 + $0x30] sm:$0xff] %v1867
      %1900 = vst [vmem:[%s440 + $0x38] sm:$0xff] %v1868
      %1901 = vst [vmem:[%s440 + $0x40] sm:$0xff] %v1869
      %1902 = vst [vmem:[%s440 + $0x48] sm:$0xff] %v1870
      %1903 = vst [vmem:[%s440 + $0x50] sm:$0xff] %v1871
      %1904 = vst [vmem:[%s440 + $0x58] sm:$0xff] %v1872
      %1905 = vst [vmem:[%s440 + $0x60] sm:$0xff] %v1873
      %1906 = vst [vmem:[%s440 + $0x68] sm:$0xff] %v1874
      %1907 = vst [vmem:[%s440 + $0x70] sm:$0xff] %v1875
      %1908 = vst [vmem:[%s440 + $0x78] sm:$0xff] %v1876
      %1909 = vst [vmem:[%s440 + $0x80] sm:$0xff] %v1877
      %1910 = vst [vmem:[%s440 + $0x88] sm:$0xff] %v1878
      %1911 = vst [vmem:[%s440 + $0x90] sm:$0xff] %v1879
      %1912 = vst [vmem:[%s440 + $0x98] sm:$0xff] %v1880
      %1913 = vst [vmem:[%s440 + $0xa0] sm:$0xff] %v1881
      %1914 = vst [vmem:[%s440 + $0xa8] sm:$0xff] %v1882
      %1915 = vst [vmem:[%s440 + $0xb0] sm:$0xff] %v1883
      %1916 = vst [vmem:[%s440 + $0xb8] sm:$0xff] %v1884
      %1917 = vst [vmem:[%s440 + $0xc0] sm:$0xff] %v1885
      %1918 = vst [vmem:[%s440 + $0xc8] sm:$0xff] %v1886
      %1919 = vst [vmem:[%s440 + $0xd0] sm:$0xff] %v1887
      %1920 = vst [vmem:[%s440 + $0xd8] sm:$0xff] %v1888
      %1921 = vst [vmem:[%s440 + $0xe0] sm:$0xff] %v1889
      %1922 = vst [vmem:[%s440 + $0xe8] sm:$0xff] %v1890
      %1923 = vst [vmem:[%s440 + $0xf0] sm:$0xff] %v1891
      %1924 = vst [vmem:[%s440 + $0xf8] sm:$0xff] %v1892
      %v1925 = vld [vmem:[%s4] sm:$0xff]
      %v1926 = vld [vmem:[%s4 + $0x8] sm:$0xff]
      %v1927 = vld [vmem:[%s4 + $0x10] sm:$0xff]
      %v1928 = vld [vmem:[%s4 + $0x18] sm:$0xff]
      %v1929 = vld [vmem:[%s4 + $0x20] sm:$0xff]
      %v1930 = vld [vmem:[%s4 + $0x28] sm:$0xff]
      %v1931 = vld [vmem:[%s4 + $0x30] sm:$0xff]
      %v1932 = vld [vmem:[%s4 + $0x38] sm:$0xff]
      %v1933 = vld [vmem:[%s4 + $0x40] sm:$0xff]
      %v1934 = vld [vmem:[%s4 + $0x48] sm:$0xff]
      %v1935 = vld [vmem:[%s4 + $0x50] sm:$0xff]
      %v1936 = vld [vmem:[%s4 + $0x58] sm:$0xff]
      %v1937 = vld [vmem:[%s4 + $0x60] sm:$0xff]
      %v1938 = vld [vmem:[%s4 + $0x68] sm:$0xff]
      %v1939 = vld [vmem:[%s4 + $0x70] sm:$0xff]
      %v1940 = vld [vmem:[%s4 + $0x78] sm:$0xff]
      %v1941 = vld [vmem:[%s4 + $0x80] sm:$0xff]
      %v1942 = vld [vmem:[%s4 + $0x88] sm:$0xff]
      %v1943 = vld [vmem:[%s4 + $0x90] sm:$0xff]
      %v1944 = vld [vmem:[%s4 + $0x98] sm:$0xff]
      %v1945 = vld [vmem:[%s4 + $0xa0] sm:$0xff]
      %v1946 = vld [vmem:[%s4 + $0xa8] sm:$0xff]
      %v1947 = vld [vmem:[%s4 + $0xb0] sm:$0xff]
      %v1948 = vld [vmem:[%s4 + $0xb8] sm:$0xff]
      %v1949 = vld [vmem:[%s4 + $0xc0] sm:$0xff]
      %v1950 = vld [vmem:[%s4 + $0xc8] sm:$0xff]
      %v1951 = vld [vmem:[%s4 + $0xd0] sm:$0xff]
      %v1952 = vld [vmem:[%s4 + $0xd8] sm:$0xff]
      %v1953 = vld [vmem:[%s4 + $0xe0] sm:$0xff]
      %v1954 = vld [vmem:[%s4 + $0xe8] sm:$0xff]
      %v1955 = vld [vmem:[%s4 + $0xf0] sm:$0xff]
      %v1956 = vld [vmem:[%s4 + $0xf8] sm:$0xff]
      %v1957 = vld [vmem:[%s5] sm:$0x3]
      %v1959 = vlaneseq
      %v1960 = vshrl.u32 %v1959, 7
      %v1961 = vsub.s32 0, %v1960
      %v1962 = vrot.slane %v1957, %v1961
      %v1963 = vlaneseq
      %v1964 = vshrl.u32 %v1963, 7
      %v1965 = vsub.s32 1, %v1964
      %v1966 = vrot.slane %v1957, %v1965
      %1969 = vmatprep.subr.mxu0 %v1926
      %1970 = vmatpush1.msra.mxu0 %v1925
      %1971 = vmatprep.subr.mxu0 %v1928
      %1972 = vmatpush1.msra.mxu0 %v1927
      %1973 = vmatprep.subr.mxu0 %v1930
      %1974 = vmatpush1.msra.mxu0 %v1929
      %1975 = vmatprep.subr.mxu0 %v1932
      %1976 = vmatpush1.msra.mxu0 %v1931
      %1977 = vmatprep.subr.mxu0 %v1934
      %1978 = vmatpush1.msra.mxu0 %v1933
      %1979 = vmatprep.subr.mxu0 %v1936
      %1980 = vmatpush1.msra.mxu0 %v1935
      %1981 = vmatprep.subr.mxu0 %v1938
      %1982 = vmatpush1.msra.mxu0 %v1937
      %1983 = vmatprep.subr.mxu0 %v1940
      %1984 = vmatpush1.msra.mxu0 %v1939
      %1985 = vmatprep.subr.mxu0 %v1942
      %1986 = vmatpush1.msra.mxu0 %v1941
      %1987 = vmatprep.subr.mxu0 %v1944
      %1988 = vmatpush1.msra.mxu0 %v1943
      %1989 = vmatprep.subr.mxu0 %v1946
      %1990 = vmatpush1.msra.mxu0 %v1945
      %1991 = vmatprep.subr.mxu0 %v1948
      %1992 = vmatpush1.msra.mxu0 %v1947
      %1993 = vmatprep.subr.mxu0 %v1950
      %1994 = vmatpush1.msra.mxu0 %v1949
      %1995 = vmatprep.subr.mxu0 %v1952
      %1996 = vmatpush1.msra.mxu0 %v1951
      %1997 = vmatprep.subr.mxu0 %v1954
      %1998 = vmatpush1.msra.mxu0 %v1953
      %1999 = vmatprep.subr.mxu0 %v1956
      %2000 = vmatpush1.msra.mxu0 %v1955
      %2001 = vmatprep.subr.mxu0 0.0
      %2002 = vmatpush1.msra.mxu0 0.0
      %2003 = vmatprep.subr.mxu0 0.0
      %2004 = vmatpush1.msra.mxu0 0.0
      %2005 = vmatprep.subr.mxu0 0.0
      %2006 = vmatpush1.msra.mxu0 0.0
      %2007 = vmatprep.subr.mxu0 0.0
      %2008 = vmatpush1.msra.mxu0 0.0
      %2009 = vmatprep.subr.mxu0 0.0
      %2010 = vmatpush1.msra.mxu0 0.0
      %2011 = vmatprep.subr.mxu0 0.0
      %2012 = vmatpush1.msra.mxu0 0.0
      %2013 = vmatprep.subr.mxu0 0.0
      %2014 = vmatpush1.msra.mxu0 0.0
      %2015 = vmatprep.subr.mxu0 0.0
      %2016 = vmatpush1.msra.mxu0 0.0
      %2017 = vmatprep.subr.mxu0 0.0
      %2018 = vmatpush1.msra.mxu0 0.0
      %2019 = vmatprep.subr.mxu0 0.0
      %2020 = vmatpush1.msra.mxu0 0.0
      %2021 = vmatprep.subr.mxu0 0.0
      %2022 = vmatpush1.msra.mxu0 0.0
      %2023 = vmatprep.subr.mxu0 0.0
      %2024 = vmatpush1.msra.mxu0 0.0
      %2025 = vmatprep.subr.mxu0 0.0
      %2026 = vmatpush1.msra.mxu0 0.0
      %2027 = vmatprep.subr.mxu0 0.0
      %2028 = vmatpush1.msra.mxu0 0.0
      %2029 = vmatprep.subr.mxu0 0.0
      %2030 = vmatpush1.msra.mxu0 0.0
      %2031 = vmatprep.subr.mxu0 0.0
      %2032 = vmatpush1.msra.mxu0 0.0
      %2033 = vmatprep.mubr.f32.mxu0 0.0
      %2034 = vmatmul.mubr.f32.gmra.mrb[0].mxu0 %v456
      %v2035 = vpop.f32.mrb[0].mxu0
      %v2036 = vadd.f32 %v1962, %v2035
      %v2037 = vpop.f32.mrb[0].mxu0
      %v2038 = vadd.f32 %v1966, %v2037
      %2039 = vmatprep.mubr.f32.mxu0 0.0
      %2040 = vmatmul.mubr.f32.gmra.mrb[0].mxu0 %v457
      %v2041 = vpop.f32.mrb[0].mxu0
      %v2042 = vadd.f32 %v1962, %v2041
      %v2043 = vpop.f32.mrb[0].mxu0
      %v2044 = vadd.f32 %v1966, %v2043
      %2045 = vmatprep.mubr.f32.mxu0 0.0
      %2046 = vmatmul.mubr.f32.gmra.mrb[0].mxu0 %v458
      %v2047 = vpop.f32.mrb[0].mxu0
      %v2048 = vadd.f32 %v1962, %v2047
      %v2049 = vpop.f32.mrb[0].mxu0
      %v2050 = vadd.f32 %v1966, %v2049
      %2051 = vmatprep.mubr.f32.mxu0 0.0
      %2052 = vmatmul.mubr.f32.gmra.mrb[0].mxu0 %v459
      %v2053 = vpop.f32.mrb[0].mxu0
      %v2054 = vadd.f32 %v1962, %v2053
      %v2055 = vpop.f32.mrb[0].mxu0
      %v2056 = vadd.f32 %v1966, %v2055
      %2057 = vmatprep.mubr.f32.mxu0 0.0
      %2058 = vmatmul.mubr.f32.gmra.mrb[0].mxu0 %v460
      %v2059 = vpop.f32.mrb[0].mxu0
      %v2060 = vadd.f32 %v1962, %v2059
      %v2061 = vpop.f32.mrb[0].mxu0
      %v2062 = vadd.f32 %v1966, %v2061
      %2063 = vmatprep.mubr.f32.mxu0 0.0
      %2064 = vmatmul.mubr.f32.gmra.mrb[0].mxu0 %v461
      %v2065 = vpop.f32.mrb[0].mxu0
      %v2066 = vadd.f32 %v1962, %v2065
      %v2067 = vpop.f32.mrb[0].mxu0
      %v2068 = vadd.f32 %v1966, %v2067
      %2069 = vmatprep.mubr.f32.mxu0 0.0
      %2070 = vmatmul.mubr.f32.gmra.mrb[0].mxu0 %v462
      %v2071 = vpop.f32.mrb[0].mxu0
      %v2072 = vadd.f32 %v1962, %v2071
      %v2073 = vpop.f32.mrb[0].mxu0
      %v2074 = vadd.f32 %v1966, %v2073
      %2075 = vmatprep.mubr.f32.mxu0 0.0
      %2076 = vmatmul.mubr.f32.gmra.mrb[0].mxu0 %v463
      %v2077 = vpop.f32.mrb[0].mxu0
      %v2078 = vadd.f32 %v1962, %v2077
      %v2079 = vpop.f32.mrb[0].mxu0
      %v2080 = vadd.f32 %v1966, %v2079
      %2081 = vmatprep.mubr.f32.mxu0 0.0
      %2082 = vmatmul.mubr.f32.gmra.mrb[0].mxu0 %v464
      %v2083 = vpop.f32.mrb[0].mxu0
      %v2084 = vadd.f32 %v1962, %v2083
      %v2085 = vpop.f32.mrb[0].mxu0
      %v2086 = vadd.f32 %v1966, %v2085
      %2087 = vmatprep.mubr.f32.mxu0 0.0
      %2088 = vmatmul.mubr.f32.gmra.mrb[0].mxu0 %v465
      %v2089 = vpop.f32.mrb[0].mxu0
      %v2090 = vadd.f32 %v1962, %v2089
      %v2091 = vpop.f32.mrb[0].mxu0
      %v2092 = vadd.f32 %v1966, %v2091
      %2093 = vmatprep.mubr.f32.mxu0 0.0
      %2094 = vmatmul.mubr.f32.gmra.mrb[0].mxu0 %v466
      %v2095 = vpop.f32.mrb[0].mxu0
      %v2096 = vadd.f32 %v1962, %v2095
      %v2097 = vpop.f32.mrb[0].mxu0
      %v2098 = vadd.f32 %v1966, %v2097
      %2099 = vmatprep.mubr.f32.mxu0 0.0
      %2100 = vmatmul.mubr.f32.gmra.mrb[0].mxu0 %v467
      %v2101 = vpop.f32.mrb[0].mxu0
      %v2102 = vadd.f32 %v1962, %v2101
      %v2103 = vpop.f32.mrb[0].mxu0
      %v2104 = vadd.f32 %v1966, %v2103
      %2105 = vmatprep.mubr.f32.mxu0 0.0
      %2106 = vmatmul.mubr.f32.gmra.mrb[0].mxu0 %v468
      %v2107 = vpop.f32.mrb[0].mxu0
      %v2108 = vadd.f32 %v1962, %v2107
      %v2109 = vpop.f32.mrb[0].mxu0
      %v2110 = vadd.f32 %v1966, %v2109
      %2111 = vmatprep.mubr.f32.mxu0 0.0
      %2112 = vmatmul.mubr.f32.gmra.mrb[0].mxu0 %v469
      %v2113 = vpop.f32.mrb[0].mxu0
      %v2114 = vadd.f32 %v1962, %v2113
      %v2115 = vpop.f32.mrb[0].mxu0
      %v2116 = vadd.f32 %v1966, %v2115
      %2117 = vmatprep.mubr.f32.mxu0 0.0
      %2118 = vmatmul.mubr.f32.gmra.mrb[0].mxu0 %v470
      %v2119 = vpop.f32.mrb[0].mxu0
      %v2120 = vadd.f32 %v1962, %v2119
      %v2121 = vpop.f32.mrb[0].mxu0
      %v2122 = vadd.f32 %v1966, %v2121
      %2123 = vmatprep.mubr.f32.mxu0 0.0
      %2124 = vmatmul.mubr.f32.gmra.mrb[0].mxu0 %v471
      %v2125 = vpop.f32.mrb[0].mxu0
      %v2126 = vadd.f32 %v1962, %v2125
      %v2127 = vpop.f32.mrb[0].mxu0
      %v2128 = vadd.f32 %v1966, %v2127
      %2129 = vmatprep.mubr.f32.mxu0 0.0
      %2130 = vmatmul.mubr.f32.gmra.mrb[0].mxu0 %v472
      %v2131 = vpop.f32.mrb[0].mxu0
      %v2132 = vadd.f32 %v1962, %v2131
      %v2133 = vpop.f32.mrb[0].mxu0
      %v2134 = vadd.f32 %v1966, %v2133
      %2135 = vmatprep.mubr.f32.mxu0 0.0
      %2136 = vmatmul.mubr.f32.gmra.mrb[0].mxu0 %v473
      %v2137 = vpop.f32.mrb[0].mxu0
      %v2138 = vadd.f32 %v1962, %v2137
      %v2139 = vpop.f32.mrb[0].mxu0
      %v2140 = vadd.f32 %v1966, %v2139
      %2141 = vmatprep.mubr.f32.mxu0 0.0
      %2142 = vmatmul.mubr.f32.gmra.mrb[0].mxu0 %v474
      %v2143 = vpop.f32.mrb[0].mxu0
      %v2144 = vadd.f32 %v1962, %v2143
      %v2145 = vpop.f32.mrb[0].mxu0
      %v2146 = vadd.f32 %v1966, %v2145
      %2147 = vmatprep.mubr.f32.mxu0 0.0
      %2148 = vmatmul.mubr.f32.gmra.mrb[0].mxu0 %v475
      %v2149 = vpop.f32.mrb[0].mxu0
      %v2150 = vadd.f32 %v1962, %v2149
      %v2151 = vpop.f32.mrb[0].mxu0
      %v2152 = vadd.f32 %v1966, %v2151
      %2153 = vmatprep.mubr.f32.mxu0 0.0
      %2154 = vmatmul.mubr.f32.gmra.mrb[0].mxu0 %v476
      %v2155 = vpop.f32.mrb[0].mxu0
      %v2156 = vadd.f32 %v1962, %v2155
      %v2157 = vpop.f32.mrb[0].mxu0
      %v2158 = vadd.f32 %v1966, %v2157
      %2159 = vmatprep.mubr.f32.mxu0 0.0
      %2160 = vmatmul.mubr.f32.gmra.mrb[0].mxu0 %v477
      %v2161 = vpop.f32.mrb[0].mxu0
      %v2162 = vadd.f32 %v1962, %v2161
      %v2163 = vpop.f32.mrb[0].mxu0
      %v2164 = vadd.f32 %v1966, %v2163
      %2165 = vmatprep.mubr.f32.mxu0 0.0
      %2166 = vmatmul.mubr.f32.gmra.mrb[0].mxu0 %v478
      %v2167 = vpop.f32.mrb[0].mxu0
      %v2168 = vadd.f32 %v1962, %v2167
      %v2169 = vpop.f32.mrb[0].mxu0
      %v2170 = vadd.f32 %v1966, %v2169
      %2171 = vmatprep.mubr.f32.mxu0 0.0
      %2172 = vmatmul.mubr.f32.gmra.mrb[0].mxu0 %v479
      %v2173 = vpop.f32.mrb[0].mxu0
      %v2174 = vadd.f32 %v1962, %v2173
      %v2175 = vpop.f32.mrb[0].mxu0
      %v2176 = vadd.f32 %v1966, %v2175
      %2177 = vmatprep.mubr.f32.mxu0 0.0
      %2178 = vmatmul.mubr.f32.gmra.mrb[0].mxu0 %v480
      %v2179 = vpop.f32.mrb[0].mxu0
      %v2180 = vadd.f32 %v1962, %v2179
      %v2181 = vpop.f32.mrb[0].mxu0
      %v2182 = vadd.f32 %v1966, %v2181
      %2183 = vmatprep.mubr.f32.mxu0 0.0
      %2184 = vmatmul.mubr.f32.gmra.mrb[0].mxu0 %v481
      %v2185 = vpop.f32.mrb[0].mxu0
      %v2186 = vadd.f32 %v1962, %v2185
      %v2187 = vpop.f32.mrb[0].mxu0
      %v2188 = vadd.f32 %v1966, %v2187
      %2189 = vmatprep.mubr.f32.mxu0 0.0
      %2190 = vmatmul.mubr.f32.gmra.mrb[0].mxu0 %v482
      %v2191 = vpop.f32.mrb[0].mxu0
      %v2192 = vadd.f32 %v1962, %v2191
      %v2193 = vpop.f32.mrb[0].mxu0
      %v2194 = vadd.f32 %v1966, %v2193
      %2195 = vmatprep.mubr.f32.mxu0 0.0
      %2196 = vmatmul.mubr.f32.gmra.mrb[0].mxu0 %v483
      %v2197 = vpop.f32.mrb[0].mxu0
      %v2198 = vadd.f32 %v1962, %v2197
      %v2199 = vpop.f32.mrb[0].mxu0
      %v2200 = vadd.f32 %v1966, %v2199
      %2201 = vmatprep.mubr.f32.mxu0 0.0
      %2202 = vmatmul.mubr.f32.gmra.mrb[0].mxu0 %v484
      %v2203 = vpop.f32.mrb[0].mxu0
      %v2204 = vadd.f32 %v1962, %v2203
      %v2205 = vpop.f32.mrb[0].mxu0
      %v2206 = vadd.f32 %v1966, %v2205
      %2207 = vmatprep.mubr.f32.mxu0 0.0
      %2208 = vmatmul.mubr.f32.gmra.mrb[0].mxu0 %v485
      %v2209 = vpop.f32.mrb[0].mxu0
      %v2210 = vadd.f32 %v1962, %v2209
      %v2211 = vpop.f32.mrb[0].mxu0
      %v2212 = vadd.f32 %v1966, %v2211
      %2213 = vmatprep.mubr.f32.mxu0 0.0
      %2214 = vmatmul.mubr.f32.gmra.mrb[0].mxu0 %v486
      %v2215 = vpop.f32.mrb[0].mxu0
      %v2216 = vadd.f32 %v1962, %v2215
      %v2217 = vpop.f32.mrb[0].mxu0
      %v2218 = vadd.f32 %v1966, %v2217
      %2219 = vmatprep.mubr.f32.mxu0 0.0
      %2220 = vmatmul.mubr.f32.gmra.mrb[0].mxu0 %v487
      %v2221 = vpop.f32.mrb[0].mxu0
      %v2222 = vadd.f32 %v1962, %v2221
      %v2223 = vpop.f32.mrb[0].mxu0
      %v2224 = vadd.f32 %v1966, %v2223
      %2225 = vdwg.mxu0
      %2226 = vst [vmem:[%s447] sm:$0xff] %v2036
      %2227 = vst [vmem:[%s447 + $0x8] sm:$0xff] %v2038
      %2228 = vst [vmem:[%s447 + $0x10] sm:$0xff] %v2042
      %2229 = vst [vmem:[%s447 + $0x18] sm:$0xff] %v2044
      %2230 = vst [vmem:[%s447 + $0x20] sm:$0xff] %v2048
      %2231 = vst [vmem:[%s447 + $0x28] sm:$0xff] %v2050
      %2232 = vst [vmem:[%s447 + $0x30] sm:$0xff] %v2054
      %2233 = vst [vmem:[%s447 + $0x38] sm:$0xff] %v2056
      %2234 = vst [vmem:[%s447 + $0x40] sm:$0xff] %v2060
      %2235 = vst [vmem:[%s447 + $0x48] sm:$0xff] %v2062
      %2236 = vst [vmem:[%s447 + $0x50] sm:$0xff] %v2066
      %2237 = vst [vmem:[%s447 + $0x58] sm:$0xff] %v2068
      %2238 = vst [vmem:[%s447 + $0x60] sm:$0xff] %v2072
      %2239 = vst [vmem:[%s447 + $0x68] sm:$0xff] %v2074
      %2240 = vst [vmem:[%s447 + $0x70] sm:$0xff] %v2078
      %2241 = vst [vmem:[%s447 + $0x78] sm:$0xff] %v2080
      %2242 = vst [vmem:[%s447 + $0x80] sm:$0xff] %v2084
      %2243 = vst [vmem:[%s447 + $0x88] sm:$0xff] %v2086
      %2244 = vst [vmem:[%s447 + $0x90] sm:$0xff] %v2090
      %2245 = vst [vmem:[%s447 + $0x98] sm:$0xff] %v2092
      %2246 = vst [vmem:[%s447 + $0xa0] sm:$0xff] %v2096
      %2247 = vst [vmem:[%s447 + $0xa8] sm:$0xff] %v2098
      %2248 = vst [vmem:[%s447 + $0xb0] sm:$0xff] %v2102
      %2249 = vst [vmem:[%s447 + $0xb8] sm:$0xff] %v2104
      %2250 = vst [vmem:[%s447 + $0xc0] sm:$0xff] %v2108
      %2251 = vst [vmem:[%s447 + $0xc8] sm:$0xff] %v2110
      %2252 = vst [vmem:[%s447 + $0xd0] sm:$0xff] %v2114
      %2253 = vst [vmem:[%s447 + $0xd8] sm:$0xff] %v2116
      %2254 = vst [vmem:[%s447 + $0xe0] sm:$0xff] %v2120
      %2255 = vst [vmem:[%s447 + $0xe8] sm:$0xff] %v2122
      %2256 = vst [vmem:[%s447 + $0xf0] sm:$0xff] %v2126
      %2257 = vst [vmem:[%s447 + $0xf8] sm:$0xff] %v2128
      %2258 = vst [vmem:[%s447 + $0x100] sm:$0xff] %v2132
      %2259 = vst [vmem:[%s447 + $0x108] sm:$0xff] %v2134
      %2260 = vst [vmem:[%s447 + $0x110] sm:$0xff] %v2138
      %2261 = vst [vmem:[%s447 + $0x118] sm:$0xff] %v2140
      %2262 = vst [vmem:[%s447 + $0x120] sm:$0xff] %v2144
      %2263 = vst [vmem:[%s447 + $0x128] sm:$0xff] %v2146
      %2264 = vst [vmem:[%s447 + $0x130] sm:$0xff] %v2150
      %2265 = vst [vmem:[%s447 + $0x138] sm:$0xff] %v2152
      %2266 = vst [vmem:[%s447 + $0x140] sm:$0xff] %v2156
      %2267 = vst [vmem:[%s447 + $0x148] sm:$0xff] %v2158
      %2268 = vst [vmem:[%s447 + $0x150] sm:$0xff] %v2162
      %2269 = vst [vmem:[%s447 + $0x158] sm:$0xff] %v2164
      %2270 = vst [vmem:[%s447 + $0x160] sm:$0xff] %v2168
      %2271 = vst [vmem:[%s447 + $0x168] sm:$0xff] %v2170
      %2272 = vst [vmem:[%s447 + $0x170] sm:$0xff] %v2174
      %2273 = vst [vmem:[%s447 + $0x178] sm:$0xff] %v2176
      %2274 = vst [vmem:[%s447 + $0x180] sm:$0xff] %v2180
      %2275 = vst [vmem:[%s447 + $0x188] sm:$0xff] %v2182
      %2276 = vst [vmem:[%s447 + $0x190] sm:$0xff] %v2186
      %2277 = vst [vmem:[%s447 + $0x198] sm:$0xff] %v2188
      %2278 = vst [vmem:[%s447 + $0x1a0] sm:$0xff] %v2192
      %2279 = vst [vmem:[%s447 + $0x1a8] sm:$0xff] %v2194
      %2280 = vst [vmem:[%s447 + $0x1b0] sm:$0xff] %v2198
      %2281 = vst [vmem:[%s447 + $0x1b8] sm:$0xff] %v2200
      %2282 = vst [vmem:[%s447 + $0x1c0] sm:$0xff] %v2204
      %2283 = vst [vmem:[%s447 + $0x1c8] sm:$0xff] %v2206
      %2284 = vst [vmem:[%s447 + $0x1d0] sm:$0xff] %v2210
      %2285 = vst [vmem:[%s447 + $0x1d8] sm:$0xff] %v2212
      %2286 = vst [vmem:[%s447 + $0x1e0] sm:$0xff] %v2216
      %2287 = vst [vmem:[%s447 + $0x1e8] sm:$0xff] %v2218
      %2288 = vst [vmem:[%s447 + $0x1f0] sm:$0xff] %v2222
      %2289 = vst [vmem:[%s447 + $0x1f8] sm:$0xff] %v2224
      %v2290 = vld [vmem:[%s6] sm:$0xff]
      %v2291 = vld [vmem:[%s6 + $0x8] sm:$0xff]
      %v2292 = vld [vmem:[%s6 + $0x10] sm:$0xff]
      %v2293 = vld [vmem:[%s6 + $0x18] sm:$0xff]
      %v2294 = vld [vmem:[%s6 + $0x20] sm:$0xff]
      %v2295 = vld [vmem:[%s6 + $0x28] sm:$0xff]
      %v2296 = vld [vmem:[%s6 + $0x30] sm:$0xff]
      %v2297 = vld [vmem:[%s6 + $0x38] sm:$0xff]
      %v2298 = vld [vmem:[%s6 + $0x40] sm:$0xff]
      %v2299 = vld [vmem:[%s6 + $0x48] sm:$0xff]
      %v2300 = vld [vmem:[%s6 + $0x50] sm:$0xff]
      %v2301 = vld [vmem:[%s6 + $0x58] sm:$0xff]
      %v2302 = vld [vmem:[%s6 + $0x60] sm:$0xff]
      %v2303 = vld [vmem:[%s6 + $0x68] sm:$0xff]
      %v2304 = vld [vmem:[%s6 + $0x70] sm:$0xff]
      %v2305 = vld [vmem:[%s6 + $0x78] sm:$0xff]
      %v2306 = vld [vmem:[%s6 + $0x80] sm:$0xff]
      %v2307 = vld [vmem:[%s6 + $0x88] sm:$0xff]
      %v2308 = vld [vmem:[%s6 + $0x90] sm:$0xff]
      %v2309 = vld [vmem:[%s6 + $0x98] sm:$0xff]
      %v2310 = vld [vmem:[%s6 + $0xa0] sm:$0xff]
      %v2311 = vld [vmem:[%s6 + $0xa8] sm:$0xff]
      %v2312 = vld [vmem:[%s6 + $0xb0] sm:$0xff]
      %v2313 = vld [vmem:[%s6 + $0xb8] sm:$0xff]
      %v2314 = vld [vmem:[%s6 + $0xc0] sm:$0xff]
      %v2315 = vld [vmem:[%s6 + $0xc8] sm:$0xff]
      %v2316 = vld [vmem:[%s6 + $0xd0] sm:$0xff]
      %v2317 = vld [vmem:[%s6 + $0xd8] sm:$0xff]
      %v2318 = vld [vmem:[%s6 + $0xe0] sm:$0xff]
      %v2319 = vld [vmem:[%s6 + $0xe8] sm:$0xff]
      %v2320 = vld [vmem:[%s6 + $0xf0] sm:$0xff]
      %v2321 = vld [vmem:[%s6 + $0xf8] sm:$0xff]
      %v2322 = vld [vmem:[%s7] sm:$0x3]
      %v2324 = vlaneseq
      %v2325 = vshrl.u32 %v2324, 7
      %v2326 = vsub.s32 0, %v2325
      %v2327 = vrot.slane %v2322, %v2326
      %v2328 = vlaneseq
      %v2329 = vshrl.u32 %v2328, 7
      %v2330 = vsub.s32 1, %v2329
      %v2331 = vrot.slane %v2322, %v2330
      %2334 = vmatprep.subr.mxu0 %v2291
      %2335 = vmatpush1.msra.mxu0 %v2290
      %2336 = vmatprep.subr.mxu0 %v2293
      %2337 = vmatpush1.msra.mxu0 %v2292
      %2338 = vmatprep.subr.mxu0 %v2295
      %2339 = vmatpush1.msra.mxu0 %v2294
      %2340 = vmatprep.subr.mxu0 %v2297
      %2341 = vmatpush1.msra.mxu0 %v2296
      %2342 = vmatprep.subr.mxu0 %v2299
      %2343 = vmatpush1.msra.mxu0 %v2298
      %2344 = vmatprep.subr.mxu0 %v2301
      %2345 = vmatpush1.msra.mxu0 %v2300
      %2346 = vmatprep.subr.mxu0 %v2303
      %2347 = vmatpush1.msra.mxu0 %v2302
      %2348 = vmatprep.subr.mxu0 %v2305
      %2349 = vmatpush1.msra.mxu0 %v2304
      %2350 = vmatprep.subr.mxu0 %v2307
      %2351 = vmatpush1.msra.mxu0 %v2306
      %2352 = vmatprep.subr.mxu0 %v2309
      %2353 = vmatpush1.msra.mxu0 %v2308
      %2354 = vmatprep.subr.mxu0 %v2311
      %2355 = vmatpush1.msra.mxu0 %v2310
      %2356 = vmatprep.subr.mxu0 %v2313
      %2357 = vmatpush1.msra.mxu0 %v2312
      %2358 = vmatprep.subr.mxu0 %v2315
      %2359 = vmatpush1.msra.mxu0 %v2314
      %2360 = vmatprep.subr.mxu0 %v2317
      %2361 = vmatpush1.msra.mxu0 %v2316
      %2362 = vmatprep.subr.mxu0 %v2319
      %2363 = vmatpush1.msra.mxu0 %v2318
      %2364 = vmatprep.subr.mxu0 %v2321
      %2365 = vmatpush1.msra.mxu0 %v2320
      %2366 = vmatprep.subr.mxu0 0.0
      %2367 = vmatpush1.msra.mxu0 0.0
      %2368 = vmatprep.subr.mxu0 0.0
      %2369 = vmatpush1.msra.mxu0 0.0
      %2370 = vmatprep.subr.mxu0 0.0
      %2371 = vmatpush1.msra.mxu0 0.0
      %2372 = vmatprep.subr.mxu0 0.0
      %2373 = vmatpush1.msra.mxu0 0.0
      %2374 = vmatprep.subr.mxu0 0.0
      %2375 = vmatpush1.msra.mxu0 0.0
      %2376 = vmatprep.subr.mxu0 0.0
      %2377 = vmatpush1.msra.mxu0 0.0
      %2378 = vmatprep.subr.mxu0 0.0
      %2379 = vmatpush1.msra.mxu0 0.0
      %2380 = vmatprep.subr.mxu0 0.0
      %2381 = vmatpush1.msra.mxu0 0.0
      %2382 = vmatprep.subr.mxu0 0.0
      %2383 = vmatpush1.msra.mxu0 0.0
      %2384 = vmatprep.subr.mxu0 0.0
      %2385 = vmatpush1.msra.mxu0 0.0
      %2386 = vmatprep.subr.mxu0 0.0
      %2387 = vmatpush1.msra.mxu0 0.0
      %2388 = vmatprep.subr.mxu0 0.0
      %2389 = vmatpush1.msra.mxu0 0.0
      %2390 = vmatprep.subr.mxu0 0.0
      %2391 = vmatpush1.msra.mxu0 0.0
      %2392 = vmatprep.subr.mxu0 0.0
      %2393 = vmatpush1.msra.mxu0 0.0
      %2394 = vmatprep.subr.mxu0 0.0
      %2395 = vmatpush1.msra.mxu0 0.0
      %2396 = vmatprep.subr.mxu0 0.0
      %2397 = vmatpush1.msra.mxu0 0.0
      %2398 = vmatprep.mubr.f32.mxu0 0.0
      %2399 = vmatmul.mubr.f32.gmra.mrb[0].mxu0 %v488
      %v2400 = vpop.f32.mrb[0].mxu0
      %v2401 = vadd.f32 %v2327, %v2400
      %v2402 = vpop.f32.mrb[0].mxu0
      %v2403 = vadd.f32 %v2331, %v2402
      %2404 = vmatprep.mubr.f32.mxu0 0.0
      %2405 = vmatmul.mubr.f32.gmra.mrb[0].mxu0 %v489
      %v2406 = vpop.f32.mrb[0].mxu0
      %v2407 = vadd.f32 %v2327, %v2406
      %v2408 = vpop.f32.mrb[0].mxu0
      %v2409 = vadd.f32 %v2331, %v2408
      %2410 = vmatprep.mubr.f32.mxu0 0.0
      %2411 = vmatmul.mubr.f32.gmra.mrb[0].mxu0 %v490
      %v2412 = vpop.f32.mrb[0].mxu0
      %v2413 = vadd.f32 %v2327, %v2412
      %v2414 = vpop.f32.mrb[0].mxu0
      %v2415 = vadd.f32 %v2331, %v2414
      %2416 = vmatprep.mubr.f32.mxu0 0.0
      %2417 = vmatmul.mubr.f32.gmra.mrb[0].mxu0 %v491
      %v2418 = vpop.f32.mrb[0].mxu0
      %v2419 = vadd.f32 %v2327, %v2418
      %v2420 = vpop.f32.mrb[0].mxu0
      %v2421 = vadd.f32 %v2331, %v2420
      %2422 = vmatprep.mubr.f32.mxu0 0.0
      %2423 = vmatmul.mubr.f32.gmra.mrb[0].mxu0 %v492
      %v2424 = vpop.f32.mrb[0].mxu0
      %v2425 = vadd.f32 %v2327, %v2424
      %v2426 = vpop.f32.mrb[0].mxu0
      %v2427 = vadd.f32 %v2331, %v2426
      %2428 = vmatprep.mubr.f32.mxu0 0.0
      %2429 = vmatmul.mubr.f32.gmra.mrb[0].mxu0 %v493
      %v2430 = vpop.f32.mrb[0].mxu0
      %v2431 = vadd.f32 %v2327, %v2430
      %v2432 = vpop.f32.mrb[0].mxu0
      %v2433 = vadd.f32 %v2331, %v2432
      %2434 = vmatprep.mubr.f32.mxu0 0.0
      %2435 = vmatmul.mubr.f32.gmra.mrb[0].mxu0 %v494
      %v2436 = vpop.f32.mrb[0].mxu0
      %v2437 = vadd.f32 %v2327, %v2436
      %v2438 = vpop.f32.mrb[0].mxu0
      %v2439 = vadd.f32 %v2331, %v2438
      %2440 = vmatprep.mubr.f32.mxu0 0.0
      %2441 = vmatmul.mubr.f32.gmra.mrb[0].mxu0 %v495
      %v2442 = vpop.f32.mrb[0].mxu0
      %v2443 = vadd.f32 %v2327, %v2442
      %v2444 = vpop.f32.mrb[0].mxu0
      %v2445 = vadd.f32 %v2331, %v2444
      %2446 = vmatprep.mubr.f32.mxu0 0.0
      %2447 = vmatmul.mubr.f32.gmra.mrb[0].mxu0 %v496
      %v2448 = vpop.f32.mrb[0].mxu0
      %v2449 = vadd.f32 %v2327, %v2448
      %v2450 = vpop.f32.mrb[0].mxu0
      %v2451 = vadd.f32 %v2331, %v2450
      %2452 = vmatprep.mubr.f32.mxu0 0.0
      %2453 = vmatmul.mubr.f32.gmra.mrb[0].mxu0 %v497
      %v2454 = vpop.f32.mrb[0].mxu0
      %v2455 = vadd.f32 %v2327, %v2454
      %v2456 = vpop.f32.mrb[0].mxu0
      %v2457 = vadd.f32 %v2331, %v2456
      %2458 = vmatprep.mubr.f32.mxu0 0.0
      %2459 = vmatmul.mubr.f32.gmra.mrb[0].mxu0 %v498
      %v2460 = vpop.f32.mrb[0].mxu0
      %v2461 = vadd.f32 %v2327, %v2460
      %v2462 = vpop.f32.mrb[0].mxu0
      %v2463 = vadd.f32 %v2331, %v2462
      %2464 = vmatprep.mubr.f32.mxu0 0.0
      %2465 = vmatmul.mubr.f32.gmra.mrb[0].mxu0 %v499
      %v2466 = vpop.f32.mrb[0].mxu0
      %v2467 = vadd.f32 %v2327, %v2466
      %v2468 = vpop.f32.mrb[0].mxu0
      %v2469 = vadd.f32 %v2331, %v2468
      %2470 = vmatprep.mubr.f32.mxu0 0.0
      %2471 = vmatmul.mubr.f32.gmra.mrb[0].mxu0 %v500
      %v2472 = vpop.f32.mrb[0].mxu0
      %v2473 = vadd.f32 %v2327, %v2472
      %v2474 = vpop.f32.mrb[0].mxu0
      %v2475 = vadd.f32 %v2331, %v2474
      %2476 = vmatprep.mubr.f32.mxu0 0.0
      %2477 = vmatmul.mubr.f32.gmra.mrb[0].mxu0 %v501
      %v2478 = vpop.f32.mrb[0].mxu0
      %v2479 = vadd.f32 %v2327, %v2478
      %v2480 = vpop.f32.mrb[0].mxu0
      %v2481 = vadd.f32 %v2331, %v2480
      %2482 = vmatprep.mubr.f32.mxu0 0.0
      %2483 = vmatmul.mubr.f32.gmra.mrb[0].mxu0 %v502
      %v2484 = vpop.f32.mrb[0].mxu0
      %v2485 = vadd.f32 %v2327, %v2484
      %v2486 = vpop.f32.mrb[0].mxu0
      %v2487 = vadd.f32 %v2331, %v2486
      %2488 = vmatprep.mubr.f32.mxu0 0.0
      %2489 = vmatmul.mubr.f32.gmra.mrb[0].mxu0 %v503
      %v2490 = vpop.f32.mrb[0].mxu0
      %v2491 = vadd.f32 %v2327, %v2490
      %v2492 = vpop.f32.mrb[0].mxu0
      %v2493 = vadd.f32 %v2331, %v2492
      %2494 = vmatprep.mubr.f32.mxu0 0.0
      %2495 = vmatmul.mubr.f32.gmra.mrb[0].mxu0 %v504
      %v2496 = vpop.f32.mrb[0].mxu0
      %v2497 = vadd.f32 %v2327, %v2496
      %v2498 = vpop.f32.mrb[0].mxu0
      %v2499 = vadd.f32 %v2331, %v2498
      %2500 = vmatprep.mubr.f32.mxu0 0.0
      %2501 = vmatmul.mubr.f32.gmra.mrb[0].mxu0 %v505
      %v2502 = vpop.f32.mrb[0].mxu0
      %v2503 = vadd.f32 %v2327, %v2502
      %v2504 = vpop.f32.mrb[0].mxu0
      %v2505 = vadd.f32 %v2331, %v2504
      %2506 = vmatprep.mubr.f32.mxu0 0.0
      %2507 = vmatmul.mubr.f32.gmra.mrb[0].mxu0 %v506
      %v2508 = vpop.f32.mrb[0].mxu0
      %v2509 = vadd.f32 %v2327, %v2508
      %v2510 = vpop.f32.mrb[0].mxu0
      %v2511 = vadd.f32 %v2331, %v2510
      %2512 = vmatprep.mubr.f32.mxu0 0.0
      %2513 = vmatmul.mubr.f32.gmra.mrb[0].mxu0 %v507
      %v2514 = vpop.f32.mrb[0].mxu0
      %v2515 = vadd.f32 %v2327, %v2514
      %v2516 = vpop.f32.mrb[0].mxu0
      %v2517 = vadd.f32 %v2331, %v2516
      %2518 = vmatprep.mubr.f32.mxu0 0.0
      %2519 = vmatmul.mubr.f32.gmra.mrb[0].mxu0 %v508
      %v2520 = vpop.f32.mrb[0].mxu0
      %v2521 = vadd.f32 %v2327, %v2520
      %v2522 = vpop.f32.mrb[0].mxu0
      %v2523 = vadd.f32 %v2331, %v2522
      %2524 = vmatprep.mubr.f32.mxu0 0.0
      %2525 = vmatmul.mubr.f32.gmra.mrb[0].mxu0 %v509
      %v2526 = vpop.f32.mrb[0].mxu0
      %v2527 = vadd.f32 %v2327, %v2526
      %v2528 = vpop.f32.mrb[0].mxu0
      %v2529 = vadd.f32 %v2331, %v2528
      %2530 = vmatprep.mubr.f32.mxu0 0.0
      %2531 = vmatmul.mubr.f32.gmra.mrb[0].mxu0 %v510
      %v2532 = vpop.f32.mrb[0].mxu0
      %v2533 = vadd.f32 %v2327, %v2532
      %v2534 = vpop.f32.mrb[0].mxu0
      %v2535 = vadd.f32 %v2331, %v2534
      %2536 = vmatprep.mubr.f32.mxu0 0.0
      %2537 = vmatmul.mubr.f32.gmra.mrb[0].mxu0 %v511
      %v2538 = vpop.f32.mrb[0].mxu0
      %v2539 = vadd.f32 %v2327, %v2538
      %v2540 = vpop.f32.mrb[0].mxu0
      %v2541 = vadd.f32 %v2331, %v2540
      %2542 = vmatprep.mubr.f32.mxu0 0.0
      %2543 = vmatmul.mubr.f32.gmra.mrb[0].mxu0 %v512
      %v2544 = vpop.f32.mrb[0].mxu0
      %v2545 = vadd.f32 %v2327, %v2544
      %v2546 = vpop.f32.mrb[0].mxu0
      %v2547 = vadd.f32 %v2331, %v2546
      %2548 = vmatprep.mubr.f32.mxu0 0.0
      %2549 = vmatmul.mubr.f32.gmra.mrb[0].mxu0 %v513
      %v2550 = vpop.f32.mrb[0].mxu0
      %v2551 = vadd.f32 %v2327, %v2550
      %v2552 = vpop.f32.mrb[0].mxu0
      %v2553 = vadd.f32 %v2331, %v2552
      %2554 = vmatprep.mubr.f32.mxu0 0.0
      %2555 = vmatmul.mubr.f32.gmra.mrb[0].mxu0 %v514
      %v2556 = vpop.f32.mrb[0].mxu0
      %v2557 = vadd.f32 %v2327, %v2556
      %v2558 = vpop.f32.mrb[0].mxu0
      %v2559 = vadd.f32 %v2331, %v2558
      %2560 = vmatprep.mubr.f32.mxu0 0.0
      %2561 = vmatmul.mubr.f32.gmra.mrb[0].mxu0 %v515
      %v2562 = vpop.f32.mrb[0].mxu0
      %v2563 = vadd.f32 %v2327, %v2562
      %v2564 = vpop.f32.mrb[0].mxu0
      %v2565 = vadd.f32 %v2331, %v2564
      %2566 = vmatprep.mubr.f32.mxu0 0.0
      %2567 = vmatmul.mubr.f32.gmra.mrb[0].mxu0 %v516
      %v2568 = vpop.f32.mrb[0].mxu0
      %v2569 = vadd.f32 %v2327, %v2568
      %v2570 = vpop.f32.mrb[0].mxu0
      %v2571 = vadd.f32 %v2331, %v2570
      %2572 = vmatprep.mubr.f32.mxu0 0.0
      %2573 = vmatmul.mubr.f32.gmra.mrb[0].mxu0 %v517
      %v2574 = vpop.f32.mrb[0].mxu0
      %v2575 = vadd.f32 %v2327, %v2574
      %v2576 = vpop.f32.mrb[0].mxu0
      %v2577 = vadd.f32 %v2331, %v2576
      %2578 = vmatprep.mubr.f32.mxu0 0.0
      %2579 = vmatmul.mubr.f32.gmra.mrb[0].mxu0 %v518
      %v2580 = vpop.f32.mrb[0].mxu0
      %v2581 = vadd.f32 %v2327, %v2580
      %v2582 = vpop.f32.mrb[0].mxu0
      %v2583 = vadd.f32 %v2331, %v2582
      %2584 = vmatprep.mubr.f32.mxu0 0.0
      %2585 = vmatmul.mubr.f32.gmra.mrb[0].mxu0 %v519
      %v2586 = vpop.f32.mrb[0].mxu0
      %v2587 = vadd.f32 %v2327, %v2586
      %v2588 = vpop.f32.mrb[0].mxu0
      %v2589 = vadd.f32 %v2331, %v2588
      %2590 = vdwg.mxu0
      %2591 = vst [vmem:[%s454] sm:$0xff] %v2401
      %2592 = vst [vmem:[%s454 + $0x8] sm:$0xff] %v2403
      %2593 = vst [vmem:[%s454 + $0x10] sm:$0xff] %v2407
      %2594 = vst [vmem:[%s454 + $0x18] sm:$0xff] %v2409
      %2595 = vst [vmem:[%s454 + $0x20] sm:$0xff] %v2413
      %2596 = vst [vmem:[%s454 + $0x28] sm:$0xff] %v2415
      %2597 = vst [vmem:[%s454 + $0x30] sm:$0xff] %v2419
      %2598 = vst [vmem:[%s454 + $0x38] sm:$0xff] %v2421
      %2599 = vst [vmem:[%s454 + $0x40] sm:$0xff] %v2425
      %2600 = vst [vmem:[%s454 + $0x48] sm:$0xff] %v2427
      %2601 = vst [vmem:[%s454 + $0x50] sm:$0xff] %v2431
      %2602 = vst [vmem:[%s454 + $0x58] sm:$0xff] %v2433
      %2603 = vst [vmem:[%s454 + $0x60] sm:$0xff] %v2437
      %2604 = vst [vmem:[%s454 + $0x68] sm:$0xff] %v2439
      %2605 = vst [vmem:[%s454 + $0x70] sm:$0xff] %v2443
      %2606 = vst [vmem:[%s454 + $0x78] sm:$0xff] %v2445
      %2607 = vst [vmem:[%s454 + $0x80] sm:$0xff] %v2449
      %2608 = vst [vmem:[%s454 + $0x88] sm:$0xff] %v2451
      %2609 = vst [vmem:[%s454 + $0x90] sm:$0xff] %v2455
      %2610 = vst [vmem:[%s454 + $0x98] sm:$0xff] %v2457
      %2611 = vst [vmem:[%s454 + $0xa0] sm:$0xff] %v2461
      %2612 = vst [vmem:[%s454 + $0xa8] sm:$0xff] %v2463
      %2613 = vst [vmem:[%s454 + $0xb0] sm:$0xff] %v2467
      %2614 = vst [vmem:[%s454 + $0xb8] sm:$0xff] %v2469
      %2615 = vst [vmem:[%s454 + $0xc0] sm:$0xff] %v2473
      %2616 = vst [vmem:[%s454 + $0xc8] sm:$0xff] %v2475
      %2617 = vst [vmem:[%s454 + $0xd0] sm:$0xff] %v2479
      %2618 = vst [vmem:[%s454 + $0xd8] sm:$0xff] %v2481
      %2619 = vst [vmem:[%s454 + $0xe0] sm:$0xff] %v2485
      %2620 = vst [vmem:[%s454 + $0xe8] sm:$0xff] %v2487
      %2621 = vst [vmem:[%s454 + $0xf0] sm:$0xff] %v2491
      %2622 = vst [vmem:[%s454 + $0xf8] sm:$0xff] %v2493
      %2623 = vst [vmem:[%s454 + $0x100] sm:$0xff] %v2497
      %2624 = vst [vmem:[%s454 + $0x108] sm:$0xff] %v2499
      %2625 = vst [vmem:[%s454 + $0x110] sm:$0xff] %v2503
      %2626 = vst [vmem:[%s454 + $0x118] sm:$0xff] %v2505
      %2627 = vst [vmem:[%s454 + $0x120] sm:$0xff] %v2509
      %2628 = vst [vmem:[%s454 + $0x128] sm:$0xff] %v2511
      %2629 = vst [vmem:[%s454 + $0x130] sm:$0xff] %v2515
      %2630 = vst [vmem:[%s454 + $0x138] sm:$0xff] %v2517
      %2631 = vst [vmem:[%s454 + $0x140] sm:$0xff] %v2521
      %2632 = vst [vmem:[%s454 + $0x148] sm:$0xff] %v2523
      %2633 = vst [vmem:[%s454 + $0x150] sm:$0xff] %v2527
      %2634 = vst [vmem:[%s454 + $0x158] sm:$0xff] %v2529
      %2635 = vst [vmem:[%s454 + $0x160] sm:$0xff] %v2533
      %2636 = vst [vmem:[%s454 + $0x168] sm:$0xff] %v2535
      %2637 = vst [vmem:[%s454 + $0x170] sm:$0xff] %v2539
      %2638 = vst [vmem:[%s454 + $0x178] sm:$0xff] %v2541
      %2639 = vst [vmem:[%s454 + $0x180] sm:$0xff] %v2545
      %2640 = vst [vmem:[%s454 + $0x188] sm:$0xff] %v2547
      %2641 = vst [vmem:[%s454 + $0x190] sm:$0xff] %v2551
      %2642 = vst [vmem:[%s454 + $0x198] sm:$0xff] %v2553
      %2643 = vst [vmem:[%s454 + $0x1a0] sm:$0xff] %v2557
      %2644 = vst [vmem:[%s454 + $0x1a8] sm:$0xff] %v2559
      %2645 = vst [vmem:[%s454 + $0x1b0] sm:$0xff] %v2563
      %2646 = vst [vmem:[%s454 + $0x1b8] sm:$0xff] %v2565
      %2647 = vst [vmem:[%s454 + $0x1c0] sm:$0xff] %v2569
      %2648 = vst [vmem:[%s454 + $0x1c8] sm:$0xff] %v2571
      %2649 = vst [vmem:[%s454 + $0x1d0] sm:$0xff] %v2575
      %2650 = vst [vmem:[%s454 + $0x1d8] sm:$0xff] %v2577
      %2651 = vst [vmem:[%s454 + $0x1e0] sm:$0xff] %v2581
      %2652 = vst [vmem:[%s454 + $0x1e8] sm:$0xff] %v2583
      %2653 = vst [vmem:[%s454 + $0x1f0] sm:$0xff] %v2587
      %2654 = vst [vmem:[%s454 + $0x1f8] sm:$0xff] %v2589
      %s2655 = smul.u32 32, %s23
      %p2656 = scmp.lt.s32.totalorder %s2655, 63
      %s2657 = scalar_select %p2656, %s2655, 63
      %s2658 = smul.addr %s2657, 8
      %s2659 = scalar_lea.vmem %s8, %s2658
      %s2660 = smul.u32 32, %s23
      %p2661 = scmp.lt.s32.totalorder %s2660, 63
      %s2662 = scalar_select %p2661, %s2660, 63
      %s2663 = smul.addr %s2662, 8
      %s2664 = scalar_lea.vmem %s9, %s2663
      %s2665 = smul.u32 32, %s23
      %p2666 = scmp.lt.s32.totalorder %s2665, 63
      %s2667 = scalar_select %p2666, %s2665, 63
      %s2668 = smul.addr %s2667, 2
      %s2669 = smul.addr %s2668, 8
      %s2670 = scalar_lea.vmem %s10, %s2669
      %s2671 = smul.u32 32, %s23
      %p2672 = scmp.lt.s32.totalorder %s2671, 63
      %s2673 = scalar_select %p2672, %s2671, 63
      %s2674 = smul.addr %s2673, 2
      %s2675 = smul.addr %s2674, 8
      %s2676 = scalar_lea.vmem %s11, %s2675
      // Predicated region
      $region53: #{encoder_overall_forward.15} parent=51 // pred_check
        %p2677 = pneg %p219
      $region54: #{encoder_overall_forward.15} parent=51 // pred_check_branch
        %2679 = sbr.rel (%p2677) target = $region56
      $region55: #{encoder_overall_forward.15} parent=51 // pred_region
        %s2680 = smul.u32 32, %s23
      $region56: #{encoder_overall_forward.15} parent=51 // pred_fallthru
        _
      // Predicated region
      $region57: #{encoder_overall_forward.15} parent=51 // pred_check
        %p2681 = pneg %p245
      $region58: #{encoder_overall_forward.15} parent=51 // pred_check_branch
        %2683 = sbr.rel (%p2681) target = $region60
      $region59: #{encoder_overall_forward.15} parent=51 // pred_region
        %s2684 = smul.u32 32, %s23
      $region60: #{encoder_overall_forward.15} parent=51 // pred_fallthru
        _
      // Predicated region
      $region61: #{encoder_overall_forward.15} parent=51 // pred_check
        %p2685 = pneg %p271
      $region62: #{encoder_overall_forward.15} parent=51 // pred_check_branch
        %2687 = sbr.rel (%p2685) target = $region64
      $region63: #{encoder_overall_forward.15} parent=51 // pred_region
        %s2688 = smul.u32 32, %s23
      $region64: #{encoder_overall_forward.15} parent=51 // pred_fallthru
        _
      // Predicated region
      $region65: #{encoder_overall_forward.15} parent=51 // pred_check
        %p2689 = pneg %p297
      $region66: #{encoder_overall_forward.15} parent=51 // pred_check_branch
        %2691 = sbr.rel (%p2689) target = $region68
      $region67: #{encoder_overall_forward.15} parent=51 // pred_region
        %s2692 = smul.u32 32, %s23
      $region68: #{encoder_overall_forward.15} parent=51 // pred_fallthru
        _
    $region52: #{encoder_overall_forward.15} parent=5 // pred_fallthru
      _
    %p2693 = scmp.le.s32.totalorder 2, %s18
    // Predicated region
    $region69: #{encoder_overall_forward.15} parent=5 // pred_check
      %p2694 = pneg %p2693
    $region70: #{encoder_overall_forward.15} parent=5 // pred_check_branch
      %2696 = sbr.rel (%p2694) target = $region72
    $region71: #{encoder_overall_forward.15} parent=5 // pred_region
      %s2697 = ssub.s32 %s18, 2
      // Predicated region
      $region73: #{encoder_overall_forward.15} parent=71 // pred_check
        %p2698 = pneg %p225
      $region74: #{encoder_overall_forward.15} parent=71 // pred_check_branch
        %2700 = sbr.rel (%p2698) target = $region76
      $region75: #{encoder_overall_forward.15} parent=71 // pred_region
        %s2701 = smul.u32 32, %s24
        %p2702 = scmp.lt.s32.totalorder %s2701, 63
        %s2703 = scalar_select %p2702, %s2701, 63
        %s2704 = smul.addr %s2703, 8
        %s2705 = scalar_lea.vmem %s8, %s2704
      $region76: #{encoder_overall_forward.15} parent=71 // pred_fallthru
        _
      // Predicated region
      $region77: #{encoder_overall_forward.15} parent=71 // pred_check
        %p2706 = pneg %p251
      $region78: #{encoder_overall_forward.15} parent=71 // pred_check_branch
        %2708 = sbr.rel (%p2706) target = $region80
      $region79: #{encoder_overall_forward.15} parent=71 // pred_region
        %s2709 = smul.u32 32, %s24
        %p2710 = scmp.lt.s32.totalorder %s2709, 63
        %s2711 = scalar_select %p2710, %s2709, 63
        %s2712 = smul.addr %s2711, 8
        %s2713 = scalar_lea.vmem %s9, %s2712
      $region80: #{encoder_overall_forward.15} parent=71 // pred_fallthru
        _
      // Predicated region
      $region81: #{encoder_overall_forward.15} parent=71 // pred_check
        %p2714 = pneg %p277
      $region82: #{encoder_overall_forward.15} parent=71 // pred_check_branch
        %2716 = sbr.rel (%p2714) target = $region84
      $region83: #{encoder_overall_forward.15} parent=71 // pred_region
        %s2717 = smul.u32 32, %s24
        %p2718 = scmp.lt.s32.totalorder %s2717, 63
        %s2719 = scalar_select %p2718, %s2717, 63
        %s2720 = smul.addr %s2719, 2
        %s2721 = smul.addr %s2720, 8
        %s2722 = scalar_lea.vmem %s10, %s2721
      $region84: #{encoder_overall_forward.15} parent=71 // pred_fallthru
        _
      // Predicated region
      $region85: #{encoder_overall_forward.15} parent=71 // pred_check
        %p2723 = pneg %p303
      $region86: #{encoder_overall_forward.15} parent=71 // pred_check_branch
        %2725 = sbr.rel (%p2723) target = $region88
      $region87: #{encoder_overall_forward.15} parent=71 // pred_region
        %s2726 = smul.u32 32, %s24
        %p2727 = scmp.lt.s32.totalorder %s2726, 63
        %s2728 = scalar_select %p2727, %s2726, 63
        %s2729 = smul.addr %s2728, 2
        %s2730 = smul.addr %s2729, 8
        %s2731 = scalar_lea.vmem %s11, %s2730
      $region88: #{encoder_overall_forward.15} parent=71 // pred_fallthru
        _
    $region72: #{encoder_overall_forward.15} parent=5 // pred_fallthru
      _
  $region6: #{encoder_overall_forward.15} parent=0 // loop_footer
    %s22 = sadd.s32 1, %s18
  $region7: #{encoder_overall_forward.15} parent=0 // loop_footer_branch
    %17 = sbr.rel target = $region3
  $region8: #{encoder_overall_forward.15} parent=0 // loop_exit
    _

// kernel: encoder_overall_forward.19
$region0: #{encoder_overall_forward.19}
  #allocation0 [shape = 'u32[]', space=smem, size = 0x4, offset = 0x4, fixed_abs, tag = 'smem constant byte address 0x4 - core index']
  #allocation1 [shape = 'u32[144,128]{1,0:T(1,128)}', space=vmem, size = 0x12000, scoped, tag = 'internal scratch']
  #allocation2 [shape = 'f32[256,256]{1,0:T(8,128)}', space=vmem, size = 0x40000, scoped, tag = 'scratch operand']
  %s0 = inlined_call_operand.vmem [shape: f32[512,256], index: 0, kind: input, shape index: {}]
  %s1 = inlined_call_operand.vmem [shape: f32[256,256], index: 1, kind: input, shape index: {}]
  %s2 = inlined_call_operand.vmem [shape: f32[512,256], index: 2, kind: output, shape index: {}]
  %s3 = sld [smem:[#allocation0]]
  $region49: #{encoder_overall_forward.19} parent=0
    _
  %s5 = ssub.s32 1, %s3
  %s6 = scalar_select 0, %s5, %s3
  loop: start=0, step=1, limit=4
  $region2: #{encoder_overall_forward.19} parent=0 // loop_pre_header
    _
  $region3: #{encoder_overall_forward.19} parent=0 // loop_header
    %s8 = sphi 0, %s12
    %p9 = scmp.ge.s32.totalorder %s8, 4
    %s15 = sphi 0, %s34
    %s16 = sphi 0, %s30
    %s17 = sphi 0, %s26
    %s18 = sphi 0, %s15
    %s19 = sphi 0, %s16
    %s20 = sphi 0, %s17
    %s21 = sphi 0, %s18
    %s22 = sphi 0, %s19
    %s23 = sphi 0, %s20
    %s39 = sphi 0, %s41
    %s42 = sphi 0, %s39
    %s43 = sphi 0, %s42
    %s59 = sphi 0, %s43
    %s67 = sphi 0, %s69
    %s70 = sphi 0, %s67
    %s71 = sphi 0, %s70
    %s87 = sphi 0, %s71
    %s95 = sphi 0, %s97
    %s98 = sphi 0, %s95
    %s99 = sphi 0, %s98
    %s115 = sphi 0, %s99
  $region4: #{encoder_overall_forward.19} parent=0 // loop_header_branch
    %11 = sbr.rel (%p9) target = $region8
  $region5: #{encoder_overall_forward.19} parent=0 // loop_body
    %s13 = ssub.s32 %s8, 1
    %s14 = ssub.s32 %s8, 2
    %s24 = sadd.s32 1, %s17
    %p25 = scmp.ge.s32.totalorder %s24, 1
    %s26 = scalar_select %p25, 0, %s24
    %s27 = sadd.s32 1, %s16
    %s28 = scalar_select %p25, %s27, %s16
    %p29 = scmp.ge.s32.totalorder %s28, 1
    %s30 = scalar_select %p29, 0, %s28
    %s31 = sadd.s32 1, %s15
    %s32 = scalar_select %p29, %s31, %s15
    %p33 = scmp.ge.s32.totalorder %s32, 2
    %s34 = scalar_select %p33, 0, %s32
    %s35 = ssub.s32 %s15, %s34
    %s36 = ssub.s32 %s17, %s26
    %s37 = sor.u32 %s35, %s36
    %p38 = scmp.eq.s32.totalorder %s37, 0
    %s40 = sadd.s32 %s39, 1
    %s41 = scalar_select %p38, %s39, %s40
    %p44 = pneg %p38
    %p45 = scmp.eq.s32.totalorder %s8, 1
    %p46 = por %p44, %p45
    %p47 = scmp.ne.s32.totalorder %s39, %s42
    %p48 = scmp.eq.s32.totalorder %s8, 0
    %p49 = por %p47, %p48
    %p50 = scmp.ne.s32.totalorder %s39, %s42
    %p51 = scmp.eq.s32.totalorder %s13, 1
    %p52 = por %p50, %p51
    %p53 = scmp.ne.s32.totalorder %s42, %s43
    %p54 = scmp.eq.s32.totalorder %s13, 0
    %p55 = por %p53, %p54
    %p56 = scmp.ne.s32.totalorder %s42, %s43
    %p57 = scmp.eq.s32.totalorder %s14, 1
    %p58 = por %p56, %p57
    %p60 = scmp.ne.s32.totalorder %s43, %s59
    %p61 = scmp.eq.s32.totalorder %s14, 0
    %p62 = por %p60, %p61
    %s63 = ssub.s32 %s17, %s26
    %s64 = ssub.s32 %s16, %s30
    %s65 = sor.u32 %s63, %s64
    %p66 = scmp.eq.s32.totalorder %s65, 0
    %s68 = sadd.s32 %s67, 1
    %s69 = scalar_select %p66, %s67, %s68
    %p72 = pneg %p66
    %p73 = scmp.eq.s32.totalorder %s8, 1
    %p74 = por %p72, %p73
    %p75 = scmp.ne.s32.totalorder %s67, %s70
    %p76 = scmp.eq.s32.totalorder %s8, 0
    %p77 = por %p75, %p76
    %p78 = scmp.ne.s32.totalorder %s67, %s70
    %p79 = scmp.eq.s32.totalorder %s13, 1
    %p80 = por %p78, %p79
    %p81 = scmp.ne.s32.totalorder %s70, %s71
    %p82 = scmp.eq.s32.totalorder %s13, 0
    %p83 = por %p81, %p82
    %p84 = scmp.ne.s32.totalorder %s70, %s71
    %p85 = scmp.eq.s32.totalorder %s14, 1
    %p86 = por %p84, %p85
    %p88 = scmp.ne.s32.totalorder %s71, %s87
    %p89 = scmp.eq.s32.totalorder %s14, 0
    %p90 = por %p88, %p89
    %s91 = ssub.s32 %s15, %s34
    %s92 = ssub.s32 %s16, %s30
    %s93 = sor.u32 %s91, %s92
    %p94 = scmp.eq.s32.totalorder %s93, 0
    %s96 = sadd.s32 %s95, 1
    %s97 = scalar_select %p94, %s95, %s96
    %p100 = pneg %p94
    %p101 = scmp.eq.s32.totalorder %s8, 1
    %p102 = por %p100, %p101
    %p103 = scmp.ne.s32.totalorder %s95, %s98
    %p104 = scmp.eq.s32.totalorder %s8, 0
    %p105 = por %p103, %p104
    %p106 = scmp.ne.s32.totalorder %s95, %s98
    %p107 = scmp.eq.s32.totalorder %s13, 1
    %p108 = por %p106, %p107
    %p109 = scmp.ne.s32.totalorder %s98, %s99
    %p110 = scmp.eq.s32.totalorder %s13, 0
    %p111 = por %p109, %p110
    %p112 = scmp.ne.s32.totalorder %s98, %s99
    %p113 = scmp.eq.s32.totalorder %s14, 1
    %p114 = por %p112, %p113
    %p116 = scmp.ne.s32.totalorder %s99, %s115
    %p117 = scmp.eq.s32.totalorder %s14, 0
    %p118 = por %p116, %p117
    %p119 = scmp.le.s32.totalorder 1, %s8
    %p120 = scmp.lt.s32.totalorder %s8, 3
    %p121 = pnand %p119, %p120
    %p122 = pneg %p121
    // Predicated region
    $region9: #{encoder_overall_forward.19} parent=5 // pred_check
      _
    $region10: #{encoder_overall_forward.19} parent=5 // pred_check_branch
      %124 = sbr.rel (%p121) target = $region12
    $region11: #{encoder_overall_forward.19} parent=5 // pred_region
      %s125 = ssub.s32 %s8, 1
      // Predicated region
      $region13: #{encoder_overall_forward.19} parent=11 // pred_check
        %p126 = pneg %p83
      $region14: #{encoder_overall_forward.19} parent=11 // pred_check_branch
        %128 = sbr.rel (%p126) target = $region16
      $region15: #{encoder_overall_forward.19} parent=11 // pred_region
        %s129 = smul.u32 32, %s20
        %s130 = smul.u32 2, %s19
        %p131 = scmp.lt.s32.totalorder %s129, 31
        %s132 = scalar_select %p131, %s129, 31
        %p133 = scmp.lt.s32.totalorder %s130, 1
        %s134 = scalar_select %p133, %s130, 1
        %s135 = smul.addr %s132, 2
        %s136 = sadd.s32 %s134, %s135
        %s137 = smul.addr %s136, 8
        %s138 = scalar_lea.vmem %s1, %s137
        %s139 = smul.u32 32, %s20
        %s140 = smul.u32 2, %s19
      $region16: #{encoder_overall_forward.19} parent=11 // pred_fallthru
        _
    $region12: #{encoder_overall_forward.19} parent=5 // pred_fallthru
      _
    %p141 = scmp.lt.s32.totalorder %s8, 2
    // Predicated region
    $region17: #{encoder_overall_forward.19} parent=5 // pred_check
      %p142 = pneg %p141
    $region18: #{encoder_overall_forward.19} parent=5 // pred_check_branch
      %144 = sbr.rel (%p142) target = $region20
    $region19: #{encoder_overall_forward.19} parent=5 // pred_region
      // Predicated region
      $region21: #{encoder_overall_forward.19} parent=19 // pred_check
        %p145 = pneg %p49
      $region22: #{encoder_overall_forward.19} parent=19 // pred_check_branch
        %147 = sbr.rel (%p145) target = $region24
      $region23: #{encoder_overall_forward.19} parent=19 // pred_region
        %s148 = smul.u32 32, %s15
        %s149 = smul.u32 2, %s17
        %p150 = scmp.lt.s32.totalorder %s148, 63
        %s151 = scalar_select %p150, %s148, 63
        %p152 = scmp.lt.s32.totalorder %s149, 1
        %s153 = scalar_select %p152, %s149, 1
        %s154 = smul.addr %s151, 2
        %s155 = sadd.s32 %s153, %s154
        %s156 = smul.addr %s155, 8
        %s157 = scalar_lea.vmem %s0, %s156
        %s158 = smul.u32 32, %s15
        %s159 = smul.u32 2, %s17
      $region24: #{encoder_overall_forward.19} parent=19 // pred_fallthru
        _
    $region20: #{encoder_overall_forward.19} parent=5 // pred_fallthru
      _
    %p160 = scmp.le.s32.totalorder 1, %s8
    %p161 = scmp.lt.s32.totalorder %s8, 3
    %p162 = pnand %p160, %p161
    %p163 = pneg %p162
    // Predicated region
    $region25: #{encoder_overall_forward.19} parent=5 // pred_check
      _
    $region26: #{encoder_overall_forward.19} parent=5 // pred_check_branch
      %165 = sbr.rel (%p162) target = $region28
    $region27: #{encoder_overall_forward.19} parent=5 // pred_region
      %s166 = ssub.s32 %s8, 1
      %s167 = smul.u32 32, %s18
      %s168 = smul.u32 2, %s20
      %p169 = scmp.lt.s32.totalorder %s167, 63
      %s170 = scalar_select %p169, %s167, 63
      %p171 = scmp.lt.s32.totalorder %s168, 1
      %s172 = scalar_select %p171, %s168, 1
      %s173 = smul.addr %s170, 2
      %s174 = sadd.s32 %s172, %s173
      %s175 = smul.addr %s174, 8
      %s176 = scalar_lea.vmem %s0, %s175
      %p177 = pneg %p55
      %p178 = pneg %p52
      %s179 = smul.u32 32, %s20
      %s180 = smul.u32 2, %s19
      %p181 = scmp.lt.s32.totalorder %s179, 31
      %s182 = scalar_select %p181, %s179, 31
      %p183 = scmp.lt.s32.totalorder %s180, 1
      %s184 = scalar_select %p183, %s180, 1
      %s185 = smul.addr %s182, 2
      %s186 = sadd.s32 %s184, %s185
      %s187 = smul.addr %s186, 8
      %s188 = scalar_lea.vmem %s1, %s187
      %p189 = pneg %p83
      %p190 = pneg %p80
      %p191 = pneg %p111
      %p192 = pneg %p108
      %s193 = smul.u32 32, %s18
      %s194 = smul.u32 2, %s19
      %p195 = scmp.lt.s32.totalorder %s193, 63
      %s196 = scalar_select %p195, %s193, 63
      %p197 = scmp.lt.s32.totalorder %s194, 1
      %s198 = scalar_select %p197, %s194, 1
      %s199 = smul.addr %s196, 2
      %s200 = sadd.s32 %s198, %s199
      %s201 = smul.addr %s200, 8
      %s202 = scalar_lea.vmem %s2, %s201
      %s203 = smul.u32 32, %s18
      %s204 = smul.u32 2, %s20
      %p205 = scmp.lt.s32.totalorder %s203, 63
      %s206 = scalar_select %p205, %s203, 63
      %p207 = scmp.lt.s32.totalorder %s204, 1
      %s208 = scalar_select %p207, %s204, 1
      %s209 = smul.addr %s206, 2
      %s210 = sadd.s32 %s208, %s209
      %s211 = smul.addr %s210, 8
      %s212 = scalar_lea.vmem %s0, %s211
      %s213 = smul.u32 32, %s18
      %s214 = smul.u32 2, %s20
      %s215 = smul.u32 32, %s20
      %s216 = smul.u32 2, %s19
      %p217 = scmp.lt.s32.totalorder %s215, 31
      %s218 = scalar_select %p217, %s215, 31
      %p219 = scmp.lt.s32.totalorder %s216, 1
      %s220 = scalar_select %p219, %s216, 1
      %s221 = smul.addr %s218, 2
      %s222 = sadd.s32 %s220, %s221
      %s223 = smul.addr %s222, 8
      %s224 = scalar_lea.vmem %s1, %s223
      %s225 = smul.u32 32, %s20
      %s226 = smul.u32 2, %s19
      %s227 = smul.u32 32, %s18
      %s228 = smul.u32 2, %s19
      %p229 = scmp.lt.s32.totalorder %s227, 63
      %s230 = scalar_select %p229, %s227, 63
      %p231 = scmp.lt.s32.totalorder %s228, 1
      %s232 = scalar_select %p231, %s228, 1
      %s233 = smul.addr %s230, 2
      %s234 = sadd.s32 %s232, %s233
      %s235 = smul.addr %s234, 8
      %s236 = scalar_lea.vmem %s2, %s235
      %s237 = smul.u32 32, %s18
      %s238 = smul.u32 2, %s19
      %p239 = scmp.eq.s32.totalorder %s20, 0
      // Predicated region
      $region29: #{encoder_overall_forward.19} parent=27 // pred_check
        %p240 = pneg %p239
      $region30: #{encoder_overall_forward.19} parent=27 // pred_check_branch
        %242 = sbr.rel (%p240) target = $region32
      $region31: #{encoder_overall_forward.19} parent=27 // pred_region
        %243 = vst [vmem:[#allocation2] sm:$0xff] 0.0
        %244 = vst [vmem:[#allocation2 + $0x8] sm:$0xff] 0.0
        %245 = vst [vmem:[#allocation2 + $0x10] sm:$0xff] 0.0
        %246 = vst [vmem:[#allocation2 + $0x18] sm:$0xff] 0.0
        %247 = vst [vmem:[#allocation2 + $0x20] sm:$0xff] 0.0
        %248 = vst [vmem:[#allocation2 + $0x28] sm:$0xff] 0.0
        %249 = vst [vmem:[#allocation2 + $0x30] sm:$0xff] 0.0
        %250 = vst [vmem:[#allocation2 + $0x38] sm:$0xff] 0.0
        %251 = vst [vmem:[#allocation2 + $0x40] sm:$0xff] 0.0
        %252 = vst [vmem:[#allocation2 + $0x48] sm:$0xff] 0.0
        %253 = vst [vmem:[#allocation2 + $0x50] sm:$0xff] 0.0
        %254 = vst [vmem:[#allocation2 + $0x58] sm:$0xff] 0.0
        %255 = vst [vmem:[#allocation2 + $0x60] sm:$0xff] 0.0
        %256 = vst [vmem:[#allocation2 + $0x68] sm:$0xff] 0.0
        %257 = vst [vmem:[#allocation2 + $0x70] sm:$0xff] 0.0
        %258 = vst [vmem:[#allocation2 + $0x78] sm:$0xff] 0.0
        %259 = vst [vmem:[#allocation2 + $0x80] sm:$0xff] 0.0
        %260 = vst [vmem:[#allocation2 + $0x88] sm:$0xff] 0.0
        %261 = vst [vmem:[#allocation2 + $0x90] sm:$0xff] 0.0
        %262 = vst [vmem:[#allocation2 + $0x98] sm:$0xff] 0.0
        %263 = vst [vmem:[#allocation2 + $0xa0] sm:$0xff] 0.0
        %264 = vst [vmem:[#allocation2 + $0xa8] sm:$0xff] 0.0
        %265 = vst [vmem:[#allocation2 + $0xb0] sm:$0xff] 0.0
        %266 = vst [vmem:[#allocation2 + $0xb8] sm:$0xff] 0.0
        %267 = vst [vmem:[#allocation2 + $0xc0] sm:$0xff] 0.0
        %268 = vst [vmem:[#allocation2 + $0xc8] sm:$0xff] 0.0
        %269 = vst [vmem:[#allocation2 + $0xd0] sm:$0xff] 0.0
        %270 = vst [vmem:[#allocation2 + $0xd8] sm:$0xff] 0.0
        %271 = vst [vmem:[#allocation2 + $0xe0] sm:$0xff] 0.0
        %272 = vst [vmem:[#allocation2 + $0xe8] sm:$0xff] 0.0
        %273 = vst [vmem:[#allocation2 + $0xf0] sm:$0xff] 0.0
        %274 = vst [vmem:[#allocation2 + $0xf8] sm:$0xff] 0.0
        %275 = vst [vmem:[#allocation2 + $0x100] sm:$0xff] 0.0
        %276 = vst [vmem:[#allocation2 + $0x108] sm:$0xff] 0.0
        %277 = vst [vmem:[#allocation2 + $0x110] sm:$0xff] 0.0
        %278 = vst [vmem:[#allocation2 + $0x118] sm:$0xff] 0.0
        %279 = vst [vmem:[#allocation2 + $0x120] sm:$0xff] 0.0
        %280 = vst [vmem:[#allocation2 + $0x128] sm:$0xff] 0.0
        %281 = vst [vmem:[#allocation2 + $0x130] sm:$0xff] 0.0
        %282 = vst [vmem:[#allocation2 + $0x138] sm:$0xff] 0.0
        %283 = vst [vmem:[#allocation2 + $0x140] sm:$0xff] 0.0
        %284 = vst [vmem:[#allocation2 + $0x148] sm:$0xff] 0.0
        %285 = vst [vmem:[#allocation2 + $0x150] sm:$0xff] 0.0
        %286 = vst [vmem:[#allocation2 + $0x158] sm:$0xff] 0.0
        %287 = vst [vmem:[#allocation2 + $0x160] sm:$0xff] 0.0
        %288 = vst [vmem:[#allocation2 + $0x168] sm:$0xff] 0.0
        %289 = vst [vmem:[#allocation2 + $0x170] sm:$0xff] 0.0
        %290 = vst [vmem:[#allocation2 + $0x178] sm:$0xff] 0.0
        %291 = vst [vmem:[#allocation2 + $0x180] sm:$0xff] 0.0
        %292 = vst [vmem:[#allocation2 + $0x188] sm:$0xff] 0.0
        %293 = vst [vmem:[#allocation2 + $0x190] sm:$0xff] 0.0
        %294 = vst [vmem:[#allocation2 + $0x198] sm:$0xff] 0.0
        %295 = vst [vmem:[#allocation2 + $0x1a0] sm:$0xff] 0.0
        %296 = vst [vmem:[#allocation2 + $0x1a8] sm:$0xff] 0.0
        %297 = vst [vmem:[#allocation2 + $0x1b0] sm:$0xff] 0.0
        %298 = vst [vmem:[#allocation2 + $0x1b8] sm:$0xff] 0.0
        %299 = vst [vmem:[#allocation2 + $0x1c0] sm:$0xff] 0.0
        %300 = vst [vmem:[#allocation2 + $0x1c8] sm:$0xff] 0.0
        %301 = vst [vmem:[#allocation2 + $0x1d0] sm:$0xff] 0.0
        %302 = vst [vmem:[#allocation2 + $0x1d8] sm:$0xff] 0.0
        %303 = vst [vmem:[#allocation2 + $0x1e0] sm:$0xff] 0.0
        %304 = vst [vmem:[#allocation2 + $0x1e8] sm:$0xff] 0.0
        %305 = vst [vmem:[#allocation2 + $0x1f0] sm:$0xff] 0.0
        %306 = vst [vmem:[#allocation2 + $0x1f8] sm:$0xff] 0.0
      $region32: #{encoder_overall_forward.19} parent=27 // pred_fallthru
        _
      %v307 = vld [vmem:[#allocation2] sm:$0xff]
      %v308 = vld [vmem:[#allocation2 + $0x8] sm:$0xff]
      %v309 = vld [vmem:[#allocation2 + $0x10] sm:$0xff]
      %v310 = vld [vmem:[#allocation2 + $0x18] sm:$0xff]
      %v311 = vld [vmem:[#allocation2 + $0x20] sm:$0xff]
      %v312 = vld [vmem:[#allocation2 + $0x28] sm:$0xff]
      %v313 = vld [vmem:[#allocation2 + $0x30] sm:$0xff]
      %v314 = vld [vmem:[#allocation2 + $0x38] sm:$0xff]
      %v315 = vld [vmem:[#allocation2 + $0x40] sm:$0xff]
      %v316 = vld [vmem:[#allocation2 + $0x48] sm:$0xff]
      %v317 = vld [vmem:[#allocation2 + $0x50] sm:$0xff]
      %v318 = vld [vmem:[#allocation2 + $0x58] sm:$0xff]
      %v319 = vld [vmem:[#allocation2 + $0x60] sm:$0xff]
      %v320 = vld [vmem:[#allocation2 + $0x68] sm:$0xff]
      %v321 = vld [vmem:[#allocation2 + $0x70] sm:$0xff]
      %v322 = vld [vmem:[#allocation2 + $0x78] sm:$0xff]
      %v323 = vld [vmem:[#allocation2 + $0x80] sm:$0xff]
      %v324 = vld [vmem:[#allocation2 + $0x88] sm:$0xff]
      %v325 = vld [vmem:[#allocation2 + $0x90] sm:$0xff]
      %v326 = vld [vmem:[#allocation2 + $0x98] sm:$0xff]
      %v327 = vld [vmem:[#allocation2 + $0xa0] sm:$0xff]
      %v328 = vld [vmem:[#allocation2 + $0xa8] sm:$0xff]
      %v329 = vld [vmem:[#allocation2 + $0xb0] sm:$0xff]
      %v330 = vld [vmem:[#allocation2 + $0xb8] sm:$0xff]
      %v331 = vld [vmem:[#allocation2 + $0xc0] sm:$0xff]
      %v332 = vld [vmem:[#allocation2 + $0xc8] sm:$0xff]
      %v333 = vld [vmem:[#allocation2 + $0xd0] sm:$0xff]
      %v334 = vld [vmem:[#allocation2 + $0xd8] sm:$0xff]
      %v335 = vld [vmem:[#allocation2 + $0xe0] sm:$0xff]
      %v336 = vld [vmem:[#allocation2 + $0xe8] sm:$0xff]
      %v337 = vld [vmem:[#allocation2 + $0xf0] sm:$0xff]
      %v338 = vld [vmem:[#allocation2 + $0xf8] sm:$0xff]
      %v339 = vld [vmem:[#allocation2 + $0x100] sm:$0xff]
      %v340 = vld [vmem:[#allocation2 + $0x108] sm:$0xff]
      %v341 = vld [vmem:[#allocation2 + $0x110] sm:$0xff]
      %v342 = vld [vmem:[#allocation2 + $0x118] sm:$0xff]
      %v343 = vld [vmem:[#allocation2 + $0x120] sm:$0xff]
      %v344 = vld [vmem:[#allocation2 + $0x128] sm:$0xff]
      %v345 = vld [vmem:[#allocation2 + $0x130] sm:$0xff]
      %v346 = vld [vmem:[#allocation2 + $0x138] sm:$0xff]
      %v347 = vld [vmem:[#allocation2 + $0x140] sm:$0xff]
      %v348 = vld [vmem:[#allocation2 + $0x148] sm:$0xff]
      %v349 = vld [vmem:[#allocation2 + $0x150] sm:$0xff]
      %v350 = vld [vmem:[#allocation2 + $0x158] sm:$0xff]
      %v351 = vld [vmem:[#allocation2 + $0x160] sm:$0xff]
      %v352 = vld [vmem:[#allocation2 + $0x168] sm:$0xff]
      %v353 = vld [vmem:[#allocation2 + $0x170] sm:$0xff]
      %v354 = vld [vmem:[#allocation2 + $0x178] sm:$0xff]
      %v355 = vld [vmem:[#allocation2 + $0x180] sm:$0xff]
      %v356 = vld [vmem:[#allocation2 + $0x188] sm:$0xff]
      %v357 = vld [vmem:[#allocation2 + $0x190] sm:$0xff]
      %v358 = vld [vmem:[#allocation2 + $0x198] sm:$0xff]
      %v359 = vld [vmem:[#allocation2 + $0x1a0] sm:$0xff]
      %v360 = vld [vmem:[#allocation2 + $0x1a8] sm:$0xff]
      %v361 = vld [vmem:[#allocation2 + $0x1b0] sm:$0xff]
      %v362 = vld [vmem:[#allocation2 + $0x1b8] sm:$0xff]
      %v363 = vld [vmem:[#allocation2 + $0x1c0] sm:$0xff]
      %v364 = vld [vmem:[#allocation2 + $0x1c8] sm:$0xff]
      %v365 = vld [vmem:[#allocation2 + $0x1d0] sm:$0xff]
      %v366 = vld [vmem:[#allocation2 + $0x1d8] sm:$0xff]
      %v367 = vld [vmem:[#allocation2 + $0x1e0] sm:$0xff]
      %v368 = vld [vmem:[#allocation2 + $0x1e8] sm:$0xff]
      %v369 = vld [vmem:[#allocation2 + $0x1f0] sm:$0xff]
      %v370 = vld [vmem:[#allocation2 + $0x1f8] sm:$0xff]
      %v371 = vld [vmem:[%s212] sm:$0xff]
      %v372 = vld [vmem:[%s212 + $0x8] sm:$0xff]
      %v373 = vld [vmem:[%s212 + $0x10] sm:$0xff]
      %v374 = vld [vmem:[%s212 + $0x18] sm:$0xff]
      %v375 = vld [vmem:[%s212 + $0x20] sm:$0xff]
      %v376 = vld [vmem:[%s212 + $0x28] sm:$0xff]
      %v377 = vld [vmem:[%s212 + $0x30] sm:$0xff]
      %v378 = vld [vmem:[%s212 + $0x38] sm:$0xff]
      %v379 = vld [vmem:[%s212 + $0x40] sm:$0xff]
      %v380 = vld [vmem:[%s212 + $0x48] sm:$0xff]
      %v381 = vld [vmem:[%s212 + $0x50] sm:$0xff]
      %v382 = vld [vmem:[%s212 + $0x58] sm:$0xff]
      %v383 = vld [vmem:[%s212 + $0x60] sm:$0xff]
      %v384 = vld [vmem:[%s212 + $0x68] sm:$0xff]
      %v385 = vld [vmem:[%s212 + $0x70] sm:$0xff]
      %v386 = vld [vmem:[%s212 + $0x78] sm:$0xff]
      %v387 = vld [vmem:[%s212 + $0x80] sm:$0xff]
      %v388 = vld [vmem:[%s212 + $0x88] sm:$0xff]
      %v389 = vld [vmem:[%s212 + $0x90] sm:$0xff]
      %v390 = vld [vmem:[%s212 + $0x98] sm:$0xff]
      %v391 = vld [vmem:[%s212 + $0xa0] sm:$0xff]
      %v392 = vld [vmem:[%s212 + $0xa8] sm:$0xff]
      %v393 = vld [vmem:[%s212 + $0xb0] sm:$0xff]
      %v394 = vld [vmem:[%s212 + $0xb8] sm:$0xff]
      %v395 = vld [vmem:[%s212 + $0xc0] sm:$0xff]
      %v396 = vld [vmem:[%s212 + $0xc8] sm:$0xff]
      %v397 = vld [vmem:[%s212 + $0xd0] sm:$0xff]
      %v398 = vld [vmem:[%s212 + $0xd8] sm:$0xff]
      %v399 = vld [vmem:[%s212 + $0xe0] sm:$0xff]
      %v400 = vld [vmem:[%s212 + $0xe8] sm:$0xff]
      %v401 = vld [vmem:[%s212 + $0xf0] sm:$0xff]
      %v402 = vld [vmem:[%s212 + $0xf8] sm:$0xff]
      %v403 = vld [vmem:[%s212 + $0x100] sm:$0xff]
      %v404 = vld [vmem:[%s212 + $0x108] sm:$0xff]
      %v405 = vld [vmem:[%s212 + $0x110] sm:$0xff]
      %v406 = vld [vmem:[%s212 + $0x118] sm:$0xff]
      %v407 = vld [vmem:[%s212 + $0x120] sm:$0xff]
      %v408 = vld [vmem:[%s212 + $0x128] sm:$0xff]
      %v409 = vld [vmem:[%s212 + $0x130] sm:$0xff]
      %v410 = vld [vmem:[%s212 + $0x138] sm:$0xff]
      %v411 = vld [vmem:[%s212 + $0x140] sm:$0xff]
      %v412 = vld [vmem:[%s212 + $0x148] sm:$0xff]
      %v413 = vld [vmem:[%s212 + $0x150] sm:$0xff]
      %v414 = vld [vmem:[%s212 + $0x158] sm:$0xff]
      %v415 = vld [vmem:[%s212 + $0x160] sm:$0xff]
      %v416 = vld [vmem:[%s212 + $0x168] sm:$0xff]
      %v417 = vld [vmem:[%s212 + $0x170] sm:$0xff]
      %v418 = vld [vmem:[%s212 + $0x178] sm:$0xff]
      %v419 = vld [vmem:[%s212 + $0x180] sm:$0xff]
      %v420 = vld [vmem:[%s212 + $0x188] sm:$0xff]
      %v421 = vld [vmem:[%s212 + $0x190] sm:$0xff]
      %v422 = vld [vmem:[%s212 + $0x198] sm:$0xff]
      %v423 = vld [vmem:[%s212 + $0x1a0] sm:$0xff]
      %v424 = vld [vmem:[%s212 + $0x1a8] sm:$0xff]
      %v425 = vld [vmem:[%s212 + $0x1b0] sm:$0xff]
      %v426 = vld [vmem:[%s212 + $0x1b8] sm:$0xff]
      %v427 = vld [vmem:[%s212 + $0x1c0] sm:$0xff]
      %v428 = vld [vmem:[%s212 + $0x1c8] sm:$0xff]
      %v429 = vld [vmem:[%s212 + $0x1d0] sm:$0xff]
      %v430 = vld [vmem:[%s212 + $0x1d8] sm:$0xff]
      %v431 = vld [vmem:[%s212 + $0x1e0] sm:$0xff]
      %v432 = vld [vmem:[%s212 + $0x1e8] sm:$0xff]
      %v433 = vld [vmem:[%s212 + $0x1f0] sm:$0xff]
      %v434 = vld [vmem:[%s212 + $0x1f8] sm:$0xff]
      %v435 = vld [vmem:[%s224] sm:$0xff]
      %v436 = vld [vmem:[%s224 + $0x8] sm:$0xff]
      %v437 = vld [vmem:[%s224 + $0x10] sm:$0xff]
      %v438 = vld [vmem:[%s224 + $0x18] sm:$0xff]
      %v439 = vld [vmem:[%s224 + $0x20] sm:$0xff]
      %v440 = vld [vmem:[%s224 + $0x28] sm:$0xff]
      %v441 = vld [vmem:[%s224 + $0x30] sm:$0xff]
      %v442 = vld [vmem:[%s224 + $0x38] sm:$0xff]
      %v443 = vld [vmem:[%s224 + $0x40] sm:$0xff]
      %v444 = vld [vmem:[%s224 + $0x48] sm:$0xff]
      %v445 = vld [vmem:[%s224 + $0x50] sm:$0xff]
      %v446 = vld [vmem:[%s224 + $0x58] sm:$0xff]
      %v447 = vld [vmem:[%s224 + $0x60] sm:$0xff]
      %v448 = vld [vmem:[%s224 + $0x68] sm:$0xff]
      %v449 = vld [vmem:[%s224 + $0x70] sm:$0xff]
      %v450 = vld [vmem:[%s224 + $0x78] sm:$0xff]
      %v451 = vld [vmem:[%s224 + $0x80] sm:$0xff]
      %v452 = vld [vmem:[%s224 + $0x88] sm:$0xff]
      %v453 = vld [vmem:[%s224 + $0x90] sm:$0xff]
      %v454 = vld [vmem:[%s224 + $0x98] sm:$0xff]
      %v455 = vld [vmem:[%s224 + $0xa0] sm:$0xff]
      %v456 = vld [vmem:[%s224 + $0xa8] sm:$0xff]
      %v457 = vld [vmem:[%s224 + $0xb0] sm:$0xff]
      %v458 = vld [vmem:[%s224 + $0xb8] sm:$0xff]
      %v459 = vld [vmem:[%s224 + $0xc0] sm:$0xff]
      %v460 = vld [vmem:[%s224 + $0xc8] sm:$0xff]
      %v461 = vld [vmem:[%s224 + $0xd0] sm:$0xff]
      %v462 = vld [vmem:[%s224 + $0xd8] sm:$0xff]
      %v463 = vld [vmem:[%s224 + $0xe0] sm:$0xff]
      %v464 = vld [vmem:[%s224 + $0xe8] sm:$0xff]
      %v465 = vld [vmem:[%s224 + $0xf0] sm:$0xff]
      %v466 = vld [vmem:[%s224 + $0xf8] sm:$0xff]
      %v467 = vld [vmem:[%s224 + $0x100] sm:$0xff]
      %v468 = vld [vmem:[%s224 + $0x108] sm:$0xff]
      %v469 = vld [vmem:[%s224 + $0x110] sm:$0xff]
      %v470 = vld [vmem:[%s224 + $0x118] sm:$0xff]
      %v471 = vld [vmem:[%s224 + $0x120] sm:$0xff]
      %v472 = vld [vmem:[%s224 + $0x128] sm:$0xff]
      %v473 = vld [vmem:[%s224 + $0x130] sm:$0xff]
      %v474 = vld [vmem:[%s224 + $0x138] sm:$0xff]
      %v475 = vld [vmem:[%s224 + $0x140] sm:$0xff]
      %v476 = vld [vmem:[%s224 + $0x148] sm:$0xff]
      %v477 = vld [vmem:[%s224 + $0x150] sm:$0xff]
      %v478 = vld [vmem:[%s224 + $0x158] sm:$0xff]
      %v479 = vld [vmem:[%s224 + $0x160] sm:$0xff]
      %v480 = vld [vmem:[%s224 + $0x168] sm:$0xff]
      %v481 = vld [vmem:[%s224 + $0x170] sm:$0xff]
      %v482 = vld [vmem:[%s224 + $0x178] sm:$0xff]
      %v483 = vld [vmem:[%s224 + $0x180] sm:$0xff]
      %v484 = vld [vmem:[%s224 + $0x188] sm:$0xff]
      %v485 = vld [vmem:[%s224 + $0x190] sm:$0xff]
      %v486 = vld [vmem:[%s224 + $0x198] sm:$0xff]
      %v487 = vld [vmem:[%s224 + $0x1a0] sm:$0xff]
      %v488 = vld [vmem:[%s224 + $0x1a8] sm:$0xff]
      %v489 = vld [vmem:[%s224 + $0x1b0] sm:$0xff]
      %v490 = vld [vmem:[%s224 + $0x1b8] sm:$0xff]
      %v491 = vld [vmem:[%s224 + $0x1c0] sm:$0xff]
      %v492 = vld [vmem:[%s224 + $0x1c8] sm:$0xff]
      %v493 = vld [vmem:[%s224 + $0x1d0] sm:$0xff]
      %v494 = vld [vmem:[%s224 + $0x1d8] sm:$0xff]
      %v495 = vld [vmem:[%s224 + $0x1e0] sm:$0xff]
      %v496 = vld [vmem:[%s224 + $0x1e8] sm:$0xff]
      %v497 = vld [vmem:[%s224 + $0x1f0] sm:$0xff]
      %v498 = vld [vmem:[%s224 + $0x1f8] sm:$0xff]
      %499 = vmatprep.subr.mxu0 %v436
      %500 = vmatpush1.msra.mxu0 %v435
      %501 = vmatprep.subr.mxu0 %v438
      %502 = vmatpush1.msra.mxu0 %v437
      %503 = vmatprep.subr.mxu0 %v440
      %504 = vmatpush1.msra.mxu0 %v439
      %505 = vmatprep.subr.mxu0 %v442
      %506 = vmatpush1.msra.mxu0 %v441
      %507 = vmatprep.subr.mxu0 %v444
      %508 = vmatpush1.msra.mxu0 %v443
      %509 = vmatprep.subr.mxu0 %v446
      %510 = vmatpush1.msra.mxu0 %v445
      %511 = vmatprep.subr.mxu0 %v448
      %512 = vmatpush1.msra.mxu0 %v447
      %513 = vmatprep.subr.mxu0 %v450
      %514 = vmatpush1.msra.mxu0 %v449
      %515 = vmatprep.subr.mxu0 %v452
      %516 = vmatpush1.msra.mxu0 %v451
      %517 = vmatprep.subr.mxu0 %v454
      %518 = vmatpush1.msra.mxu0 %v453
      %519 = vmatprep.subr.mxu0 %v456
      %520 = vmatpush1.msra.mxu0 %v455
      %521 = vmatprep.subr.mxu0 %v458
      %522 = vmatpush1.msra.mxu0 %v457
      %523 = vmatprep.subr.mxu0 %v460
      %524 = vmatpush1.msra.mxu0 %v459
      %525 = vmatprep.subr.mxu0 %v462
      %526 = vmatpush1.msra.mxu0 %v461
      %527 = vmatprep.subr.mxu0 %v464
      %528 = vmatpush1.msra.mxu0 %v463
      %529 = vmatprep.subr.mxu0 %v466
      %530 = vmatpush1.msra.mxu0 %v465
      %531 = vmatprep.subr.mxu0 %v468
      %532 = vmatpush1.msra.mxu0 %v467
      %533 = vmatprep.subr.mxu0 %v470
      %534 = vmatpush1.msra.mxu0 %v469
      %535 = vmatprep.subr.mxu0 %v472
      %536 = vmatpush1.msra.mxu0 %v471
      %537 = vmatprep.subr.mxu0 %v474
      %538 = vmatpush1.msra.mxu0 %v473
      %539 = vmatprep.subr.mxu0 %v476
      %540 = vmatpush1.msra.mxu0 %v475
      %541 = vmatprep.subr.mxu0 %v478
      %542 = vmatpush1.msra.mxu0 %v477
      %543 = vmatprep.subr.mxu0 %v480
      %544 = vmatpush1.msra.mxu0 %v479
      %545 = vmatprep.subr.mxu0 %v482
      %546 = vmatpush1.msra.mxu0 %v481
      %547 = vmatprep.subr.mxu0 %v484
      %548 = vmatpush1.msra.mxu0 %v483
      %549 = vmatprep.subr.mxu0 %v486
      %550 = vmatpush1.msra.mxu0 %v485
      %551 = vmatprep.subr.mxu0 %v488
      %552 = vmatpush1.msra.mxu0 %v487
      %553 = vmatprep.subr.mxu0 %v490
      %554 = vmatpush1.msra.mxu0 %v489
      %555 = vmatprep.subr.mxu0 %v492
      %556 = vmatpush1.msra.mxu0 %v491
      %557 = vmatprep.subr.mxu0 %v494
      %558 = vmatpush1.msra.mxu0 %v493
      %559 = vmatprep.subr.mxu0 %v496
      %560 = vmatpush1.msra.mxu0 %v495
      %561 = vmatprep.subr.mxu0 %v498
      %562 = vmatpush1.msra.mxu0 %v497
      %563 = vmatprep.mubr.f32.mxu0 %v372
      %564 = vmatmul.mubr.f32.gmra.mrb[0].mxu0 %v371
      %v565 = vpop.f32.mrb[0].mxu0
      %v566 = vadd.f32 0.0, %v565
      %v567 = vpop.f32.mrb[0].mxu0
      %v568 = vadd.f32 0.0, %v567
      %569 = vmatprep.mubr.f32.mxu0 %v374
      %570 = vmatmul.mubr.f32.gmra.mrb[0].mxu0 %v373
      %v571 = vpop.f32.mrb[0].mxu0
      %v572 = vadd.f32 0.0, %v571
      %v573 = vpop.f32.mrb[0].mxu0
      %v574 = vadd.f32 0.0, %v573
      %575 = vmatprep.mubr.f32.mxu0 %v376
      %576 = vmatmul.mubr.f32.gmra.mrb[0].mxu0 %v375
      %v577 = vpop.f32.mrb[0].mxu0
      %v578 = vadd.f32 0.0, %v577
      %v579 = vpop.f32.mrb[0].mxu0
      %v580 = vadd.f32 0.0, %v579
      %581 = vmatprep.mubr.f32.mxu0 %v378
      %582 = vmatmul.mubr.f32.gmra.mrb[0].mxu0 %v377
      %v583 = vpop.f32.mrb[0].mxu0
      %v584 = vadd.f32 0.0, %v583
      %v585 = vpop.f32.mrb[0].mxu0
      %v586 = vadd.f32 0.0, %v585
      %587 = vmatprep.mubr.f32.mxu0 %v380
      %588 = vmatmul.mubr.f32.gmra.mrb[0].mxu0 %v379
      %v589 = vpop.f32.mrb[0].mxu0
      %v590 = vadd.f32 0.0, %v589
      %v591 = vpop.f32.mrb[0].mxu0
      %v592 = vadd.f32 0.0, %v591
      %593 = vmatprep.mubr.f32.mxu0 %v382
      %594 = vmatmul.mubr.f32.gmra.mrb[0].mxu0 %v381
      %v595 = vpop.f32.mrb[0].mxu0
      %v596 = vadd.f32 0.0, %v595
      %v597 = vpop.f32.mrb[0].mxu0
      %v598 = vadd.f32 0.0, %v597
      %599 = vmatprep.mubr.f32.mxu0 %v384
      %600 = vmatmul.mubr.f32.gmra.mrb[0].mxu0 %v383
      %v601 = vpop.f32.mrb[0].mxu0
      %v602 = vadd.f32 0.0, %v601
      %v603 = vpop.f32.mrb[0].mxu0
      %v604 = vadd.f32 0.0, %v603
      %605 = vmatprep.mubr.f32.mxu0 %v386
      %606 = vmatmul.mubr.f32.gmra.mrb[0].mxu0 %v385
      %v607 = vpop.f32.mrb[0].mxu0
      %v608 = vadd.f32 0.0, %v607
      %v609 = vpop.f32.mrb[0].mxu0
      %v610 = vadd.f32 0.0, %v609
      %611 = vmatprep.mubr.f32.mxu0 %v388
      %612 = vmatmul.mubr.f32.gmra.mrb[0].mxu0 %v387
      %v613 = vpop.f32.mrb[0].mxu0
      %v614 = vadd.f32 0.0, %v613
      %v615 = vpop.f32.mrb[0].mxu0
      %v616 = vadd.f32 0.0, %v615
      %617 = vmatprep.mubr.f32.mxu0 %v390
      %618 = vmatmul.mubr.f32.gmra.mrb[0].mxu0 %v389
      %v619 = vpop.f32.mrb[0].mxu0
      %v620 = vadd.f32 0.0, %v619
      %v621 = vpop.f32.mrb[0].mxu0
      %v622 = vadd.f32 0.0, %v621
      %623 = vmatprep.mubr.f32.mxu0 %v392
      %624 = vmatmul.mubr.f32.gmra.mrb[0].mxu0 %v391
      %v625 = vpop.f32.mrb[0].mxu0
      %v626 = vadd.f32 0.0, %v625
      %v627 = vpop.f32.mrb[0].mxu0
      %v628 = vadd.f32 0.0, %v627
      %629 = vmatprep.mubr.f32.mxu0 %v394
      %630 = vmatmul.mubr.f32.gmra.mrb[0].mxu0 %v393
      %v631 = vpop.f32.mrb[0].mxu0
      %v632 = vadd.f32 0.0, %v631
      %v633 = vpop.f32.mrb[0].mxu0
      %v634 = vadd.f32 0.0, %v633
      %635 = vmatprep.mubr.f32.mxu0 %v396
      %636 = vmatmul.mubr.f32.gmra.mrb[0].mxu0 %v395
      %v637 = vpop.f32.mrb[0].mxu0
      %v638 = vadd.f32 0.0, %v637
      %v639 = vpop.f32.mrb[0].mxu0
      %v640 = vadd.f32 0.0, %v639
      %641 = vmatprep.mubr.f32.mxu0 %v398
      %642 = vmatmul.mubr.f32.gmra.mrb[0].mxu0 %v397
      %v643 = vpop.f32.mrb[0].mxu0
      %v644 = vadd.f32 0.0, %v643
      %v645 = vpop.f32.mrb[0].mxu0
      %v646 = vadd.f32 0.0, %v645
      %647 = vmatprep.mubr.f32.mxu0 %v400
      %648 = vmatmul.mubr.f32.gmra.mrb[0].mxu0 %v399
      %v649 = vpop.f32.mrb[0].mxu0
      %v650 = vadd.f32 0.0, %v649
      %v651 = vpop.f32.mrb[0].mxu0
      %v652 = vadd.f32 0.0, %v651
      %653 = vmatprep.mubr.f32.mxu0 %v402
      %654 = vmatmul.mubr.f32.gmra.mrb[0].mxu0 %v401
      %v655 = vpop.f32.mrb[0].mxu0
      %v656 = vadd.f32 0.0, %v655
      %v657 = vpop.f32.mrb[0].mxu0
      %v658 = vadd.f32 0.0, %v657
      %659 = vmatprep.mubr.f32.mxu0 %v404
      %660 = vmatmul.mubr.f32.gmra.mrb[0].mxu0 %v403
      %v661 = vpop.f32.mrb[0].mxu0
      %v662 = vadd.f32 0.0, %v661
      %v663 = vpop.f32.mrb[0].mxu0
      %v664 = vadd.f32 0.0, %v663
      %665 = vmatprep.mubr.f32.mxu0 %v406
      %666 = vmatmul.mubr.f32.gmra.mrb[0].mxu0 %v405
      %v667 = vpop.f32.mrb[0].mxu0
      %v668 = vadd.f32 0.0, %v667
      %v669 = vpop.f32.mrb[0].mxu0
      %v670 = vadd.f32 0.0, %v669
      %671 = vmatprep.mubr.f32.mxu0 %v408
      %672 = vmatmul.mubr.f32.gmra.mrb[0].mxu0 %v407
      %v673 = vpop.f32.mrb[0].mxu0
      %v674 = vadd.f32 0.0, %v673
      %v675 = vpop.f32.mrb[0].mxu0
      %v676 = vadd.f32 0.0, %v675
      %677 = vmatprep.mubr.f32.mxu0 %v410
      %678 = vmatmul.mubr.f32.gmra.mrb[0].mxu0 %v409
      %v679 = vpop.f32.mrb[0].mxu0
      %v680 = vadd.f32 0.0, %v679
      %v681 = vpop.f32.mrb[0].mxu0
      %v682 = vadd.f32 0.0, %v681
      %683 = vmatprep.mubr.f32.mxu0 %v412
      %684 = vmatmul.mubr.f32.gmra.mrb[0].mxu0 %v411
      %v685 = vpop.f32.mrb[0].mxu0
      %v686 = vadd.f32 0.0, %v685
      %v687 = vpop.f32.mrb[0].mxu0
      %v688 = vadd.f32 0.0, %v687
      %689 = vmatprep.mubr.f32.mxu0 %v414
      %690 = vmatmul.mubr.f32.gmra.mrb[0].mxu0 %v413
      %v691 = vpop.f32.mrb[0].mxu0
      %v692 = vadd.f32 0.0, %v691
      %v693 = vpop.f32.mrb[0].mxu0
      %v694 = vadd.f32 0.0, %v693
      %695 = vmatprep.mubr.f32.mxu0 %v416
      %696 = vmatmul.mubr.f32.gmra.mrb[0].mxu0 %v415
      %v697 = vpop.f32.mrb[0].mxu0
      %v698 = vadd.f32 0.0, %v697
      %v699 = vpop.f32.mrb[0].mxu0
      %v700 = vadd.f32 0.0, %v699
      %701 = vmatprep.mubr.f32.mxu0 %v418
      %702 = vmatmul.mubr.f32.gmra.mrb[0].mxu0 %v417
      %v703 = vpop.f32.mrb[0].mxu0
      %v704 = vadd.f32 0.0, %v703
      %v705 = vpop.f32.mrb[0].mxu0
      %v706 = vadd.f32 0.0, %v705
      %707 = vmatprep.mubr.f32.mxu0 %v420
      %708 = vmatmul.mubr.f32.gmra.mrb[0].mxu0 %v419
      %v709 = vpop.f32.mrb[0].mxu0
      %v710 = vadd.f32 0.0, %v709
      %v711 = vpop.f32.mrb[0].mxu0
      %v712 = vadd.f32 0.0, %v711
      %713 = vmatprep.mubr.f32.mxu0 %v422
      %714 = vmatmul.mubr.f32.gmra.mrb[0].mxu0 %v421
      %v715 = vpop.f32.mrb[0].mxu0
      %v716 = vadd.f32 0.0, %v715
      %v717 = vpop.f32.mrb[0].mxu0
      %v718 = vadd.f32 0.0, %v717
      %719 = vmatprep.mubr.f32.mxu0 %v424
      %720 = vmatmul.mubr.f32.gmra.mrb[0].mxu0 %v423
      %v721 = vpop.f32.mrb[0].mxu0
      %v722 = vadd.f32 0.0, %v721
      %v723 = vpop.f32.mrb[0].mxu0
      %v724 = vadd.f32 0.0, %v723
      %725 = vmatprep.mubr.f32.mxu0 %v426
      %726 = vmatmul.mubr.f32.gmra.mrb[0].mxu0 %v425
      %v727 = vpop.f32.mrb[0].mxu0
      %v728 = vadd.f32 0.0, %v727
      %v729 = vpop.f32.mrb[0].mxu0
      %v730 = vadd.f32 0.0, %v729
      %731 = vmatprep.mubr.f32.mxu0 %v428
      %732 = vmatmul.mubr.f32.gmra.mrb[0].mxu0 %v427
      %v733 = vpop.f32.mrb[0].mxu0
      %v734 = vadd.f32 0.0, %v733
      %v735 = vpop.f32.mrb[0].mxu0
      %v736 = vadd.f32 0.0, %v735
      %737 = vmatprep.mubr.f32.mxu0 %v430
      %738 = vmatmul.mubr.f32.gmra.mrb[0].mxu0 %v429
      %v739 = vpop.f32.mrb[0].mxu0
      %v740 = vadd.f32 0.0, %v739
      %v741 = vpop.f32.mrb[0].mxu0
      %v742 = vadd.f32 0.0, %v741
      %743 = vmatprep.mubr.f32.mxu0 %v432
      %744 = vmatmul.mubr.f32.gmra.mrb[0].mxu0 %v431
      %v745 = vpop.f32.mrb[0].mxu0
      %v746 = vadd.f32 0.0, %v745
      %v747 = vpop.f32.mrb[0].mxu0
      %v748 = vadd.f32 0.0, %v747
      %749 = vmatprep.mubr.f32.mxu0 %v434
      %750 = vmatmul.mubr.f32.gmra.mrb[0].mxu0 %v433
      %v751 = vpop.f32.mrb[0].mxu0
      %v752 = vadd.f32 0.0, %v751
      %v753 = vpop.f32.mrb[0].mxu0
      %v754 = vadd.f32 0.0, %v753
      %755 = vdwg.mxu0
      %v756 = vadd.f32 %v307, %v566
      %v757 = vadd.f32 %v308, %v568
      %v758 = vadd.f32 %v309, %v572
      %v759 = vadd.f32 %v310, %v574
      %v760 = vadd.f32 %v311, %v578
      %v761 = vadd.f32 %v312, %v580
      %v762 = vadd.f32 %v313, %v584
      %v763 = vadd.f32 %v314, %v586
      %v764 = vadd.f32 %v315, %v590
      %v765 = vadd.f32 %v316, %v592
      %v766 = vadd.f32 %v317, %v596
      %v767 = vadd.f32 %v318, %v598
      %v768 = vadd.f32 %v319, %v602
      %v769 = vadd.f32 %v320, %v604
      %v770 = vadd.f32 %v321, %v608
      %v771 = vadd.f32 %v322, %v610
      %v772 = vadd.f32 %v323, %v614
      %v773 = vadd.f32 %v324, %v616
      %v774 = vadd.f32 %v325, %v620
      %v775 = vadd.f32 %v326, %v622
      %v776 = vadd.f32 %v327, %v626
      %v777 = vadd.f32 %v328, %v628
      %v778 = vadd.f32 %v329, %v632
      %v779 = vadd.f32 %v330, %v634
      %v780 = vadd.f32 %v331, %v638
      %v781 = vadd.f32 %v332, %v640
      %v782 = vadd.f32 %v333, %v644
      %v783 = vadd.f32 %v334, %v646
      %v784 = vadd.f32 %v335, %v650
      %v785 = vadd.f32 %v336, %v652
      %v786 = vadd.f32 %v337, %v656
      %v787 = vadd.f32 %v338, %v658
      %v788 = vadd.f32 %v339, %v662
      %v789 = vadd.f32 %v340, %v664
      %v790 = vadd.f32 %v341, %v668
      %v791 = vadd.f32 %v342, %v670
      %v792 = vadd.f32 %v343, %v674
      %v793 = vadd.f32 %v344, %v676
      %v794 = vadd.f32 %v345, %v680
      %v795 = vadd.f32 %v346, %v682
      %v796 = vadd.f32 %v347, %v686
      %v797 = vadd.f32 %v348, %v688
      %v798 = vadd.f32 %v349, %v692
      %v799 = vadd.f32 %v350, %v694
      %v800 = vadd.f32 %v351, %v698
      %v801 = vadd.f32 %v352, %v700
      %v802 = vadd.f32 %v353, %v704
      %v803 = vadd.f32 %v354, %v706
      %v804 = vadd.f32 %v355, %v710
      %v805 = vadd.f32 %v356, %v712
      %v806 = vadd.f32 %v357, %v716
      %v807 = vadd.f32 %v358, %v718
      %v808 = vadd.f32 %v359, %v722
      %v809 = vadd.f32 %v360, %v724
      %v810 = vadd.f32 %v361, %v728
      %v811 = vadd.f32 %v362, %v730
      %v812 = vadd.f32 %v363, %v734
      %v813 = vadd.f32 %v364, %v736
      %v814 = vadd.f32 %v365, %v740
      %v815 = vadd.f32 %v366, %v742
      %v816 = vadd.f32 %v367, %v746
      %v817 = vadd.f32 %v368, %v748
      %v818 = vadd.f32 %v369, %v752
      %v819 = vadd.f32 %v370, %v754
      %820 = vst [vmem:[#allocation2] sm:$0xff] %v756
      %821 = vst [vmem:[#allocation2 + $0x8] sm:$0xff] %v757
      %822 = vst [vmem:[#allocation2 + $0x10] sm:$0xff] %v758
      %823 = vst [vmem:[#allocation2 + $0x18] sm:$0xff] %v759
      %824 = vst [vmem:[#allocation2 + $0x20] sm:$0xff] %v760
      %825 = vst [vmem:[#allocation2 + $0x28] sm:$0xff] %v761
      %826 = vst [vmem:[#allocation2 + $0x30] sm:$0xff] %v762
      %827 = vst [vmem:[#allocation2 + $0x38] sm:$0xff] %v763
      %828 = vst [vmem:[#allocation2 + $0x40] sm:$0xff] %v764
      %829 = vst [vmem:[#allocation2 + $0x48] sm:$0xff] %v765
      %830 = vst [vmem:[#allocation2 + $0x50] sm:$0xff] %v766
      %831 = vst [vmem:[#allocation2 + $0x58] sm:$0xff] %v767
      %832 = vst [vmem:[#allocation2 + $0x60] sm:$0xff] %v768
      %833 = vst [vmem:[#allocation2 + $0x68] sm:$0xff] %v769
      %834 = vst [vmem:[#allocation2 + $0x70] sm:$0xff] %v770
      %835 = vst [vmem:[#allocation2 + $0x78] sm:$0xff] %v771
      %836 = vst [vmem:[#allocation2 + $0x80] sm:$0xff] %v772
      %837 = vst [vmem:[#allocation2 + $0x88] sm:$0xff] %v773
      %838 = vst [vmem:[#allocation2 + $0x90] sm:$0xff] %v774
      %839 = vst [vmem:[#allocation2 + $0x98] sm:$0xff] %v775
      %840 = vst [vmem:[#allocation2 + $0xa0] sm:$0xff] %v776
      %841 = vst [vmem:[#allocation2 + $0xa8] sm:$0xff] %v777
      %842 = vst [vmem:[#allocation2 + $0xb0] sm:$0xff] %v778
      %843 = vst [vmem:[#allocation2 + $0xb8] sm:$0xff] %v779
      %844 = vst [vmem:[#allocation2 + $0xc0] sm:$0xff] %v780
      %845 = vst [vmem:[#allocation2 + $0xc8] sm:$0xff] %v781
      %846 = vst [vmem:[#allocation2 + $0xd0] sm:$0xff] %v782
      %847 = vst [vmem:[#allocation2 + $0xd8] sm:$0xff] %v783
      %848 = vst [vmem:[#allocation2 + $0xe0] sm:$0xff] %v784
      %849 = vst [vmem:[#allocation2 + $0xe8] sm:$0xff] %v785
      %850 = vst [vmem:[#allocation2 + $0xf0] sm:$0xff] %v786
      %851 = vst [vmem:[#allocation2 + $0xf8] sm:$0xff] %v787
      %852 = vst [vmem:[#allocation2 + $0x100] sm:$0xff] %v788
      %853 = vst [vmem:[#allocation2 + $0x108] sm:$0xff] %v789
      %854 = vst [vmem:[#allocation2 + $0x110] sm:$0xff] %v790
      %855 = vst [vmem:[#allocation2 + $0x118] sm:$0xff] %v791
      %856 = vst [vmem:[#allocation2 + $0x120] sm:$0xff] %v792
      %857 = vst [vmem:[#allocation2 + $0x128] sm:$0xff] %v793
      %858 = vst [vmem:[#allocation2 + $0x130] sm:$0xff] %v794
      %859 = vst [vmem:[#allocation2 + $0x138] sm:$0xff] %v795
      %860 = vst [vmem:[#allocation2 + $0x140] sm:$0xff] %v796
      %861 = vst [vmem:[#allocation2 + $0x148] sm:$0xff] %v797
      %862 = vst [vmem:[#allocation2 + $0x150] sm:$0xff] %v798
      %863 = vst [vmem:[#allocation2 + $0x158] sm:$0xff] %v799
      %864 = vst [vmem:[#allocation2 + $0x160] sm:$0xff] %v800
      %865 = vst [vmem:[#allocation2 + $0x168] sm:$0xff] %v801
      %866 = vst [vmem:[#allocation2 + $0x170] sm:$0xff] %v802
      %867 = vst [vmem:[#allocation2 + $0x178] sm:$0xff] %v803
      %868 = vst [vmem:[#allocation2 + $0x180] sm:$0xff] %v804
      %869 = vst [vmem:[#allocation2 + $0x188] sm:$0xff] %v805
      %870 = vst [vmem:[#allocation2 + $0x190] sm:$0xff] %v806
      %871 = vst [vmem:[#allocation2 + $0x198] sm:$0xff] %v807
      %872 = vst [vmem:[#allocation2 + $0x1a0] sm:$0xff] %v808
      %873 = vst [vmem:[#allocation2 + $0x1a8] sm:$0xff] %v809
      %874 = vst [vmem:[#allocation2 + $0x1b0] sm:$0xff] %v810
      %875 = vst [vmem:[#allocation2 + $0x1b8] sm:$0xff] %v811
      %876 = vst [vmem:[#allocation2 + $0x1c0] sm:$0xff] %v812
      %877 = vst [vmem:[#allocation2 + $0x1c8] sm:$0xff] %v813
      %878 = vst [vmem:[#allocation2 + $0x1d0] sm:$0xff] %v814
      %879 = vst [vmem:[#allocation2 + $0x1d8] sm:$0xff] %v815
      %880 = vst [vmem:[#allocation2 + $0x1e0] sm:$0xff] %v816
      %881 = vst [vmem:[#allocation2 + $0x1e8] sm:$0xff] %v817
      %882 = vst [vmem:[#allocation2 + $0x1f0] sm:$0xff] %v818
      %883 = vst [vmem:[#allocation2 + $0x1f8] sm:$0xff] %v819
      // Predicated region
      $region33: #{encoder_overall_forward.19} parent=27 // pred_check
        %p884 = pneg %p239
      $region34: #{encoder_overall_forward.19} parent=27 // pred_check_branch
        %886 = sbr.rel (%p884) target = $region36
      $region35: #{encoder_overall_forward.19} parent=27 // pred_region
        %v887 = vld [vmem:[#allocation2] sm:$0xff]
        %v888 = vld [vmem:[#allocation2 + $0x8] sm:$0xff]
        %v889 = vld [vmem:[#allocation2 + $0x10] sm:$0xff]
        %v890 = vld [vmem:[#allocation2 + $0x18] sm:$0xff]
        %v891 = vld [vmem:[#allocation2 + $0x20] sm:$0xff]
        %v892 = vld [vmem:[#allocation2 + $0x28] sm:$0xff]
        %v893 = vld [vmem:[#allocation2 + $0x30] sm:$0xff]
        %v894 = vld [vmem:[#allocation2 + $0x38] sm:$0xff]
        %v895 = vld [vmem:[#allocation2 + $0x40] sm:$0xff]
        %v896 = vld [vmem:[#allocation2 + $0x48] sm:$0xff]
        %v897 = vld [vmem:[#allocation2 + $0x50] sm:$0xff]
        %v898 = vld [vmem:[#allocation2 + $0x58] sm:$0xff]
        %v899 = vld [vmem:[#allocation2 + $0x60] sm:$0xff]
        %v900 = vld [vmem:[#allocation2 + $0x68] sm:$0xff]
        %v901 = vld [vmem:[#allocation2 + $0x70] sm:$0xff]
        %v902 = vld [vmem:[#allocation2 + $0x78] sm:$0xff]
        %v903 = vld [vmem:[#allocation2 + $0x80] sm:$0xff]
        %v904 = vld [vmem:[#allocation2 + $0x88] sm:$0xff]
        %v905 = vld [vmem:[#allocation2 + $0x90] sm:$0xff]
        %v906 = vld [vmem:[#allocation2 + $0x98] sm:$0xff]
        %v907 = vld [vmem:[#allocation2 + $0xa0] sm:$0xff]
        %v908 = vld [vmem:[#allocation2 + $0xa8] sm:$0xff]
        %v909 = vld [vmem:[#allocation2 + $0xb0] sm:$0xff]
        %v910 = vld [vmem:[#allocation2 + $0xb8] sm:$0xff]
        %v911 = vld [vmem:[#allocation2 + $0xc0] sm:$0xff]
        %v912 = vld [vmem:[#allocation2 + $0xc8] sm:$0xff]
        %v913 = vld [vmem:[#allocation2 + $0xd0] sm:$0xff]
        %v914 = vld [vmem:[#allocation2 + $0xd8] sm:$0xff]
        %v915 = vld [vmem:[#allocation2 + $0xe0] sm:$0xff]
        %v916 = vld [vmem:[#allocation2 + $0xe8] sm:$0xff]
        %v917 = vld [vmem:[#allocation2 + $0xf0] sm:$0xff]
        %v918 = vld [vmem:[#allocation2 + $0xf8] sm:$0xff]
        %v919 = vld [vmem:[#allocation2 + $0x100] sm:$0xff]
        %v920 = vld [vmem:[#allocation2 + $0x108] sm:$0xff]
        %v921 = vld [vmem:[#allocation2 + $0x110] sm:$0xff]
        %v922 = vld [vmem:[#allocation2 + $0x118] sm:$0xff]
        %v923 = vld [vmem:[#allocation2 + $0x120] sm:$0xff]
        %v924 = vld [vmem:[#allocation2 + $0x128] sm:$0xff]
        %v925 = vld [vmem:[#allocation2 + $0x130] sm:$0xff]
        %v926 = vld [vmem:[#allocation2 + $0x138] sm:$0xff]
        %v927 = vld [vmem:[#allocation2 + $0x140] sm:$0xff]
        %v928 = vld [vmem:[#allocation2 + $0x148] sm:$0xff]
        %v929 = vld [vmem:[#allocation2 + $0x150] sm:$0xff]
        %v930 = vld [vmem:[#allocation2 + $0x158] sm:$0xff]
        %v931 = vld [vmem:[#allocation2 + $0x160] sm:$0xff]
        %v932 = vld [vmem:[#allocation2 + $0x168] sm:$0xff]
        %v933 = vld [vmem:[#allocation2 + $0x170] sm:$0xff]
        %v934 = vld [vmem:[#allocation2 + $0x178] sm:$0xff]
        %v935 = vld [vmem:[#allocation2 + $0x180] sm:$0xff]
        %v936 = vld [vmem:[#allocation2 + $0x188] sm:$0xff]
        %v937 = vld [vmem:[#allocation2 + $0x190] sm:$0xff]
        %v938 = vld [vmem:[#allocation2 + $0x198] sm:$0xff]
        %v939 = vld [vmem:[#allocation2 + $0x1a0] sm:$0xff]
        %v940 = vld [vmem:[#allocation2 + $0x1a8] sm:$0xff]
        %v941 = vld [vmem:[#allocation2 + $0x1b0] sm:$0xff]
        %v942 = vld [vmem:[#allocation2 + $0x1b8] sm:$0xff]
        %v943 = vld [vmem:[#allocation2 + $0x1c0] sm:$0xff]
        %v944 = vld [vmem:[#allocation2 + $0x1c8] sm:$0xff]
        %v945 = vld [vmem:[#allocation2 + $0x1d0] sm:$0xff]
        %v946 = vld [vmem:[#allocation2 + $0x1d8] sm:$0xff]
        %v947 = vld [vmem:[#allocation2 + $0x1e0] sm:$0xff]
        %v948 = vld [vmem:[#allocation2 + $0x1e8] sm:$0xff]
        %v949 = vld [vmem:[#allocation2 + $0x1f0] sm:$0xff]
        %v950 = vld [vmem:[#allocation2 + $0x1f8] sm:$0xff]
        %951 = vst [vmem:[%s236] sm:$0xff] %v887
        %952 = vst [vmem:[%s236 + $0x8] sm:$0xff] %v888
        %953 = vst [vmem:[%s236 + $0x10] sm:$0xff] %v889
        %954 = vst [vmem:[%s236 + $0x18] sm:$0xff] %v890
        %955 = vst [vmem:[%s236 + $0x20] sm:$0xff] %v891
        %956 = vst [vmem:[%s236 + $0x28] sm:$0xff] %v892
        %957 = vst [vmem:[%s236 + $0x30] sm:$0xff] %v893
        %958 = vst [vmem:[%s236 + $0x38] sm:$0xff] %v894
        %959 = vst [vmem:[%s236 + $0x40] sm:$0xff] %v895
        %960 = vst [vmem:[%s236 + $0x48] sm:$0xff] %v896
        %961 = vst [vmem:[%s236 + $0x50] sm:$0xff] %v897
        %962 = vst [vmem:[%s236 + $0x58] sm:$0xff] %v898
        %963 = vst [vmem:[%s236 + $0x60] sm:$0xff] %v899
        %964 = vst [vmem:[%s236 + $0x68] sm:$0xff] %v900
        %965 = vst [vmem:[%s236 + $0x70] sm:$0xff] %v901
        %966 = vst [vmem:[%s236 + $0x78] sm:$0xff] %v902
        %967 = vst [vmem:[%s236 + $0x80] sm:$0xff] %v903
        %968 = vst [vmem:[%s236 + $0x88] sm:$0xff] %v904
        %969 = vst [vmem:[%s236 + $0x90] sm:$0xff] %v905
        %970 = vst [vmem:[%s236 + $0x98] sm:$0xff] %v906
        %971 = vst [vmem:[%s236 + $0xa0] sm:$0xff] %v907
        %972 = vst [vmem:[%s236 + $0xa8] sm:$0xff] %v908
        %973 = vst [vmem:[%s236 + $0xb0] sm:$0xff] %v909
        %974 = vst [vmem:[%s236 + $0xb8] sm:$0xff] %v910
        %975 = vst [vmem:[%s236 + $0xc0] sm:$0xff] %v911
        %976 = vst [vmem:[%s236 + $0xc8] sm:$0xff] %v912
        %977 = vst [vmem:[%s236 + $0xd0] sm:$0xff] %v913
        %978 = vst [vmem:[%s236 + $0xd8] sm:$0xff] %v914
        %979 = vst [vmem:[%s236 + $0xe0] sm:$0xff] %v915
        %980 = vst [vmem:[%s236 + $0xe8] sm:$0xff] %v916
        %981 = vst [vmem:[%s236 + $0xf0] sm:$0xff] %v917
        %982 = vst [vmem:[%s236 + $0xf8] sm:$0xff] %v918
        %983 = vst [vmem:[%s236 + $0x100] sm:$0xff] %v919
        %984 = vst [vmem:[%s236 + $0x108] sm:$0xff] %v920
        %985 = vst [vmem:[%s236 + $0x110] sm:$0xff] %v921
        %986 = vst [vmem:[%s236 + $0x118] sm:$0xff] %v922
        %987 = vst [vmem:[%s236 + $0x120] sm:$0xff] %v923
        %988 = vst [vmem:[%s236 + $0x128] sm:$0xff] %v924
        %989 = vst [vmem:[%s236 + $0x130] sm:$0xff] %v925
        %990 = vst [vmem:[%s236 + $0x138] sm:$0xff] %v926
        %991 = vst [vmem:[%s236 + $0x140] sm:$0xff] %v927
        %992 = vst [vmem:[%s236 + $0x148] sm:$0xff] %v928
        %993 = vst [vmem:[%s236 + $0x150] sm:$0xff] %v929
        %994 = vst [vmem:[%s236 + $0x158] sm:$0xff] %v930
        %995 = vst [vmem:[%s236 + $0x160] sm:$0xff] %v931
        %996 = vst [vmem:[%s236 + $0x168] sm:$0xff] %v932
        %997 = vst [vmem:[%s236 + $0x170] sm:$0xff] %v933
        %998 = vst [vmem:[%s236 + $0x178] sm:$0xff] %v934
        %999 = vst [vmem:[%s236 + $0x180] sm:$0xff] %v935
        %1000 = vst [vmem:[%s236 + $0x188] sm:$0xff] %v936
        %1001 = vst [vmem:[%s236 + $0x190] sm:$0xff] %v937
        %1002 = vst [vmem:[%s236 + $0x198] sm:$0xff] %v938
        %1003 = vst [vmem:[%s236 + $0x1a0] sm:$0xff] %v939
        %1004 = vst [vmem:[%s236 + $0x1a8] sm:$0xff] %v940
        %1005 = vst [vmem:[%s236 + $0x1b0] sm:$0xff] %v941
        %1006 = vst [vmem:[%s236 + $0x1b8] sm:$0xff] %v942
        %1007 = vst [vmem:[%s236 + $0x1c0] sm:$0xff] %v943
        %1008 = vst [vmem:[%s236 + $0x1c8] sm:$0xff] %v944
        %1009 = vst [vmem:[%s236 + $0x1d0] sm:$0xff] %v945
        %1010 = vst [vmem:[%s236 + $0x1d8] sm:$0xff] %v946
        %1011 = vst [vmem:[%s236 + $0x1e0] sm:$0xff] %v947
        %1012 = vst [vmem:[%s236 + $0x1e8] sm:$0xff] %v948
        %1013 = vst [vmem:[%s236 + $0x1f0] sm:$0xff] %v949
        %1014 = vst [vmem:[%s236 + $0x1f8] sm:$0xff] %v950
      $region36: #{encoder_overall_forward.19} parent=27 // pred_fallthru
        _
      %s1015 = smul.u32 32, %s18
      %s1016 = smul.u32 2, %s19
      %p1017 = scmp.lt.s32.totalorder %s1015, 63
      %s1018 = scalar_select %p1017, %s1015, 63
      %p1019 = scmp.lt.s32.totalorder %s1016, 1
      %s1020 = scalar_select %p1019, %s1016, 1
      %s1021 = smul.addr %s1018, 2
      %s1022 = sadd.s32 %s1020, %s1021
      %s1023 = smul.addr %s1022, 8
      %s1024 = scalar_lea.vmem %s2, %s1023
      // Predicated region
      $region37: #{encoder_overall_forward.19} parent=27 // pred_check
        %p1025 = pneg %p108
      $region38: #{encoder_overall_forward.19} parent=27 // pred_check_branch
        %1027 = sbr.rel (%p1025) target = $region40
      $region39: #{encoder_overall_forward.19} parent=27 // pred_region
        %s1028 = smul.u32 32, %s18
        %s1029 = smul.u32 2, %s19
      $region40: #{encoder_overall_forward.19} parent=27 // pred_fallthru
        _
    $region28: #{encoder_overall_forward.19} parent=5 // pred_fallthru
      _
    %p1030 = scmp.le.s32.totalorder 2, %s8
    // Predicated region
    $region41: #{encoder_overall_forward.19} parent=5 // pred_check
      %p1031 = pneg %p1030
    $region42: #{encoder_overall_forward.19} parent=5 // pred_check_branch
      %1033 = sbr.rel (%p1031) target = $region44
    $region43: #{encoder_overall_forward.19} parent=5 // pred_region
      %s1034 = ssub.s32 %s8, 2
      // Predicated region
      $region45: #{encoder_overall_forward.19} parent=43 // pred_check
        %p1035 = pneg %p114
      $region46: #{encoder_overall_forward.19} parent=43 // pred_check_branch
        %1037 = sbr.rel (%p1035) target = $region48
      $region47: #{encoder_overall_forward.19} parent=43 // pred_region
        %s1038 = smul.u32 32, %s21
        %s1039 = smul.u32 2, %s22
        %p1040 = scmp.lt.s32.totalorder %s1038, 63
        %s1041 = scalar_select %p1040, %s1038, 63
        %p1042 = scmp.lt.s32.totalorder %s1039, 1
        %s1043 = scalar_select %p1042, %s1039, 1
        %s1044 = smul.addr %s1041, 2
        %s1045 = sadd.s32 %s1043, %s1044
        %s1046 = smul.addr %s1045, 8
        %s1047 = scalar_lea.vmem %s2, %s1046
      $region48: #{encoder_overall_forward.19} parent=43 // pred_fallthru
        _
    $region44: #{encoder_overall_forward.19} parent=5 // pred_fallthru
      _
  $region6: #{encoder_overall_forward.19} parent=0 // loop_footer
    %s12 = sadd.s32 1, %s8
  $region7: #{encoder_overall_forward.19} parent=0 // loop_footer_branch
    %7 = sbr.rel target = $region3
  $region8: #{encoder_overall_forward.19} parent=0 // loop_exit
    _

// kernel: encoder_overall_forward.21
$region0: #{encoder_overall_forward.21}
  #allocation0 [shape = 'u32[]', space=smem, size = 0x4, offset = 0x4, fixed_abs, tag = 'smem constant byte address 0x4 - core index']
  #allocation1 [shape = 'u32[144,128]{1,0:T(1,128)}', space=vmem, size = 0x12000, scoped, tag = 'internal scratch']
  #allocation2 [shape = 'f32[256,128]{1,0:T(8,128)}', space=vmem, size = 0x20000, scoped, tag = 'scratch operand']
  %s0 = inlined_call_operand.vmem [shape: f32[512,512], index: 0, kind: input, shape index: {}]
  %s1 = inlined_call_operand.vmem [shape: f32[512,128], index: 1, kind: input, shape index: {}]
  %s2 = inlined_call_operand.vmem [shape: f32[512,128], index: 2, kind: output, shape index: {}]
  %s3 = sld [smem:[#allocation0]]
  $region72: #{encoder_overall_forward.21} parent=0
    _
  %s5 = ssub.s32 1, %s3
  %s6 = scalar_select 0, %s5, %s3
  $region1: #{encoder_overall_forward.21} parent=0
    #allocation3 [shape = 'u8[524288]{0}', space=vmem, size = 0x80000, scoped, tag = 'input window, operand 0']
    loop: start=0, step=1, limit=6
    $region2: #{encoder_overall_forward.21} parent=1 // loop_pre_header
      _
    $region3: #{encoder_overall_forward.21} parent=1 // loop_header
      %s8 = sphi 0, %s12
      %p9 = scmp.ge.s32.totalorder %s8, 6
      %s15 = sphi 0, %s34
      %s16 = sphi 0, %s30
      %s17 = sphi 0, %s26
      %s18 = sphi 0, %s15
      %s19 = sphi 0, %s16
      %s20 = sphi 0, %s17
      %s21 = sphi 0, %s18
      %s22 = sphi 0, %s19
      %s23 = sphi 0, %s20
      %s39 = sphi 0, %s41
      %s42 = sphi 0, %s39
      %s43 = sphi 0, %s42
      %s59 = sphi 0, %s43
      %s67 = sphi 0, %s69
      %s70 = sphi 0, %s67
      %s71 = sphi 0, %s70
      %s87 = sphi 0, %s71
      %s95 = sphi 0, %s97
      %s98 = sphi 0, %s95
      %s99 = sphi 0, %s98
      %s115 = sphi 0, %s99
    $region4: #{encoder_overall_forward.21} parent=1 // loop_header_branch
      %11 = sbr.rel (%p9) target = $region8
    $region5: #{encoder_overall_forward.21} parent=1 // loop_body
      %s13 = ssub.s32 %s8, 1
      %s14 = ssub.s32 %s8, 2
      %s24 = sadd.s32 1, %s17
      %p25 = scmp.ge.s32.totalorder %s24, 2
      %s26 = scalar_select %p25, 0, %s24
      %s27 = sadd.s32 1, %s16
      %s28 = scalar_select %p25, %s27, %s16
      %p29 = scmp.ge.s32.totalorder %s28, 1
      %s30 = scalar_select %p29, 0, %s28
      %s31 = sadd.s32 1, %s15
      %s32 = scalar_select %p29, %s31, %s15
      %p33 = scmp.ge.s32.totalorder %s32, 2
      %s34 = scalar_select %p33, 0, %s32
      %s35 = ssub.s32 %s15, %s34
      %s36 = ssub.s32 %s17, %s26
      %s37 = sor.u32 %s35, %s36
      %p38 = scmp.eq.s32.totalorder %s37, 0
      %s40 = sadd.s32 %s39, 1
      %s41 = scalar_select %p38, %s39, %s40
      %p44 = pneg %p38
      %p45 = scmp.eq.s32.totalorder %s8, 3
      %p46 = por %p44, %p45
      %p47 = scmp.ne.s32.totalorder %s39, %s42
      %p48 = scmp.eq.s32.totalorder %s8, 0
      %p49 = por %p47, %p48
      %p50 = scmp.ne.s32.totalorder %s39, %s42
      %p51 = scmp.eq.s32.totalorder %s13, 3
      %p52 = por %p50, %p51
      %p53 = scmp.ne.s32.totalorder %s42, %s43
      %p54 = scmp.eq.s32.totalorder %s13, 0
      %p55 = por %p53, %p54
      %p56 = scmp.ne.s32.totalorder %s42, %s43
      %p57 = scmp.eq.s32.totalorder %s14, 3
      %p58 = por %p56, %p57
      %p60 = scmp.ne.s32.totalorder %s43, %s59
      %p61 = scmp.eq.s32.totalorder %s14, 0
      %p62 = por %p60, %p61
      %s63 = ssub.s32 %s17, %s26
      %s64 = ssub.s32 %s16, %s30
      %s65 = sor.u32 %s63, %s64
      %p66 = scmp.eq.s32.totalorder %s65, 0
      %s68 = sadd.s32 %s67, 1
      %s69 = scalar_select %p66, %s67, %s68
      %p72 = pneg %p66
      %p73 = scmp.eq.s32.totalorder %s8, 3
      %p74 = por %p72, %p73
      %p75 = scmp.ne.s32.totalorder %s67, %s70
      %p76 = scmp.eq.s32.totalorder %s8, 0
      %p77 = por %p75, %p76
      %p78 = scmp.ne.s32.totalorder %s67, %s70
      %p79 = scmp.eq.s32.totalorder %s13, 3
      %p80 = por %p78, %p79
      %p81 = scmp.ne.s32.totalorder %s70, %s71
      %p82 = scmp.eq.s32.totalorder %s13, 0
      %p83 = por %p81, %p82
      %p84 = scmp.ne.s32.totalorder %s70, %s71
      %p85 = scmp.eq.s32.totalorder %s14, 3
      %p86 = por %p84, %p85
      %p88 = scmp.ne.s32.totalorder %s71, %s87
      %p89 = scmp.eq.s32.totalorder %s14, 0
      %p90 = por %p88, %p89
      %s91 = ssub.s32 %s15, %s34
      %s92 = ssub.s32 %s16, %s30
      %s93 = sor.u32 %s91, %s92
      %p94 = scmp.eq.s32.totalorder %s93, 0
      %s96 = sadd.s32 %s95, 1
      %s97 = scalar_select %p94, %s95, %s96
      %p100 = pneg %p94
      %p101 = scmp.eq.s32.totalorder %s8, 3
      %p102 = por %p100, %p101
      %p103 = scmp.ne.s32.totalorder %s95, %s98
      %p104 = scmp.eq.s32.totalorder %s8, 0
      %p105 = por %p103, %p104
      %p106 = scmp.ne.s32.totalorder %s95, %s98
      %p107 = scmp.eq.s32.totalorder %s13, 3
      %p108 = por %p106, %p107
      %p109 = scmp.ne.s32.totalorder %s98, %s99
      %p110 = scmp.eq.s32.totalorder %s13, 0
      %p111 = por %p109, %p110
      %p112 = scmp.ne.s32.totalorder %s98, %s99
      %p113 = scmp.eq.s32.totalorder %s14, 3
      %p114 = por %p112, %p113
      %p116 = scmp.ne.s32.totalorder %s99, %s115
      %p117 = scmp.eq.s32.totalorder %s14, 0
      %p118 = por %p116, %p117
      %p119 = scmp.le.s32.totalorder 1, %s8
      %p120 = scmp.lt.s32.totalorder %s8, 5
      %p121 = pnand %p119, %p120
      %p122 = pneg %p121
      // Predicated region
      $region9: #{encoder_overall_forward.21} parent=5 // pred_check
        _
      $region10: #{encoder_overall_forward.21} parent=5 // pred_check_branch
        %124 = sbr.rel (%p121) target = $region12
      $region11: #{encoder_overall_forward.21} parent=5 // pred_region
        %s125 = ssub.s32 %s8, 1
      $region12: #{encoder_overall_forward.21} parent=5 // pred_fallthru
        _
      %p126 = scmp.lt.s32.totalorder %s8, 4
      // Predicated region
      $region13: #{encoder_overall_forward.21} parent=5 // pred_check
        %p127 = pneg %p126
      $region14: #{encoder_overall_forward.21} parent=5 // pred_check_branch
        %129 = sbr.rel (%p127) target = $region16
      $region15: #{encoder_overall_forward.21} parent=5 // pred_region
        // Predicated region
        $region17: #{encoder_overall_forward.21} parent=15 // pred_check
          %p130 = pneg %p49
        $region18: #{encoder_overall_forward.21} parent=15 // pred_check_branch
          %132 = sbr.rel (%p130) target = $region20
        $region19: #{encoder_overall_forward.21} parent=15 // pred_region
          %s133 = sand.u32 %s39, 1
          %s134 = sand.u32 %s39, 1
          %s135 = smul.addr %s134, 512
          %s136 = scalar_lea.vmem [#allocation3], %s135
          %s137 = smul.u32 32, %s15
          %s138 = smul.u32 2, %s17
          %s139 = smul.addr %s137, 4
          %s140 = sadd.s32 %s138, %s139
          %s141 = smul.addr %s140, 8
          %s142 = scalar_lea.vmem %s0, %s141
          // Predicated region
          $region21: #{encoder_overall_forward.21} parent=19 // pred_check
            _
          $region22: #{encoder_overall_forward.21} parent=19 // pred_check_branch
            %144 = sbr.rel (0) target = $region24
          $region23: #{encoder_overall_forward.21} parent=19 // pred_region
            // Predicated region
            $region25: #{encoder_overall_forward.21} parent=23 // pred_check
              _
            $region26: #{encoder_overall_forward.21} parent=23 // pred_check_branch
              %146 = sbr.rel (0) target = $region28
            $region27: #{encoder_overall_forward.21} parent=23 // pred_region
              loop: start=0, step=1, limit=1
              $region29: #{encoder_overall_forward.21} parent=27 // loop_pre_header
                _
              $region30: #{encoder_overall_forward.21} parent=27 // loop_header
                %s148 = sphi 0, %s152
                %p149 = scmp.ge.s32.totalorder %s148, 1
                %s153 = sphi %s142, %s142
                %s154 = sphi %s136, %s136
              $region31: #{encoder_overall_forward.21} parent=27 // loop_header_branch
                %151 = sbr.rel (%p149) target = $region35
              $region32: #{encoder_overall_forward.21} parent=27 // loop_body
                %v155 = vld [vmem:[%s153] sm:$0xff]
                %156 = vst [vmem:[%s154] sm:$0xff] %v155
                %v157 = vld [vmem:[%s153 + $0x8] sm:$0xff]
                %158 = vst [vmem:[%s154 + $0x8] sm:$0xff] %v157
                %v159 = vld [vmem:[%s153 + $0x20] sm:$0xff]
                %160 = vst [vmem:[%s154 + $0x10] sm:$0xff] %v159
                %v161 = vld [vmem:[%s153 + $0x28] sm:$0xff]
                %162 = vst [vmem:[%s154 + $0x18] sm:$0xff] %v161
                %v163 = vld [vmem:[%s153 + $0x40] sm:$0xff]
                %164 = vst [vmem:[%s154 + $0x20] sm:$0xff] %v163
                %v165 = vld [vmem:[%s153 + $0x48] sm:$0xff]
                %166 = vst [vmem:[%s154 + $0x28] sm:$0xff] %v165
                %v167 = vld [vmem:[%s153 + $0x60] sm:$0xff]
                %168 = vst [vmem:[%s154 + $0x30] sm:$0xff] %v167
                %v169 = vld [vmem:[%s153 + $0x68] sm:$0xff]
                %170 = vst [vmem:[%s154 + $0x38] sm:$0xff] %v169
                %v171 = vld [vmem:[%s153 + $0x80] sm:$0xff]
                %172 = vst [vmem:[%s154 + $0x40] sm:$0xff] %v171
                %v173 = vld [vmem:[%s153 + $0x88] sm:$0xff]
                %174 = vst [vmem:[%s154 + $0x48] sm:$0xff] %v173
                %v175 = vld [vmem:[%s153 + $0xa0] sm:$0xff]
                %176 = vst [vmem:[%s154 + $0x50] sm:$0xff] %v175
                %v177 = vld [vmem:[%s153 + $0xa8] sm:$0xff]
                %178 = vst [vmem:[%s154 + $0x58] sm:$0xff] %v177
                %v179 = vld [vmem:[%s153 + $0xc0] sm:$0xff]
                %180 = vst [vmem:[%s154 + $0x60] sm:$0xff] %v179
                %v181 = vld [vmem:[%s153 + $0xc8] sm:$0xff]
                %182 = vst [vmem:[%s154 + $0x68] sm:$0xff] %v181
                %v183 = vld [vmem:[%s153 + $0xe0] sm:$0xff]
                %184 = vst [vmem:[%s154 + $0x70] sm:$0xff] %v183
                %v185 = vld [vmem:[%s153 + $0xe8] sm:$0xff]
                %186 = vst [vmem:[%s154 + $0x78] sm:$0xff] %v185
                %v187 = vld [vmem:[%s153 + $0x100] sm:$0xff]
                %188 = vst [vmem:[%s154 + $0x80] sm:$0xff] %v187
                %v189 = vld [vmem:[%s153 + $0x108] sm:$0xff]
                %190 = vst [vmem:[%s154 + $0x88] sm:$0xff] %v189
                %v191 = vld [vmem:[%s153 + $0x120] sm:$0xff]
                %192 = vst [vmem:[%s154 + $0x90] sm:$0xff] %v191
                %v193 = vld [vmem:[%s153 + $0x128] sm:$0xff]
                %194 = vst [vmem:[%s154 + $0x98] sm:$0xff] %v193
                %v195 = vld [vmem:[%s153 + $0x140] sm:$0xff]
                %196 = vst [vmem:[%s154 + $0xa0] sm:$0xff] %v195
                %v197 = vld [vmem:[%s153 + $0x148] sm:$0xff]
                %198 = vst [vmem:[%s154 + $0xa8] sm:$0xff] %v197
                %v199 = vld [vmem:[%s153 + $0x160] sm:$0xff]
                %200 = vst [vmem:[%s154 + $0xb0] sm:$0xff] %v199
                %v201 = vld [vmem:[%s153 + $0x168] sm:$0xff]
                %202 = vst [vmem:[%s154 + $0xb8] sm:$0xff] %v201
                %v203 = vld [vmem:[%s153 + $0x180] sm:$0xff]
                %204 = vst [vmem:[%s154 + $0xc0] sm:$0xff] %v203
                %v205 = vld [vmem:[%s153 + $0x188] sm:$0xff]
                %206 = vst [vmem:[%s154 + $0xc8] sm:$0xff] %v205
                %v207 = vld [vmem:[%s153 + $0x1a0] sm:$0xff]
                %208 = vst [vmem:[%s154 + $0xd0] sm:$0xff] %v207
                %v209 = vld [vmem:[%s153 + $0x1a8] sm:$0xff]
                %210 = vst [vmem:[%s154 + $0xd8] sm:$0xff] %v209
                %v211 = vld [vmem:[%s153 + $0x1c0] sm:$0xff]
                %212 = vst [vmem:[%s154 + $0xe0] sm:$0xff] %v211
                %v213 = vld [vmem:[%s153 + $0x1c8] sm:$0xff]
                %214 = vst [vmem:[%s154 + $0xe8] sm:$0xff] %v213
                %v215 = vld [vmem:[%s153 + $0x1e0] sm:$0xff]
                %216 = vst [vmem:[%s154 + $0xf0] sm:$0xff] %v215
                %v217 = vld [vmem:[%s153 + $0x1e8] sm:$0xff]
                %218 = vst [vmem:[%s154 + $0xf8] sm:$0xff] %v217
                %v219 = vld [vmem:[%s153 + $0x200] sm:$0xff]
                %220 = vst [vmem:[%s154 + $0x100] sm:$0xff] %v219
                %v221 = vld [vmem:[%s153 + $0x208] sm:$0xff]
                %222 = vst [vmem:[%s154 + $0x108] sm:$0xff] %v221
                %v223 = vld [vmem:[%s153 + $0x220] sm:$0xff]
                %224 = vst [vmem:[%s154 + $0x110] sm:$0xff] %v223
                %v225 = vld [vmem:[%s153 + $0x228] sm:$0xff]
                %226 = vst [vmem:[%s154 + $0x118] sm:$0xff] %v225
                %v227 = vld [vmem:[%s153 + $0x240] sm:$0xff]
                %228 = vst [vmem:[%s154 + $0x120] sm:$0xff] %v227
                %v229 = vld [vmem:[%s153 + $0x248] sm:$0xff]
                %230 = vst [vmem:[%s154 + $0x128] sm:$0xff] %v229
                %v231 = vld [vmem:[%s153 + $0x260] sm:$0xff]
                %232 = vst [vmem:[%s154 + $0x130] sm:$0xff] %v231
                %v233 = vld [vmem:[%s153 + $0x268] sm:$0xff]
                %234 = vst [vmem:[%s154 + $0x138] sm:$0xff] %v233
                %v235 = vld [vmem:[%s153 + $0x280] sm:$0xff]
                %236 = vst [vmem:[%s154 + $0x140] sm:$0xff] %v235
                %v237 = vld [vmem:[%s153 + $0x288] sm:$0xff]
                %238 = vst [vmem:[%s154 + $0x148] sm:$0xff] %v237
                %v239 = vld [vmem:[%s153 + $0x2a0] sm:$0xff]
                %240 = vst [vmem:[%s154 + $0x150] sm:$0xff] %v239
                %v241 = vld [vmem:[%s153 + $0x2a8] sm:$0xff]
                %242 = vst [vmem:[%s154 + $0x158] sm:$0xff] %v241
                %v243 = vld [vmem:[%s153 + $0x2c0] sm:$0xff]
                %244 = vst [vmem:[%s154 + $0x160] sm:$0xff] %v243
                %v245 = vld [vmem:[%s153 + $0x2c8] sm:$0xff]
                %246 = vst [vmem:[%s154 + $0x168] sm:$0xff] %v245
                %v247 = vld [vmem:[%s153 + $0x2e0] sm:$0xff]
                %248 = vst [vmem:[%s154 + $0x170] sm:$0xff] %v247
                %v249 = vld [vmem:[%s153 + $0x2e8] sm:$0xff]
                %250 = vst [vmem:[%s154 + $0x178] sm:$0xff] %v249
                %v251 = vld [vmem:[%s153 + $0x300] sm:$0xff]
                %252 = vst [vmem:[%s154 + $0x180] sm:$0xff] %v251
                %v253 = vld [vmem:[%s153 + $0x308] sm:$0xff]
                %254 = vst [vmem:[%s154 + $0x188] sm:$0xff] %v253
                %v255 = vld [vmem:[%s153 + $0x320] sm:$0xff]
                %256 = vst [vmem:[%s154 + $0x190] sm:$0xff] %v255
                %v257 = vld [vmem:[%s153 + $0x328] sm:$0xff]
                %258 = vst [vmem:[%s154 + $0x198] sm:$0xff] %v257
                %v259 = vld [vmem:[%s153 + $0x340] sm:$0xff]
                %260 = vst [vmem:[%s154 + $0x1a0] sm:$0xff] %v259
                %v261 = vld [vmem:[%s153 + $0x348] sm:$0xff]
                %262 = vst [vmem:[%s154 + $0x1a8] sm:$0xff] %v261
                %v263 = vld [vmem:[%s153 + $0x360] sm:$0xff]
                %264 = vst [vmem:[%s154 + $0x1b0] sm:$0xff] %v263
                %v265 = vld [vmem:[%s153 + $0x368] sm:$0xff]
                %266 = vst [vmem:[%s154 + $0x1b8] sm:$0xff] %v265
                %v267 = vld [vmem:[%s153 + $0x380] sm:$0xff]
                %268 = vst [vmem:[%s154 + $0x1c0] sm:$0xff] %v267
                %v269 = vld [vmem:[%s153 + $0x388] sm:$0xff]
                %270 = vst [vmem:[%s154 + $0x1c8] sm:$0xff] %v269
                %v271 = vld [vmem:[%s153 + $0x3a0] sm:$0xff]
                %272 = vst [vmem:[%s154 + $0x1d0] sm:$0xff] %v271
                %v273 = vld [vmem:[%s153 + $0x3a8] sm:$0xff]
                %274 = vst [vmem:[%s154 + $0x1d8] sm:$0xff] %v273
                %v275 = vld [vmem:[%s153 + $0x3c0] sm:$0xff]
                %276 = vst [vmem:[%s154 + $0x1e0] sm:$0xff] %v275
                %v277 = vld [vmem:[%s153 + $0x3c8] sm:$0xff]
                %278 = vst [vmem:[%s154 + $0x1e8] sm:$0xff] %v277
                %v279 = vld [vmem:[%s153 + $0x3e0] sm:$0xff]
                %280 = vst [vmem:[%s154 + $0x1f0] sm:$0xff] %v279
                %v281 = vld [vmem:[%s153 + $0x3e8] sm:$0xff]
                %282 = vst [vmem:[%s154 + $0x1f8] sm:$0xff] %v281
              $region33: #{encoder_overall_forward.21} parent=27 // loop_footer
                %s152 = sadd.s32 1, %s148
              $region34: #{encoder_overall_forward.21} parent=27 // loop_footer_branch
                %147 = sbr.rel target = $region30
              $region35: #{encoder_overall_forward.21} parent=27 // loop_exit
                _
            $region28: #{encoder_overall_forward.21} parent=23 // pred_fallthru
              _
            // Predicated region
            $region36: #{encoder_overall_forward.21} parent=23 // pred_check
              _
            $region37: #{encoder_overall_forward.21} parent=23 // pred_check_branch
              %284 = sbr.rel target = $region39
            $region38: #{encoder_overall_forward.21} parent=23 // pred_region
              _
            $region39: #{encoder_overall_forward.21} parent=23 // pred_fallthru
              _
          $region24: #{encoder_overall_forward.21} parent=19 // pred_fallthru
            _
          %285 = vnop
        $region20: #{encoder_overall_forward.21} parent=15 // pred_fallthru
          _
        // Predicated region
        $region40: #{encoder_overall_forward.21} parent=15 // pred_check
          %p286 = pneg %p77
        $region41: #{encoder_overall_forward.21} parent=15 // pred_check_branch
          %288 = sbr.rel (%p286) target = $region43
        $region42: #{encoder_overall_forward.21} parent=15 // pred_region
          %s289 = smul.u32 32, %s17
          %p290 = scmp.lt.s32.totalorder %s289, 63
          %s291 = scalar_select %p290, %s289, 63
          %p292 = scmp.lt.s32.totalorder %s16, 0
          %s293 = scalar_select %p292, %s16, 0
          %s294 = sadd.s32 %s293, %s291
          %s295 = smul.addr %s294, 8
          %s296 = scalar_lea.vmem %s1, %s295
          %s297 = smul.u32 32, %s17
        $region43: #{encoder_overall_forward.21} parent=15 // pred_fallthru
          _
      $region16: #{encoder_overall_forward.21} parent=5 // pred_fallthru
        _
      %p298 = scmp.le.s32.totalorder 1, %s8
      %p299 = scmp.lt.s32.totalorder %s8, 5
      %p300 = pnand %p298, %p299
      %p301 = pneg %p300
      // Predicated region
      $region44: #{encoder_overall_forward.21} parent=5 // pred_check
        _
      $region45: #{encoder_overall_forward.21} parent=5 // pred_check_branch
        %303 = sbr.rel (%p300) target = $region47
      $region46: #{encoder_overall_forward.21} parent=5 // pred_region
        %s304 = ssub.s32 %s8, 1
        %s305 = sand.u32 %s42, 1
        %s306 = sand.u32 %s42, 1
        %s307 = smul.addr %s306, 512
        %s308 = scalar_lea.vmem [#allocation3], %s307
        // Predicated region
        $region48: #{encoder_overall_forward.21} parent=46 // pred_check
          %p309 = pneg %p55
        $region49: #{encoder_overall_forward.21} parent=46 // pred_check_branch
          %311 = sbr.rel (%p309) target = $region51
        $region50: #{encoder_overall_forward.21} parent=46 // pred_region
          _
        $region51: #{encoder_overall_forward.21} parent=46 // pred_fallthru
          _
        %s312 = sand.u32 %s42, 1
        %s313 = sand.u32 %s42, 1
        %s314 = smul.addr %s313, 512
        %s315 = scalar_lea.vmem [#allocation3], %s314
        %p316 = pneg %p55
        %p317 = pneg %p52
        %s318 = smul.u32 32, %s20
        %p319 = scmp.lt.s32.totalorder %s318, 63
        %s320 = scalar_select %p319, %s318, 63
        %p321 = scmp.lt.s32.totalorder %s19, 0
        %s322 = scalar_select %p321, %s19, 0
        %s323 = sadd.s32 %s322, %s320
        %s324 = smul.addr %s323, 8
        %s325 = scalar_lea.vmem %s1, %s324
        %p326 = pneg %p83
        %p327 = pneg %p80
        %p328 = pneg %p111
        %p329 = pneg %p108
        %s330 = smul.u32 32, %s18
        %p331 = scmp.lt.s32.totalorder %s330, 63
        %s332 = scalar_select %p331, %s330, 63
        %p333 = scmp.lt.s32.totalorder %s19, 0
        %s334 = scalar_select %p333, %s19, 0
        %s335 = sadd.s32 %s334, %s332
        %s336 = smul.addr %s335, 8
        %s337 = scalar_lea.vmem %s2, %s336
        %s338 = smul.u32 32, %s18
        %s339 = smul.u32 2, %s20
        %s340 = smul.u32 32, %s20
        %p341 = scmp.lt.s32.totalorder %s340, 63
        %s342 = scalar_select %p341, %s340, 63
        %p343 = scmp.lt.s32.totalorder %s19, 0
        %s344 = scalar_select %p343, %s19, 0
        %s345 = sadd.s32 %s344, %s342
        %s346 = smul.addr %s345, 8
        %s347 = scalar_lea.vmem %s1, %s346
        %s348 = smul.u32 32, %s20
        %s349 = smul.u32 32, %s18
        %p350 = scmp.lt.s32.totalorder %s349, 63
        %s351 = scalar_select %p350, %s349, 63
        %p352 = scmp.lt.s32.totalorder %s19, 0
        %s353 = scalar_select %p352, %s19, 0
        %s354 = sadd.s32 %s353, %s351
        %s355 = smul.addr %s354, 8
        %s356 = scalar_lea.vmem %s2, %s355
        %s357 = smul.u32 32, %s18
        %p358 = scmp.eq.s32.totalorder %s20, 0
        // Predicated region
        $region52: #{encoder_overall_forward.21} parent=46 // pred_check
          %p359 = pneg %p358
        $region53: #{encoder_overall_forward.21} parent=46 // pred_check_branch
          %361 = sbr.rel (%p359) target = $region55
        $region54: #{encoder_overall_forward.21} parent=46 // pred_region
          %362 = vst [vmem:[#allocation2] sm:$0xff] 0.0
          %363 = vst [vmem:[#allocation2 + $0x8] sm:$0xff] 0.0
          %364 = vst [vmem:[#allocation2 + $0x10] sm:$0xff] 0.0
          %365 = vst [vmem:[#allocation2 + $0x18] sm:$0xff] 0.0
          %366 = vst [vmem:[#allocation2 + $0x20] sm:$0xff] 0.0
          %367 = vst [vmem:[#allocation2 + $0x28] sm:$0xff] 0.0
          %368 = vst [vmem:[#allocation2 + $0x30] sm:$0xff] 0.0
          %369 = vst [vmem:[#allocation2 + $0x38] sm:$0xff] 0.0
          %370 = vst [vmem:[#allocation2 + $0x40] sm:$0xff] 0.0
          %371 = vst [vmem:[#allocation2 + $0x48] sm:$0xff] 0.0
          %372 = vst [vmem:[#allocation2 + $0x50] sm:$0xff] 0.0
          %373 = vst [vmem:[#allocation2 + $0x58] sm:$0xff] 0.0
          %374 = vst [vmem:[#allocation2 + $0x60] sm:$0xff] 0.0
          %375 = vst [vmem:[#allocation2 + $0x68] sm:$0xff] 0.0
          %376 = vst [vmem:[#allocation2 + $0x70] sm:$0xff] 0.0
          %377 = vst [vmem:[#allocation2 + $0x78] sm:$0xff] 0.0
          %378 = vst [vmem:[#allocation2 + $0x80] sm:$0xff] 0.0
          %379 = vst [vmem:[#allocation2 + $0x88] sm:$0xff] 0.0
          %380 = vst [vmem:[#allocation2 + $0x90] sm:$0xff] 0.0
          %381 = vst [vmem:[#allocation2 + $0x98] sm:$0xff] 0.0
          %382 = vst [vmem:[#allocation2 + $0xa0] sm:$0xff] 0.0
          %383 = vst [vmem:[#allocation2 + $0xa8] sm:$0xff] 0.0
          %384 = vst [vmem:[#allocation2 + $0xb0] sm:$0xff] 0.0
          %385 = vst [vmem:[#allocation2 + $0xb8] sm:$0xff] 0.0
          %386 = vst [vmem:[#allocation2 + $0xc0] sm:$0xff] 0.0
          %387 = vst [vmem:[#allocation2 + $0xc8] sm:$0xff] 0.0
          %388 = vst [vmem:[#allocation2 + $0xd0] sm:$0xff] 0.0
          %389 = vst [vmem:[#allocation2 + $0xd8] sm:$0xff] 0.0
          %390 = vst [vmem:[#allocation2 + $0xe0] sm:$0xff] 0.0
          %391 = vst [vmem:[#allocation2 + $0xe8] sm:$0xff] 0.0
          %392 = vst [vmem:[#allocation2 + $0xf0] sm:$0xff] 0.0
          %393 = vst [vmem:[#allocation2 + $0xf8] sm:$0xff] 0.0
        $region55: #{encoder_overall_forward.21} parent=46 // pred_fallthru
          _
        %v394 = vld [vmem:[#allocation2] sm:$0xff]
        %v395 = vld [vmem:[#allocation2 + $0x8] sm:$0xff]
        %v396 = vld [vmem:[#allocation2 + $0x10] sm:$0xff]
        %v397 = vld [vmem:[#allocation2 + $0x18] sm:$0xff]
        %v398 = vld [vmem:[#allocation2 + $0x20] sm:$0xff]
        %v399 = vld [vmem:[#allocation2 + $0x28] sm:$0xff]
        %v400 = vld [vmem:[#allocation2 + $0x30] sm:$0xff]
        %v401 = vld [vmem:[#allocation2 + $0x38] sm:$0xff]
        %v402 = vld [vmem:[#allocation2 + $0x40] sm:$0xff]
        %v403 = vld [vmem:[#allocation2 + $0x48] sm:$0xff]
        %v404 = vld [vmem:[#allocation2 + $0x50] sm:$0xff]
        %v405 = vld [vmem:[#allocation2 + $0x58] sm:$0xff]
        %v406 = vld [vmem:[#allocation2 + $0x60] sm:$0xff]
        %v407 = vld [vmem:[#allocation2 + $0x68] sm:$0xff]
        %v408 = vld [vmem:[#allocation2 + $0x70] sm:$0xff]
        %v409 = vld [vmem:[#allocation2 + $0x78] sm:$0xff]
        %v410 = vld [vmem:[#allocation2 + $0x80] sm:$0xff]
        %v411 = vld [vmem:[#allocation2 + $0x88] sm:$0xff]
        %v412 = vld [vmem:[#allocation2 + $0x90] sm:$0xff]
        %v413 = vld [vmem:[#allocation2 + $0x98] sm:$0xff]
        %v414 = vld [vmem:[#allocation2 + $0xa0] sm:$0xff]
        %v415 = vld [vmem:[#allocation2 + $0xa8] sm:$0xff]
        %v416 = vld [vmem:[#allocation2 + $0xb0] sm:$0xff]
        %v417 = vld [vmem:[#allocation2 + $0xb8] sm:$0xff]
        %v418 = vld [vmem:[#allocation2 + $0xc0] sm:$0xff]
        %v419 = vld [vmem:[#allocation2 + $0xc8] sm:$0xff]
        %v420 = vld [vmem:[#allocation2 + $0xd0] sm:$0xff]
        %v421 = vld [vmem:[#allocation2 + $0xd8] sm:$0xff]
        %v422 = vld [vmem:[#allocation2 + $0xe0] sm:$0xff]
        %v423 = vld [vmem:[#allocation2 + $0xe8] sm:$0xff]
        %v424 = vld [vmem:[#allocation2 + $0xf0] sm:$0xff]
        %v425 = vld [vmem:[#allocation2 + $0xf8] sm:$0xff]
        %v426 = vld [vmem:[%s308] sm:$0xff]
        %v427 = vld [vmem:[%s308 + $0x8] sm:$0xff]
        %v428 = vld [vmem:[%s308 + $0x10] sm:$0xff]
        %v429 = vld [vmem:[%s308 + $0x18] sm:$0xff]
        %v430 = vld [vmem:[%s308 + $0x20] sm:$0xff]
        %v431 = vld [vmem:[%s308 + $0x28] sm:$0xff]
        %v432 = vld [vmem:[%s308 + $0x30] sm:$0xff]
        %v433 = vld [vmem:[%s308 + $0x38] sm:$0xff]
        %v434 = vld [vmem:[%s308 + $0x40] sm:$0xff]
        %v435 = vld [vmem:[%s308 + $0x48] sm:$0xff]
        %v436 = vld [vmem:[%s308 + $0x50] sm:$0xff]
        %v437 = vld [vmem:[%s308 + $0x58] sm:$0xff]
        %v438 = vld [vmem:[%s308 + $0x60] sm:$0xff]
        %v439 = vld [vmem:[%s308 + $0x68] sm:$0xff]
        %v440 = vld [vmem:[%s308 + $0x70] sm:$0xff]
        %v441 = vld [vmem:[%s308 + $0x78] sm:$0xff]
        %v442 = vld [vmem:[%s308 + $0x80] sm:$0xff]
        %v443 = vld [vmem:[%s308 + $0x88] sm:$0xff]
        %v444 = vld [vmem:[%s308 + $0x90] sm:$0xff]
        %v445 = vld [vmem:[%s308 + $0x98] sm:$0xff]
        %v446 = vld [vmem:[%s308 + $0xa0] sm:$0xff]
        %v447 = vld [vmem:[%s308 + $0xa8] sm:$0xff]
        %v448 = vld [vmem:[%s308 + $0xb0] sm:$0xff]
        %v449 = vld [vmem:[%s308 + $0xb8] sm:$0xff]
        %v450 = vld [vmem:[%s308 + $0xc0] sm:$0xff]
        %v451 = vld [vmem:[%s308 + $0xc8] sm:$0xff]
        %v452 = vld [vmem:[%s308 + $0xd0] sm:$0xff]
        %v453 = vld [vmem:[%s308 + $0xd8] sm:$0xff]
        %v454 = vld [vmem:[%s308 + $0xe0] sm:$0xff]
        %v455 = vld [vmem:[%s308 + $0xe8] sm:$0xff]
        %v456 = vld [vmem:[%s308 + $0xf0] sm:$0xff]
        %v457 = vld [vmem:[%s308 + $0xf8] sm:$0xff]
        %v458 = vld [vmem:[%s308 + $0x100] sm:$0xff]
        %v459 = vld [vmem:[%s308 + $0x108] sm:$0xff]
        %v460 = vld [vmem:[%s308 + $0x110] sm:$0xff]
        %v461 = vld [vmem:[%s308 + $0x118] sm:$0xff]
        %v462 = vld [vmem:[%s308 + $0x120] sm:$0xff]
        %v463 = vld [vmem:[%s308 + $0x128] sm:$0xff]
        %v464 = vld [vmem:[%s308 + $0x130] sm:$0xff]
        %v465 = vld [vmem:[%s308 + $0x138] sm:$0xff]
        %v466 = vld [vmem:[%s308 + $0x140] sm:$0xff]
        %v467 = vld [vmem:[%s308 + $0x148] sm:$0xff]
        %v468 = vld [vmem:[%s308 + $0x150] sm:$0xff]
        %v469 = vld [vmem:[%s308 + $0x158] sm:$0xff]
        %v470 = vld [vmem:[%s308 + $0x160] sm:$0xff]
        %v471 = vld [vmem:[%s308 + $0x168] sm:$0xff]
        %v472 = vld [vmem:[%s308 + $0x170] sm:$0xff]
        %v473 = vld [vmem:[%s308 + $0x178] sm:$0xff]
        %v474 = vld [vmem:[%s308 + $0x180] sm:$0xff]
        %v475 = vld [vmem:[%s308 + $0x188] sm:$0xff]
        %v476 = vld [vmem:[%s308 + $0x190] sm:$0xff]
        %v477 = vld [vmem:[%s308 + $0x198] sm:$0xff]
        %v478 = vld [vmem:[%s308 + $0x1a0] sm:$0xff]
        %v479 = vld [vmem:[%s308 + $0x1a8] sm:$0xff]
        %v480 = vld [vmem:[%s308 + $0x1b0] sm:$0xff]
        %v481 = vld [vmem:[%s308 + $0x1b8] sm:$0xff]
        %v482 = vld [vmem:[%s308 + $0x1c0] sm:$0xff]
        %v483 = vld [vmem:[%s308 + $0x1c8] sm:$0xff]
        %v484 = vld [vmem:[%s308 + $0x1d0] sm:$0xff]
        %v485 = vld [vmem:[%s308 + $0x1d8] sm:$0xff]
        %v486 = vld [vmem:[%s308 + $0x1e0] sm:$0xff]
        %v487 = vld [vmem:[%s308 + $0x1e8] sm:$0xff]
        %v488 = vld [vmem:[%s308 + $0x1f0] sm:$0xff]
        %v489 = vld [vmem:[%s308 + $0x1f8] sm:$0xff]
        %v490 = vld [vmem:[%s347] sm:$0xff]
        %v491 = vld [vmem:[%s347 + $0x8] sm:$0xff]
        %v492 = vld [vmem:[%s347 + $0x10] sm:$0xff]
        %v493 = vld [vmem:[%s347 + $0x18] sm:$0xff]
        %v494 = vld [vmem:[%s347 + $0x20] sm:$0xff]
        %v495 = vld [vmem:[%s347 + $0x28] sm:$0xff]
        %v496 = vld [vmem:[%s347 + $0x30] sm:$0xff]
        %v497 = vld [vmem:[%s347 + $0x38] sm:$0xff]
        %v498 = vld [vmem:[%s347 + $0x40] sm:$0xff]
        %v499 = vld [vmem:[%s347 + $0x48] sm:$0xff]
        %v500 = vld [vmem:[%s347 + $0x50] sm:$0xff]
        %v501 = vld [vmem:[%s347 + $0x58] sm:$0xff]
        %v502 = vld [vmem:[%s347 + $0x60] sm:$0xff]
        %v503 = vld [vmem:[%s347 + $0x68] sm:$0xff]
        %v504 = vld [vmem:[%s347 + $0x70] sm:$0xff]
        %v505 = vld [vmem:[%s347 + $0x78] sm:$0xff]
        %v506 = vld [vmem:[%s347 + $0x80] sm:$0xff]
        %v507 = vld [vmem:[%s347 + $0x88] sm:$0xff]
        %v508 = vld [vmem:[%s347 + $0x90] sm:$0xff]
        %v509 = vld [vmem:[%s347 + $0x98] sm:$0xff]
        %v510 = vld [vmem:[%s347 + $0xa0] sm:$0xff]
        %v511 = vld [vmem:[%s347 + $0xa8] sm:$0xff]
        %v512 = vld [vmem:[%s347 + $0xb0] sm:$0xff]
        %v513 = vld [vmem:[%s347 + $0xb8] sm:$0xff]
        %v514 = vld [vmem:[%s347 + $0xc0] sm:$0xff]
        %v515 = vld [vmem:[%s347 + $0xc8] sm:$0xff]
        %v516 = vld [vmem:[%s347 + $0xd0] sm:$0xff]
        %v517 = vld [vmem:[%s347 + $0xd8] sm:$0xff]
        %v518 = vld [vmem:[%s347 + $0xe0] sm:$0xff]
        %v519 = vld [vmem:[%s347 + $0xe8] sm:$0xff]
        %v520 = vld [vmem:[%s347 + $0xf0] sm:$0xff]
        %v521 = vld [vmem:[%s347 + $0xf8] sm:$0xff]
        %522 = vmatprep.subr.mxu0 0.0
        %523 = vmatpush1.msra.mxu0 %v490
        %524 = vmatprep.subr.mxu0 0.0
        %525 = vmatpush1.msra.mxu0 %v491
        %526 = vmatprep.subr.mxu0 0.0
        %527 = vmatpush1.msra.mxu0 %v492
        %528 = vmatprep.subr.mxu0 0.0
        %529 = vmatpush1.msra.mxu0 %v493
        %530 = vmatprep.subr.mxu0 0.0
        %531 = vmatpush1.msra.mxu0 %v494
        %532 = vmatprep.subr.mxu0 0.0
        %533 = vmatpush1.msra.mxu0 %v495
        %534 = vmatprep.subr.mxu0 0.0
        %535 = vmatpush1.msra.mxu0 %v496
        %536 = vmatprep.subr.mxu0 0.0
        %537 = vmatpush1.msra.mxu0 %v497
        %538 = vmatprep.subr.mxu0 0.0
        %539 = vmatpush1.msra.mxu0 %v498
        %540 = vmatprep.subr.mxu0 0.0
        %541 = vmatpush1.msra.mxu0 %v499
        %542 = vmatprep.subr.mxu0 0.0
        %543 = vmatpush1.msra.mxu0 %v500
        %544 = vmatprep.subr.mxu0 0.0
        %545 = vmatpush1.msra.mxu0 %v501
        %546 = vmatprep.subr.mxu0 0.0
        %547 = vmatpush1.msra.mxu0 %v502
        %548 = vmatprep.subr.mxu0 0.0
        %549 = vmatpush1.msra.mxu0 %v503
        %550 = vmatprep.subr.mxu0 0.0
        %551 = vmatpush1.msra.mxu0 %v504
        %552 = vmatprep.subr.mxu0 0.0
        %553 = vmatpush1.msra.mxu0 %v505
        %554 = vmatprep.subr.mxu0 0.0
        %555 = vmatpush1.msra.mxu0 %v506
        %556 = vmatprep.subr.mxu0 0.0
        %557 = vmatpush1.msra.mxu0 %v507
        %558 = vmatprep.subr.mxu0 0.0
        %559 = vmatpush1.msra.mxu0 %v508
        %560 = vmatprep.subr.mxu0 0.0
        %561 = vmatpush1.msra.mxu0 %v509
        %562 = vmatprep.subr.mxu0 0.0
        %563 = vmatpush1.msra.mxu0 %v510
        %564 = vmatprep.subr.mxu0 0.0
        %565 = vmatpush1.msra.mxu0 %v511
        %566 = vmatprep.subr.mxu0 0.0
        %567 = vmatpush1.msra.mxu0 %v512
        %568 = vmatprep.subr.mxu0 0.0
        %569 = vmatpush1.msra.mxu0 %v513
        %570 = vmatprep.subr.mxu0 0.0
        %571 = vmatpush1.msra.mxu0 %v514
        %572 = vmatprep.subr.mxu0 0.0
        %573 = vmatpush1.msra.mxu0 %v515
        %574 = vmatprep.subr.mxu0 0.0
        %575 = vmatpush1.msra.mxu0 %v516
        %576 = vmatprep.subr.mxu0 0.0
        %577 = vmatpush1.msra.mxu0 %v517
        %578 = vmatprep.subr.mxu0 0.0
        %579 = vmatpush1.msra.mxu0 %v518
        %580 = vmatprep.subr.mxu0 0.0
        %581 = vmatpush1.msra.mxu0 %v519
        %582 = vmatprep.subr.mxu0 0.0
        %583 = vmatpush1.msra.mxu0 %v520
        %584 = vmatprep.subr.mxu0 0.0
        %585 = vmatpush1.msra.mxu0 %v521
        %586 = vmatprep.mubr.f32.mxu0 %v427
        %587 = vmatmul.mubr.f32.gmra.mrb[0].mxu0 %v426
        %v588 = vpop.f32.mrb[0].mxu0
        %v589 = vadd.f32 0.0, %v588
        %v590 = vpop.f32.mrb[0].mxu0
        %591 = vmatprep.mubr.f32.mxu0 %v429
        %592 = vmatmul.mubr.f32.gmra.mrb[0].mxu0 %v428
        %v593 = vpop.f32.mrb[0].mxu0
        %v594 = vadd.f32 0.0, %v593
        %v595 = vpop.f32.mrb[0].mxu0
        %596 = vmatprep.mubr.f32.mxu0 %v431
        %597 = vmatmul.mubr.f32.gmra.mrb[0].mxu0 %v430
        %v598 = vpop.f32.mrb[0].mxu0
        %v599 = vadd.f32 0.0, %v598
        %v600 = vpop.f32.mrb[0].mxu0
        %601 = vmatprep.mubr.f32.mxu0 %v433
        %602 = vmatmul.mubr.f32.gmra.mrb[0].mxu0 %v432
        %v603 = vpop.f32.mrb[0].mxu0
        %v604 = vadd.f32 0.0, %v603
        %v605 = vpop.f32.mrb[0].mxu0
        %606 = vmatprep.mubr.f32.mxu0 %v435
        %607 = vmatmul.mubr.f32.gmra.mrb[0].mxu0 %v434
        %v608 = vpop.f32.mrb[0].mxu0
        %v609 = vadd.f32 0.0, %v608
        %v610 = vpop.f32.mrb[0].mxu0
        %611 = vmatprep.mubr.f32.mxu0 %v437
        %612 = vmatmul.mubr.f32.gmra.mrb[0].mxu0 %v436
        %v613 = vpop.f32.mrb[0].mxu0
        %v614 = vadd.f32 0.0, %v613
        %v615 = vpop.f32.mrb[0].mxu0
        %616 = vmatprep.mubr.f32.mxu0 %v439
        %617 = vmatmul.mubr.f32.gmra.mrb[0].mxu0 %v438
        %v618 = vpop.f32.mrb[0].mxu0
        %v619 = vadd.f32 0.0, %v618
        %v620 = vpop.f32.mrb[0].mxu0
        %621 = vmatprep.mubr.f32.mxu0 %v441
        %622 = vmatmul.mubr.f32.gmra.mrb[0].mxu0 %v440
        %v623 = vpop.f32.mrb[0].mxu0
        %v624 = vadd.f32 0.0, %v623
        %v625 = vpop.f32.mrb[0].mxu0
        %626 = vmatprep.mubr.f32.mxu0 %v443
        %627 = vmatmul.mubr.f32.gmra.mrb[0].mxu0 %v442
        %v628 = vpop.f32.mrb[0].mxu0
        %v629 = vadd.f32 0.0, %v628
        %v630 = vpop.f32.mrb[0].mxu0
        %631 = vmatprep.mubr.f32.mxu0 %v445
        %632 = vmatmul.mubr.f32.gmra.mrb[0].mxu0 %v444
        %v633 = vpop.f32.mrb[0].mxu0
        %v634 = vadd.f32 0.0, %v633
        %v635 = vpop.f32.mrb[0].mxu0
        %636 = vmatprep.mubr.f32.mxu0 %v447
        %637 = vmatmul.mubr.f32.gmra.mrb[0].mxu0 %v446
        %v638 = vpop.f32.mrb[0].mxu0
        %v639 = vadd.f32 0.0, %v638
        %v640 = vpop.f32.mrb[0].mxu0
        %641 = vmatprep.mubr.f32.mxu0 %v449
        %642 = vmatmul.mubr.f32.gmra.mrb[0].mxu0 %v448
        %v643 = vpop.f32.mrb[0].mxu0
        %v644 = vadd.f32 0.0, %v643
        %v645 = vpop.f32.mrb[0].mxu0
        %646 = vmatprep.mubr.f32.mxu0 %v451
        %647 = vmatmul.mubr.f32.gmra.mrb[0].mxu0 %v450
        %v648 = vpop.f32.mrb[0].mxu0
        %v649 = vadd.f32 0.0, %v648
        %v650 = vpop.f32.mrb[0].mxu0
        %651 = vmatprep.mubr.f32.mxu0 %v453
        %652 = vmatmul.mubr.f32.gmra.mrb[0].mxu0 %v452
        %v653 = vpop.f32.mrb[0].mxu0
        %v654 = vadd.f32 0.0, %v653
        %v655 = vpop.f32.mrb[0].mxu0
        %656 = vmatprep.mubr.f32.mxu0 %v455
        %657 = vmatmul.mubr.f32.gmra.mrb[0].mxu0 %v454
        %v658 = vpop.f32.mrb[0].mxu0
        %v659 = vadd.f32 0.0, %v658
        %v660 = vpop.f32.mrb[0].mxu0
        %661 = vmatprep.mubr.f32.mxu0 %v457
        %662 = vmatmul.mubr.f32.gmra.mrb[0].mxu0 %v456
        %v663 = vpop.f32.mrb[0].mxu0
        %v664 = vadd.f32 0.0, %v663
        %v665 = vpop.f32.mrb[0].mxu0
        %666 = vmatprep.mubr.f32.mxu0 %v459
        %667 = vmatmul.mubr.f32.gmra.mrb[0].mxu0 %v458
        %v668 = vpop.f32.mrb[0].mxu0
        %v669 = vadd.f32 0.0, %v668
        %v670 = vpop.f32.mrb[0].mxu0
        %671 = vmatprep.mubr.f32.mxu0 %v461
        %672 = vmatmul.mubr.f32.gmra.mrb[0].mxu0 %v460
        %v673 = vpop.f32.mrb[0].mxu0
        %v674 = vadd.f32 0.0, %v673
        %v675 = vpop.f32.mrb[0].mxu0
        %676 = vmatprep.mubr.f32.mxu0 %v463
        %677 = vmatmul.mubr.f32.gmra.mrb[0].mxu0 %v462
        %v678 = vpop.f32.mrb[0].mxu0
        %v679 = vadd.f32 0.0, %v678
        %v680 = vpop.f32.mrb[0].mxu0
        %681 = vmatprep.mubr.f32.mxu0 %v465
        %682 = vmatmul.mubr.f32.gmra.mrb[0].mxu0 %v464
        %v683 = vpop.f32.mrb[0].mxu0
        %v684 = vadd.f32 0.0, %v683
        %v685 = vpop.f32.mrb[0].mxu0
        %686 = vmatprep.mubr.f32.mxu0 %v467
        %687 = vmatmul.mubr.f32.gmra.mrb[0].mxu0 %v466
        %v688 = vpop.f32.mrb[0].mxu0
        %v689 = vadd.f32 0.0, %v688
        %v690 = vpop.f32.mrb[0].mxu0
        %691 = vmatprep.mubr.f32.mxu0 %v469
        %692 = vmatmul.mubr.f32.gmra.mrb[0].mxu0 %v468
        %v693 = vpop.f32.mrb[0].mxu0
        %v694 = vadd.f32 0.0, %v693
        %v695 = vpop.f32.mrb[0].mxu0
        %696 = vmatprep.mubr.f32.mxu0 %v471
        %697 = vmatmul.mubr.f32.gmra.mrb[0].mxu0 %v470
        %v698 = vpop.f32.mrb[0].mxu0
        %v699 = vadd.f32 0.0, %v698
        %v700 = vpop.f32.mrb[0].mxu0
        %701 = vmatprep.mubr.f32.mxu0 %v473
        %702 = vmatmul.mubr.f32.gmra.mrb[0].mxu0 %v472
        %v703 = vpop.f32.mrb[0].mxu0
        %v704 = vadd.f32 0.0, %v703
        %v705 = vpop.f32.mrb[0].mxu0
        %706 = vmatprep.mubr.f32.mxu0 %v475
        %707 = vmatmul.mubr.f32.gmra.mrb[0].mxu0 %v474
        %v708 = vpop.f32.mrb[0].mxu0
        %v709 = vadd.f32 0.0, %v708
        %v710 = vpop.f32.mrb[0].mxu0
        %711 = vmatprep.mubr.f32.mxu0 %v477
        %712 = vmatmul.mubr.f32.gmra.mrb[0].mxu0 %v476
        %v713 = vpop.f32.mrb[0].mxu0
        %v714 = vadd.f32 0.0, %v713
        %v715 = vpop.f32.mrb[0].mxu0
        %716 = vmatprep.mubr.f32.mxu0 %v479
        %717 = vmatmul.mubr.f32.gmra.mrb[0].mxu0 %v478
        %v718 = vpop.f32.mrb[0].mxu0
        %v719 = vadd.f32 0.0, %v718
        %v720 = vpop.f32.mrb[0].mxu0
        %721 = vmatprep.mubr.f32.mxu0 %v481
        %722 = vmatmul.mubr.f32.gmra.mrb[0].mxu0 %v480
        %v723 = vpop.f32.mrb[0].mxu0
        %v724 = vadd.f32 0.0, %v723
        %v725 = vpop.f32.mrb[0].mxu0
        %726 = vmatprep.mubr.f32.mxu0 %v483
        %727 = vmatmul.mubr.f32.gmra.mrb[0].mxu0 %v482
        %v728 = vpop.f32.mrb[0].mxu0
        %v729 = vadd.f32 0.0, %v728
        %v730 = vpop.f32.mrb[0].mxu0
        %731 = vmatprep.mubr.f32.mxu0 %v485
        %732 = vmatmul.mubr.f32.gmra.mrb[0].mxu0 %v484
        %v733 = vpop.f32.mrb[0].mxu0
        %v734 = vadd.f32 0.0, %v733
        %v735 = vpop.f32.mrb[0].mxu0
        %736 = vmatprep.mubr.f32.mxu0 %v487
        %737 = vmatmul.mubr.f32.gmra.mrb[0].mxu0 %v486
        %v738 = vpop.f32.mrb[0].mxu0
        %v739 = vadd.f32 0.0, %v738
        %v740 = vpop.f32.mrb[0].mxu0
        %741 = vmatprep.mubr.f32.mxu0 %v489
        %742 = vmatmul.mubr.f32.gmra.mrb[0].mxu0 %v488
        %v743 = vpop.f32.mrb[0].mxu0
        %v744 = vadd.f32 0.0, %v743
        %v745 = vpop.f32.mrb[0].mxu0
        %746 = vdwg.mxu0
        %v747 = vadd.f32 %v394, %v589
        %v748 = vadd.f32 %v395, %v594
        %v749 = vadd.f32 %v396, %v599
        %v750 = vadd.f32 %v397, %v604
        %v751 = vadd.f32 %v398, %v609
        %v752 = vadd.f32 %v399, %v614
        %v753 = vadd.f32 %v400, %v619
        %v754 = vadd.f32 %v401, %v624
        %v755 = vadd.f32 %v402, %v629
        %v756 = vadd.f32 %v403, %v634
        %v757 = vadd.f32 %v404, %v639
        %v758 = vadd.f32 %v405, %v644
        %v759 = vadd.f32 %v406, %v649
        %v760 = vadd.f32 %v407, %v654
        %v761 = vadd.f32 %v408, %v659
        %v762 = vadd.f32 %v409, %v664
        %v763 = vadd.f32 %v410, %v669
        %v764 = vadd.f32 %v411, %v674
        %v765 = vadd.f32 %v412, %v679
        %v766 = vadd.f32 %v413, %v684
        %v767 = vadd.f32 %v414, %v689
        %v768 = vadd.f32 %v415, %v694
        %v769 = vadd.f32 %v416, %v699
        %v770 = vadd.f32 %v417, %v704
        %v771 = vadd.f32 %v418, %v709
        %v772 = vadd.f32 %v419, %v714
        %v773 = vadd.f32 %v420, %v719
        %v774 = vadd.f32 %v421, %v724
        %v775 = vadd.f32 %v422, %v729
        %v776 = vadd.f32 %v423, %v734
        %v777 = vadd.f32 %v424, %v739
        %v778 = vadd.f32 %v425, %v744
        %779 = vst [vmem:[#allocation2] sm:$0xff] %v747
        %780 = vst [vmem:[#allocation2 + $0x8] sm:$0xff] %v748
        %781 = vst [vmem:[#allocation2 + $0x10] sm:$0xff] %v749
        %782 = vst [vmem:[#allocation2 + $0x18] sm:$0xff] %v750
        %783 = vst [vmem:[#allocation2 + $0x20] sm:$0xff] %v751
        %784 = vst [vmem:[#allocation2 + $0x28] sm:$0xff] %v752
        %785 = vst [vmem:[#allocation2 + $0x30] sm:$0xff] %v753
        %786 = vst [vmem:[#allocation2 + $0x38] sm:$0xff] %v754
        %787 = vst [vmem:[#allocation2 + $0x40] sm:$0xff] %v755
        %788 = vst [vmem:[#allocation2 + $0x48] sm:$0xff] %v756
        %789 = vst [vmem:[#allocation2 + $0x50] sm:$0xff] %v757
        %790 = vst [vmem:[#allocation2 + $0x58] sm:$0xff] %v758
        %791 = vst [vmem:[#allocation2 + $0x60] sm:$0xff] %v759
        %792 = vst [vmem:[#allocation2 + $0x68] sm:$0xff] %v760
        %793 = vst [vmem:[#allocation2 + $0x70] sm:$0xff] %v761
        %794 = vst [vmem:[#allocation2 + $0x78] sm:$0xff] %v762
        %795 = vst [vmem:[#allocation2 + $0x80] sm:$0xff] %v763
        %796 = vst [vmem:[#allocation2 + $0x88] sm:$0xff] %v764
        %797 = vst [vmem:[#allocation2 + $0x90] sm:$0xff] %v765
        %798 = vst [vmem:[#allocation2 + $0x98] sm:$0xff] %v766
        %799 = vst [vmem:[#allocation2 + $0xa0] sm:$0xff] %v767
        %800 = vst [vmem:[#allocation2 + $0xa8] sm:$0xff] %v768
        %801 = vst [vmem:[#allocation2 + $0xb0] sm:$0xff] %v769
        %802 = vst [vmem:[#allocation2 + $0xb8] sm:$0xff] %v770
        %803 = vst [vmem:[#allocation2 + $0xc0] sm:$0xff] %v771
        %804 = vst [vmem:[#allocation2 + $0xc8] sm:$0xff] %v772
        %805 = vst [vmem:[#allocation2 + $0xd0] sm:$0xff] %v773
        %806 = vst [vmem:[#allocation2 + $0xd8] sm:$0xff] %v774
        %807 = vst [vmem:[#allocation2 + $0xe0] sm:$0xff] %v775
        %808 = vst [vmem:[#allocation2 + $0xe8] sm:$0xff] %v776
        %809 = vst [vmem:[#allocation2 + $0xf0] sm:$0xff] %v777
        %810 = vst [vmem:[#allocation2 + $0xf8] sm:$0xff] %v778
        %p811 = scmp.eq.s32.totalorder %s20, 1
        // Predicated region
        $region56: #{encoder_overall_forward.21} parent=46 // pred_check
          %p812 = pneg %p811
        $region57: #{encoder_overall_forward.21} parent=46 // pred_check_branch
          %814 = sbr.rel (%p812) target = $region59
        $region58: #{encoder_overall_forward.21} parent=46 // pred_region
          %v815 = vld [vmem:[#allocation2] sm:$0xff]
          %v816 = vld [vmem:[#allocation2 + $0x8] sm:$0xff]
          %v817 = vld [vmem:[#allocation2 + $0x10] sm:$0xff]
          %v818 = vld [vmem:[#allocation2 + $0x18] sm:$0xff]
          %v819 = vld [vmem:[#allocation2 + $0x20] sm:$0xff]
          %v820 = vld [vmem:[#allocation2 + $0x28] sm:$0xff]
          %v821 = vld [vmem:[#allocation2 + $0x30] sm:$0xff]
          %v822 = vld [vmem:[#allocation2 + $0x38] sm:$0xff]
          %v823 = vld [vmem:[#allocation2 + $0x40] sm:$0xff]
          %v824 = vld [vmem:[#allocation2 + $0x48] sm:$0xff]
          %v825 = vld [vmem:[#allocation2 + $0x50] sm:$0xff]
          %v826 = vld [vmem:[#allocation2 + $0x58] sm:$0xff]
          %v827 = vld [vmem:[#allocation2 + $0x60] sm:$0xff]
          %v828 = vld [vmem:[#allocation2 + $0x68] sm:$0xff]
          %v829 = vld [vmem:[#allocation2 + $0x70] sm:$0xff]
          %v830 = vld [vmem:[#allocation2 + $0x78] sm:$0xff]
          %v831 = vld [vmem:[#allocation2 + $0x80] sm:$0xff]
          %v832 = vld [vmem:[#allocation2 + $0x88] sm:$0xff]
          %v833 = vld [vmem:[#allocation2 + $0x90] sm:$0xff]
          %v834 = vld [vmem:[#allocation2 + $0x98] sm:$0xff]
          %v835 = vld [vmem:[#allocation2 + $0xa0] sm:$0xff]
          %v836 = vld [vmem:[#allocation2 + $0xa8] sm:$0xff]
          %v837 = vld [vmem:[#allocation2 + $0xb0] sm:$0xff]
          %v838 = vld [vmem:[#allocation2 + $0xb8] sm:$0xff]
          %v839 = vld [vmem:[#allocation2 + $0xc0] sm:$0xff]
          %v840 = vld [vmem:[#allocation2 + $0xc8] sm:$0xff]
          %v841 = vld [vmem:[#allocation2 + $0xd0] sm:$0xff]
          %v842 = vld [vmem:[#allocation2 + $0xd8] sm:$0xff]
          %v843 = vld [vmem:[#allocation2 + $0xe0] sm:$0xff]
          %v844 = vld [vmem:[#allocation2 + $0xe8] sm:$0xff]
          %v845 = vld [vmem:[#allocation2 + $0xf0] sm:$0xff]
          %v846 = vld [vmem:[#allocation2 + $0xf8] sm:$0xff]
          %847 = vst [vmem:[%s356] sm:$0xff] %v815
          %848 = vst [vmem:[%s356 + $0x8] sm:$0xff] %v816
          %849 = vst [vmem:[%s356 + $0x10] sm:$0xff] %v817
          %850 = vst [vmem:[%s356 + $0x18] sm:$0xff] %v818
          %851 = vst [vmem:[%s356 + $0x20] sm:$0xff] %v819
          %852 = vst [vmem:[%s356 + $0x28] sm:$0xff] %v820
          %853 = vst [vmem:[%s356 + $0x30] sm:$0xff] %v821
          %854 = vst [vmem:[%s356 + $0x38] sm:$0xff] %v822
          %855 = vst [vmem:[%s356 + $0x40] sm:$0xff] %v823
          %856 = vst [vmem:[%s356 + $0x48] sm:$0xff] %v824
          %857 = vst [vmem:[%s356 + $0x50] sm:$0xff] %v825
          %858 = vst [vmem:[%s356 + $0x58] sm:$0xff] %v826
          %859 = vst [vmem:[%s356 + $0x60] sm:$0xff] %v827
          %860 = vst [vmem:[%s356 + $0x68] sm:$0xff] %v828
          %861 = vst [vmem:[%s356 + $0x70] sm:$0xff] %v829
          %862 = vst [vmem:[%s356 + $0x78] sm:$0xff] %v830
          %863 = vst [vmem:[%s356 + $0x80] sm:$0xff] %v831
          %864 = vst [vmem:[%s356 + $0x88] sm:$0xff] %v832
          %865 = vst [vmem:[%s356 + $0x90] sm:$0xff] %v833
          %866 = vst [vmem:[%s356 + $0x98] sm:$0xff] %v834
          %867 = vst [vmem:[%s356 + $0xa0] sm:$0xff] %v835
          %868 = vst [vmem:[%s356 + $0xa8] sm:$0xff] %v836
          %869 = vst [vmem:[%s356 + $0xb0] sm:$0xff] %v837
          %870 = vst [vmem:[%s356 + $0xb8] sm:$0xff] %v838
          %871 = vst [vmem:[%s356 + $0xc0] sm:$0xff] %v839
          %872 = vst [vmem:[%s356 + $0xc8] sm:$0xff] %v840
          %873 = vst [vmem:[%s356 + $0xd0] sm:$0xff] %v841
          %874 = vst [vmem:[%s356 + $0xd8] sm:$0xff] %v842
          %875 = vst [vmem:[%s356 + $0xe0] sm:$0xff] %v843
          %876 = vst [vmem:[%s356 + $0xe8] sm:$0xff] %v844
          %877 = vst [vmem:[%s356 + $0xf0] sm:$0xff] %v845
          %878 = vst [vmem:[%s356 + $0xf8] sm:$0xff] %v846
        $region59: #{encoder_overall_forward.21} parent=46 // pred_fallthru
          _
        %s879 = smul.u32 32, %s18
        %p880 = scmp.lt.s32.totalorder %s879, 63
        %s881 = scalar_select %p880, %s879, 63
        %p882 = scmp.lt.s32.totalorder %s19, 0
        %s883 = scalar_select %p882, %s19, 0
        %s884 = sadd.s32 %s883, %s881
        %s885 = smul.addr %s884, 8
        %s886 = scalar_lea.vmem %s2, %s885
        // Predicated region
        $region60: #{encoder_overall_forward.21} parent=46 // pred_check
          %p887 = pneg %p108
        $region61: #{encoder_overall_forward.21} parent=46 // pred_check_branch
          %889 = sbr.rel (%p887) target = $region63
        $region62: #{encoder_overall_forward.21} parent=46 // pred_region
          %s890 = smul.u32 32, %s18
        $region63: #{encoder_overall_forward.21} parent=46 // pred_fallthru
          _
      $region47: #{encoder_overall_forward.21} parent=5 // pred_fallthru
        _
      %p891 = scmp.le.s32.totalorder 2, %s8
      // Predicated region
      $region64: #{encoder_overall_forward.21} parent=5 // pred_check
        %p892 = pneg %p891
      $region65: #{encoder_overall_forward.21} parent=5 // pred_check_branch
        %894 = sbr.rel (%p892) target = $region67
      $region66: #{encoder_overall_forward.21} parent=5 // pred_region
        %s895 = ssub.s32 %s8, 2
        // Predicated region
        $region68: #{encoder_overall_forward.21} parent=66 // pred_check
          %p896 = pneg %p114
        $region69: #{encoder_overall_forward.21} parent=66 // pred_check_branch
          %898 = sbr.rel (%p896) target = $region71
        $region70: #{encoder_overall_forward.21} parent=66 // pred_region
          %s899 = smul.u32 32, %s21
          %p900 = scmp.lt.s32.totalorder %s899, 63
          %s901 = scalar_select %p900, %s899, 63
          %p902 = scmp.lt.s32.totalorder %s22, 0
          %s903 = scalar_select %p902, %s22, 0
          %s904 = sadd.s32 %s903, %s901
          %s905 = smul.addr %s904, 8
          %s906 = scalar_lea.vmem %s2, %s905
        $region71: #{encoder_overall_forward.21} parent=66 // pred_fallthru
          _
      $region67: #{encoder_overall_forward.21} parent=5 // pred_fallthru
        _
    $region6: #{encoder_overall_forward.21} parent=1 // loop_footer
      %s12 = sadd.s32 1, %s8
    $region7: #{encoder_overall_forward.21} parent=1 // loop_footer_branch
      %7 = sbr.rel target = $region3
    $region8: #{encoder_overall_forward.21} parent=1 // loop_exit
      _

// kernel: encoder_overall_forward.20
$region0: #{encoder_overall_forward.20}
  #allocation0 [shape = 'u32[]', space=smem, size = 0x4, offset = 0x4, fixed_abs, tag = 'smem constant byte address 0x4 - core index']
  #allocation1 [shape = 'u32[144,128]{1,0:T(1,128)}', space=vmem, size = 0x12000, scoped, tag = 'internal scratch']
  #allocation2 [shape = 'f32[256,256]{1,0:T(8,128)}', space=vmem, size = 0x40000, scoped, tag = 'scratch operand']
  %s0 = inlined_call_operand.vmem [shape: f32[512,512], index: 0, kind: input, shape index: {}]
  %s1 = inlined_call_operand.vmem [shape: f32[512,256], index: 1, kind: input, shape index: {}]
  %s2 = inlined_call_operand.vmem [shape: f32[512,256], index: 2, kind: output, shape index: {}]
  %s3 = sld [smem:[#allocation0]]
  $region72: #{encoder_overall_forward.20} parent=0
    _
  %s5 = ssub.s32 1, %s3
  %s6 = scalar_select 0, %s5, %s3
  $region1: #{encoder_overall_forward.20} parent=0
    #allocation3 [shape = 'u8[524288]{0}', space=vmem, size = 0x80000, scoped, tag = 'input window, operand 0']
    loop: start=0, step=1, limit=6
    $region2: #{encoder_overall_forward.20} parent=1 // loop_pre_header
      _
    $region3: #{encoder_overall_forward.20} parent=1 // loop_header
      %s8 = sphi 0, %s12
      %p9 = scmp.ge.s32.totalorder %s8, 6
      %s15 = sphi 0, %s34
      %s16 = sphi 0, %s30
      %s17 = sphi 0, %s26
      %s18 = sphi 0, %s15
      %s19 = sphi 0, %s16
      %s20 = sphi 0, %s17
      %s21 = sphi 0, %s18
      %s22 = sphi 0, %s19
      %s23 = sphi 0, %s20
      %s39 = sphi 0, %s41
      %s42 = sphi 0, %s39
      %s43 = sphi 0, %s42
      %s59 = sphi 0, %s43
      %s67 = sphi 0, %s69
      %s70 = sphi 0, %s67
      %s71 = sphi 0, %s70
      %s87 = sphi 0, %s71
      %s95 = sphi 0, %s97
      %s98 = sphi 0, %s95
      %s99 = sphi 0, %s98
      %s115 = sphi 0, %s99
    $region4: #{encoder_overall_forward.20} parent=1 // loop_header_branch
      %11 = sbr.rel (%p9) target = $region8
    $region5: #{encoder_overall_forward.20} parent=1 // loop_body
      %s13 = ssub.s32 %s8, 1
      %s14 = ssub.s32 %s8, 2
      %s24 = sadd.s32 1, %s17
      %p25 = scmp.ge.s32.totalorder %s24, 2
      %s26 = scalar_select %p25, 0, %s24
      %s27 = sadd.s32 1, %s16
      %s28 = scalar_select %p25, %s27, %s16
      %p29 = scmp.ge.s32.totalorder %s28, 1
      %s30 = scalar_select %p29, 0, %s28
      %s31 = sadd.s32 1, %s15
      %s32 = scalar_select %p29, %s31, %s15
      %p33 = scmp.ge.s32.totalorder %s32, 2
      %s34 = scalar_select %p33, 0, %s32
      %s35 = ssub.s32 %s15, %s34
      %s36 = ssub.s32 %s17, %s26
      %s37 = sor.u32 %s35, %s36
      %p38 = scmp.eq.s32.totalorder %s37, 0
      %s40 = sadd.s32 %s39, 1
      %s41 = scalar_select %p38, %s39, %s40
      %p44 = pneg %p38
      %p45 = scmp.eq.s32.totalorder %s8, 3
      %p46 = por %p44, %p45
      %p47 = scmp.ne.s32.totalorder %s39, %s42
      %p48 = scmp.eq.s32.totalorder %s8, 0
      %p49 = por %p47, %p48
      %p50 = scmp.ne.s32.totalorder %s39, %s42
      %p51 = scmp.eq.s32.totalorder %s13, 3
      %p52 = por %p50, %p51
      %p53 = scmp.ne.s32.totalorder %s42, %s43
      %p54 = scmp.eq.s32.totalorder %s13, 0
      %p55 = por %p53, %p54
      %p56 = scmp.ne.s32.totalorder %s42, %s43
      %p57 = scmp.eq.s32.totalorder %s14, 3
      %p58 = por %p56, %p57
      %p60 = scmp.ne.s32.totalorder %s43, %s59
      %p61 = scmp.eq.s32.totalorder %s14, 0
      %p62 = por %p60, %p61
      %s63 = ssub.s32 %s17, %s26
      %s64 = ssub.s32 %s16, %s30
      %s65 = sor.u32 %s63, %s64
      %p66 = scmp.eq.s32.totalorder %s65, 0
      %s68 = sadd.s32 %s67, 1
      %s69 = scalar_select %p66, %s67, %s68
      %p72 = pneg %p66
      %p73 = scmp.eq.s32.totalorder %s8, 3
      %p74 = por %p72, %p73
      %p75 = scmp.ne.s32.totalorder %s67, %s70
      %p76 = scmp.eq.s32.totalorder %s8, 0
      %p77 = por %p75, %p76
      %p78 = scmp.ne.s32.totalorder %s67, %s70
      %p79 = scmp.eq.s32.totalorder %s13, 3
      %p80 = por %p78, %p79
      %p81 = scmp.ne.s32.totalorder %s70, %s71
      %p82 = scmp.eq.s32.totalorder %s13, 0
      %p83 = por %p81, %p82
      %p84 = scmp.ne.s32.totalorder %s70, %s71
      %p85 = scmp.eq.s32.totalorder %s14, 3
      %p86 = por %p84, %p85
      %p88 = scmp.ne.s32.totalorder %s71, %s87
      %p89 = scmp.eq.s32.totalorder %s14, 0
      %p90 = por %p88, %p89
      %s91 = ssub.s32 %s15, %s34
      %s92 = ssub.s32 %s16, %s30
      %s93 = sor.u32 %s91, %s92
      %p94 = scmp.eq.s32.totalorder %s93, 0
      %s96 = sadd.s32 %s95, 1
      %s97 = scalar_select %p94, %s95, %s96
      %p100 = pneg %p94
      %p101 = scmp.eq.s32.totalorder %s8, 3
      %p102 = por %p100, %p101
      %p103 = scmp.ne.s32.totalorder %s95, %s98
      %p104 = scmp.eq.s32.totalorder %s8, 0
      %p105 = por %p103, %p104
      %p106 = scmp.ne.s32.totalorder %s95, %s98
      %p107 = scmp.eq.s32.totalorder %s13, 3
      %p108 = por %p106, %p107
      %p109 = scmp.ne.s32.totalorder %s98, %s99
      %p110 = scmp.eq.s32.totalorder %s13, 0
      %p111 = por %p109, %p110
      %p112 = scmp.ne.s32.totalorder %s98, %s99
      %p113 = scmp.eq.s32.totalorder %s14, 3
      %p114 = por %p112, %p113
      %p116 = scmp.ne.s32.totalorder %s99, %s115
      %p117 = scmp.eq.s32.totalorder %s14, 0
      %p118 = por %p116, %p117
      %p119 = scmp.le.s32.totalorder 1, %s8
      %p120 = scmp.lt.s32.totalorder %s8, 5
      %p121 = pnand %p119, %p120
      %p122 = pneg %p121
      // Predicated region
      $region9: #{encoder_overall_forward.20} parent=5 // pred_check
        _
      $region10: #{encoder_overall_forward.20} parent=5 // pred_check_branch
        %124 = sbr.rel (%p121) target = $region12
      $region11: #{encoder_overall_forward.20} parent=5 // pred_region
        %s125 = ssub.s32 %s8, 1
      $region12: #{encoder_overall_forward.20} parent=5 // pred_fallthru
        _
      %p126 = scmp.lt.s32.totalorder %s8, 4
      // Predicated region
      $region13: #{encoder_overall_forward.20} parent=5 // pred_check
        %p127 = pneg %p126
      $region14: #{encoder_overall_forward.20} parent=5 // pred_check_branch
        %129 = sbr.rel (%p127) target = $region16
      $region15: #{encoder_overall_forward.20} parent=5 // pred_region
        // Predicated region
        $region17: #{encoder_overall_forward.20} parent=15 // pred_check
          %p130 = pneg %p49
        $region18: #{encoder_overall_forward.20} parent=15 // pred_check_branch
          %132 = sbr.rel (%p130) target = $region20
        $region19: #{encoder_overall_forward.20} parent=15 // pred_region
          %s133 = sand.u32 %s39, 1
          %s134 = sand.u32 %s39, 1
          %s135 = smul.addr %s134, 512
          %s136 = scalar_lea.vmem [#allocation3], %s135
          %s137 = smul.u32 32, %s15
          %s138 = smul.u32 2, %s17
          %s139 = smul.addr %s137, 4
          %s140 = sadd.s32 %s138, %s139
          %s141 = smul.addr %s140, 8
          %s142 = scalar_lea.vmem %s0, %s141
          // Predicated region
          $region21: #{encoder_overall_forward.20} parent=19 // pred_check
            _
          $region22: #{encoder_overall_forward.20} parent=19 // pred_check_branch
            %144 = sbr.rel (0) target = $region24
          $region23: #{encoder_overall_forward.20} parent=19 // pred_region
            // Predicated region
            $region25: #{encoder_overall_forward.20} parent=23 // pred_check
              _
            $region26: #{encoder_overall_forward.20} parent=23 // pred_check_branch
              %146 = sbr.rel (0) target = $region28
            $region27: #{encoder_overall_forward.20} parent=23 // pred_region
              loop: start=0, step=1, limit=1
              $region29: #{encoder_overall_forward.20} parent=27 // loop_pre_header
                _
              $region30: #{encoder_overall_forward.20} parent=27 // loop_header
                %s148 = sphi 0, %s152
                %p149 = scmp.ge.s32.totalorder %s148, 1
                %s153 = sphi %s142, %s142
                %s154 = sphi %s136, %s136
              $region31: #{encoder_overall_forward.20} parent=27 // loop_header_branch
                %151 = sbr.rel (%p149) target = $region35
              $region32: #{encoder_overall_forward.20} parent=27 // loop_body
                %v155 = vld [vmem:[%s153] sm:$0xff]
                %156 = vst [vmem:[%s154] sm:$0xff] %v155
                %v157 = vld [vmem:[%s153 + $0x8] sm:$0xff]
                %158 = vst [vmem:[%s154 + $0x8] sm:$0xff] %v157
                %v159 = vld [vmem:[%s153 + $0x20] sm:$0xff]
                %160 = vst [vmem:[%s154 + $0x10] sm:$0xff] %v159
                %v161 = vld [vmem:[%s153 + $0x28] sm:$0xff]
                %162 = vst [vmem:[%s154 + $0x18] sm:$0xff] %v161
                %v163 = vld [vmem:[%s153 + $0x40] sm:$0xff]
                %164 = vst [vmem:[%s154 + $0x20] sm:$0xff] %v163
                %v165 = vld [vmem:[%s153 + $0x48] sm:$0xff]
                %166 = vst [vmem:[%s154 + $0x28] sm:$0xff] %v165
                %v167 = vld [vmem:[%s153 + $0x60] sm:$0xff]
                %168 = vst [vmem:[%s154 + $0x30] sm:$0xff] %v167
                %v169 = vld [vmem:[%s153 + $0x68] sm:$0xff]
                %170 = vst [vmem:[%s154 + $0x38] sm:$0xff] %v169
                %v171 = vld [vmem:[%s153 + $0x80] sm:$0xff]
                %172 = vst [vmem:[%s154 + $0x40] sm:$0xff] %v171
                %v173 = vld [vmem:[%s153 + $0x88] sm:$0xff]
                %174 = vst [vmem:[%s154 + $0x48] sm:$0xff] %v173
                %v175 = vld [vmem:[%s153 + $0xa0] sm:$0xff]
                %176 = vst [vmem:[%s154 + $0x50] sm:$0xff] %v175
                %v177 = vld [vmem:[%s153 + $0xa8] sm:$0xff]
                %178 = vst [vmem:[%s154 + $0x58] sm:$0xff] %v177
                %v179 = vld [vmem:[%s153 + $0xc0] sm:$0xff]
                %180 = vst [vmem:[%s154 + $0x60] sm:$0xff] %v179
                %v181 = vld [vmem:[%s153 + $0xc8] sm:$0xff]
                %182 = vst [vmem:[%s154 + $0x68] sm:$0xff] %v181
                %v183 = vld [vmem:[%s153 + $0xe0] sm:$0xff]
                %184 = vst [vmem:[%s154 + $0x70] sm:$0xff] %v183
                %v185 = vld [vmem:[%s153 + $0xe8] sm:$0xff]
                %186 = vst [vmem:[%s154 + $0x78] sm:$0xff] %v185
                %v187 = vld [vmem:[%s153 + $0x100] sm:$0xff]
                %188 = vst [vmem:[%s154 + $0x80] sm:$0xff] %v187
                %v189 = vld [vmem:[%s153 + $0x108] sm:$0xff]
                %190 = vst [vmem:[%s154 + $0x88] sm:$0xff] %v189
                %v191 = vld [vmem:[%s153 + $0x120] sm:$0xff]
                %192 = vst [vmem:[%s154 + $0x90] sm:$0xff] %v191
                %v193 = vld [vmem:[%s153 + $0x128] sm:$0xff]
                %194 = vst [vmem:[%s154 + $0x98] sm:$0xff] %v193
                %v195 = vld [vmem:[%s153 + $0x140] sm:$0xff]
                %196 = vst [vmem:[%s154 + $0xa0] sm:$0xff] %v195
                %v197 = vld [vmem:[%s153 + $0x148] sm:$0xff]
                %198 = vst [vmem:[%s154 + $0xa8] sm:$0xff] %v197
                %v199 = vld [vmem:[%s153 + $0x160] sm:$0xff]
                %200 = vst [vmem:[%s154 + $0xb0] sm:$0xff] %v199
                %v201 = vld [vmem:[%s153 + $0x168] sm:$0xff]
                %202 = vst [vmem:[%s154 + $0xb8] sm:$0xff] %v201
                %v203 = vld [vmem:[%s153 + $0x180] sm:$0xff]
                %204 = vst [vmem:[%s154 + $0xc0] sm:$0xff] %v203
                %v205 = vld [vmem:[%s153 + $0x188] sm:$0xff]
                %206 = vst [vmem:[%s154 + $0xc8] sm:$0xff] %v205
                %v207 = vld [vmem:[%s153 + $0x1a0] sm:$0xff]
                %208 = vst [vmem:[%s154 + $0xd0] sm:$0xff] %v207
                %v209 = vld [vmem:[%s153 + $0x1a8] sm:$0xff]
                %210 = vst [vmem:[%s154 + $0xd8] sm:$0xff] %v209
                %v211 = vld [vmem:[%s153 + $0x1c0] sm:$0xff]
                %212 = vst [vmem:[%s154 + $0xe0] sm:$0xff] %v211
                %v213 = vld [vmem:[%s153 + $0x1c8] sm:$0xff]
                %214 = vst [vmem:[%s154 + $0xe8] sm:$0xff] %v213
                %v215 = vld [vmem:[%s153 + $0x1e0] sm:$0xff]
                %216 = vst [vmem:[%s154 + $0xf0] sm:$0xff] %v215
                %v217 = vld [vmem:[%s153 + $0x1e8] sm:$0xff]
                %218 = vst [vmem:[%s154 + $0xf8] sm:$0xff] %v217
                %v219 = vld [vmem:[%s153 + $0x200] sm:$0xff]
                %220 = vst [vmem:[%s154 + $0x100] sm:$0xff] %v219
                %v221 = vld [vmem:[%s153 + $0x208] sm:$0xff]
                %222 = vst [vmem:[%s154 + $0x108] sm:$0xff] %v221
                %v223 = vld [vmem:[%s153 + $0x220] sm:$0xff]
                %224 = vst [vmem:[%s154 + $0x110] sm:$0xff] %v223
                %v225 = vld [vmem:[%s153 + $0x228] sm:$0xff]
                %226 = vst [vmem:[%s154 + $0x118] sm:$0xff] %v225
                %v227 = vld [vmem:[%s153 + $0x240] sm:$0xff]
                %228 = vst [vmem:[%s154 + $0x120] sm:$0xff] %v227
                %v229 = vld [vmem:[%s153 + $0x248] sm:$0xff]
                %230 = vst [vmem:[%s154 + $0x128] sm:$0xff] %v229
                %v231 = vld [vmem:[%s153 + $0x260] sm:$0xff]
                %232 = vst [vmem:[%s154 + $0x130] sm:$0xff] %v231
                %v233 = vld [vmem:[%s153 + $0x268] sm:$0xff]
                %234 = vst [vmem:[%s154 + $0x138] sm:$0xff] %v233
                %v235 = vld [vmem:[%s153 + $0x280] sm:$0xff]
                %236 = vst [vmem:[%s154 + $0x140] sm:$0xff] %v235
                %v237 = vld [vmem:[%s153 + $0x288] sm:$0xff]
                %238 = vst [vmem:[%s154 + $0x148] sm:$0xff] %v237
                %v239 = vld [vmem:[%s153 + $0x2a0] sm:$0xff]
                %240 = vst [vmem:[%s154 + $0x150] sm:$0xff] %v239
                %v241 = vld [vmem:[%s153 + $0x2a8] sm:$0xff]
                %242 = vst [vmem:[%s154 + $0x158] sm:$0xff] %v241
                %v243 = vld [vmem:[%s153 + $0x2c0] sm:$0xff]
                %244 = vst [vmem:[%s154 + $0x160] sm:$0xff] %v243
                %v245 = vld [vmem:[%s153 + $0x2c8] sm:$0xff]
                %246 = vst [vmem:[%s154 + $0x168] sm:$0xff] %v245
                %v247 = vld [vmem:[%s153 + $0x2e0] sm:$0xff]
                %248 = vst [vmem:[%s154 + $0x170] sm:$0xff] %v247
                %v249 = vld [vmem:[%s153 + $0x2e8] sm:$0xff]
                %250 = vst [vmem:[%s154 + $0x178] sm:$0xff] %v249
                %v251 = vld [vmem:[%s153 + $0x300] sm:$0xff]
                %252 = vst [vmem:[%s154 + $0x180] sm:$0xff] %v251
                %v253 = vld [vmem:[%s153 + $0x308] sm:$0xff]
                %254 = vst [vmem:[%s154 + $0x188] sm:$0xff] %v253
                %v255 = vld [vmem:[%s153 + $0x320] sm:$0xff]
                %256 = vst [vmem:[%s154 + $0x190] sm:$0xff] %v255
                %v257 = vld [vmem:[%s153 + $0x328] sm:$0xff]
                %258 = vst [vmem:[%s154 + $0x198] sm:$0xff] %v257
                %v259 = vld [vmem:[%s153 + $0x340] sm:$0xff]
                %260 = vst [vmem:[%s154 + $0x1a0] sm:$0xff] %v259
                %v261 = vld [vmem:[%s153 + $0x348] sm:$0xff]
                %262 = vst [vmem:[%s154 + $0x1a8] sm:$0xff] %v261
                %v263 = vld [vmem:[%s153 + $0x360] sm:$0xff]
                %264 = vst [vmem:[%s154 + $0x1b0] sm:$0xff] %v263
                %v265 = vld [vmem:[%s153 + $0x368] sm:$0xff]
                %266 = vst [vmem:[%s154 + $0x1b8] sm:$0xff] %v265
                %v267 = vld [vmem:[%s153 + $0x380] sm:$0xff]
                %268 = vst [vmem:[%s154 + $0x1c0] sm:$0xff] %v267
                %v269 = vld [vmem:[%s153 + $0x388] sm:$0xff]
                %270 = vst [vmem:[%s154 + $0x1c8] sm:$0xff] %v269
                %v271 = vld [vmem:[%s153 + $0x3a0] sm:$0xff]
                %272 = vst [vmem:[%s154 + $0x1d0] sm:$0xff] %v271
                %v273 = vld [vmem:[%s153 + $0x3a8] sm:$0xff]
                %274 = vst [vmem:[%s154 + $0x1d8] sm:$0xff] %v273
                %v275 = vld [vmem:[%s153 + $0x3c0] sm:$0xff]
                %276 = vst [vmem:[%s154 + $0x1e0] sm:$0xff] %v275
                %v277 = vld [vmem:[%s153 + $0x3c8] sm:$0xff]
                %278 = vst [vmem:[%s154 + $0x1e8] sm:$0xff] %v277
                %v279 = vld [vmem:[%s153 + $0x3e0] sm:$0xff]
                %280 = vst [vmem:[%s154 + $0x1f0] sm:$0xff] %v279
                %v281 = vld [vmem:[%s153 + $0x3e8] sm:$0xff]
                %282 = vst [vmem:[%s154 + $0x1f8] sm:$0xff] %v281
              $region33: #{encoder_overall_forward.20} parent=27 // loop_footer
                %s152 = sadd.s32 1, %s148
              $region34: #{encoder_overall_forward.20} parent=27 // loop_footer_branch
                %147 = sbr.rel target = $region30
              $region35: #{encoder_overall_forward.20} parent=27 // loop_exit
                _
            $region28: #{encoder_overall_forward.20} parent=23 // pred_fallthru
              _
            // Predicated region
            $region36: #{encoder_overall_forward.20} parent=23 // pred_check
              _
            $region37: #{encoder_overall_forward.20} parent=23 // pred_check_branch
              %284 = sbr.rel target = $region39
            $region38: #{encoder_overall_forward.20} parent=23 // pred_region
              _
            $region39: #{encoder_overall_forward.20} parent=23 // pred_fallthru
              _
          $region24: #{encoder_overall_forward.20} parent=19 // pred_fallthru
            _
          %285 = vnop
        $region20: #{encoder_overall_forward.20} parent=15 // pred_fallthru
          _
        // Predicated region
        $region40: #{encoder_overall_forward.20} parent=15 // pred_check
          %p286 = pneg %p77
        $region41: #{encoder_overall_forward.20} parent=15 // pred_check_branch
          %288 = sbr.rel (%p286) target = $region43
        $region42: #{encoder_overall_forward.20} parent=15 // pred_region
          %s289 = smul.u32 32, %s17
          %s290 = smul.u32 2, %s16
          %p291 = scmp.lt.s32.totalorder %s289, 63
          %s292 = scalar_select %p291, %s289, 63
          %p293 = scmp.lt.s32.totalorder %s290, 1
          %s294 = scalar_select %p293, %s290, 1
          %s295 = smul.addr %s292, 2
          %s296 = sadd.s32 %s294, %s295
          %s297 = smul.addr %s296, 8
          %s298 = scalar_lea.vmem %s1, %s297
          %s299 = smul.u32 32, %s17
          %s300 = smul.u32 2, %s16
        $region43: #{encoder_overall_forward.20} parent=15 // pred_fallthru
          _
      $region16: #{encoder_overall_forward.20} parent=5 // pred_fallthru
        _
      %p301 = scmp.le.s32.totalorder 1, %s8
      %p302 = scmp.lt.s32.totalorder %s8, 5
      %p303 = pnand %p301, %p302
      %p304 = pneg %p303
      // Predicated region
      $region44: #{encoder_overall_forward.20} parent=5 // pred_check
        _
      $region45: #{encoder_overall_forward.20} parent=5 // pred_check_branch
        %306 = sbr.rel (%p303) target = $region47
      $region46: #{encoder_overall_forward.20} parent=5 // pred_region
        %s307 = ssub.s32 %s8, 1
        %s308 = sand.u32 %s42, 1
        %s309 = sand.u32 %s42, 1
        %s310 = smul.addr %s309, 512
        %s311 = scalar_lea.vmem [#allocation3], %s310
        // Predicated region
        $region48: #{encoder_overall_forward.20} parent=46 // pred_check
          %p312 = pneg %p55
        $region49: #{encoder_overall_forward.20} parent=46 // pred_check_branch
          %314 = sbr.rel (%p312) target = $region51
        $region50: #{encoder_overall_forward.20} parent=46 // pred_region
          _
        $region51: #{encoder_overall_forward.20} parent=46 // pred_fallthru
          _
        %s315 = sand.u32 %s42, 1
        %s316 = sand.u32 %s42, 1
        %s317 = smul.addr %s316, 512
        %s318 = scalar_lea.vmem [#allocation3], %s317
        %p319 = pneg %p55
        %p320 = pneg %p52
        %s321 = smul.u32 32, %s20
        %s322 = smul.u32 2, %s19
        %p323 = scmp.lt.s32.totalorder %s321, 63
        %s324 = scalar_select %p323, %s321, 63
        %p325 = scmp.lt.s32.totalorder %s322, 1
        %s326 = scalar_select %p325, %s322, 1
        %s327 = smul.addr %s324, 2
        %s328 = sadd.s32 %s326, %s327
        %s329 = smul.addr %s328, 8
        %s330 = scalar_lea.vmem %s1, %s329
        %p331 = pneg %p83
        %p332 = pneg %p80
        %p333 = pneg %p111
        %p334 = pneg %p108
        %s335 = smul.u32 32, %s18
        %s336 = smul.u32 2, %s19
        %p337 = scmp.lt.s32.totalorder %s335, 63
        %s338 = scalar_select %p337, %s335, 63
        %p339 = scmp.lt.s32.totalorder %s336, 1
        %s340 = scalar_select %p339, %s336, 1
        %s341 = smul.addr %s338, 2
        %s342 = sadd.s32 %s340, %s341
        %s343 = smul.addr %s342, 8
        %s344 = scalar_lea.vmem %s2, %s343
        %s345 = smul.u32 32, %s18
        %s346 = smul.u32 2, %s20
        %s347 = smul.u32 32, %s20
        %s348 = smul.u32 2, %s19
        %p349 = scmp.lt.s32.totalorder %s347, 63
        %s350 = scalar_select %p349, %s347, 63
        %p351 = scmp.lt.s32.totalorder %s348, 1
        %s352 = scalar_select %p351, %s348, 1
        %s353 = smul.addr %s350, 2
        %s354 = sadd.s32 %s352, %s353
        %s355 = smul.addr %s354, 8
        %s356 = scalar_lea.vmem %s1, %s355
        %s357 = smul.u32 32, %s20
        %s358 = smul.u32 2, %s19
        %s359 = smul.u32 32, %s18
        %s360 = smul.u32 2, %s19
        %p361 = scmp.lt.s32.totalorder %s359, 63
        %s362 = scalar_select %p361, %s359, 63
        %p363 = scmp.lt.s32.totalorder %s360, 1
        %s364 = scalar_select %p363, %s360, 1
        %s365 = smul.addr %s362, 2
        %s366 = sadd.s32 %s364, %s365
        %s367 = smul.addr %s366, 8
        %s368 = scalar_lea.vmem %s2, %s367
        %s369 = smul.u32 32, %s18
        %s370 = smul.u32 2, %s19
        %p371 = scmp.eq.s32.totalorder %s20, 0
        // Predicated region
        $region52: #{encoder_overall_forward.20} parent=46 // pred_check
          %p372 = pneg %p371
        $region53: #{encoder_overall_forward.20} parent=46 // pred_check_branch
          %374 = sbr.rel (%p372) target = $region55
        $region54: #{encoder_overall_forward.20} parent=46 // pred_region
          %375 = vst [vmem:[#allocation2] sm:$0xff] 0.0
          %376 = vst [vmem:[#allocation2 + $0x8] sm:$0xff] 0.0
          %377 = vst [vmem:[#allocation2 + $0x10] sm:$0xff] 0.0
          %378 = vst [vmem:[#allocation2 + $0x18] sm:$0xff] 0.0
          %379 = vst [vmem:[#allocation2 + $0x20] sm:$0xff] 0.0
          %380 = vst [vmem:[#allocation2 + $0x28] sm:$0xff] 0.0
          %381 = vst [vmem:[#allocation2 + $0x30] sm:$0xff] 0.0
          %382 = vst [vmem:[#allocation2 + $0x38] sm:$0xff] 0.0
          %383 = vst [vmem:[#allocation2 + $0x40] sm:$0xff] 0.0
          %384 = vst [vmem:[#allocation2 + $0x48] sm:$0xff] 0.0
          %385 = vst [vmem:[#allocation2 + $0x50] sm:$0xff] 0.0
          %386 = vst [vmem:[#allocation2 + $0x58] sm:$0xff] 0.0
          %387 = vst [vmem:[#allocation2 + $0x60] sm:$0xff] 0.0
          %388 = vst [vmem:[#allocation2 + $0x68] sm:$0xff] 0.0
          %389 = vst [vmem:[#allocation2 + $0x70] sm:$0xff] 0.0
          %390 = vst [vmem:[#allocation2 + $0x78] sm:$0xff] 0.0
          %391 = vst [vmem:[#allocation2 + $0x80] sm:$0xff] 0.0
          %392 = vst [vmem:[#allocation2 + $0x88] sm:$0xff] 0.0
          %393 = vst [vmem:[#allocation2 + $0x90] sm:$0xff] 0.0
          %394 = vst [vmem:[#allocation2 + $0x98] sm:$0xff] 0.0
          %395 = vst [vmem:[#allocation2 + $0xa0] sm:$0xff] 0.0
          %396 = vst [vmem:[#allocation2 + $0xa8] sm:$0xff] 0.0
          %397 = vst [vmem:[#allocation2 + $0xb0] sm:$0xff] 0.0
          %398 = vst [vmem:[#allocation2 + $0xb8] sm:$0xff] 0.0
          %399 = vst [vmem:[#allocation2 + $0xc0] sm:$0xff] 0.0
          %400 = vst [vmem:[#allocation2 + $0xc8] sm:$0xff] 0.0
          %401 = vst [vmem:[#allocation2 + $0xd0] sm:$0xff] 0.0
          %402 = vst [vmem:[#allocation2 + $0xd8] sm:$0xff] 0.0
          %403 = vst [vmem:[#allocation2 + $0xe0] sm:$0xff] 0.0
          %404 = vst [vmem:[#allocation2 + $0xe8] sm:$0xff] 0.0
          %405 = vst [vmem:[#allocation2 + $0xf0] sm:$0xff] 0.0
          %406 = vst [vmem:[#allocation2 + $0xf8] sm:$0xff] 0.0
          %407 = vst [vmem:[#allocation2 + $0x100] sm:$0xff] 0.0
          %408 = vst [vmem:[#allocation2 + $0x108] sm:$0xff] 0.0
          %409 = vst [vmem:[#allocation2 + $0x110] sm:$0xff] 0.0
          %410 = vst [vmem:[#allocation2 + $0x118] sm:$0xff] 0.0
          %411 = vst [vmem:[#allocation2 + $0x120] sm:$0xff] 0.0
          %412 = vst [vmem:[#allocation2 + $0x128] sm:$0xff] 0.0
          %413 = vst [vmem:[#allocation2 + $0x130] sm:$0xff] 0.0
          %414 = vst [vmem:[#allocation2 + $0x138] sm:$0xff] 0.0
          %415 = vst [vmem:[#allocation2 + $0x140] sm:$0xff] 0.0
          %416 = vst [vmem:[#allocation2 + $0x148] sm:$0xff] 0.0
          %417 = vst [vmem:[#allocation2 + $0x150] sm:$0xff] 0.0
          %418 = vst [vmem:[#allocation2 + $0x158] sm:$0xff] 0.0
          %419 = vst [vmem:[#allocation2 + $0x160] sm:$0xff] 0.0
          %420 = vst [vmem:[#allocation2 + $0x168] sm:$0xff] 0.0
          %421 = vst [vmem:[#allocation2 + $0x170] sm:$0xff] 0.0
          %422 = vst [vmem:[#allocation2 + $0x178] sm:$0xff] 0.0
          %423 = vst [vmem:[#allocation2 + $0x180] sm:$0xff] 0.0
          %424 = vst [vmem:[#allocation2 + $0x188] sm:$0xff] 0.0
          %425 = vst [vmem:[#allocation2 + $0x190] sm:$0xff] 0.0
          %426 = vst [vmem:[#allocation2 + $0x198] sm:$0xff] 0.0
          %427 = vst [vmem:[#allocation2 + $0x1a0] sm:$0xff] 0.0
          %428 = vst [vmem:[#allocation2 + $0x1a8] sm:$0xff] 0.0
          %429 = vst [vmem:[#allocation2 + $0x1b0] sm:$0xff] 0.0
          %430 = vst [vmem:[#allocation2 + $0x1b8] sm:$0xff] 0.0
          %431 = vst [vmem:[#allocation2 + $0x1c0] sm:$0xff] 0.0
          %432 = vst [vmem:[#allocation2 + $0x1c8] sm:$0xff] 0.0
          %433 = vst [vmem:[#allocation2 + $0x1d0] sm:$0xff] 0.0
          %434 = vst [vmem:[#allocation2 + $0x1d8] sm:$0xff] 0.0
          %435 = vst [vmem:[#allocation2 + $0x1e0] sm:$0xff] 0.0
          %436 = vst [vmem:[#allocation2 + $0x1e8] sm:$0xff] 0.0
          %437 = vst [vmem:[#allocation2 + $0x1f0] sm:$0xff] 0.0
          %438 = vst [vmem:[#allocation2 + $0x1f8] sm:$0xff] 0.0
        $region55: #{encoder_overall_forward.20} parent=46 // pred_fallthru
          _
        %v439 = vld [vmem:[#allocation2] sm:$0xff]
        %v440 = vld [vmem:[#allocation2 + $0x8] sm:$0xff]
        %v441 = vld [vmem:[#allocation2 + $0x10] sm:$0xff]
        %v442 = vld [vmem:[#allocation2 + $0x18] sm:$0xff]
        %v443 = vld [vmem:[#allocation2 + $0x20] sm:$0xff]
        %v444 = vld [vmem:[#allocation2 + $0x28] sm:$0xff]
        %v445 = vld [vmem:[#allocation2 + $0x30] sm:$0xff]
        %v446 = vld [vmem:[#allocation2 + $0x38] sm:$0xff]
        %v447 = vld [vmem:[#allocation2 + $0x40] sm:$0xff]
        %v448 = vld [vmem:[#allocation2 + $0x48] sm:$0xff]
        %v449 = vld [vmem:[#allocation2 + $0x50] sm:$0xff]
        %v450 = vld [vmem:[#allocation2 + $0x58] sm:$0xff]
        %v451 = vld [vmem:[#allocation2 + $0x60] sm:$0xff]
        %v452 = vld [vmem:[#allocation2 + $0x68] sm:$0xff]
        %v453 = vld [vmem:[#allocation2 + $0x70] sm:$0xff]
        %v454 = vld [vmem:[#allocation2 + $0x78] sm:$0xff]
        %v455 = vld [vmem:[#allocation2 + $0x80] sm:$0xff]
        %v456 = vld [vmem:[#allocation2 + $0x88] sm:$0xff]
        %v457 = vld [vmem:[#allocation2 + $0x90] sm:$0xff]
        %v458 = vld [vmem:[#allocation2 + $0x98] sm:$0xff]
        %v459 = vld [vmem:[#allocation2 + $0xa0] sm:$0xff]
        %v460 = vld [vmem:[#allocation2 + $0xa8] sm:$0xff]
        %v461 = vld [vmem:[#allocation2 + $0xb0] sm:$0xff]
        %v462 = vld [vmem:[#allocation2 + $0xb8] sm:$0xff]
        %v463 = vld [vmem:[#allocation2 + $0xc0] sm:$0xff]
        %v464 = vld [vmem:[#allocation2 + $0xc8] sm:$0xff]
        %v465 = vld [vmem:[#allocation2 + $0xd0] sm:$0xff]
        %v466 = vld [vmem:[#allocation2 + $0xd8] sm:$0xff]
        %v467 = vld [vmem:[#allocation2 + $0xe0] sm:$0xff]
        %v468 = vld [vmem:[#allocation2 + $0xe8] sm:$0xff]
        %v469 = vld [vmem:[#allocation2 + $0xf0] sm:$0xff]
        %v470 = vld [vmem:[#allocation2 + $0xf8] sm:$0xff]
        %v471 = vld [vmem:[#allocation2 + $0x100] sm:$0xff]
        %v472 = vld [vmem:[#allocation2 + $0x108] sm:$0xff]
        %v473 = vld [vmem:[#allocation2 + $0x110] sm:$0xff]
        %v474 = vld [vmem:[#allocation2 + $0x118] sm:$0xff]
        %v475 = vld [vmem:[#allocation2 + $0x120] sm:$0xff]
        %v476 = vld [vmem:[#allocation2 + $0x128] sm:$0xff]
        %v477 = vld [vmem:[#allocation2 + $0x130] sm:$0xff]
        %v478 = vld [vmem:[#allocation2 + $0x138] sm:$0xff]
        %v479 = vld [vmem:[#allocation2 + $0x140] sm:$0xff]
        %v480 = vld [vmem:[#allocation2 + $0x148] sm:$0xff]
        %v481 = vld [vmem:[#allocation2 + $0x150] sm:$0xff]
        %v482 = vld [vmem:[#allocation2 + $0x158] sm:$0xff]
        %v483 = vld [vmem:[#allocation2 + $0x160] sm:$0xff]
        %v484 = vld [vmem:[#allocation2 + $0x168] sm:$0xff]
        %v485 = vld [vmem:[#allocation2 + $0x170] sm:$0xff]
        %v486 = vld [vmem:[#allocation2 + $0x178] sm:$0xff]
        %v487 = vld [vmem:[#allocation2 + $0x180] sm:$0xff]
        %v488 = vld [vmem:[#allocation2 + $0x188] sm:$0xff]
        %v489 = vld [vmem:[#allocation2 + $0x190] sm:$0xff]
        %v490 = vld [vmem:[#allocation2 + $0x198] sm:$0xff]
        %v491 = vld [vmem:[#allocation2 + $0x1a0] sm:$0xff]
        %v492 = vld [vmem:[#allocation2 + $0x1a8] sm:$0xff]
        %v493 = vld [vmem:[#allocation2 + $0x1b0] sm:$0xff]
        %v494 = vld [vmem:[#allocation2 + $0x1b8] sm:$0xff]
        %v495 = vld [vmem:[#allocation2 + $0x1c0] sm:$0xff]
        %v496 = vld [vmem:[#allocation2 + $0x1c8] sm:$0xff]
        %v497 = vld [vmem:[#allocation2 + $0x1d0] sm:$0xff]
        %v498 = vld [vmem:[#allocation2 + $0x1d8] sm:$0xff]
        %v499 = vld [vmem:[#allocation2 + $0x1e0] sm:$0xff]
        %v500 = vld [vmem:[#allocation2 + $0x1e8] sm:$0xff]
        %v501 = vld [vmem:[#allocation2 + $0x1f0] sm:$0xff]
        %v502 = vld [vmem:[#allocation2 + $0x1f8] sm:$0xff]
        %v503 = vld [vmem:[%s311] sm:$0xff]
        %v504 = vld [vmem:[%s311 + $0x8] sm:$0xff]
        %v505 = vld [vmem:[%s311 + $0x10] sm:$0xff]
        %v506 = vld [vmem:[%s311 + $0x18] sm:$0xff]
        %v507 = vld [vmem:[%s311 + $0x20] sm:$0xff]
        %v508 = vld [vmem:[%s311 + $0x28] sm:$0xff]
        %v509 = vld [vmem:[%s311 + $0x30] sm:$0xff]
        %v510 = vld [vmem:[%s311 + $0x38] sm:$0xff]
        %v511 = vld [vmem:[%s311 + $0x40] sm:$0xff]
        %v512 = vld [vmem:[%s311 + $0x48] sm:$0xff]
        %v513 = vld [vmem:[%s311 + $0x50] sm:$0xff]
        %v514 = vld [vmem:[%s311 + $0x58] sm:$0xff]
        %v515 = vld [vmem:[%s311 + $0x60] sm:$0xff]
        %v516 = vld [vmem:[%s311 + $0x68] sm:$0xff]
        %v517 = vld [vmem:[%s311 + $0x70] sm:$0xff]
        %v518 = vld [vmem:[%s311 + $0x78] sm:$0xff]
        %v519 = vld [vmem:[%s311 + $0x80] sm:$0xff]
        %v520 = vld [vmem:[%s311 + $0x88] sm:$0xff]
        %v521 = vld [vmem:[%s311 + $0x90] sm:$0xff]
        %v522 = vld [vmem:[%s311 + $0x98] sm:$0xff]
        %v523 = vld [vmem:[%s311 + $0xa0] sm:$0xff]
        %v524 = vld [vmem:[%s311 + $0xa8] sm:$0xff]
        %v525 = vld [vmem:[%s311 + $0xb0] sm:$0xff]
        %v526 = vld [vmem:[%s311 + $0xb8] sm:$0xff]
        %v527 = vld [vmem:[%s311 + $0xc0] sm:$0xff]
        %v528 = vld [vmem:[%s311 + $0xc8] sm:$0xff]
        %v529 = vld [vmem:[%s311 + $0xd0] sm:$0xff]
        %v530 = vld [vmem:[%s311 + $0xd8] sm:$0xff]
        %v531 = vld [vmem:[%s311 + $0xe0] sm:$0xff]
        %v532 = vld [vmem:[%s311 + $0xe8] sm:$0xff]
        %v533 = vld [vmem:[%s311 + $0xf0] sm:$0xff]
        %v534 = vld [vmem:[%s311 + $0xf8] sm:$0xff]
        %v535 = vld [vmem:[%s311 + $0x100] sm:$0xff]
        %v536 = vld [vmem:[%s311 + $0x108] sm:$0xff]
        %v537 = vld [vmem:[%s311 + $0x110] sm:$0xff]
        %v538 = vld [vmem:[%s311 + $0x118] sm:$0xff]
        %v539 = vld [vmem:[%s311 + $0x120] sm:$0xff]
        %v540 = vld [vmem:[%s311 + $0x128] sm:$0xff]
        %v541 = vld [vmem:[%s311 + $0x130] sm:$0xff]
        %v542 = vld [vmem:[%s311 + $0x138] sm:$0xff]
        %v543 = vld [vmem:[%s311 + $0x140] sm:$0xff]
        %v544 = vld [vmem:[%s311 + $0x148] sm:$0xff]
        %v545 = vld [vmem:[%s311 + $0x150] sm:$0xff]
        %v546 = vld [vmem:[%s311 + $0x158] sm:$0xff]
        %v547 = vld [vmem:[%s311 + $0x160] sm:$0xff]
        %v548 = vld [vmem:[%s311 + $0x168] sm:$0xff]
        %v549 = vld [vmem:[%s311 + $0x170] sm:$0xff]
        %v550 = vld [vmem:[%s311 + $0x178] sm:$0xff]
        %v551 = vld [vmem:[%s311 + $0x180] sm:$0xff]
        %v552 = vld [vmem:[%s311 + $0x188] sm:$0xff]
        %v553 = vld [vmem:[%s311 + $0x190] sm:$0xff]
        %v554 = vld [vmem:[%s311 + $0x198] sm:$0xff]
        %v555 = vld [vmem:[%s311 + $0x1a0] sm:$0xff]
        %v556 = vld [vmem:[%s311 + $0x1a8] sm:$0xff]
        %v557 = vld [vmem:[%s311 + $0x1b0] sm:$0xff]
        %v558 = vld [vmem:[%s311 + $0x1b8] sm:$0xff]
        %v559 = vld [vmem:[%s311 + $0x1c0] sm:$0xff]
        %v560 = vld [vmem:[%s311 + $0x1c8] sm:$0xff]
        %v561 = vld [vmem:[%s311 + $0x1d0] sm:$0xff]
        %v562 = vld [vmem:[%s311 + $0x1d8] sm:$0xff]
        %v563 = vld [vmem:[%s311 + $0x1e0] sm:$0xff]
        %v564 = vld [vmem:[%s311 + $0x1e8] sm:$0xff]
        %v565 = vld [vmem:[%s311 + $0x1f0] sm:$0xff]
        %v566 = vld [vmem:[%s311 + $0x1f8] sm:$0xff]
        %v567 = vld [vmem:[%s356] sm:$0xff]
        %v568 = vld [vmem:[%s356 + $0x8] sm:$0xff]
        %v569 = vld [vmem:[%s356 + $0x10] sm:$0xff]
        %v570 = vld [vmem:[%s356 + $0x18] sm:$0xff]
        %v571 = vld [vmem:[%s356 + $0x20] sm:$0xff]
        %v572 = vld [vmem:[%s356 + $0x28] sm:$0xff]
        %v573 = vld [vmem:[%s356 + $0x30] sm:$0xff]
        %v574 = vld [vmem:[%s356 + $0x38] sm:$0xff]
        %v575 = vld [vmem:[%s356 + $0x40] sm:$0xff]
        %v576 = vld [vmem:[%s356 + $0x48] sm:$0xff]
        %v577 = vld [vmem:[%s356 + $0x50] sm:$0xff]
        %v578 = vld [vmem:[%s356 + $0x58] sm:$0xff]
        %v579 = vld [vmem:[%s356 + $0x60] sm:$0xff]
        %v580 = vld [vmem:[%s356 + $0x68] sm:$0xff]
        %v581 = vld [vmem:[%s356 + $0x70] sm:$0xff]
        %v582 = vld [vmem:[%s356 + $0x78] sm:$0xff]
        %v583 = vld [vmem:[%s356 + $0x80] sm:$0xff]
        %v584 = vld [vmem:[%s356 + $0x88] sm:$0xff]
        %v585 = vld [vmem:[%s356 + $0x90] sm:$0xff]
        %v586 = vld [vmem:[%s356 + $0x98] sm:$0xff]
        %v587 = vld [vmem:[%s356 + $0xa0] sm:$0xff]
        %v588 = vld [vmem:[%s356 + $0xa8] sm:$0xff]
        %v589 = vld [vmem:[%s356 + $0xb0] sm:$0xff]
        %v590 = vld [vmem:[%s356 + $0xb8] sm:$0xff]
        %v591 = vld [vmem:[%s356 + $0xc0] sm:$0xff]
        %v592 = vld [vmem:[%s356 + $0xc8] sm:$0xff]
        %v593 = vld [vmem:[%s356 + $0xd0] sm:$0xff]
        %v594 = vld [vmem:[%s356 + $0xd8] sm:$0xff]
        %v595 = vld [vmem:[%s356 + $0xe0] sm:$0xff]
        %v596 = vld [vmem:[%s356 + $0xe8] sm:$0xff]
        %v597 = vld [vmem:[%s356 + $0xf0] sm:$0xff]
        %v598 = vld [vmem:[%s356 + $0xf8] sm:$0xff]
        %v599 = vld [vmem:[%s356 + $0x100] sm:$0xff]
        %v600 = vld [vmem:[%s356 + $0x108] sm:$0xff]
        %v601 = vld [vmem:[%s356 + $0x110] sm:$0xff]
        %v602 = vld [vmem:[%s356 + $0x118] sm:$0xff]
        %v603 = vld [vmem:[%s356 + $0x120] sm:$0xff]
        %v604 = vld [vmem:[%s356 + $0x128] sm:$0xff]
        %v605 = vld [vmem:[%s356 + $0x130] sm:$0xff]
        %v606 = vld [vmem:[%s356 + $0x138] sm:$0xff]
        %v607 = vld [vmem:[%s356 + $0x140] sm:$0xff]
        %v608 = vld [vmem:[%s356 + $0x148] sm:$0xff]
        %v609 = vld [vmem:[%s356 + $0x150] sm:$0xff]
        %v610 = vld [vmem:[%s356 + $0x158] sm:$0xff]
        %v611 = vld [vmem:[%s356 + $0x160] sm:$0xff]
        %v612 = vld [vmem:[%s356 + $0x168] sm:$0xff]
        %v613 = vld [vmem:[%s356 + $0x170] sm:$0xff]
        %v614 = vld [vmem:[%s356 + $0x178] sm:$0xff]
        %v615 = vld [vmem:[%s356 + $0x180] sm:$0xff]
        %v616 = vld [vmem:[%s356 + $0x188] sm:$0xff]
        %v617 = vld [vmem:[%s356 + $0x190] sm:$0xff]
        %v618 = vld [vmem:[%s356 + $0x198] sm:$0xff]
        %v619 = vld [vmem:[%s356 + $0x1a0] sm:$0xff]
        %v620 = vld [vmem:[%s356 + $0x1a8] sm:$0xff]
        %v621 = vld [vmem:[%s356 + $0x1b0] sm:$0xff]
        %v622 = vld [vmem:[%s356 + $0x1b8] sm:$0xff]
        %v623 = vld [vmem:[%s356 + $0x1c0] sm:$0xff]
        %v624 = vld [vmem:[%s356 + $0x1c8] sm:$0xff]
        %v625 = vld [vmem:[%s356 + $0x1d0] sm:$0xff]
        %v626 = vld [vmem:[%s356 + $0x1d8] sm:$0xff]
        %v627 = vld [vmem:[%s356 + $0x1e0] sm:$0xff]
        %v628 = vld [vmem:[%s356 + $0x1e8] sm:$0xff]
        %v629 = vld [vmem:[%s356 + $0x1f0] sm:$0xff]
        %v630 = vld [vmem:[%s356 + $0x1f8] sm:$0xff]
        %631 = vmatprep.subr.mxu0 %v568
        %632 = vmatpush1.msra.mxu0 %v567
        %633 = vmatprep.subr.mxu0 %v570
        %634 = vmatpush1.msra.mxu0 %v569
        %635 = vmatprep.subr.mxu0 %v572
        %636 = vmatpush1.msra.mxu0 %v571
        %637 = vmatprep.subr.mxu0 %v574
        %638 = vmatpush1.msra.mxu0 %v573
        %639 = vmatprep.subr.mxu0 %v576
        %640 = vmatpush1.msra.mxu0 %v575
        %641 = vmatprep.subr.mxu0 %v578
        %642 = vmatpush1.msra.mxu0 %v577
        %643 = vmatprep.subr.mxu0 %v580
        %644 = vmatpush1.msra.mxu0 %v579
        %645 = vmatprep.subr.mxu0 %v582
        %646 = vmatpush1.msra.mxu0 %v581
        %647 = vmatprep.subr.mxu0 %v584
        %648 = vmatpush1.msra.mxu0 %v583
        %649 = vmatprep.subr.mxu0 %v586
        %650 = vmatpush1.msra.mxu0 %v585
        %651 = vmatprep.subr.mxu0 %v588
        %652 = vmatpush1.msra.mxu0 %v587
        %653 = vmatprep.subr.mxu0 %v590
        %654 = vmatpush1.msra.mxu0 %v589
        %655 = vmatprep.subr.mxu0 %v592
        %656 = vmatpush1.msra.mxu0 %v591
        %657 = vmatprep.subr.mxu0 %v594
        %658 = vmatpush1.msra.mxu0 %v593
        %659 = vmatprep.subr.mxu0 %v596
        %660 = vmatpush1.msra.mxu0 %v595
        %661 = vmatprep.subr.mxu0 %v598
        %662 = vmatpush1.msra.mxu0 %v597
        %663 = vmatprep.subr.mxu0 %v600
        %664 = vmatpush1.msra.mxu0 %v599
        %665 = vmatprep.subr.mxu0 %v602
        %666 = vmatpush1.msra.mxu0 %v601
        %667 = vmatprep.subr.mxu0 %v604
        %668 = vmatpush1.msra.mxu0 %v603
        %669 = vmatprep.subr.mxu0 %v606
        %670 = vmatpush1.msra.mxu0 %v605
        %671 = vmatprep.subr.mxu0 %v608
        %672 = vmatpush1.msra.mxu0 %v607
        %673 = vmatprep.subr.mxu0 %v610
        %674 = vmatpush1.msra.mxu0 %v609
        %675 = vmatprep.subr.mxu0 %v612
        %676 = vmatpush1.msra.mxu0 %v611
        %677 = vmatprep.subr.mxu0 %v614
        %678 = vmatpush1.msra.mxu0 %v613
        %679 = vmatprep.subr.mxu0 %v616
        %680 = vmatpush1.msra.mxu0 %v615
        %681 = vmatprep.subr.mxu0 %v618
        %682 = vmatpush1.msra.mxu0 %v617
        %683 = vmatprep.subr.mxu0 %v620
        %684 = vmatpush1.msra.mxu0 %v619
        %685 = vmatprep.subr.mxu0 %v622
        %686 = vmatpush1.msra.mxu0 %v621
        %687 = vmatprep.subr.mxu0 %v624
        %688 = vmatpush1.msra.mxu0 %v623
        %689 = vmatprep.subr.mxu0 %v626
        %690 = vmatpush1.msra.mxu0 %v625
        %691 = vmatprep.subr.mxu0 %v628
        %692 = vmatpush1.msra.mxu0 %v627
        %693 = vmatprep.subr.mxu0 %v630
        %694 = vmatpush1.msra.mxu0 %v629
        %695 = vmatprep.mubr.f32.mxu0 %v504
        %696 = vmatmul.mubr.f32.gmra.mrb[0].mxu0 %v503
        %v697 = vpop.f32.mrb[0].mxu0
        %v698 = vadd.f32 0.0, %v697
        %v699 = vpop.f32.mrb[0].mxu0
        %v700 = vadd.f32 0.0, %v699
        %701 = vmatprep.mubr.f32.mxu0 %v506
        %702 = vmatmul.mubr.f32.gmra.mrb[0].mxu0 %v505
        %v703 = vpop.f32.mrb[0].mxu0
        %v704 = vadd.f32 0.0, %v703
        %v705 = vpop.f32.mrb[0].mxu0
        %v706 = vadd.f32 0.0, %v705
        %707 = vmatprep.mubr.f32.mxu0 %v508
        %708 = vmatmul.mubr.f32.gmra.mrb[0].mxu0 %v507
        %v709 = vpop.f32.mrb[0].mxu0
        %v710 = vadd.f32 0.0, %v709
        %v711 = vpop.f32.mrb[0].mxu0
        %v712 = vadd.f32 0.0, %v711
        %713 = vmatprep.mubr.f32.mxu0 %v510
        %714 = vmatmul.mubr.f32.gmra.mrb[0].mxu0 %v509
        %v715 = vpop.f32.mrb[0].mxu0
        %v716 = vadd.f32 0.0, %v715
        %v717 = vpop.f32.mrb[0].mxu0
        %v718 = vadd.f32 0.0, %v717
        %719 = vmatprep.mubr.f32.mxu0 %v512
        %720 = vmatmul.mubr.f32.gmra.mrb[0].mxu0 %v511
        %v721 = vpop.f32.mrb[0].mxu0
        %v722 = vadd.f32 0.0, %v721
        %v723 = vpop.f32.mrb[0].mxu0
        %v724 = vadd.f32 0.0, %v723
        %725 = vmatprep.mubr.f32.mxu0 %v514
        %726 = vmatmul.mubr.f32.gmra.mrb[0].mxu0 %v513
        %v727 = vpop.f32.mrb[0].mxu0
        %v728 = vadd.f32 0.0, %v727
        %v729 = vpop.f32.mrb[0].mxu0
        %v730 = vadd.f32 0.0, %v729
        %731 = vmatprep.mubr.f32.mxu0 %v516
        %732 = vmatmul.mubr.f32.gmra.mrb[0].mxu0 %v515
        %v733 = vpop.f32.mrb[0].mxu0
        %v734 = vadd.f32 0.0, %v733
        %v735 = vpop.f32.mrb[0].mxu0
        %v736 = vadd.f32 0.0, %v735
        %737 = vmatprep.mubr.f32.mxu0 %v518
        %738 = vmatmul.mubr.f32.gmra.mrb[0].mxu0 %v517
        %v739 = vpop.f32.mrb[0].mxu0
        %v740 = vadd.f32 0.0, %v739
        %v741 = vpop.f32.mrb[0].mxu0
        %v742 = vadd.f32 0.0, %v741
        %743 = vmatprep.mubr.f32.mxu0 %v520
        %744 = vmatmul.mubr.f32.gmra.mrb[0].mxu0 %v519
        %v745 = vpop.f32.mrb[0].mxu0
        %v746 = vadd.f32 0.0, %v745
        %v747 = vpop.f32.mrb[0].mxu0
        %v748 = vadd.f32 0.0, %v747
        %749 = vmatprep.mubr.f32.mxu0 %v522
        %750 = vmatmul.mubr.f32.gmra.mrb[0].mxu0 %v521
        %v751 = vpop.f32.mrb[0].mxu0
        %v752 = vadd.f32 0.0, %v751
        %v753 = vpop.f32.mrb[0].mxu0
        %v754 = vadd.f32 0.0, %v753
        %755 = vmatprep.mubr.f32.mxu0 %v524
        %756 = vmatmul.mubr.f32.gmra.mrb[0].mxu0 %v523
        %v757 = vpop.f32.mrb[0].mxu0
        %v758 = vadd.f32 0.0, %v757
        %v759 = vpop.f32.mrb[0].mxu0
        %v760 = vadd.f32 0.0, %v759
        %761 = vmatprep.mubr.f32.mxu0 %v526
        %762 = vmatmul.mubr.f32.gmra.mrb[0].mxu0 %v525
        %v763 = vpop.f32.mrb[0].mxu0
        %v764 = vadd.f32 0.0, %v763
        %v765 = vpop.f32.mrb[0].mxu0
        %v766 = vadd.f32 0.0, %v765
        %767 = vmatprep.mubr.f32.mxu0 %v528
        %768 = vmatmul.mubr.f32.gmra.mrb[0].mxu0 %v527
        %v769 = vpop.f32.mrb[0].mxu0
        %v770 = vadd.f32 0.0, %v769
        %v771 = vpop.f32.mrb[0].mxu0
        %v772 = vadd.f32 0.0, %v771
        %773 = vmatprep.mubr.f32.mxu0 %v530
        %774 = vmatmul.mubr.f32.gmra.mrb[0].mxu0 %v529
        %v775 = vpop.f32.mrb[0].mxu0
        %v776 = vadd.f32 0.0, %v775
        %v777 = vpop.f32.mrb[0].mxu0
        %v778 = vadd.f32 0.0, %v777
        %779 = vmatprep.mubr.f32.mxu0 %v532
        %780 = vmatmul.mubr.f32.gmra.mrb[0].mxu0 %v531
        %v781 = vpop.f32.mrb[0].mxu0
        %v782 = vadd.f32 0.0, %v781
        %v783 = vpop.f32.mrb[0].mxu0
        %v784 = vadd.f32 0.0, %v783
        %785 = vmatprep.mubr.f32.mxu0 %v534
        %786 = vmatmul.mubr.f32.gmra.mrb[0].mxu0 %v533
        %v787 = vpop.f32.mrb[0].mxu0
        %v788 = vadd.f32 0.0, %v787
        %v789 = vpop.f32.mrb[0].mxu0
        %v790 = vadd.f32 0.0, %v789
        %791 = vmatprep.mubr.f32.mxu0 %v536
        %792 = vmatmul.mubr.f32.gmra.mrb[0].mxu0 %v535
        %v793 = vpop.f32.mrb[0].mxu0
        %v794 = vadd.f32 0.0, %v793
        %v795 = vpop.f32.mrb[0].mxu0
        %v796 = vadd.f32 0.0, %v795
        %797 = vmatprep.mubr.f32.mxu0 %v538
        %798 = vmatmul.mubr.f32.gmra.mrb[0].mxu0 %v537
        %v799 = vpop.f32.mrb[0].mxu0
        %v800 = vadd.f32 0.0, %v799
        %v801 = vpop.f32.mrb[0].mxu0
        %v802 = vadd.f32 0.0, %v801
        %803 = vmatprep.mubr.f32.mxu0 %v540
        %804 = vmatmul.mubr.f32.gmra.mrb[0].mxu0 %v539
        %v805 = vpop.f32.mrb[0].mxu0
        %v806 = vadd.f32 0.0, %v805
        %v807 = vpop.f32.mrb[0].mxu0
        %v808 = vadd.f32 0.0, %v807
        %809 = vmatprep.mubr.f32.mxu0 %v542
        %810 = vmatmul.mubr.f32.gmra.mrb[0].mxu0 %v541
        %v811 = vpop.f32.mrb[0].mxu0
        %v812 = vadd.f32 0.0, %v811
        %v813 = vpop.f32.mrb[0].mxu0
        %v814 = vadd.f32 0.0, %v813
        %815 = vmatprep.mubr.f32.mxu0 %v544
        %816 = vmatmul.mubr.f32.gmra.mrb[0].mxu0 %v543
        %v817 = vpop.f32.mrb[0].mxu0
        %v818 = vadd.f32 0.0, %v817
        %v819 = vpop.f32.mrb[0].mxu0
        %v820 = vadd.f32 0.0, %v819
        %821 = vmatprep.mubr.f32.mxu0 %v546
        %822 = vmatmul.mubr.f32.gmra.mrb[0].mxu0 %v545
        %v823 = vpop.f32.mrb[0].mxu0
        %v824 = vadd.f32 0.0, %v823
        %v825 = vpop.f32.mrb[0].mxu0
        %v826 = vadd.f32 0.0, %v825
        %827 = vmatprep.mubr.f32.mxu0 %v548
        %828 = vmatmul.mubr.f32.gmra.mrb[0].mxu0 %v547
        %v829 = vpop.f32.mrb[0].mxu0
        %v830 = vadd.f32 0.0, %v829
        %v831 = vpop.f32.mrb[0].mxu0
        %v832 = vadd.f32 0.0, %v831
        %833 = vmatprep.mubr.f32.mxu0 %v550
        %834 = vmatmul.mubr.f32.gmra.mrb[0].mxu0 %v549
        %v835 = vpop.f32.mrb[0].mxu0
        %v836 = vadd.f32 0.0, %v835
        %v837 = vpop.f32.mrb[0].mxu0
        %v838 = vadd.f32 0.0, %v837
        %839 = vmatprep.mubr.f32.mxu0 %v552
        %840 = vmatmul.mubr.f32.gmra.mrb[0].mxu0 %v551
        %v841 = vpop.f32.mrb[0].mxu0
        %v842 = vadd.f32 0.0, %v841
        %v843 = vpop.f32.mrb[0].mxu0
        %v844 = vadd.f32 0.0, %v843
        %845 = vmatprep.mubr.f32.mxu0 %v554
        %846 = vmatmul.mubr.f32.gmra.mrb[0].mxu0 %v553
        %v847 = vpop.f32.mrb[0].mxu0
        %v848 = vadd.f32 0.0, %v847
        %v849 = vpop.f32.mrb[0].mxu0
        %v850 = vadd.f32 0.0, %v849
        %851 = vmatprep.mubr.f32.mxu0 %v556
        %852 = vmatmul.mubr.f32.gmra.mrb[0].mxu0 %v555
        %v853 = vpop.f32.mrb[0].mxu0
        %v854 = vadd.f32 0.0, %v853
        %v855 = vpop.f32.mrb[0].mxu0
        %v856 = vadd.f32 0.0, %v855
        %857 = vmatprep.mubr.f32.mxu0 %v558
        %858 = vmatmul.mubr.f32.gmra.mrb[0].mxu0 %v557
        %v859 = vpop.f32.mrb[0].mxu0
        %v860 = vadd.f32 0.0, %v859
        %v861 = vpop.f32.mrb[0].mxu0
        %v862 = vadd.f32 0.0, %v861
        %863 = vmatprep.mubr.f32.mxu0 %v560
        %864 = vmatmul.mubr.f32.gmra.mrb[0].mxu0 %v559
        %v865 = vpop.f32.mrb[0].mxu0
        %v866 = vadd.f32 0.0, %v865
        %v867 = vpop.f32.mrb[0].mxu0
        %v868 = vadd.f32 0.0, %v867
        %869 = vmatprep.mubr.f32.mxu0 %v562
        %870 = vmatmul.mubr.f32.gmra.mrb[0].mxu0 %v561
        %v871 = vpop.f32.mrb[0].mxu0
        %v872 = vadd.f32 0.0, %v871
        %v873 = vpop.f32.mrb[0].mxu0
        %v874 = vadd.f32 0.0, %v873
        %875 = vmatprep.mubr.f32.mxu0 %v564
        %876 = vmatmul.mubr.f32.gmra.mrb[0].mxu0 %v563
        %v877 = vpop.f32.mrb[0].mxu0
        %v878 = vadd.f32 0.0, %v877
        %v879 = vpop.f32.mrb[0].mxu0
        %v880 = vadd.f32 0.0, %v879
        %881 = vmatprep.mubr.f32.mxu0 %v566
        %882 = vmatmul.mubr.f32.gmra.mrb[0].mxu0 %v565
        %v883 = vpop.f32.mrb[0].mxu0
        %v884 = vadd.f32 0.0, %v883
        %v885 = vpop.f32.mrb[0].mxu0
        %v886 = vadd.f32 0.0, %v885
        %887 = vdwg.mxu0
        %v888 = vadd.f32 %v439, %v698
        %v889 = vadd.f32 %v440, %v700
        %v890 = vadd.f32 %v441, %v704
        %v891 = vadd.f32 %v442, %v706
        %v892 = vadd.f32 %v443, %v710
        %v893 = vadd.f32 %v444, %v712
        %v894 = vadd.f32 %v445, %v716
        %v895 = vadd.f32 %v446, %v718
        %v896 = vadd.f32 %v447, %v722
        %v897 = vadd.f32 %v448, %v724
        %v898 = vadd.f32 %v449, %v728
        %v899 = vadd.f32 %v450, %v730
        %v900 = vadd.f32 %v451, %v734
        %v901 = vadd.f32 %v452, %v736
        %v902 = vadd.f32 %v453, %v740
        %v903 = vadd.f32 %v454, %v742
        %v904 = vadd.f32 %v455, %v746
        %v905 = vadd.f32 %v456, %v748
        %v906 = vadd.f32 %v457, %v752
        %v907 = vadd.f32 %v458, %v754
        %v908 = vadd.f32 %v459, %v758
        %v909 = vadd.f32 %v460, %v760
        %v910 = vadd.f32 %v461, %v764
        %v911 = vadd.f32 %v462, %v766
        %v912 = vadd.f32 %v463, %v770
        %v913 = vadd.f32 %v464, %v772
        %v914 = vadd.f32 %v465, %v776
        %v915 = vadd.f32 %v466, %v778
        %v916 = vadd.f32 %v467, %v782
        %v917 = vadd.f32 %v468, %v784
        %v918 = vadd.f32 %v469, %v788
        %v919 = vadd.f32 %v470, %v790
        %v920 = vadd.f32 %v471, %v794
        %v921 = vadd.f32 %v472, %v796
        %v922 = vadd.f32 %v473, %v800
        %v923 = vadd.f32 %v474, %v802
        %v924 = vadd.f32 %v475, %v806
        %v925 = vadd.f32 %v476, %v808
        %v926 = vadd.f32 %v477, %v812
        %v927 = vadd.f32 %v478, %v814
        %v928 = vadd.f32 %v479, %v818
        %v929 = vadd.f32 %v480, %v820
        %v930 = vadd.f32 %v481, %v824
        %v931 = vadd.f32 %v482, %v826
        %v932 = vadd.f32 %v483, %v830
        %v933 = vadd.f32 %v484, %v832
        %v934 = vadd.f32 %v485, %v836
        %v935 = vadd.f32 %v486, %v838
        %v936 = vadd.f32 %v487, %v842
        %v937 = vadd.f32 %v488, %v844
        %v938 = vadd.f32 %v489, %v848
        %v939 = vadd.f32 %v490, %v850
        %v940 = vadd.f32 %v491, %v854
        %v941 = vadd.f32 %v492, %v856
        %v942 = vadd.f32 %v493, %v860
        %v943 = vadd.f32 %v494, %v862
        %v944 = vadd.f32 %v495, %v866
        %v945 = vadd.f32 %v496, %v868
        %v946 = vadd.f32 %v497, %v872
        %v947 = vadd.f32 %v498, %v874
        %v948 = vadd.f32 %v499, %v878
        %v949 = vadd.f32 %v500, %v880
        %v950 = vadd.f32 %v501, %v884
        %v951 = vadd.f32 %v502, %v886
        %952 = vst [vmem:[#allocation2] sm:$0xff] %v888
        %953 = vst [vmem:[#allocation2 + $0x8] sm:$0xff] %v889
        %954 = vst [vmem:[#allocation2 + $0x10] sm:$0xff] %v890
        %955 = vst [vmem:[#allocation2 + $0x18] sm:$0xff] %v891
        %956 = vst [vmem:[#allocation2 + $0x20] sm:$0xff] %v892
        %957 = vst [vmem:[#allocation2 + $0x28] sm:$0xff] %v893
        %958 = vst [vmem:[#allocation2 + $0x30] sm:$0xff] %v894
        %959 = vst [vmem:[#allocation2 + $0x38] sm:$0xff] %v895
        %960 = vst [vmem:[#allocation2 + $0x40] sm:$0xff] %v896
        %961 = vst [vmem:[#allocation2 + $0x48] sm:$0xff] %v897
        %962 = vst [vmem:[#allocation2 + $0x50] sm:$0xff] %v898
        %963 = vst [vmem:[#allocation2 + $0x58] sm:$0xff] %v899
        %964 = vst [vmem:[#allocation2 + $0x60] sm:$0xff] %v900
        %965 = vst [vmem:[#allocation2 + $0x68] sm:$0xff] %v901
        %966 = vst [vmem:[#allocation2 + $0x70] sm:$0xff] %v902
        %967 = vst [vmem:[#allocation2 + $0x78] sm:$0xff] %v903
        %968 = vst [vmem:[#allocation2 + $0x80] sm:$0xff] %v904
        %969 = vst [vmem:[#allocation2 + $0x88] sm:$0xff] %v905
        %970 = vst [vmem:[#allocation2 + $0x90] sm:$0xff] %v906
        %971 = vst [vmem:[#allocation2 + $0x98] sm:$0xff] %v907
        %972 = vst [vmem:[#allocation2 + $0xa0] sm:$0xff] %v908
        %973 = vst [vmem:[#allocation2 + $0xa8] sm:$0xff] %v909
        %974 = vst [vmem:[#allocation2 + $0xb0] sm:$0xff] %v910
        %975 = vst [vmem:[#allocation2 + $0xb8] sm:$0xff] %v911
        %976 = vst [vmem:[#allocation2 + $0xc0] sm:$0xff] %v912
        %977 = vst [vmem:[#allocation2 + $0xc8] sm:$0xff] %v913
        %978 = vst [vmem:[#allocation2 + $0xd0] sm:$0xff] %v914
        %979 = vst [vmem:[#allocation2 + $0xd8] sm:$0xff] %v915
        %980 = vst [vmem:[#allocation2 + $0xe0] sm:$0xff] %v916
        %981 = vst [vmem:[#allocation2 + $0xe8] sm:$0xff] %v917
        %982 = vst [vmem:[#allocation2 + $0xf0] sm:$0xff] %v918
        %983 = vst [vmem:[#allocation2 + $0xf8] sm:$0xff] %v919
        %984 = vst [vmem:[#allocation2 + $0x100] sm:$0xff] %v920
        %985 = vst [vmem:[#allocation2 + $0x108] sm:$0xff] %v921
        %986 = vst [vmem:[#allocation2 + $0x110] sm:$0xff] %v922
        %987 = vst [vmem:[#allocation2 + $0x118] sm:$0xff] %v923
        %988 = vst [vmem:[#allocation2 + $0x120] sm:$0xff] %v924
        %989 = vst [vmem:[#allocation2 + $0x128] sm:$0xff] %v925
        %990 = vst [vmem:[#allocation2 + $0x130] sm:$0xff] %v926
        %991 = vst [vmem:[#allocation2 + $0x138] sm:$0xff] %v927
        %992 = vst [vmem:[#allocation2 + $0x140] sm:$0xff] %v928
        %993 = vst [vmem:[#allocation2 + $0x148] sm:$0xff] %v929
        %994 = vst [vmem:[#allocation2 + $0x150] sm:$0xff] %v930
        %995 = vst [vmem:[#allocation2 + $0x158] sm:$0xff] %v931
        %996 = vst [vmem:[#allocation2 + $0x160] sm:$0xff] %v932
        %997 = vst [vmem:[#allocation2 + $0x168] sm:$0xff] %v933
        %998 = vst [vmem:[#allocation2 + $0x170] sm:$0xff] %v934
        %999 = vst [vmem:[#allocation2 + $0x178] sm:$0xff] %v935
        %1000 = vst [vmem:[#allocation2 + $0x180] sm:$0xff] %v936
        %1001 = vst [vmem:[#allocation2 + $0x188] sm:$0xff] %v937
        %1002 = vst [vmem:[#allocation2 + $0x190] sm:$0xff] %v938
        %1003 = vst [vmem:[#allocation2 + $0x198] sm:$0xff] %v939
        %1004 = vst [vmem:[#allocation2 + $0x1a0] sm:$0xff] %v940
        %1005 = vst [vmem:[#allocation2 + $0x1a8] sm:$0xff] %v941
        %1006 = vst [vmem:[#allocation2 + $0x1b0] sm:$0xff] %v942
        %1007 = vst [vmem:[#allocation2 + $0x1b8] sm:$0xff] %v943
        %1008 = vst [vmem:[#allocation2 + $0x1c0] sm:$0xff] %v944
        %1009 = vst [vmem:[#allocation2 + $0x1c8] sm:$0xff] %v945
        %1010 = vst [vmem:[#allocation2 + $0x1d0] sm:$0xff] %v946
        %1011 = vst [vmem:[#allocation2 + $0x1d8] sm:$0xff] %v947
        %1012 = vst [vmem:[#allocation2 + $0x1e0] sm:$0xff] %v948
        %1013 = vst [vmem:[#allocation2 + $0x1e8] sm:$0xff] %v949
        %1014 = vst [vmem:[#allocation2 + $0x1f0] sm:$0xff] %v950
        %1015 = vst [vmem:[#allocation2 + $0x1f8] sm:$0xff] %v951
        %p1016 = scmp.eq.s32.totalorder %s20, 1
        // Predicated region
        $region56: #{encoder_overall_forward.20} parent=46 // pred_check
          %p1017 = pneg %p1016
        $region57: #{encoder_overall_forward.20} parent=46 // pred_check_branch
          %1019 = sbr.rel (%p1017) target = $region59
        $region58: #{encoder_overall_forward.20} parent=46 // pred_region
          %v1020 = vld [vmem:[#allocation2] sm:$0xff]
          %v1021 = vld [vmem:[#allocation2 + $0x8] sm:$0xff]
          %v1022 = vld [vmem:[#allocation2 + $0x10] sm:$0xff]
          %v1023 = vld [vmem:[#allocation2 + $0x18] sm:$0xff]
          %v1024 = vld [vmem:[#allocation2 + $0x20] sm:$0xff]
          %v1025 = vld [vmem:[#allocation2 + $0x28] sm:$0xff]
          %v1026 = vld [vmem:[#allocation2 + $0x30] sm:$0xff]
          %v1027 = vld [vmem:[#allocation2 + $0x38] sm:$0xff]
          %v1028 = vld [vmem:[#allocation2 + $0x40] sm:$0xff]
          %v1029 = vld [vmem:[#allocation2 + $0x48] sm:$0xff]
          %v1030 = vld [vmem:[#allocation2 + $0x50] sm:$0xff]
          %v1031 = vld [vmem:[#allocation2 + $0x58] sm:$0xff]
          %v1032 = vld [vmem:[#allocation2 + $0x60] sm:$0xff]
          %v1033 = vld [vmem:[#allocation2 + $0x68] sm:$0xff]
          %v1034 = vld [vmem:[#allocation2 + $0x70] sm:$0xff]
          %v1035 = vld [vmem:[#allocation2 + $0x78] sm:$0xff]
          %v1036 = vld [vmem:[#allocation2 + $0x80] sm:$0xff]
          %v1037 = vld [vmem:[#allocation2 + $0x88] sm:$0xff]
          %v1038 = vld [vmem:[#allocation2 + $0x90] sm:$0xff]
          %v1039 = vld [vmem:[#allocation2 + $0x98] sm:$0xff]
          %v1040 = vld [vmem:[#allocation2 + $0xa0] sm:$0xff]
          %v1041 = vld [vmem:[#allocation2 + $0xa8] sm:$0xff]
          %v1042 = vld [vmem:[#allocation2 + $0xb0] sm:$0xff]
          %v1043 = vld [vmem:[#allocation2 + $0xb8] sm:$0xff]
          %v1044 = vld [vmem:[#allocation2 + $0xc0] sm:$0xff]
          %v1045 = vld [vmem:[#allocation2 + $0xc8] sm:$0xff]
          %v1046 = vld [vmem:[#allocation2 + $0xd0] sm:$0xff]
          %v1047 = vld [vmem:[#allocation2 + $0xd8] sm:$0xff]
          %v1048 = vld [vmem:[#allocation2 + $0xe0] sm:$0xff]
          %v1049 = vld [vmem:[#allocation2 + $0xe8] sm:$0xff]
          %v1050 = vld [vmem:[#allocation2 + $0xf0] sm:$0xff]
          %v1051 = vld [vmem:[#allocation2 + $0xf8] sm:$0xff]
          %v1052 = vld [vmem:[#allocation2 + $0x100] sm:$0xff]
          %v1053 = vld [vmem:[#allocation2 + $0x108] sm:$0xff]
          %v1054 = vld [vmem:[#allocation2 + $0x110] sm:$0xff]
          %v1055 = vld [vmem:[#allocation2 + $0x118] sm:$0xff]
          %v1056 = vld [vmem:[#allocation2 + $0x120] sm:$0xff]
          %v1057 = vld [vmem:[#allocation2 + $0x128] sm:$0xff]
          %v1058 = vld [vmem:[#allocation2 + $0x130] sm:$0xff]
          %v1059 = vld [vmem:[#allocation2 + $0x138] sm:$0xff]
          %v1060 = vld [vmem:[#allocation2 + $0x140] sm:$0xff]
          %v1061 = vld [vmem:[#allocation2 + $0x148] sm:$0xff]
          %v1062 = vld [vmem:[#allocation2 + $0x150] sm:$0xff]
          %v1063 = vld [vmem:[#allocation2 + $0x158] sm:$0xff]
          %v1064 = vld [vmem:[#allocation2 + $0x160] sm:$0xff]
          %v1065 = vld [vmem:[#allocation2 + $0x168] sm:$0xff]
          %v1066 = vld [vmem:[#allocation2 + $0x170] sm:$0xff]
          %v1067 = vld [vmem:[#allocation2 + $0x178] sm:$0xff]
          %v1068 = vld [vmem:[#allocation2 + $0x180] sm:$0xff]
          %v1069 = vld [vmem:[#allocation2 + $0x188] sm:$0xff]
          %v1070 = vld [vmem:[#allocation2 + $0x190] sm:$0xff]
          %v1071 = vld [vmem:[#allocation2 + $0x198] sm:$0xff]
          %v1072 = vld [vmem:[#allocation2 + $0x1a0] sm:$0xff]
          %v1073 = vld [vmem:[#allocation2 + $0x1a8] sm:$0xff]
          %v1074 = vld [vmem:[#allocation2 + $0x1b0] sm:$0xff]
          %v1075 = vld [vmem:[#allocation2 + $0x1b8] sm:$0xff]
          %v1076 = vld [vmem:[#allocation2 + $0x1c0] sm:$0xff]
          %v1077 = vld [vmem:[#allocation2 + $0x1c8] sm:$0xff]
          %v1078 = vld [vmem:[#allocation2 + $0x1d0] sm:$0xff]
          %v1079 = vld [vmem:[#allocation2 + $0x1d8] sm:$0xff]
          %v1080 = vld [vmem:[#allocation2 + $0x1e0] sm:$0xff]
          %v1081 = vld [vmem:[#allocation2 + $0x1e8] sm:$0xff]
          %v1082 = vld [vmem:[#allocation2 + $0x1f0] sm:$0xff]
          %v1083 = vld [vmem:[#allocation2 + $0x1f8] sm:$0xff]
          %1084 = vst [vmem:[%s368] sm:$0xff] %v1020
          %1085 = vst [vmem:[%s368 + $0x8] sm:$0xff] %v1021
          %1086 = vst [vmem:[%s368 + $0x10] sm:$0xff] %v1022
          %1087 = vst [vmem:[%s368 + $0x18] sm:$0xff] %v1023
          %1088 = vst [vmem:[%s368 + $0x20] sm:$0xff] %v1024
          %1089 = vst [vmem:[%s368 + $0x28] sm:$0xff] %v1025
          %1090 = vst [vmem:[%s368 + $0x30] sm:$0xff] %v1026
          %1091 = vst [vmem:[%s368 + $0x38] sm:$0xff] %v1027
          %1092 = vst [vmem:[%s368 + $0x40] sm:$0xff] %v1028
          %1093 = vst [vmem:[%s368 + $0x48] sm:$0xff] %v1029
          %1094 = vst [vmem:[%s368 + $0x50] sm:$0xff] %v1030
          %1095 = vst [vmem:[%s368 + $0x58] sm:$0xff] %v1031
          %1096 = vst [vmem:[%s368 + $0x60] sm:$0xff] %v1032
          %1097 = vst [vmem:[%s368 + $0x68] sm:$0xff] %v1033
          %1098 = vst [vmem:[%s368 + $0x70] sm:$0xff] %v1034
          %1099 = vst [vmem:[%s368 + $0x78] sm:$0xff] %v1035
          %1100 = vst [vmem:[%s368 + $0x80] sm:$0xff] %v1036
          %1101 = vst [vmem:[%s368 + $0x88] sm:$0xff] %v1037
          %1102 = vst [vmem:[%s368 + $0x90] sm:$0xff] %v1038
          %1103 = vst [vmem:[%s368 + $0x98] sm:$0xff] %v1039
          %1104 = vst [vmem:[%s368 + $0xa0] sm:$0xff] %v1040
          %1105 = vst [vmem:[%s368 + $0xa8] sm:$0xff] %v1041
          %1106 = vst [vmem:[%s368 + $0xb0] sm:$0xff] %v1042
          %1107 = vst [vmem:[%s368 + $0xb8] sm:$0xff] %v1043
          %1108 = vst [vmem:[%s368 + $0xc0] sm:$0xff] %v1044
          %1109 = vst [vmem:[%s368 + $0xc8] sm:$0xff] %v1045
          %1110 = vst [vmem:[%s368 + $0xd0] sm:$0xff] %v1046
          %1111 = vst [vmem:[%s368 + $0xd8] sm:$0xff] %v1047
          %1112 = vst [vmem:[%s368 + $0xe0] sm:$0xff] %v1048
          %1113 = vst [vmem:[%s368 + $0xe8] sm:$0xff] %v1049
          %1114 = vst [vmem:[%s368 + $0xf0] sm:$0xff] %v1050
          %1115 = vst [vmem:[%s368 + $0xf8] sm:$0xff] %v1051
          %1116 = vst [vmem:[%s368 + $0x100] sm:$0xff] %v1052
          %1117 = vst [vmem:[%s368 + $0x108] sm:$0xff] %v1053
          %1118 = vst [vmem:[%s368 + $0x110] sm:$0xff] %v1054
          %1119 = vst [vmem:[%s368 + $0x118] sm:$0xff] %v1055
          %1120 = vst [vmem:[%s368 + $0x120] sm:$0xff] %v1056
          %1121 = vst [vmem:[%s368 + $0x128] sm:$0xff] %v1057
          %1122 = vst [vmem:[%s368 + $0x130] sm:$0xff] %v1058
          %1123 = vst [vmem:[%s368 + $0x138] sm:$0xff] %v1059
          %1124 = vst [vmem:[%s368 + $0x140] sm:$0xff] %v1060
          %1125 = vst [vmem:[%s368 + $0x148] sm:$0xff] %v1061
          %1126 = vst [vmem:[%s368 + $0x150] sm:$0xff] %v1062
          %1127 = vst [vmem:[%s368 + $0x158] sm:$0xff] %v1063
          %1128 = vst [vmem:[%s368 + $0x160] sm:$0xff] %v1064
          %1129 = vst [vmem:[%s368 + $0x168] sm:$0xff] %v1065
          %1130 = vst [vmem:[%s368 + $0x170] sm:$0xff] %v1066
          %1131 = vst [vmem:[%s368 + $0x178] sm:$0xff] %v1067
          %1132 = vst [vmem:[%s368 + $0x180] sm:$0xff] %v1068
          %1133 = vst [vmem:[%s368 + $0x188] sm:$0xff] %v1069
          %1134 = vst [vmem:[%s368 + $0x190] sm:$0xff] %v1070
          %1135 = vst [vmem:[%s368 + $0x198] sm:$0xff] %v1071
          %1136 = vst [vmem:[%s368 + $0x1a0] sm:$0xff] %v1072
          %1137 = vst [vmem:[%s368 + $0x1a8] sm:$0xff] %v1073
          %1138 = vst [vmem:[%s368 + $0x1b0] sm:$0xff] %v1074
          %1139 = vst [vmem:[%s368 + $0x1b8] sm:$0xff] %v1075
          %1140 = vst [vmem:[%s368 + $0x1c0] sm:$0xff] %v1076
          %1141 = vst [vmem:[%s368 + $0x1c8] sm:$0xff] %v1077
          %1142 = vst [vmem:[%s368 + $0x1d0] sm:$0xff] %v1078
          %1143 = vst [vmem:[%s368 + $0x1d8] sm:$0xff] %v1079
          %1144 = vst [vmem:[%s368 + $0x1e0] sm:$0xff] %v1080
          %1145 = vst [vmem:[%s368 + $0x1e8] sm:$0xff] %v1081
          %1146 = vst [vmem:[%s368 + $0x1f0] sm:$0xff] %v1082
          %1147 = vst [vmem:[%s368 + $0x1f8] sm:$0xff] %v1083
        $region59: #{encoder_overall_forward.20} parent=46 // pred_fallthru
          _
        %s1148 = smul.u32 32, %s18
        %s1149 = smul.u32 2, %s19
        %p1150 = scmp.lt.s32.totalorder %s1148, 63
        %s1151 = scalar_select %p1150, %s1148, 63
        %p1152 = scmp.lt.s32.totalorder %s1149, 1
        %s1153 = scalar_select %p1152, %s1149, 1
        %s1154 = smul.addr %s1151, 2
        %s1155 = sadd.s32 %s1153, %s1154
        %s1156 = smul.addr %s1155, 8
        %s1157 = scalar_lea.vmem %s2, %s1156
        // Predicated region
        $region60: #{encoder_overall_forward.20} parent=46 // pred_check
          %p1158 = pneg %p108
        $region61: #{encoder_overall_forward.20} parent=46 // pred_check_branch
          %1160 = sbr.rel (%p1158) target = $region63
        $region62: #{encoder_overall_forward.20} parent=46 // pred_region
          %s1161 = smul.u32 32, %s18
          %s1162 = smul.u32 2, %s19
        $region63: #{encoder_overall_forward.20} parent=46 // pred_fallthru
          _
      $region47: #{encoder_overall_forward.20} parent=5 // pred_fallthru
        _
      %p1163 = scmp.le.s32.totalorder 2, %s8
      // Predicated region
      $region64: #{encoder_overall_forward.20} parent=5 // pred_check
        %p1164 = pneg %p1163
      $region65: #{encoder_overall_forward.20} parent=5 // pred_check_branch
        %1166 = sbr.rel (%p1164) target = $region67
      $region66: #{encoder_overall_forward.20} parent=5 // pred_region
        %s1167 = ssub.s32 %s8, 2
        // Predicated region
        $region68: #{encoder_overall_forward.20} parent=66 // pred_check
          %p1168 = pneg %p114
        $region69: #{encoder_overall_forward.20} parent=66 // pred_check_branch
          %1170 = sbr.rel (%p1168) target = $region71
        $region70: #{encoder_overall_forward.20} parent=66 // pred_region
          %s1171 = smul.u32 32, %s21
          %s1172 = smul.u32 2, %s22
          %p1173 = scmp.lt.s32.totalorder %s1171, 63
          %s1174 = scalar_select %p1173, %s1171, 63
          %p1175 = scmp.lt.s32.totalorder %s1172, 1
          %s1176 = scalar_select %p1175, %s1172, 1
          %s1177 = smul.addr %s1174, 2
          %s1178 = sadd.s32 %s1176, %s1177
          %s1179 = smul.addr %s1178, 8
          %s1180 = scalar_lea.vmem %s2, %s1179
        $region71: #{encoder_overall_forward.20} parent=66 // pred_fallthru
          _
      $region67: #{encoder_overall_forward.20} parent=5 // pred_fallthru
        _
    $region6: #{encoder_overall_forward.20} parent=1 // loop_footer
      %s12 = sadd.s32 1, %s8
    $region7: #{encoder_overall_forward.20} parent=1 // loop_footer_branch
      %7 = sbr.rel target = $region3
    $region8: #{encoder_overall_forward.20} parent=1 // loop_exit
      _

</llo_original>
